<compile_context>
chip_gen: v6e
topology: v6e:2x2x1
jax: 0.10.0
libtpu: 0.0.40
codegen_flags: <defaults>
</compile_context>

<pallas_src>
import functools

import jax
import jax.numpy as jnp
from jax import lax
from jax.experimental import pallas as pl
from jax.experimental.pallas import tpu as pltpu


_VMEM_SPEC = pl.BlockSpec(memory_space=pltpu.MemorySpace.VMEM)
_LANE = 128  # TPU lane width; each gate block is padded to a multiple of this.


# ----------------------------------------------------------------------------
# Fused BiLSTM + FC kernel
# ----------------------------------------------------------------------------
def _lstm_cell(gates, c_prev, HP):
    """Gate columns are pre-ordered and lane-padded: [i | f | o | g], each HP wide."""
    sg = jax.nn.sigmoid(gates[:, : 3 * HP])      # one EUP slab; vreg-aligned slices
    i_g = sg[:, :HP]
    f_g = sg[:, HP:2 * HP]
    o_g = sg[:, 2 * HP:3 * HP]
    g_g = jnp.tanh(gates[:, 3 * HP:])
    c_new = f_g * c_prev + i_g * g_g
    h_new = o_g * jnp.tanh(c_new)
    return h_new, c_new


def _bilstm_kernel(*refs, num_layers, hidden, hidden_pad, batch, seqlen):
    """Fused multi-layer bidirectional LSTM + final Linear.

    Ref order (all VMEM, whole-array):
      x_ref                     (T*Bp, F)        bf16, time-major, batch-padded
      per layer: wih (D, 8*HP) bf16, whh_bd (2H, 8*HP) bf16, b (1, 8*HP) f32
      fc_w (2H, C) f32, fc_b (1, C) f32
      out_ref                   (Bp, C) f32
      scratch: gx (T*Bp, 8*HP) f32, act_f (T*Bp, H) f32, act_r (T*Bp, H) f32
    """
    H, HP, Bp, T = hidden, hidden_pad, batch, seqlen
    G = 4 * HP                          # per-direction (padded) gate width
    nw = 3 * num_layers

    x_ref = refs[0]
    w_refs = refs[1:1 + nw]
    fcw_ref = refs[1 + nw]
    fcb_ref = refs[2 + nw]
    out_ref = refs[3 + nw]
    gx_ref = refs[4 + nw]
    actf_ref = refs[5 + nw]
    actr_ref = refs[6 + nw]

    for layer in range(num_layers):
        # Hoist weight / bias loads out of the time loop.
        wih = w_refs[3 * layer + 0][...]      # (D, 8*HP)  bf16 [dirF | dirR]
        whh = w_refs[3 * layer + 1][...]      # (2H, 8*HP) bf16 block-diag by dir
        b = w_refs[3 * layer + 2][...]        # (1, 8*HP)  f32

        # ---- Input projection for ALL timesteps / BOTH directions: one matmul.
        if layer == 0:
            inp = x_ref[...]                                       # (T*Bp, F) bf16
        else:
            inp = jnp.concatenate(
                [actf_ref[...], actr_ref[...]], axis=1).astype(jnp.bfloat16)
        gx_ref[...] = jnp.dot(inp, wih, preferred_element_type=jnp.float32) + b

        # ---- Serial recurrence: fwd & rev chains share ONE matmul per step.
        def step(t, carry, whh=whh):
            h_f, h_r, c_f, c_r = carry
            rf = pl.multiple_of(t * Bp, Bp)               # forward row block
            rr = pl.multiple_of((T - 1 - t) * Bp, Bp)     # reverse row block
            hc = jnp.concatenate([h_f, h_r], axis=1).astype(jnp.bfloat16)
            gh = jnp.dot(hc, whh, preferred_element_type=jnp.float32)  # (Bp,8HP)
            g_f = gx_ref[pl.ds(rf, Bp), :G] + gh[:, :G]
            g_r = gx_ref[pl.ds(rr, Bp), G:] + gh[:, G:]
            hf_full, c_f = _lstm_cell(g_f, c_f, HP)
            hr_full, c_r = _lstm_cell(g_r, c_r, HP)
            h_f = hf_full[:, :H]          # padded lanes are exactly zero
            h_r = hr_full[:, :H]
            actf_ref[pl.ds(rf, Bp), :] = h_f
            actr_ref[pl.ds(rr, Bp), :] = h_r
            return (h_f, h_r, c_f, c_r)

        zh = jnp.zeros((Bp, H), jnp.float32)
        zc = jnp.zeros((Bp, HP), jnp.float32)
        lax.fori_loop(0, T, step, (zh, zh, zc, zc), unroll=min(T, 8))

    # ---- Final Linear on the last timestep's [fwd | rev] hidden state.
    last = jnp.concatenate(
        [actf_ref[pl.ds((T - 1) * Bp, Bp), :],
         actr_ref[pl.ds((T - 1) * Bp, Bp), :]], axis=1)            # (Bp, 2H) f32
    out_ref[...] = (jnp.dot(last, fcw_ref[...],
                            preferred_element_type=jnp.float32) + fcb_ref[...])


# ----------------------------------------------------------------------------
# Parameters: PyTorch-shaped raw params + kernel-layout preparation
# ----------------------------------------------------------------------------
def init_params(key, input_size, hidden_size, num_layers, num_classes):
    """Raw parameters with nn.LSTM / nn.Linear shapes and init ranges."""
    H = hidden_size
    k = 1.0 / jnp.sqrt(jnp.float32(H))
    layers = []
    for layer in range(num_layers):
        d_in = input_size if layer == 0 else 2 * H
        dirs = []
        for _ in range(2):  # 0 = forward, 1 = reverse
            key, k1, k2, k3, k4 = jax.random.split(key, 5)
            dirs.append({
                "w_ih": jax.random.uniform(k1, (4 * H, d_in), jnp.float32, -k, k),
                "w_hh": jax.random.uniform(k2, (4 * H, H), jnp.float32, -k, k),
                "b_ih": jax.random.uniform(k3, (4 * H,), jnp.float32, -k, k),
                "b_hh": jax.random.uniform(k4, (4 * H,), jnp.float32, -k, k),
            })
        layers.append(dirs)
    key, k1, k2 = jax.random.split(key, 3)
    kf = 1.0 / jnp.sqrt(jnp.float32(2 * H))
    fc_w = jax.random.uniform(k1, (num_classes, 2 * H), jnp.float32, -kf, kf)
    fc_b = jax.random.uniform(k2, (num_classes,), jnp.float32, -kf, kf)
    return {"lstm": layers, "fc_w": fc_w, "fc_b": fc_b}


def _reorder_ifgo_to_ifog(w):
    """Reorder PyTorch gate blocks [i; f; g; o] -> [i; f; o; g] along axis 0."""
    H = w.shape[0] // 4
    return jnp.concatenate([w[:2 * H], w[3 * H:], w[2 * H:3 * H]], axis=0)


def prepare_kernel_params(raw, hidden_size):
    """Build fused / lane-padded / bf16 kernel weights from raw PyTorch params."""
    H = hidden_size
    HP = ((H + _LANE - 1) // _LANE) * _LANE   # per-gate lane-padded width

    def pad_gates(w):  # (rows, 4H) in [i|f|o|g] column order -> (rows, 4*HP)
        r = w.shape[0]
        w4 = w.reshape(r, 4, H)
        w4 = jnp.pad(w4, ((0, 0), (0, 0), (0, HP - H)))
        return w4.reshape(r, 4 * HP)

    layers = []
    for dirs in raw["lstm"]:
        wihs, whhs, bs = [], [], []
        for p in dirs:
            wih_t = jnp.transpose(_reorder_ifgo_to_ifog(p["w_ih"]))     # (D, 4H)
            whh_t = jnp.transpose(_reorder_ifgo_to_ifog(p["w_hh"]))     # (H, 4H)
            bias = _reorder_ifgo_to_ifog(p["b_ih"] + p["b_hh"]).reshape(1, 4 * H)
            wihs.append(pad_gates(wih_t))
            whhs.append(pad_gates(whh_t))
            bs.append(pad_gates(bias))
        wih_cat = jnp.concatenate(wihs, axis=1).astype(jnp.bfloat16)     # (D, 8HP)
        b_cat = jnp.concatenate(bs, axis=1)                              # (1, 8HP)
        zero = jnp.zeros((H, 4 * HP), jnp.float32)
        whh_bd = jnp.concatenate(
            [jnp.concatenate([whhs[0], zero], axis=1),
             jnp.concatenate([zero, whhs[1]], axis=1)],
            axis=0).astype(jnp.bfloat16)                                 # (2H, 8HP)
        layers.append({"wih": wih_cat, "whh": whh_bd, "b": b_cat})

    return {
        "lstm": layers,
        "fc_w": jnp.transpose(raw["fc_w"]).astype(jnp.float32),          # (2H, C)
        "fc_b": raw["fc_b"].reshape(1, -1).astype(jnp.float32),          # (1, C)
    }


# ----------------------------------------------------------------------------
# Forward pass (mirrors BiLSTM.forward)
# ----------------------------------------------------------------------------
@functools.partial(jax.jit, static_argnames=("num_layers",))
def bilstm_forward(x, kparams, *, num_layers):
    # x: (B, C, F, T) -> channel 0 -> time-major (T, B, F), one transpose total.
    B, _, F, T = x.shape
    whh0 = kparams["lstm"][0]["whh"]
    H = whh0.shape[0] // 2
    HP = whh0.shape[1] // 8
    C = kparams["fc_b"].shape[1]

    seq = jnp.transpose(x[:, 0, :, :], (2, 0, 1)).astype(jnp.float32)  # (T, B, F)

    # Pad batch to the f32 sublane height and flatten time-major so every
    # per-timestep row block inside the kernel is a sublane-aligned slice.
    Bp = max(8, ((B + 7) // 8) * 8)
    seq = jnp.pad(seq, ((0, 0), (0, Bp - B), (0, 0)))
    x_flat = seq.reshape(T * Bp, F).astype(jnp.bfloat16)    # bf16 MXU operand

    flat_w = []
    for lp in kparams["lstm"]:
        flat_w += [lp["wih"], lp["whh"], lp["b"]]
    args = [x_flat] + flat_w + [kparams["fc_w"], kparams["fc_b"]]

    scratch_shapes = [
        pltpu.VMEM((T * Bp, 8 * HP), jnp.float32),   # gx: hoisted input projection
        pltpu.VMEM((T * Bp, H), jnp.float32),        # act_f (fwd hidden per t)
        pltpu.VMEM((T * Bp, H), jnp.float32),        # act_r (rev hidden per t)
    ]

    # Explicit scoped-VMEM budget sized from actual footprint (+25% headroom).
    vmem_needed = (sum(int(a.size) * a.dtype.itemsize for a in args)
                   + Bp * C * 4
                   + T * Bp * (8 * HP + 2 * H) * 4)
    vmem_limit = int(min(128 * 2 ** 20, max(32 * 2 ** 20, vmem_needed * 5 // 4)))

    kernel = functools.partial(
        _bilstm_kernel, num_layers=num_layers, hidden=H, hidden_pad=HP,
        batch=Bp, seqlen=T)

    out_p = pl.pallas_call(
        kernel,
        out_shape=jax.ShapeDtypeStruct((Bp, C), jnp.float32),
        in_specs=[_VMEM_SPEC] * len(args),
        out_specs=_VMEM_SPEC,
        scratch_shapes=scratch_shapes,
        compiler_params=pltpu.CompilerParams(vmem_limit_bytes=vmem_limit),
    )(*args)

    # NOTE: self.dropout is defined in __init__ but never applied in forward.
    return out_p[:B]


# ----------------------------------------------------------------------------
# Pure-JAX reference (PyTorch gate order / layout) for correctness check
# ----------------------------------------------------------------------------
def _ref_lstm_seq(x_tm, w_ih, w_hh, b_ih, b_hh):
    H = w_hh.shape[1]
    B = x_tm.shape[1]
    wih_t, whh_t = w_ih.T, w_hh.T
    b = (b_ih + b_hh)[None, :]

    def step(carry, x_t):
        h, c = carry
        gates = x_t @ wih_t + h @ whh_t + b
        i_g = jax.nn.sigmoid(gates[:, :H])
        f_g = jax.nn.sigmoid(gates[:, H:2 * H])
        g_g = jnp.tanh(gates[:, 2 * H:3 * H])
        o_g = jax.nn.sigmoid(gates[:, 3 * H:])
        c = f_g * c + i_g * g_g
        h = o_g * jnp.tanh(c)
        return (h, c), h

    init = (jnp.zeros((B, H), jnp.float32), jnp.zeros((B, H), jnp.float32))
    _, hs = lax.scan(step, init, x_tm)
    return hs


def bilstm_forward_ref(x, raw, *, num_layers):
    seq = jnp.transpose(x[:, 0, :, :], (0, 2, 1)).astype(jnp.float32)  # (B, T, F)
    layer_in = seq
    for layer in range(num_layers):
        outs = []
        for d in range(2):
            p = raw["lstm"][layer][d]
            inp = layer_in if d == 0 else jnp.flip(layer_in, axis=1)
            out_tm = _ref_lstm_seq(jnp.transpose(inp, (1, 0, 2)),
                                   p["w_ih"], p["w_hh"], p["b_ih"], p["b_hh"])
            out = jnp.transpose(out_tm, (1, 0, 2))
            if d == 1:
                out = jnp.flip(out, axis=1)
            outs.append(out)
        layer_in = jnp.concatenate(outs, axis=-1)
    return layer_in[:, -1, :] @ raw["fc_w"].T + raw["fc_b"][None, :]


# ----------------------------------------------------------------------------
if __name__ == "__main__":
    # x: (batch, channels, input_size, seq_len) — module takes channel 0 and
    # treats input_size=F as the feature dim, seq_len=T as the sequence.
    B, Cch, F, T = 2, 4, 16, 8
    hidden_size = 32
    num_layers = 2
    num_classes = 5

    key = jax.random.PRNGKey(0)
    key, xk, pk = jax.random.split(key, 3)
    x = jax.random.normal(xk, (B, Cch, F, T), dtype=jnp.float32)

    raw_params = init_params(pk, F, hidden_size, num_layers, num_classes)
    kparams = prepare_kernel_params(raw_params, hidden_size)

    out = bilstm_forward(x, kparams, num_layers=num_layers)
    out = jax.block_until_ready(out)

    ref = bilstm_forward_ref(x, raw_params, num_layers=num_layers)
    assert out.shape == (B, num_classes)
    # bf16 MXU operands (f32 accumulation / f32 state) => relaxed tolerance.
    assert jnp.allclose(out, ref, atol=5e-2, rtol=5e-2), "mismatch vs reference"

    print("KERNEL_OK")
</pallas_src>

<mosaic_0001>
module attributes {stable_mosaic.version = 11 : i64} {
  func.func @_bilstm_kernel(%arg0: memref<64x16xbf16, #tpu.memory_space<vmem>>, %arg1: memref<16x1024xbf16, #tpu.memory_space<vmem>>, %arg2: memref<64x1024xbf16, #tpu.memory_space<vmem>>, %arg3: memref<1x1024xf32, #tpu.memory_space<vmem>>, %arg4: memref<64x1024xbf16, #tpu.memory_space<vmem>>, %arg5: memref<64x1024xbf16, #tpu.memory_space<vmem>>, %arg6: memref<1x1024xf32, #tpu.memory_space<vmem>>, %arg7: memref<64x5xf32, #tpu.memory_space<vmem>>, %arg8: memref<1x5xf32, #tpu.memory_space<vmem>>, %arg9: memref<8x5xf32, #tpu.memory_space<vmem>>, %arg10: memref<64x1024xf32, #tpu.memory_space<vmem>>, %arg11: memref<64x32xf32, #tpu.memory_space<vmem>>, %arg12: memref<64x32xf32, #tpu.memory_space<vmem>>) attributes {dimension_semantics = [], scalar_prefetch = 0 : i64, scratch_operands = 3 : i64, tpu.core_type = #tpu.core_type<tc>} {
    %c0 = arith.constant 0 : index
    %c0_0 = arith.constant 0 : index
    %0 = vector.load %arg1[%c0, %c0_0] : memref<16x1024xbf16, #tpu.memory_space<vmem>>, vector<16x1024xbf16>
    %c0_1 = arith.constant 0 : index
    %c0_2 = arith.constant 0 : index
    %1 = vector.load %arg2[%c0_1, %c0_2] : memref<64x1024xbf16, #tpu.memory_space<vmem>>, vector<64x1024xbf16>
    %c0_3 = arith.constant 0 : index
    %c0_4 = arith.constant 0 : index
    %2 = vector.load %arg3[%c0_3, %c0_4] : memref<1x1024xf32, #tpu.memory_space<vmem>>, vector<1x1024xf32>
    %c0_5 = arith.constant 0 : index
    %c0_6 = arith.constant 0 : index
    %3 = vector.load %arg0[%c0_5, %c0_6] : memref<64x16xbf16, #tpu.memory_space<vmem>>, vector<64x16xbf16>
    %cst = arith.constant dense<0.000000e+00> : vector<64x1024xf32>
    %4 = tpu.matmul %3, %0, %cst {dimension_numbers = #tpu.dot_dimension_numbers<[1], [0], [0], [1], [0, 0, 1, 1], [], []>} : vector<64x16xbf16>, vector<16x1024xbf16>, vector<64x1024xf32> -> vector<64x1024xf32>
    %5 = vector.broadcast %2 : vector<1x1024xf32> to vector<64x1024xf32>
    %6 = arith.addf %4, %5 : vector<64x1024xf32>
    %c0_7 = arith.constant 0 : index
    %c0_8 = arith.constant 0 : index
    %7 = vector.load %arg10[%c0_7, %c0_8] : memref<64x1024xf32, #tpu.memory_space<vmem>>, vector<64x1024xf32>
    tpu.vector_store %arg10[%c0_7, %c0_8], %6 {strides = array<i32>} : memref<64x1024xf32, #tpu.memory_space<vmem>>, vector<64x1024xf32>,
    %cst_9 = arith.constant 0.000000e+00 : f32
    %8 = vector.broadcast %cst_9 : f32 to vector<8x32xf32>
    %cst_10 = arith.constant 0.000000e+00 : f32
    %9 = vector.broadcast %cst_10 : f32 to vector<8x128xf32>
    %c0_i32 = arith.constant 0 : i32
    %c8_i32 = arith.constant 8 : i32
    %10 = arith.muli %c0_i32, %c8_i32 : i32
    %11 = tpu.assume_multiple %10, 8 : i32
    %c7_i32 = arith.constant 7 : i32
    %12 = arith.subi %c7_i32, %c0_i32 : i32
    %c8_i32_11 = arith.constant 8 : i32
    %13 = arith.muli %12, %c8_i32_11 : i32
    %14 = tpu.assume_multiple %13, 8 : i32
    %15 = tpu.concatenate %8, %8 in 1 : vector<8x32xf32>, vector<8x32xf32> -> vector<8x64xf32>
    %16 = arith.truncf %15 : vector<8x64xf32> to vector<8x64xbf16>
    %cst_12 = arith.constant dense<0.000000e+00> : vector<8x1024xf32>
    %17 = tpu.matmul %16, %1, %cst_12 {dimension_numbers = #tpu.dot_dimension_numbers<[1], [0], [0], [1], [0, 0, 1, 1], [], []>} : vector<8x64xbf16>, vector<64x1024xbf16>, vector<8x1024xf32> -> vector<8x1024xf32>
    %18 = arith.index_cast %11 : i32 to index
    %c0_13 = arith.constant 0 : index
    %19 = vector.load %arg10[%18, %c0_13] : memref<64x1024xf32, #tpu.memory_space<vmem>>, vector<8x512xf32>
    %20 = vector.extract_strided_slice %17 {offsets = [0, 0], sizes = [8, 512], strides = [1, 1]} : vector<8x1024xf32> to vector<8x512xf32>
    %21 = arith.addf %19, %20 : vector<8x512xf32>
    %22 = arith.index_cast %14 : i32 to index
    %c512 = arith.constant 512 : index
    %23 = vector.load %arg10[%22, %c512] : memref<64x1024xf32, #tpu.memory_space<vmem>>, vector<8x512xf32>
    %24 = vector.extract_strided_slice %17 {offsets = [0, 512], sizes = [8, 512], strides = [1, 1]} : vector<8x1024xf32> to vector<8x512xf32>
    %25 = arith.addf %23, %24 : vector<8x512xf32>
    %26 = vector.extract_strided_slice %21 {offsets = [0, 0], sizes = [8, 384], strides = [1, 1]} : vector<8x512xf32> to vector<8x384xf32>
    %27 = arith.negf %26 : vector<8x384xf32>
    %28 = math.exp %27 : vector<8x384xf32>
    %cst_14 = arith.constant 1.000000e+00 : f32
    %29 = vector.broadcast %cst_14 : f32 to vector<8x384xf32>
    %30 = arith.addf %29, %28 : vector<8x384xf32>
    %31 = arith.divf %29, %30 : vector<8x384xf32>
    %32 = vector.extract_strided_slice %31 {offsets = [0, 0], sizes = [8, 128], strides = [1, 1]} : vector<8x384xf32> to vector<8x128xf32>
    %33 = vector.extract_strided_slice %31 {offsets = [0, 128], sizes = [8, 128], strides = [1, 1]} : vector<8x384xf32> to vector<8x128xf32>
    %34 = vector.extract_strided_slice %31 {offsets = [0, 256], sizes = [8, 128], strides = [1, 1]} : vector<8x384xf32> to vector<8x128xf32>
    %35 = vector.extract_strided_slice %21 {offsets = [0, 384], sizes = [8, 128], strides = [1, 1]} : vector<8x512xf32> to vector<8x128xf32>
    %36 = math.tanh %35 : vector<8x128xf32>
    %37 = arith.mulf %33, %9 : vector<8x128xf32>
    %38 = arith.mulf %32, %36 : vector<8x128xf32>
    %39 = arith.addf %37, %38 : vector<8x128xf32>
    %40 = math.tanh %39 : vector<8x128xf32>
    %41 = arith.mulf %34, %40 : vector<8x128xf32>
    %42 = vector.extract_strided_slice %25 {offsets = [0, 0], sizes = [8, 384], strides = [1, 1]} : vector<8x512xf32> to vector<8x384xf32>
    %43 = arith.negf %42 : vector<8x384xf32>
    %44 = math.exp %43 : vector<8x384xf32>
    %cst_15 = arith.constant 1.000000e+00 : f32
    %45 = vector.broadcast %cst_15 : f32 to vector<8x384xf32>
    %46 = arith.addf %45, %44 : vector<8x384xf32>
    %47 = arith.divf %45, %46 : vector<8x384xf32>
    %48 = vector.extract_strided_slice %47 {offsets = [0, 0], sizes = [8, 128], strides = [1, 1]} : vector<8x384xf32> to vector<8x128xf32>
    %49 = vector.extract_strided_slice %47 {offsets = [0, 128], sizes = [8, 128], strides = [1, 1]} : vector<8x384xf32> to vector<8x128xf32>
    %50 = vector.extract_strided_slice %47 {offsets = [0, 256], sizes = [8, 128], strides = [1, 1]} : vector<8x384xf32> to vector<8x128xf32>
    %51 = vector.extract_strided_slice %25 {offsets = [0, 384], sizes = [8, 128], strides = [1, 1]} : vector<8x512xf32> to vector<8x128xf32>
    %52 = math.tanh %51 : vector<8x128xf32>
    %53 = arith.mulf %49, %9 : vector<8x128xf32>
    %54 = arith.mulf %48, %52 : vector<8x128xf32>
    %55 = arith.addf %53, %54 : vector<8x128xf32>
    %56 = math.tanh %55 : vector<8x128xf32>
    %57 = arith.mulf %50, %56 : vector<8x128xf32>
    %58 = vector.extract_strided_slice %41 {offsets = [0, 0], sizes = [8, 32], strides = [1, 1]} : vector<8x128xf32> to vector<8x32xf32>
    %59 = vector.extract_strided_slice %57 {offsets = [0, 0], sizes = [8, 32], strides = [1, 1]} : vector<8x128xf32> to vector<8x32xf32>
    %60 = arith.index_cast %11 : i32 to index
    %c0_16 = arith.constant 0 : index
    %61 = vector.load %arg11[%60, %c0_16] : memref<64x32xf32, #tpu.memory_space<vmem>>, vector<8x32xf32>
    tpu.vector_store %arg11[%60, %c0_16], %58 {strides = array<i32>} : memref<64x32xf32, #tpu.memory_space<vmem>>, vector<8x32xf32>,
    %62 = arith.index_cast %14 : i32 to index
    %c0_17 = arith.constant 0 : index
    %63 = vector.load %arg12[%62, %c0_17] : memref<64x32xf32, #tpu.memory_space<vmem>>, vector<8x32xf32>
    tpu.vector_store %arg12[%62, %c0_17], %59 {strides = array<i32>} : memref<64x32xf32, #tpu.memory_space<vmem>>, vector<8x32xf32>,
    %c1_i32 = arith.constant 1 : i32
    %c8_i32_18 = arith.constant 8 : i32
    %64 = arith.muli %c1_i32, %c8_i32_18 : i32
    %65 = tpu.assume_multiple %64, 8 : i32
    %c7_i32_19 = arith.constant 7 : i32
    %66 = arith.subi %c7_i32_19, %c1_i32 : i32
    %c8_i32_20 = arith.constant 8 : i32
    %67 = arith.muli %66, %c8_i32_20 : i32
    %68 = tpu.assume_multiple %67, 8 : i32
    %69 = tpu.concatenate %58, %59 in 1 : vector<8x32xf32>, vector<8x32xf32> -> vector<8x64xf32>
    %70 = arith.truncf %69 : vector<8x64xf32> to vector<8x64xbf16>
    %cst_21 = arith.constant dense<0.000000e+00> : vector<8x1024xf32>
    %71 = tpu.matmul %70, %1, %cst_21 {dimension_numbers = #tpu.dot_dimension_numbers<[1], [0], [0], [1], [0, 0, 1, 1], [], []>} : vector<8x64xbf16>, vector<64x1024xbf16>, vector<8x1024xf32> -> vector<8x1024xf32>
    %72 = arith.index_cast %65 : i32 to index
    %c0_22 = arith.constant 0 : index
    %73 = vector.load %arg10[%72, %c0_22] : memref<64x1024xf32, #tpu.memory_space<vmem>>, vector<8x512xf32>
    %74 = vector.extract_strided_slice %71 {offsets = [0, 0], sizes = [8, 512], strides = [1, 1]} : vector<8x1024xf32> to vector<8x512xf32>
    %75 = arith.addf %73, %74 : vector<8x512xf32>
    %76 = arith.index_cast %68 : i32 to index
    %c512_23 = arith.constant 512 : index
    %77 = vector.load %arg10[%76, %c512_23] : memref<64x1024xf32, #tpu.memory_space<vmem>>, vector<8x512xf32>
    %78 = vector.extract_strided_slice %71 {offsets = [0, 512], sizes = [8, 512], strides = [1, 1]} : vector<8x1024xf32> to vector<8x512xf32>
    %79 = arith.addf %77, %78 : vector<8x512xf32>
    %80 = vector.extract_strided_slice %75 {offsets = [0, 0], sizes = [8, 384], strides = [1, 1]} : vector<8x512xf32> to vector<8x384xf32>
    %81 = arith.negf %80 : vector<8x384xf32>
    %82 = math.exp %81 : vector<8x384xf32>
    %cst_24 = arith.constant 1.000000e+00 : f32
    %83 = vector.broadcast %cst_24 : f32 to vector<8x384xf32>
    %84 = arith.addf %83, %82 : vector<8x384xf32>
    %85 = arith.divf %83, %84 : vector<8x384xf32>
    %86 = vector.extract_strided_slice %85 {offsets = [0, 0], sizes = [8, 128], strides = [1, 1]} : vector<8x384xf32> to vector<8x128xf32>
    %87 = vector.extract_strided_slice %85 {offsets = [0, 128], sizes = [8, 128], strides = [1, 1]} : vector<8x384xf32> to vector<8x128xf32>
    %88 = vector.extract_strided_slice %85 {offsets = [0, 256], sizes = [8, 128], strides = [1, 1]} : vector<8x384xf32> to vector<8x128xf32>
    %89 = vector.extract_strided_slice %75 {offsets = [0, 384], sizes = [8, 128], strides = [1, 1]} : vector<8x512xf32> to vector<8x128xf32>
    %90 = math.tanh %89 : vector<8x128xf32>
    %91 = arith.mulf %87, %39 : vector<8x128xf32>
    %92 = arith.mulf %86, %90 : vector<8x128xf32>
    %93 = arith.addf %91, %92 : vector<8x128xf32>
    %94 = math.tanh %93 : vector<8x128xf32>
    %95 = arith.mulf %88, %94 : vector<8x128xf32>
    %96 = vector.extract_strided_slice %79 {offsets = [0, 0], sizes = [8, 384], strides = [1, 1]} : vector<8x512xf32> to vector<8x384xf32>
    %97 = arith.negf %96 : vector<8x384xf32>
    %98 = math.exp %97 : vector<8x384xf32>
    %cst_25 = arith.constant 1.000000e+00 : f32
    %99 = vector.broadcast %cst_25 : f32 to vector<8x384xf32>
    %100 = arith.addf %99, %98 : vector<8x384xf32>
    %101 = arith.divf %99, %100 : vector<8x384xf32>
    %102 = vector.extract_strided_slice %101 {offsets = [0, 0], sizes = [8, 128], strides = [1, 1]} : vector<8x384xf32> to vector<8x128xf32>
    %103 = vector.extract_strided_slice %101 {offsets = [0, 128], sizes = [8, 128], strides = [1, 1]} : vector<8x384xf32> to vector<8x128xf32>
    %104 = vector.extract_strided_slice %101 {offsets = [0, 256], sizes = [8, 128], strides = [1, 1]} : vector<8x384xf32> to vector<8x128xf32>
    %105 = vector.extract_strided_slice %79 {offsets = [0, 384], sizes = [8, 128], strides = [1, 1]} : vector<8x512xf32> to vector<8x128xf32>
    %106 = math.tanh %105 : vector<8x128xf32>
    %107 = arith.mulf %103, %55 : vector<8x128xf32>
    %108 = arith.mulf %102, %106 : vector<8x128xf32>
    %109 = arith.addf %107, %108 : vector<8x128xf32>
    %110 = math.tanh %109 : vector<8x128xf32>
    %111 = arith.mulf %104, %110 : vector<8x128xf32>
    %112 = vector.extract_strided_slice %95 {offsets = [0, 0], sizes = [8, 32], strides = [1, 1]} : vector<8x128xf32> to vector<8x32xf32>
    %113 = vector.extract_strided_slice %111 {offsets = [0, 0], sizes = [8, 32], strides = [1, 1]} : vector<8x128xf32> to vector<8x32xf32>
    %114 = arith.index_cast %65 : i32 to index
    %c0_26 = arith.constant 0 : index
    %115 = vector.load %arg11[%114, %c0_26] : memref<64x32xf32, #tpu.memory_space<vmem>>, vector<8x32xf32>
    tpu.vector_store %arg11[%114, %c0_26], %112 {strides = array<i32>} : memref<64x32xf32, #tpu.memory_space<vmem>>, vector<8x32xf32>,
    %116 = arith.index_cast %68 : i32 to index
    %c0_27 = arith.constant 0 : index
    %117 = vector.load %arg12[%116, %c0_27] : memref<64x32xf32, #tpu.memory_space<vmem>>, vector<8x32xf32>
    tpu.vector_store %arg12[%116, %c0_27], %113 {strides = array<i32>} : memref<64x32xf32, #tpu.memory_space<vmem>>, vector<8x32xf32>,
    %c2_i32 = arith.constant 2 : i32
    %c8_i32_28 = arith.constant 8 : i32
    %118 = arith.muli %c2_i32, %c8_i32_28 : i32
    %119 = tpu.assume_multiple %118, 8 : i32
    %c7_i32_29 = arith.constant 7 : i32
    %120 = arith.subi %c7_i32_29, %c2_i32 : i32
    %c8_i32_30 = arith.constant 8 : i32
    %121 = arith.muli %120, %c8_i32_30 : i32
    %122 = tpu.assume_multiple %121, 8 : i32
    %123 = tpu.concatenate %112, %113 in 1 : vector<8x32xf32>, vector<8x32xf32> -> vector<8x64xf32>
    %124 = arith.truncf %123 : vector<8x64xf32> to vector<8x64xbf16>
    %cst_31 = arith.constant dense<0.000000e+00> : vector<8x1024xf32>
    %125 = tpu.matmul %124, %1, %cst_31 {dimension_numbers = #tpu.dot_dimension_numbers<[1], [0], [0], [1], [0, 0, 1, 1], [], []>} : vector<8x64xbf16>, vector<64x1024xbf16>, vector<8x1024xf32> -> vector<8x1024xf32>
    %126 = arith.index_cast %119 : i32 to index
    %c0_32 = arith.constant 0 : index
    %127 = vector.load %arg10[%126, %c0_32] : memref<64x1024xf32, #tpu.memory_space<vmem>>, vector<8x512xf32>
    %128 = vector.extract_strided_slice %125 {offsets = [0, 0], sizes = [8, 512], strides = [1, 1]} : vector<8x1024xf32> to vector<8x512xf32>
    %129 = arith.addf %127, %128 : vector<8x512xf32>
    %130 = arith.index_cast %122 : i32 to index
    %c512_33 = arith.constant 512 : index
    %131 = vector.load %arg10[%130, %c512_33] : memref<64x1024xf32, #tpu.memory_space<vmem>>, vector<8x512xf32>
    %132 = vector.extract_strided_slice %125 {offsets = [0, 512], sizes = [8, 512], strides = [1, 1]} : vector<8x1024xf32> to vector<8x512xf32>
    %133 = arith.addf %131, %132 : vector<8x512xf32>
    %134 = vector.extract_strided_slice %129 {offsets = [0, 0], sizes = [8, 384], strides = [1, 1]} : vector<8x512xf32> to vector<8x384xf32>
    %135 = arith.negf %134 : vector<8x384xf32>
    %136 = math.exp %135 : vector<8x384xf32>
    %cst_34 = arith.constant 1.000000e+00 : f32
    %137 = vector.broadcast %cst_34 : f32 to vector<8x384xf32>
    %138 = arith.addf %137, %136 : vector<8x384xf32>
    %139 = arith.divf %137, %138 : vector<8x384xf32>
    %140 = vector.extract_strided_slice %139 {offsets = [0, 0], sizes = [8, 128], strides = [1, 1]} : vector<8x384xf32> to vector<8x128xf32>
    %141 = vector.extract_strided_slice %139 {offsets = [0, 128], sizes = [8, 128], strides = [1, 1]} : vector<8x384xf32> to vector<8x128xf32>
    %142 = vector.extract_strided_slice %139 {offsets = [0, 256], sizes = [8, 128], strides = [1, 1]} : vector<8x384xf32> to vector<8x128xf32>
    %143 = vector.extract_strided_slice %129 {offsets = [0, 384], sizes = [8, 128], strides = [1, 1]} : vector<8x512xf32> to vector<8x128xf32>
    %144 = math.tanh %143 : vector<8x128xf32>
    %145 = arith.mulf %141, %93 : vector<8x128xf32>
    %146 = arith.mulf %140, %144 : vector<8x128xf32>
    %147 = arith.addf %145, %146 : vector<8x128xf32>
    %148 = math.tanh %147 : vector<8x128xf32>
    %149 = arith.mulf %142, %148 : vector<8x128xf32>
    %150 = vector.extract_strided_slice %133 {offsets = [0, 0], sizes = [8, 384], strides = [1, 1]} : vector<8x512xf32> to vector<8x384xf32>
    %151 = arith.negf %150 : vector<8x384xf32>
    %152 = math.exp %151 : vector<8x384xf32>
    %cst_35 = arith.constant 1.000000e+00 : f32
    %153 = vector.broadcast %cst_35 : f32 to vector<8x384xf32>
    %154 = arith.addf %153, %152 : vector<8x384xf32>
    %155 = arith.divf %153, %154 : vector<8x384xf32>
    %156 = vector.extract_strided_slice %155 {offsets = [0, 0], sizes = [8, 128], strides = [1, 1]} : vector<8x384xf32> to vector<8x128xf32>
    %157 = vector.extract_strided_slice %155 {offsets = [0, 128], sizes = [8, 128], strides = [1, 1]} : vector<8x384xf32> to vector<8x128xf32>
    %158 = vector.extract_strided_slice %155 {offsets = [0, 256], sizes = [8, 128], strides = [1, 1]} : vector<8x384xf32> to vector<8x128xf32>
    %159 = vector.extract_strided_slice %133 {offsets = [0, 384], sizes = [8, 128], strides = [1, 1]} : vector<8x512xf32> to vector<8x128xf32>
    %160 = math.tanh %159 : vector<8x128xf32>
    %161 = arith.mulf %157, %109 : vector<8x128xf32>
    %162 = arith.mulf %156, %160 : vector<8x128xf32>
    %163 = arith.addf %161, %162 : vector<8x128xf32>
    %164 = math.tanh %163 : vector<8x128xf32>
    %165 = arith.mulf %158, %164 : vector<8x128xf32>
    %166 = vector.extract_strided_slice %149 {offsets = [0, 0], sizes = [8, 32], strides = [1, 1]} : vector<8x128xf32> to vector<8x32xf32>
    %167 = vector.extract_strided_slice %165 {offsets = [0, 0], sizes = [8, 32], strides = [1, 1]} : vector<8x128xf32> to vector<8x32xf32>
    %168 = arith.index_cast %119 : i32 to index
    %c0_36 = arith.constant 0 : index
    %169 = vector.load %arg11[%168, %c0_36] : memref<64x32xf32, #tpu.memory_space<vmem>>, vector<8x32xf32>
    tpu.vector_store %arg11[%168, %c0_36], %166 {strides = array<i32>} : memref<64x32xf32, #tpu.memory_space<vmem>>, vector<8x32xf32>,
    %170 = arith.index_cast %122 : i32 to index
    %c0_37 = arith.constant 0 : index
    %171 = vector.load %arg12[%170, %c0_37] : memref<64x32xf32, #tpu.memory_space<vmem>>, vector<8x32xf32>
    tpu.vector_store %arg12[%170, %c0_37], %167 {strides = array<i32>} : memref<64x32xf32, #tpu.memory_space<vmem>>, vector<8x32xf32>,
    %c3_i32 = arith.constant 3 : i32
    %c8_i32_38 = arith.constant 8 : i32
    %172 = arith.muli %c3_i32, %c8_i32_38 : i32
    %173 = tpu.assume_multiple %172, 8 : i32
    %c7_i32_39 = arith.constant 7 : i32
    %174 = arith.subi %c7_i32_39, %c3_i32 : i32
    %c8_i32_40 = arith.constant 8 : i32
    %175 = arith.muli %174, %c8_i32_40 : i32
    %176 = tpu.assume_multiple %175, 8 : i32
    %177 = tpu.concatenate %166, %167 in 1 : vector<8x32xf32>, vector<8x32xf32> -> vector<8x64xf32>
    %178 = arith.truncf %177 : vector<8x64xf32> to vector<8x64xbf16>
    %cst_41 = arith.constant dense<0.000000e+00> : vector<8x1024xf32>
    %179 = tpu.matmul %178, %1, %cst_41 {dimension_numbers = #tpu.dot_dimension_numbers<[1], [0], [0], [1], [0, 0, 1, 1], [], []>} : vector<8x64xbf16>, vector<64x1024xbf16>, vector<8x1024xf32> -> vector<8x1024xf32>
    %180 = arith.index_cast %173 : i32 to index
    %c0_42 = arith.constant 0 : index
    %181 = vector.load %arg10[%180, %c0_42] : memref<64x1024xf32, #tpu.memory_space<vmem>>, vector<8x512xf32>
    %182 = vector.extract_strided_slice %179 {offsets = [0, 0], sizes = [8, 512], strides = [1, 1]} : vector<8x1024xf32> to vector<8x512xf32>
    %183 = arith.addf %181, %182 : vector<8x512xf32>
    %184 = arith.index_cast %176 : i32 to index
    %c512_43 = arith.constant 512 : index
    %185 = vector.load %arg10[%184, %c512_43] : memref<64x1024xf32, #tpu.memory_space<vmem>>, vector<8x512xf32>
    %186 = vector.extract_strided_slice %179 {offsets = [0, 512], sizes = [8, 512], strides = [1, 1]} : vector<8x1024xf32> to vector<8x512xf32>
    %187 = arith.addf %185, %186 : vector<8x512xf32>
    %188 = vector.extract_strided_slice %183 {offsets = [0, 0], sizes = [8, 384], strides = [1, 1]} : vector<8x512xf32> to vector<8x384xf32>
    %189 = arith.negf %188 : vector<8x384xf32>
    %190 = math.exp %189 : vector<8x384xf32>
    %cst_44 = arith.constant 1.000000e+00 : f32
    %191 = vector.broadcast %cst_44 : f32 to vector<8x384xf32>
    %192 = arith.addf %191, %190 : vector<8x384xf32>
    %193 = arith.divf %191, %192 : vector<8x384xf32>
    %194 = vector.extract_strided_slice %193 {offsets = [0, 0], sizes = [8, 128], strides = [1, 1]} : vector<8x384xf32> to vector<8x128xf32>
    %195 = vector.extract_strided_slice %193 {offsets = [0, 128], sizes = [8, 128], strides = [1, 1]} : vector<8x384xf32> to vector<8x128xf32>
    %196 = vector.extract_strided_slice %193 {offsets = [0, 256], sizes = [8, 128], strides = [1, 1]} : vector<8x384xf32> to vector<8x128xf32>
    %197 = vector.extract_strided_slice %183 {offsets = [0, 384], sizes = [8, 128], strides = [1, 1]} : vector<8x512xf32> to vector<8x128xf32>
    %198 = math.tanh %197 : vector<8x128xf32>
    %199 = arith.mulf %195, %147 : vector<8x128xf32>
    %200 = arith.mulf %194, %198 : vector<8x128xf32>
    %201 = arith.addf %199, %200 : vector<8x128xf32>
    %202 = math.tanh %201 : vector<8x128xf32>
    %203 = arith.mulf %196, %202 : vector<8x128xf32>
    %204 = vector.extract_strided_slice %187 {offsets = [0, 0], sizes = [8, 384], strides = [1, 1]} : vector<8x512xf32> to vector<8x384xf32>
    %205 = arith.negf %204 : vector<8x384xf32>
    %206 = math.exp %205 : vector<8x384xf32>
    %cst_45 = arith.constant 1.000000e+00 : f32
    %207 = vector.broadcast %cst_45 : f32 to vector<8x384xf32>
    %208 = arith.addf %207, %206 : vector<8x384xf32>
    %209 = arith.divf %207, %208 : vector<8x384xf32>
    %210 = vector.extract_strided_slice %209 {offsets = [0, 0], sizes = [8, 128], strides = [1, 1]} : vector<8x384xf32> to vector<8x128xf32>
    %211 = vector.extract_strided_slice %209 {offsets = [0, 128], sizes = [8, 128], strides = [1, 1]} : vector<8x384xf32> to vector<8x128xf32>
    %212 = vector.extract_strided_slice %209 {offsets = [0, 256], sizes = [8, 128], strides = [1, 1]} : vector<8x384xf32> to vector<8x128xf32>
    %213 = vector.extract_strided_slice %187 {offsets = [0, 384], sizes = [8, 128], strides = [1, 1]} : vector<8x512xf32> to vector<8x128xf32>
    %214 = math.tanh %213 : vector<8x128xf32>
    %215 = arith.mulf %211, %163 : vector<8x128xf32>
    %216 = arith.mulf %210, %214 : vector<8x128xf32>
    %217 = arith.addf %215, %216 : vector<8x128xf32>
    %218 = math.tanh %217 : vector<8x128xf32>
    %219 = arith.mulf %212, %218 : vector<8x128xf32>
    %220 = vector.extract_strided_slice %203 {offsets = [0, 0], sizes = [8, 32], strides = [1, 1]} : vector<8x128xf32> to vector<8x32xf32>
    %221 = vector.extract_strided_slice %219 {offsets = [0, 0], sizes = [8, 32], strides = [1, 1]} : vector<8x128xf32> to vector<8x32xf32>
    %222 = arith.index_cast %173 : i32 to index
    %c0_46 = arith.constant 0 : index
    %223 = vector.load %arg11[%222, %c0_46] : memref<64x32xf32, #tpu.memory_space<vmem>>, vector<8x32xf32>
    tpu.vector_store %arg11[%222, %c0_46], %220 {strides = array<i32>} : memref<64x32xf32, #tpu.memory_space<vmem>>, vector<8x32xf32>,
    %224 = arith.index_cast %176 : i32 to index
    %c0_47 = arith.constant 0 : index
    %225 = vector.load %arg12[%224, %c0_47] : memref<64x32xf32, #tpu.memory_space<vmem>>, vector<8x32xf32>
    tpu.vector_store %arg12[%224, %c0_47], %221 {strides = array<i32>} : memref<64x32xf32, #tpu.memory_space<vmem>>, vector<8x32xf32>,
    %c4_i32 = arith.constant 4 : i32
    %c8_i32_48 = arith.constant 8 : i32
    %226 = arith.muli %c4_i32, %c8_i32_48 : i32
    %227 = tpu.assume_multiple %226, 8 : i32
    %c7_i32_49 = arith.constant 7 : i32
    %228 = arith.subi %c7_i32_49, %c4_i32 : i32
    %c8_i32_50 = arith.constant 8 : i32
    %229 = arith.muli %228, %c8_i32_50 : i32
    %230 = tpu.assume_multiple %229, 8 : i32
    %231 = tpu.concatenate %220, %221 in 1 : vector<8x32xf32>, vector<8x32xf32> -> vector<8x64xf32>
    %232 = arith.truncf %231 : vector<8x64xf32> to vector<8x64xbf16>
    %cst_51 = arith.constant dense<0.000000e+00> : vector<8x1024xf32>
    %233 = tpu.matmul %232, %1, %cst_51 {dimension_numbers = #tpu.dot_dimension_numbers<[1], [0], [0], [1], [0, 0, 1, 1], [], []>} : vector<8x64xbf16>, vector<64x1024xbf16>, vector<8x1024xf32> -> vector<8x1024xf32>
    %234 = arith.index_cast %227 : i32 to index
    %c0_52 = arith.constant 0 : index
    %235 = vector.load %arg10[%234, %c0_52] : memref<64x1024xf32, #tpu.memory_space<vmem>>, vector<8x512xf32>
    %236 = vector.extract_strided_slice %233 {offsets = [0, 0], sizes = [8, 512], strides = [1, 1]} : vector<8x1024xf32> to vector<8x512xf32>
    %237 = arith.addf %235, %236 : vector<8x512xf32>
    %238 = arith.index_cast %230 : i32 to index
    %c512_53 = arith.constant 512 : index
    %239 = vector.load %arg10[%238, %c512_53] : memref<64x1024xf32, #tpu.memory_space<vmem>>, vector<8x512xf32>
    %240 = vector.extract_strided_slice %233 {offsets = [0, 512], sizes = [8, 512], strides = [1, 1]} : vector<8x1024xf32> to vector<8x512xf32>
    %241 = arith.addf %239, %240 : vector<8x512xf32>
    %242 = vector.extract_strided_slice %237 {offsets = [0, 0], sizes = [8, 384], strides = [1, 1]} : vector<8x512xf32> to vector<8x384xf32>
    %243 = arith.negf %242 : vector<8x384xf32>
    %244 = math.exp %243 : vector<8x384xf32>
    %cst_54 = arith.constant 1.000000e+00 : f32
    %245 = vector.broadcast %cst_54 : f32 to vector<8x384xf32>
    %246 = arith.addf %245, %244 : vector<8x384xf32>
    %247 = arith.divf %245, %246 : vector<8x384xf32>
    %248 = vector.extract_strided_slice %247 {offsets = [0, 0], sizes = [8, 128], strides = [1, 1]} : vector<8x384xf32> to vector<8x128xf32>
    %249 = vector.extract_strided_slice %247 {offsets = [0, 128], sizes = [8, 128], strides = [1, 1]} : vector<8x384xf32> to vector<8x128xf32>
    %250 = vector.extract_strided_slice %247 {offsets = [0, 256], sizes = [8, 128], strides = [1, 1]} : vector<8x384xf32> to vector<8x128xf32>
    %251 = vector.extract_strided_slice %237 {offsets = [0, 384], sizes = [8, 128], strides = [1, 1]} : vector<8x512xf32> to vector<8x128xf32>
    %252 = math.tanh %251 : vector<8x128xf32>
    %253 = arith.mulf %249, %201 : vector<8x128xf32>
    %254 = arith.mulf %248, %252 : vector<8x128xf32>
    %255 = arith.addf %253, %254 : vector<8x128xf32>
    %256 = math.tanh %255 : vector<8x128xf32>
    %257 = arith.mulf %250, %256 : vector<8x128xf32>
    %258 = vector.extract_strided_slice %241 {offsets = [0, 0], sizes = [8, 384], strides = [1, 1]} : vector<8x512xf32> to vector<8x384xf32>
    %259 = arith.negf %258 : vector<8x384xf32>
    %260 = math.exp %259 : vector<8x384xf32>
    %cst_55 = arith.constant 1.000000e+00 : f32
    %261 = vector.broadcast %cst_55 : f32 to vector<8x384xf32>
    %262 = arith.addf %261, %260 : vector<8x384xf32>
    %263 = arith.divf %261, %262 : vector<8x384xf32>
    %264 = vector.extract_strided_slice %263 {offsets = [0, 0], sizes = [8, 128], strides = [1, 1]} : vector<8x384xf32> to vector<8x128xf32>
    %265 = vector.extract_strided_slice %263 {offsets = [0, 128], sizes = [8, 128], strides = [1, 1]} : vector<8x384xf32> to vector<8x128xf32>
    %266 = vector.extract_strided_slice %263 {offsets = [0, 256], sizes = [8, 128], strides = [1, 1]} : vector<8x384xf32> to vector<8x128xf32>
    %267 = vector.extract_strided_slice %241 {offsets = [0, 384], sizes = [8, 128], strides = [1, 1]} : vector<8x512xf32> to vector<8x128xf32>
    %268 = math.tanh %267 : vector<8x128xf32>
    %269 = arith.mulf %265, %217 : vector<8x128xf32>
    %270 = arith.mulf %264, %268 : vector<8x128xf32>
    %271 = arith.addf %269, %270 : vector<8x128xf32>
    %272 = math.tanh %271 : vector<8x128xf32>
    %273 = arith.mulf %266, %272 : vector<8x128xf32>
    %274 = vector.extract_strided_slice %257 {offsets = [0, 0], sizes = [8, 32], strides = [1, 1]} : vector<8x128xf32> to vector<8x32xf32>
    %275 = vector.extract_strided_slice %273 {offsets = [0, 0], sizes = [8, 32], strides = [1, 1]} : vector<8x128xf32> to vector<8x32xf32>
    %276 = arith.index_cast %227 : i32 to index
    %c0_56 = arith.constant 0 : index
    %277 = vector.load %arg11[%276, %c0_56] : memref<64x32xf32, #tpu.memory_space<vmem>>, vector<8x32xf32>
    tpu.vector_store %arg11[%276, %c0_56], %274 {strides = array<i32>} : memref<64x32xf32, #tpu.memory_space<vmem>>, vector<8x32xf32>,
    %278 = arith.index_cast %230 : i32 to index
    %c0_57 = arith.constant 0 : index
    %279 = vector.load %arg12[%278, %c0_57] : memref<64x32xf32, #tpu.memory_space<vmem>>, vector<8x32xf32>
    tpu.vector_store %arg12[%278, %c0_57], %275 {strides = array<i32>} : memref<64x32xf32, #tpu.memory_space<vmem>>, vector<8x32xf32>,
    %c5_i32 = arith.constant 5 : i32
    %c8_i32_58 = arith.constant 8 : i32
    %280 = arith.muli %c5_i32, %c8_i32_58 : i32
    %281 = tpu.assume_multiple %280, 8 : i32
    %c7_i32_59 = arith.constant 7 : i32
    %282 = arith.subi %c7_i32_59, %c5_i32 : i32
    %c8_i32_60 = arith.constant 8 : i32
    %283 = arith.muli %282, %c8_i32_60 : i32
    %284 = tpu.assume_multiple %283, 8 : i32
    %285 = tpu.concatenate %274, %275 in 1 : vector<8x32xf32>, vector<8x32xf32> -> vector<8x64xf32>
    %286 = arith.truncf %285 : vector<8x64xf32> to vector<8x64xbf16>
    %cst_61 = arith.constant dense<0.000000e+00> : vector<8x1024xf32>
    %287 = tpu.matmul %286, %1, %cst_61 {dimension_numbers = #tpu.dot_dimension_numbers<[1], [0], [0], [1], [0, 0, 1, 1], [], []>} : vector<8x64xbf16>, vector<64x1024xbf16>, vector<8x1024xf32> -> vector<8x1024xf32>
    %288 = arith.index_cast %281 : i32 to index
    %c0_62 = arith.constant 0 : index
    %289 = vector.load %arg10[%288, %c0_62] : memref<64x1024xf32, #tpu.memory_space<vmem>>, vector<8x512xf32>
    %290 = vector.extract_strided_slice %287 {offsets = [0, 0], sizes = [8, 512], strides = [1, 1]} : vector<8x1024xf32> to vector<8x512xf32>
    %291 = arith.addf %289, %290 : vector<8x512xf32>
    %292 = arith.index_cast %284 : i32 to index
    %c512_63 = arith.constant 512 : index
    %293 = vector.load %arg10[%292, %c512_63] : memref<64x1024xf32, #tpu.memory_space<vmem>>, vector<8x512xf32>
    %294 = vector.extract_strided_slice %287 {offsets = [0, 512], sizes = [8, 512], strides = [1, 1]} : vector<8x1024xf32> to vector<8x512xf32>
    %295 = arith.addf %293, %294 : vector<8x512xf32>
    %296 = vector.extract_strided_slice %291 {offsets = [0, 0], sizes = [8, 384], strides = [1, 1]} : vector<8x512xf32> to vector<8x384xf32>
    %297 = arith.negf %296 : vector<8x384xf32>
    %298 = math.exp %297 : vector<8x384xf32>
    %cst_64 = arith.constant 1.000000e+00 : f32
    %299 = vector.broadcast %cst_64 : f32 to vector<8x384xf32>
    %300 = arith.addf %299, %298 : vector<8x384xf32>
    %301 = arith.divf %299, %300 : vector<8x384xf32>
    %302 = vector.extract_strided_slice %301 {offsets = [0, 0], sizes = [8, 128], strides = [1, 1]} : vector<8x384xf32> to vector<8x128xf32>
    %303 = vector.extract_strided_slice %301 {offsets = [0, 128], sizes = [8, 128], strides = [1, 1]} : vector<8x384xf32> to vector<8x128xf32>
    %304 = vector.extract_strided_slice %301 {offsets = [0, 256], sizes = [8, 128], strides = [1, 1]} : vector<8x384xf32> to vector<8x128xf32>
    %305 = vector.extract_strided_slice %291 {offsets = [0, 384], sizes = [8, 128], strides = [1, 1]} : vector<8x512xf32> to vector<8x128xf32>
    %306 = math.tanh %305 : vector<8x128xf32>
    %307 = arith.mulf %303, %255 : vector<8x128xf32>
    %308 = arith.mulf %302, %306 : vector<8x128xf32>
    %309 = arith.addf %307, %308 : vector<8x128xf32>
    %310 = math.tanh %309 : vector<8x128xf32>
    %311 = arith.mulf %304, %310 : vector<8x128xf32>
    %312 = vector.extract_strided_slice %295 {offsets = [0, 0], sizes = [8, 384], strides = [1, 1]} : vector<8x512xf32> to vector<8x384xf32>
    %313 = arith.negf %312 : vector<8x384xf32>
    %314 = math.exp %313 : vector<8x384xf32>
    %cst_65 = arith.constant 1.000000e+00 : f32
    %315 = vector.broadcast %cst_65 : f32 to vector<8x384xf32>
    %316 = arith.addf %315, %314 : vector<8x384xf32>
    %317 = arith.divf %315, %316 : vector<8x384xf32>
    %318 = vector.extract_strided_slice %317 {offsets = [0, 0], sizes = [8, 128], strides = [1, 1]} : vector<8x384xf32> to vector<8x128xf32>
    %319 = vector.extract_strided_slice %317 {offsets = [0, 128], sizes = [8, 128], strides = [1, 1]} : vector<8x384xf32> to vector<8x128xf32>
    %320 = vector.extract_strided_slice %317 {offsets = [0, 256], sizes = [8, 128], strides = [1, 1]} : vector<8x384xf32> to vector<8x128xf32>
    %321 = vector.extract_strided_slice %295 {offsets = [0, 384], sizes = [8, 128], strides = [1, 1]} : vector<8x512xf32> to vector<8x128xf32>
    %322 = math.tanh %321 : vector<8x128xf32>
    %323 = arith.mulf %319, %271 : vector<8x128xf32>
    %324 = arith.mulf %318, %322 : vector<8x128xf32>
    %325 = arith.addf %323, %324 : vector<8x128xf32>
    %326 = math.tanh %325 : vector<8x128xf32>
    %327 = arith.mulf %320, %326 : vector<8x128xf32>
    %328 = vector.extract_strided_slice %311 {offsets = [0, 0], sizes = [8, 32], strides = [1, 1]} : vector<8x128xf32> to vector<8x32xf32>
    %329 = vector.extract_strided_slice %327 {offsets = [0, 0], sizes = [8, 32], strides = [1, 1]} : vector<8x128xf32> to vector<8x32xf32>
    %330 = arith.index_cast %281 : i32 to index
    %c0_66 = arith.constant 0 : index
    %331 = vector.load %arg11[%330, %c0_66] : memref<64x32xf32, #tpu.memory_space<vmem>>, vector<8x32xf32>
    tpu.vector_store %arg11[%330, %c0_66], %328 {strides = array<i32>} : memref<64x32xf32, #tpu.memory_space<vmem>>, vector<8x32xf32>,
    %332 = arith.index_cast %284 : i32 to index
    %c0_67 = arith.constant 0 : index
    %333 = vector.load %arg12[%332, %c0_67] : memref<64x32xf32, #tpu.memory_space<vmem>>, vector<8x32xf32>
    tpu.vector_store %arg12[%332, %c0_67], %329 {strides = array<i32>} : memref<64x32xf32, #tpu.memory_space<vmem>>, vector<8x32xf32>,
    %c6_i32 = arith.constant 6 : i32
    %c8_i32_68 = arith.constant 8 : i32
    %334 = arith.muli %c6_i32, %c8_i32_68 : i32
    %335 = tpu.assume_multiple %334, 8 : i32
    %c7_i32_69 = arith.constant 7 : i32
    %336 = arith.subi %c7_i32_69, %c6_i32 : i32
    %c8_i32_70 = arith.constant 8 : i32
    %337 = arith.muli %336, %c8_i32_70 : i32
    %338 = tpu.assume_multiple %337, 8 : i32
    %339 = tpu.concatenate %328, %329 in 1 : vector<8x32xf32>, vector<8x32xf32> -> vector<8x64xf32>
    %340 = arith.truncf %339 : vector<8x64xf32> to vector<8x64xbf16>
    %cst_71 = arith.constant dense<0.000000e+00> : vector<8x1024xf32>
    %341 = tpu.matmul %340, %1, %cst_71 {dimension_numbers = #tpu.dot_dimension_numbers<[1], [0], [0], [1], [0, 0, 1, 1], [], []>} : vector<8x64xbf16>, vector<64x1024xbf16>, vector<8x1024xf32> -> vector<8x1024xf32>
    %342 = arith.index_cast %335 : i32 to index
    %c0_72 = arith.constant 0 : index
    %343 = vector.load %arg10[%342, %c0_72] : memref<64x1024xf32, #tpu.memory_space<vmem>>, vector<8x512xf32>
    %344 = vector.extract_strided_slice %341 {offsets = [0, 0], sizes = [8, 512], strides = [1, 1]} : vector<8x1024xf32> to vector<8x512xf32>
    %345 = arith.addf %343, %344 : vector<8x512xf32>
    %346 = arith.index_cast %338 : i32 to index
    %c512_73 = arith.constant 512 : index
    %347 = vector.load %arg10[%346, %c512_73] : memref<64x1024xf32, #tpu.memory_space<vmem>>, vector<8x512xf32>
    %348 = vector.extract_strided_slice %341 {offsets = [0, 512], sizes = [8, 512], strides = [1, 1]} : vector<8x1024xf32> to vector<8x512xf32>
    %349 = arith.addf %347, %348 : vector<8x512xf32>
    %350 = vector.extract_strided_slice %345 {offsets = [0, 0], sizes = [8, 384], strides = [1, 1]} : vector<8x512xf32> to vector<8x384xf32>
    %351 = arith.negf %350 : vector<8x384xf32>
    %352 = math.exp %351 : vector<8x384xf32>
    %cst_74 = arith.constant 1.000000e+00 : f32
    %353 = vector.broadcast %cst_74 : f32 to vector<8x384xf32>
    %354 = arith.addf %353, %352 : vector<8x384xf32>
    %355 = arith.divf %353, %354 : vector<8x384xf32>
    %356 = vector.extract_strided_slice %355 {offsets = [0, 0], sizes = [8, 128], strides = [1, 1]} : vector<8x384xf32> to vector<8x128xf32>
    %357 = vector.extract_strided_slice %355 {offsets = [0, 128], sizes = [8, 128], strides = [1, 1]} : vector<8x384xf32> to vector<8x128xf32>
    %358 = vector.extract_strided_slice %355 {offsets = [0, 256], sizes = [8, 128], strides = [1, 1]} : vector<8x384xf32> to vector<8x128xf32>
    %359 = vector.extract_strided_slice %345 {offsets = [0, 384], sizes = [8, 128], strides = [1, 1]} : vector<8x512xf32> to vector<8x128xf32>
    %360 = math.tanh %359 : vector<8x128xf32>
    %361 = arith.mulf %357, %309 : vector<8x128xf32>
    %362 = arith.mulf %356, %360 : vector<8x128xf32>
    %363 = arith.addf %361, %362 : vector<8x128xf32>
    %364 = math.tanh %363 : vector<8x128xf32>
    %365 = arith.mulf %358, %364 : vector<8x128xf32>
    %366 = vector.extract_strided_slice %349 {offsets = [0, 0], sizes = [8, 384], strides = [1, 1]} : vector<8x512xf32> to vector<8x384xf32>
    %367 = arith.negf %366 : vector<8x384xf32>
    %368 = math.exp %367 : vector<8x384xf32>
    %cst_75 = arith.constant 1.000000e+00 : f32
    %369 = vector.broadcast %cst_75 : f32 to vector<8x384xf32>
    %370 = arith.addf %369, %368 : vector<8x384xf32>
    %371 = arith.divf %369, %370 : vector<8x384xf32>
    %372 = vector.extract_strided_slice %371 {offsets = [0, 0], sizes = [8, 128], strides = [1, 1]} : vector<8x384xf32> to vector<8x128xf32>
    %373 = vector.extract_strided_slice %371 {offsets = [0, 128], sizes = [8, 128], strides = [1, 1]} : vector<8x384xf32> to vector<8x128xf32>
    %374 = vector.extract_strided_slice %371 {offsets = [0, 256], sizes = [8, 128], strides = [1, 1]} : vector<8x384xf32> to vector<8x128xf32>
    %375 = vector.extract_strided_slice %349 {offsets = [0, 384], sizes = [8, 128], strides = [1, 1]} : vector<8x512xf32> to vector<8x128xf32>
    %376 = math.tanh %375 : vector<8x128xf32>
    %377 = arith.mulf %373, %325 : vector<8x128xf32>
    %378 = arith.mulf %372, %376 : vector<8x128xf32>
    %379 = arith.addf %377, %378 : vector<8x128xf32>
    %380 = math.tanh %379 : vector<8x128xf32>
    %381 = arith.mulf %374, %380 : vector<8x128xf32>
    %382 = vector.extract_strided_slice %365 {offsets = [0, 0], sizes = [8, 32], strides = [1, 1]} : vector<8x128xf32> to vector<8x32xf32>
    %383 = vector.extract_strided_slice %381 {offsets = [0, 0], sizes = [8, 32], strides = [1, 1]} : vector<8x128xf32> to vector<8x32xf32>
    %384 = arith.index_cast %335 : i32 to index
    %c0_76 = arith.constant 0 : index
    %385 = vector.load %arg11[%384, %c0_76] : memref<64x32xf32, #tpu.memory_space<vmem>>, vector<8x32xf32>
    tpu.vector_store %arg11[%384, %c0_76], %382 {strides = array<i32>} : memref<64x32xf32, #tpu.memory_space<vmem>>, vector<8x32xf32>,
    %386 = arith.index_cast %338 : i32 to index
    %c0_77 = arith.constant 0 : index
    %387 = vector.load %arg12[%386, %c0_77] : memref<64x32xf32, #tpu.memory_space<vmem>>, vector<8x32xf32>
    tpu.vector_store %arg12[%386, %c0_77], %383 {strides = array<i32>} : memref<64x32xf32, #tpu.memory_space<vmem>>, vector<8x32xf32>,
    %c7_i32_78 = arith.constant 7 : i32
    %c8_i32_79 = arith.constant 8 : i32
    %388 = arith.muli %c7_i32_78, %c8_i32_79 : i32
    %389 = tpu.assume_multiple %388, 8 : i32
    %c7_i32_80 = arith.constant 7 : i32
    %390 = arith.subi %c7_i32_80, %c7_i32_78 : i32
    %c8_i32_81 = arith.constant 8 : i32
    %391 = arith.muli %390, %c8_i32_81 : i32
    %392 = tpu.assume_multiple %391, 8 : i32
    %393 = tpu.concatenate %382, %383 in 1 : vector<8x32xf32>, vector<8x32xf32> -> vector<8x64xf32>
    %394 = arith.truncf %393 : vector<8x64xf32> to vector<8x64xbf16>
    %cst_82 = arith.constant dense<0.000000e+00> : vector<8x1024xf32>
    %395 = tpu.matmul %394, %1, %cst_82 {dimension_numbers = #tpu.dot_dimension_numbers<[1], [0], [0], [1], [0, 0, 1, 1], [], []>} : vector<8x64xbf16>, vector<64x1024xbf16>, vector<8x1024xf32> -> vector<8x1024xf32>
    %396 = arith.index_cast %389 : i32 to index
    %c0_83 = arith.constant 0 : index
    %397 = vector.load %arg10[%396, %c0_83] : memref<64x1024xf32, #tpu.memory_space<vmem>>, vector<8x512xf32>
    %398 = vector.extract_strided_slice %395 {offsets = [0, 0], sizes = [8, 512], strides = [1, 1]} : vector<8x1024xf32> to vector<8x512xf32>
    %399 = arith.addf %397, %398 : vector<8x512xf32>
    %400 = arith.index_cast %392 : i32 to index
    %c512_84 = arith.constant 512 : index
    %401 = vector.load %arg10[%400, %c512_84] : memref<64x1024xf32, #tpu.memory_space<vmem>>, vector<8x512xf32>
    %402 = vector.extract_strided_slice %395 {offsets = [0, 512], sizes = [8, 512], strides = [1, 1]} : vector<8x1024xf32> to vector<8x512xf32>
    %403 = arith.addf %401, %402 : vector<8x512xf32>
    %404 = vector.extract_strided_slice %399 {offsets = [0, 0], sizes = [8, 384], strides = [1, 1]} : vector<8x512xf32> to vector<8x384xf32>
    %405 = arith.negf %404 : vector<8x384xf32>
    %406 = math.exp %405 : vector<8x384xf32>
    %cst_85 = arith.constant 1.000000e+00 : f32
    %407 = vector.broadcast %cst_85 : f32 to vector<8x384xf32>
    %408 = arith.addf %407, %406 : vector<8x384xf32>
    %409 = arith.divf %407, %408 : vector<8x384xf32>
    %410 = vector.extract_strided_slice %409 {offsets = [0, 0], sizes = [8, 128], strides = [1, 1]} : vector<8x384xf32> to vector<8x128xf32>
    %411 = vector.extract_strided_slice %409 {offsets = [0, 128], sizes = [8, 128], strides = [1, 1]} : vector<8x384xf32> to vector<8x128xf32>
    %412 = vector.extract_strided_slice %409 {offsets = [0, 256], sizes = [8, 128], strides = [1, 1]} : vector<8x384xf32> to vector<8x128xf32>
    %413 = vector.extract_strided_slice %399 {offsets = [0, 384], sizes = [8, 128], strides = [1, 1]} : vector<8x512xf32> to vector<8x128xf32>
    %414 = math.tanh %413 : vector<8x128xf32>
    %415 = arith.mulf %411, %363 : vector<8x128xf32>
    %416 = arith.mulf %410, %414 : vector<8x128xf32>
    %417 = arith.addf %415, %416 : vector<8x128xf32>
    %418 = math.tanh %417 : vector<8x128xf32>
    %419 = arith.mulf %412, %418 : vector<8x128xf32>
    %420 = vector.extract_strided_slice %403 {offsets = [0, 0], sizes = [8, 384], strides = [1, 1]} : vector<8x512xf32> to vector<8x384xf32>
    %421 = arith.negf %420 : vector<8x384xf32>
    %422 = math.exp %421 : vector<8x384xf32>
    %cst_86 = arith.constant 1.000000e+00 : f32
    %423 = vector.broadcast %cst_86 : f32 to vector<8x384xf32>
    %424 = arith.addf %423, %422 : vector<8x384xf32>
    %425 = arith.divf %423, %424 : vector<8x384xf32>
    %426 = vector.extract_strided_slice %425 {offsets = [0, 0], sizes = [8, 128], strides = [1, 1]} : vector<8x384xf32> to vector<8x128xf32>
    %427 = vector.extract_strided_slice %425 {offsets = [0, 128], sizes = [8, 128], strides = [1, 1]} : vector<8x384xf32> to vector<8x128xf32>
    %428 = vector.extract_strided_slice %425 {offsets = [0, 256], sizes = [8, 128], strides = [1, 1]} : vector<8x384xf32> to vector<8x128xf32>
    %429 = vector.extract_strided_slice %403 {offsets = [0, 384], sizes = [8, 128], strides = [1, 1]} : vector<8x512xf32> to vector<8x128xf32>
    %430 = math.tanh %429 : vector<8x128xf32>
    %431 = arith.mulf %427, %379 : vector<8x128xf32>
    %432 = arith.mulf %426, %430 : vector<8x128xf32>
    %433 = arith.addf %431, %432 : vector<8x128xf32>
    %434 = math.tanh %433 : vector<8x128xf32>
    %435 = arith.mulf %428, %434 : vector<8x128xf32>
    %436 = vector.extract_strided_slice %419 {offsets = [0, 0], sizes = [8, 32], strides = [1, 1]} : vector<8x128xf32> to vector<8x32xf32>
    %437 = vector.extract_strided_slice %435 {offsets = [0, 0], sizes = [8, 32], strides = [1, 1]} : vector<8x128xf32> to vector<8x32xf32>
    %438 = arith.index_cast %389 : i32 to index
    %c0_87 = arith.constant 0 : index
    %439 = vector.load %arg11[%438, %c0_87] : memref<64x32xf32, #tpu.memory_space<vmem>>, vector<8x32xf32>
    tpu.vector_store %arg11[%438, %c0_87], %436 {strides = array<i32>} : memref<64x32xf32, #tpu.memory_space<vmem>>, vector<8x32xf32>,
    %440 = arith.index_cast %392 : i32 to index
    %c0_88 = arith.constant 0 : index
    %441 = vector.load %arg12[%440, %c0_88] : memref<64x32xf32, #tpu.memory_space<vmem>>, vector<8x32xf32>
    tpu.vector_store %arg12[%440, %c0_88], %437 {strides = array<i32>} : memref<64x32xf32, #tpu.memory_space<vmem>>, vector<8x32xf32>,
    %c8_i32_89 = arith.constant 8 : i32
    %c0_90 = arith.constant 0 : index
    %c0_91 = arith.constant 0 : index
    %442 = vector.load %arg4[%c0_90, %c0_91] : memref<64x1024xbf16, #tpu.memory_space<vmem>>, vector<64x1024xbf16>
    %c0_92 = arith.constant 0 : index
    %c0_93 = arith.constant 0 : index
    %443 = vector.load %arg5[%c0_92, %c0_93] : memref<64x1024xbf16, #tpu.memory_space<vmem>>, vector<64x1024xbf16>
    %c0_94 = arith.constant 0 : index
    %c0_95 = arith.constant 0 : index
    %444 = vector.load %arg6[%c0_94, %c0_95] : memref<1x1024xf32, #tpu.memory_space<vmem>>, vector<1x1024xf32>
    %c0_96 = arith.constant 0 : index
    %c0_97 = arith.constant 0 : index
    %445 = vector.load %arg11[%c0_96, %c0_97] : memref<64x32xf32, #tpu.memory_space<vmem>>, vector<64x32xf32>
    %c0_98 = arith.constant 0 : index
    %c0_99 = arith.constant 0 : index
    %446 = vector.load %arg12[%c0_98, %c0_99] : memref<64x32xf32, #tpu.memory_space<vmem>>, vector<64x32xf32>
    %447 = tpu.concatenate %445, %446 in 1 : vector<64x32xf32>, vector<64x32xf32> -> vector<64x64xf32>
    %448 = arith.truncf %447 : vector<64x64xf32> to vector<64x64xbf16>
    %cst_100 = arith.constant dense<0.000000e+00> : vector<64x1024xf32>
    %449 = tpu.matmul %448, %442, %cst_100 {dimension_numbers = #tpu.dot_dimension_numbers<[1], [0], [0], [1], [0, 0, 1, 1], [], []>} : vector<64x64xbf16>, vector<64x1024xbf16>, vector<64x1024xf32> -> vector<64x1024xf32>
    %450 = vector.broadcast %444 : vector<1x1024xf32> to vector<64x1024xf32>
    %451 = arith.addf %449, %450 : vector<64x1024xf32>
    %c0_101 = arith.constant 0 : index
    %c0_102 = arith.constant 0 : index
    %452 = vector.load %arg10[%c0_101, %c0_102] : memref<64x1024xf32, #tpu.memory_space<vmem>>, vector<64x1024xf32>
    tpu.vector_store %arg10[%c0_101, %c0_102], %451 {strides = array<i32>} : memref<64x1024xf32, #tpu.memory_space<vmem>>, vector<64x1024xf32>,
    %cst_103 = arith.constant 0.000000e+00 : f32
    %453 = vector.broadcast %cst_103 : f32 to vector<8x32xf32>
    %cst_104 = arith.constant 0.000000e+00 : f32
    %454 = vector.broadcast %cst_104 : f32 to vector<8x128xf32>
    %c0_i32_105 = arith.constant 0 : i32
    %c8_i32_106 = arith.constant 8 : i32
    %455 = arith.muli %c0_i32_105, %c8_i32_106 : i32
    %456 = tpu.assume_multiple %455, 8 : i32
    %c7_i32_107 = arith.constant 7 : i32
    %457 = arith.subi %c7_i32_107, %c0_i32_105 : i32
    %c8_i32_108 = arith.constant 8 : i32
    %458 = arith.muli %457, %c8_i32_108 : i32
    %459 = tpu.assume_multiple %458, 8 : i32
    %460 = tpu.concatenate %453, %453 in 1 : vector<8x32xf32>, vector<8x32xf32> -> vector<8x64xf32>
    %461 = arith.truncf %460 : vector<8x64xf32> to vector<8x64xbf16>
    %cst_109 = arith.constant dense<0.000000e+00> : vector<8x1024xf32>
    %462 = tpu.matmul %461, %443, %cst_109 {dimension_numbers = #tpu.dot_dimension_numbers<[1], [0], [0], [1], [0, 0, 1, 1], [], []>} : vector<8x64xbf16>, vector<64x1024xbf16>, vector<8x1024xf32> -> vector<8x1024xf32>
    %463 = arith.index_cast %456 : i32 to index
    %c0_110 = arith.constant 0 : index
    %464 = vector.load %arg10[%463, %c0_110] : memref<64x1024xf32, #tpu.memory_space<vmem>>, vector<8x512xf32>
    %465 = vector.extract_strided_slice %462 {offsets = [0, 0], sizes = [8, 512], strides = [1, 1]} : vector<8x1024xf32> to vector<8x512xf32>
    %466 = arith.addf %464, %465 : vector<8x512xf32>
    %467 = arith.index_cast %459 : i32 to index
    %c512_111 = arith.constant 512 : index
    %468 = vector.load %arg10[%467, %c512_111] : memref<64x1024xf32, #tpu.memory_space<vmem>>, vector<8x512xf32>
    %469 = vector.extract_strided_slice %462 {offsets = [0, 512], sizes = [8, 512], strides = [1, 1]} : vector<8x1024xf32> to vector<8x512xf32>
    %470 = arith.addf %468, %469 : vector<8x512xf32>
    %471 = vector.extract_strided_slice %466 {offsets = [0, 0], sizes = [8, 384], strides = [1, 1]} : vector<8x512xf32> to vector<8x384xf32>
    %472 = arith.negf %471 : vector<8x384xf32>
    %473 = math.exp %472 : vector<8x384xf32>
    %cst_112 = arith.constant 1.000000e+00 : f32
    %474 = vector.broadcast %cst_112 : f32 to vector<8x384xf32>
    %475 = arith.addf %474, %473 : vector<8x384xf32>
    %476 = arith.divf %474, %475 : vector<8x384xf32>
    %477 = vector.extract_strided_slice %476 {offsets = [0, 0], sizes = [8, 128], strides = [1, 1]} : vector<8x384xf32> to vector<8x128xf32>
    %478 = vector.extract_strided_slice %476 {offsets = [0, 128], sizes = [8, 128], strides = [1, 1]} : vector<8x384xf32> to vector<8x128xf32>
    %479 = vector.extract_strided_slice %476 {offsets = [0, 256], sizes = [8, 128], strides = [1, 1]} : vector<8x384xf32> to vector<8x128xf32>
    %480 = vector.extract_strided_slice %466 {offsets = [0, 384], sizes = [8, 128], strides = [1, 1]} : vector<8x512xf32> to vector<8x128xf32>
    %481 = math.tanh %480 : vector<8x128xf32>
    %482 = arith.mulf %478, %454 : vector<8x128xf32>
    %483 = arith.mulf %477, %481 : vector<8x128xf32>
    %484 = arith.addf %482, %483 : vector<8x128xf32>
    %485 = math.tanh %484 : vector<8x128xf32>
    %486 = arith.mulf %479, %485 : vector<8x128xf32>
    %487 = vector.extract_strided_slice %470 {offsets = [0, 0], sizes = [8, 384], strides = [1, 1]} : vector<8x512xf32> to vector<8x384xf32>
    %488 = arith.negf %487 : vector<8x384xf32>
    %489 = math.exp %488 : vector<8x384xf32>
    %cst_113 = arith.constant 1.000000e+00 : f32
    %490 = vector.broadcast %cst_113 : f32 to vector<8x384xf32>
    %491 = arith.addf %490, %489 : vector<8x384xf32>
    %492 = arith.divf %490, %491 : vector<8x384xf32>
    %493 = vector.extract_strided_slice %492 {offsets = [0, 0], sizes = [8, 128], strides = [1, 1]} : vector<8x384xf32> to vector<8x128xf32>
    %494 = vector.extract_strided_slice %492 {offsets = [0, 128], sizes = [8, 128], strides = [1, 1]} : vector<8x384xf32> to vector<8x128xf32>
    %495 = vector.extract_strided_slice %492 {offsets = [0, 256], sizes = [8, 128], strides = [1, 1]} : vector<8x384xf32> to vector<8x128xf32>
    %496 = vector.extract_strided_slice %470 {offsets = [0, 384], sizes = [8, 128], strides = [1, 1]} : vector<8x512xf32> to vector<8x128xf32>
    %497 = math.tanh %496 : vector<8x128xf32>
    %498 = arith.mulf %494, %454 : vector<8x128xf32>
    %499 = arith.mulf %493, %497 : vector<8x128xf32>
    %500 = arith.addf %498, %499 : vector<8x128xf32>
    %501 = math.tanh %500 : vector<8x128xf32>
    %502 = arith.mulf %495, %501 : vector<8x128xf32>
    %503 = vector.extract_strided_slice %486 {offsets = [0, 0], sizes = [8, 32], strides = [1, 1]} : vector<8x128xf32> to vector<8x32xf32>
    %504 = vector.extract_strided_slice %502 {offsets = [0, 0], sizes = [8, 32], strides = [1, 1]} : vector<8x128xf32> to vector<8x32xf32>
    %505 = arith.index_cast %456 : i32 to index
    %c0_114 = arith.constant 0 : index
    %506 = vector.load %arg11[%505, %c0_114] : memref<64x32xf32, #tpu.memory_space<vmem>>, vector<8x32xf32>
    tpu.vector_store %arg11[%505, %c0_114], %503 {strides = array<i32>} : memref<64x32xf32, #tpu.memory_space<vmem>>, vector<8x32xf32>,
    %507 = arith.index_cast %459 : i32 to index
    %c0_115 = arith.constant 0 : index
    %508 = vector.load %arg12[%507, %c0_115] : memref<64x32xf32, #tpu.memory_space<vmem>>, vector<8x32xf32>
    tpu.vector_store %arg12[%507, %c0_115], %504 {strides = array<i32>} : memref<64x32xf32, #tpu.memory_space<vmem>>, vector<8x32xf32>,
    %c1_i32_116 = arith.constant 1 : i32
    %c8_i32_117 = arith.constant 8 : i32
    %509 = arith.muli %c1_i32_116, %c8_i32_117 : i32
    %510 = tpu.assume_multiple %509, 8 : i32
    %c7_i32_118 = arith.constant 7 : i32
    %511 = arith.subi %c7_i32_118, %c1_i32_116 : i32
    %c8_i32_119 = arith.constant 8 : i32
    %512 = arith.muli %511, %c8_i32_119 : i32
    %513 = tpu.assume_multiple %512, 8 : i32
    %514 = tpu.concatenate %503, %504 in 1 : vector<8x32xf32>, vector<8x32xf32> -> vector<8x64xf32>
    %515 = arith.truncf %514 : vector<8x64xf32> to vector<8x64xbf16>
    %cst_120 = arith.constant dense<0.000000e+00> : vector<8x1024xf32>
    %516 = tpu.matmul %515, %443, %cst_120 {dimension_numbers = #tpu.dot_dimension_numbers<[1], [0], [0], [1], [0, 0, 1, 1], [], []>} : vector<8x64xbf16>, vector<64x1024xbf16>, vector<8x1024xf32> -> vector<8x1024xf32>
    %517 = arith.index_cast %510 : i32 to index
    %c0_121 = arith.constant 0 : index
    %518 = vector.load %arg10[%517, %c0_121] : memref<64x1024xf32, #tpu.memory_space<vmem>>, vector<8x512xf32>
    %519 = vector.extract_strided_slice %516 {offsets = [0, 0], sizes = [8, 512], strides = [1, 1]} : vector<8x1024xf32> to vector<8x512xf32>
    %520 = arith.addf %518, %519 : vector<8x512xf32>
    %521 = arith.index_cast %513 : i32 to index
    %c512_122 = arith.constant 512 : index
    %522 = vector.load %arg10[%521, %c512_122] : memref<64x1024xf32, #tpu.memory_space<vmem>>, vector<8x512xf32>
    %523 = vector.extract_strided_slice %516 {offsets = [0, 512], sizes = [8, 512], strides = [1, 1]} : vector<8x1024xf32> to vector<8x512xf32>
    %524 = arith.addf %522, %523 : vector<8x512xf32>
    %525 = vector.extract_strided_slice %520 {offsets = [0, 0], sizes = [8, 384], strides = [1, 1]} : vector<8x512xf32> to vector<8x384xf32>
    %526 = arith.negf %525 : vector<8x384xf32>
    %527 = math.exp %526 : vector<8x384xf32>
    %cst_123 = arith.constant 1.000000e+00 : f32
    %528 = vector.broadcast %cst_123 : f32 to vector<8x384xf32>
    %529 = arith.addf %528, %527 : vector<8x384xf32>
    %530 = arith.divf %528, %529 : vector<8x384xf32>
    %531 = vector.extract_strided_slice %530 {offsets = [0, 0], sizes = [8, 128], strides = [1, 1]} : vector<8x384xf32> to vector<8x128xf32>
    %532 = vector.extract_strided_slice %530 {offsets = [0, 128], sizes = [8, 128], strides = [1, 1]} : vector<8x384xf32> to vector<8x128xf32>
    %533 = vector.extract_strided_slice %530 {offsets = [0, 256], sizes = [8, 128], strides = [1, 1]} : vector<8x384xf32> to vector<8x128xf32>
    %534 = vector.extract_strided_slice %520 {offsets = [0, 384], sizes = [8, 128], strides = [1, 1]} : vector<8x512xf32> to vector<8x128xf32>
    %535 = math.tanh %534 : vector<8x128xf32>
    %536 = arith.mulf %532, %484 : vector<8x128xf32>
    %537 = arith.mulf %531, %535 : vector<8x128xf32>
    %538 = arith.addf %536, %537 : vector<8x128xf32>
    %539 = math.tanh %538 : vector<8x128xf32>
    %540 = arith.mulf %533, %539 : vector<8x128xf32>
    %541 = vector.extract_strided_slice %524 {offsets = [0, 0], sizes = [8, 384], strides = [1, 1]} : vector<8x512xf32> to vector<8x384xf32>
    %542 = arith.negf %541 : vector<8x384xf32>
    %543 = math.exp %542 : vector<8x384xf32>
    %cst_124 = arith.constant 1.000000e+00 : f32
    %544 = vector.broadcast %cst_124 : f32 to vector<8x384xf32>
    %545 = arith.addf %544, %543 : vector<8x384xf32>
    %546 = arith.divf %544, %545 : vector<8x384xf32>
    %547 = vector.extract_strided_slice %546 {offsets = [0, 0], sizes = [8, 128], strides = [1, 1]} : vector<8x384xf32> to vector<8x128xf32>
    %548 = vector.extract_strided_slice %546 {offsets = [0, 128], sizes = [8, 128], strides = [1, 1]} : vector<8x384xf32> to vector<8x128xf32>
    %549 = vector.extract_strided_slice %546 {offsets = [0, 256], sizes = [8, 128], strides = [1, 1]} : vector<8x384xf32> to vector<8x128xf32>
    %550 = vector.extract_strided_slice %524 {offsets = [0, 384], sizes = [8, 128], strides = [1, 1]} : vector<8x512xf32> to vector<8x128xf32>
    %551 = math.tanh %550 : vector<8x128xf32>
    %552 = arith.mulf %548, %500 : vector<8x128xf32>
    %553 = arith.mulf %547, %551 : vector<8x128xf32>
    %554 = arith.addf %552, %553 : vector<8x128xf32>
    %555 = math.tanh %554 : vector<8x128xf32>
    %556 = arith.mulf %549, %555 : vector<8x128xf32>
    %557 = vector.extract_strided_slice %540 {offsets = [0, 0], sizes = [8, 32], strides = [1, 1]} : vector<8x128xf32> to vector<8x32xf32>
    %558 = vector.extract_strided_slice %556 {offsets = [0, 0], sizes = [8, 32], strides = [1, 1]} : vector<8x128xf32> to vector<8x32xf32>
    %559 = arith.index_cast %510 : i32 to index
    %c0_125 = arith.constant 0 : index
    %560 = vector.load %arg11[%559, %c0_125] : memref<64x32xf32, #tpu.memory_space<vmem>>, vector<8x32xf32>
    tpu.vector_store %arg11[%559, %c0_125], %557 {strides = array<i32>} : memref<64x32xf32, #tpu.memory_space<vmem>>, vector<8x32xf32>,
    %561 = arith.index_cast %513 : i32 to index
    %c0_126 = arith.constant 0 : index
    %562 = vector.load %arg12[%561, %c0_126] : memref<64x32xf32, #tpu.memory_space<vmem>>, vector<8x32xf32>
    tpu.vector_store %arg12[%561, %c0_126], %558 {strides = array<i32>} : memref<64x32xf32, #tpu.memory_space<vmem>>, vector<8x32xf32>,
    %c2_i32_127 = arith.constant 2 : i32
    %c8_i32_128 = arith.constant 8 : i32
    %563 = arith.muli %c2_i32_127, %c8_i32_128 : i32
    %564 = tpu.assume_multiple %563, 8 : i32
    %c7_i32_129 = arith.constant 7 : i32
    %565 = arith.subi %c7_i32_129, %c2_i32_127 : i32
    %c8_i32_130 = arith.constant 8 : i32
    %566 = arith.muli %565, %c8_i32_130 : i32
    %567 = tpu.assume_multiple %566, 8 : i32
    %568 = tpu.concatenate %557, %558 in 1 : vector<8x32xf32>, vector<8x32xf32> -> vector<8x64xf32>
    %569 = arith.truncf %568 : vector<8x64xf32> to vector<8x64xbf16>
    %cst_131 = arith.constant dense<0.000000e+00> : vector<8x1024xf32>
    %570 = tpu.matmul %569, %443, %cst_131 {dimension_numbers = #tpu.dot_dimension_numbers<[1], [0], [0], [1], [0, 0, 1, 1], [], []>} : vector<8x64xbf16>, vector<64x1024xbf16>, vector<8x1024xf32> -> vector<8x1024xf32>
    %571 = arith.index_cast %564 : i32 to index
    %c0_132 = arith.constant 0 : index
    %572 = vector.load %arg10[%571, %c0_132] : memref<64x1024xf32, #tpu.memory_space<vmem>>, vector<8x512xf32>
    %573 = vector.extract_strided_slice %570 {offsets = [0, 0], sizes = [8, 512], strides = [1, 1]} : vector<8x1024xf32> to vector<8x512xf32>
    %574 = arith.addf %572, %573 : vector<8x512xf32>
    %575 = arith.index_cast %567 : i32 to index
    %c512_133 = arith.constant 512 : index
    %576 = vector.load %arg10[%575, %c512_133] : memref<64x1024xf32, #tpu.memory_space<vmem>>, vector<8x512xf32>
    %577 = vector.extract_strided_slice %570 {offsets = [0, 512], sizes = [8, 512], strides = [1, 1]} : vector<8x1024xf32> to vector<8x512xf32>
    %578 = arith.addf %576, %577 : vector<8x512xf32>
    %579 = vector.extract_strided_slice %574 {offsets = [0, 0], sizes = [8, 384], strides = [1, 1]} : vector<8x512xf32> to vector<8x384xf32>
    %580 = arith.negf %579 : vector<8x384xf32>
    %581 = math.exp %580 : vector<8x384xf32>
    %cst_134 = arith.constant 1.000000e+00 : f32
    %582 = vector.broadcast %cst_134 : f32 to vector<8x384xf32>
    %583 = arith.addf %582, %581 : vector<8x384xf32>
    %584 = arith.divf %582, %583 : vector<8x384xf32>
    %585 = vector.extract_strided_slice %584 {offsets = [0, 0], sizes = [8, 128], strides = [1, 1]} : vector<8x384xf32> to vector<8x128xf32>
    %586 = vector.extract_strided_slice %584 {offsets = [0, 128], sizes = [8, 128], strides = [1, 1]} : vector<8x384xf32> to vector<8x128xf32>
    %587 = vector.extract_strided_slice %584 {offsets = [0, 256], sizes = [8, 128], strides = [1, 1]} : vector<8x384xf32> to vector<8x128xf32>
    %588 = vector.extract_strided_slice %574 {offsets = [0, 384], sizes = [8, 128], strides = [1, 1]} : vector<8x512xf32> to vector<8x128xf32>
    %589 = math.tanh %588 : vector<8x128xf32>
    %590 = arith.mulf %586, %538 : vector<8x128xf32>
    %591 = arith.mulf %585, %589 : vector<8x128xf32>
    %592 = arith.addf %590, %591 : vector<8x128xf32>
    %593 = math.tanh %592 : vector<8x128xf32>
    %594 = arith.mulf %587, %593 : vector<8x128xf32>
    %595 = vector.extract_strided_slice %578 {offsets = [0, 0], sizes = [8, 384], strides = [1, 1]} : vector<8x512xf32> to vector<8x384xf32>
    %596 = arith.negf %595 : vector<8x384xf32>
    %597 = math.exp %596 : vector<8x384xf32>
    %cst_135 = arith.constant 1.000000e+00 : f32
    %598 = vector.broadcast %cst_135 : f32 to vector<8x384xf32>
    %599 = arith.addf %598, %597 : vector<8x384xf32>
    %600 = arith.divf %598, %599 : vector<8x384xf32>
    %601 = vector.extract_strided_slice %600 {offsets = [0, 0], sizes = [8, 128], strides = [1, 1]} : vector<8x384xf32> to vector<8x128xf32>
    %602 = vector.extract_strided_slice %600 {offsets = [0, 128], sizes = [8, 128], strides = [1, 1]} : vector<8x384xf32> to vector<8x128xf32>
    %603 = vector.extract_strided_slice %600 {offsets = [0, 256], sizes = [8, 128], strides = [1, 1]} : vector<8x384xf32> to vector<8x128xf32>
    %604 = vector.extract_strided_slice %578 {offsets = [0, 384], sizes = [8, 128], strides = [1, 1]} : vector<8x512xf32> to vector<8x128xf32>
    %605 = math.tanh %604 : vector<8x128xf32>
    %606 = arith.mulf %602, %554 : vector<8x128xf32>
    %607 = arith.mulf %601, %605 : vector<8x128xf32>
    %608 = arith.addf %606, %607 : vector<8x128xf32>
    %609 = math.tanh %608 : vector<8x128xf32>
    %610 = arith.mulf %603, %609 : vector<8x128xf32>
    %611 = vector.extract_strided_slice %594 {offsets = [0, 0], sizes = [8, 32], strides = [1, 1]} : vector<8x128xf32> to vector<8x32xf32>
    %612 = vector.extract_strided_slice %610 {offsets = [0, 0], sizes = [8, 32], strides = [1, 1]} : vector<8x128xf32> to vector<8x32xf32>
    %613 = arith.index_cast %564 : i32 to index
    %c0_136 = arith.constant 0 : index
    %614 = vector.load %arg11[%613, %c0_136] : memref<64x32xf32, #tpu.memory_space<vmem>>, vector<8x32xf32>
    tpu.vector_store %arg11[%613, %c0_136], %611 {strides = array<i32>} : memref<64x32xf32, #tpu.memory_space<vmem>>, vector<8x32xf32>,
    %615 = arith.index_cast %567 : i32 to index
    %c0_137 = arith.constant 0 : index
    %616 = vector.load %arg12[%615, %c0_137] : memref<64x32xf32, #tpu.memory_space<vmem>>, vector<8x32xf32>
    tpu.vector_store %arg12[%615, %c0_137], %612 {strides = array<i32>} : memref<64x32xf32, #tpu.memory_space<vmem>>, vector<8x32xf32>,
    %c3_i32_138 = arith.constant 3 : i32
    %c8_i32_139 = arith.constant 8 : i32
    %617 = arith.muli %c3_i32_138, %c8_i32_139 : i32
    %618 = tpu.assume_multiple %617, 8 : i32
    %c7_i32_140 = arith.constant 7 : i32
    %619 = arith.subi %c7_i32_140, %c3_i32_138 : i32
    %c8_i32_141 = arith.constant 8 : i32
    %620 = arith.muli %619, %c8_i32_141 : i32
    %621 = tpu.assume_multiple %620, 8 : i32
    %622 = tpu.concatenate %611, %612 in 1 : vector<8x32xf32>, vector<8x32xf32> -> vector<8x64xf32>
    %623 = arith.truncf %622 : vector<8x64xf32> to vector<8x64xbf16>
    %cst_142 = arith.constant dense<0.000000e+00> : vector<8x1024xf32>
    %624 = tpu.matmul %623, %443, %cst_142 {dimension_numbers = #tpu.dot_dimension_numbers<[1], [0], [0], [1], [0, 0, 1, 1], [], []>} : vector<8x64xbf16>, vector<64x1024xbf16>, vector<8x1024xf32> -> vector<8x1024xf32>
    %625 = arith.index_cast %618 : i32 to index
    %c0_143 = arith.constant 0 : index
    %626 = vector.load %arg10[%625, %c0_143] : memref<64x1024xf32, #tpu.memory_space<vmem>>, vector<8x512xf32>
    %627 = vector.extract_strided_slice %624 {offsets = [0, 0], sizes = [8, 512], strides = [1, 1]} : vector<8x1024xf32> to vector<8x512xf32>
    %628 = arith.addf %626, %627 : vector<8x512xf32>
    %629 = arith.index_cast %621 : i32 to index
    %c512_144 = arith.constant 512 : index
    %630 = vector.load %arg10[%629, %c512_144] : memref<64x1024xf32, #tpu.memory_space<vmem>>, vector<8x512xf32>
    %631 = vector.extract_strided_slice %624 {offsets = [0, 512], sizes = [8, 512], strides = [1, 1]} : vector<8x1024xf32> to vector<8x512xf32>
    %632 = arith.addf %630, %631 : vector<8x512xf32>
    %633 = vector.extract_strided_slice %628 {offsets = [0, 0], sizes = [8, 384], strides = [1, 1]} : vector<8x512xf32> to vector<8x384xf32>
    %634 = arith.negf %633 : vector<8x384xf32>
    %635 = math.exp %634 : vector<8x384xf32>
    %cst_145 = arith.constant 1.000000e+00 : f32
    %636 = vector.broadcast %cst_145 : f32 to vector<8x384xf32>
    %637 = arith.addf %636, %635 : vector<8x384xf32>
    %638 = arith.divf %636, %637 : vector<8x384xf32>
    %639 = vector.extract_strided_slice %638 {offsets = [0, 0], sizes = [8, 128], strides = [1, 1]} : vector<8x384xf32> to vector<8x128xf32>
    %640 = vector.extract_strided_slice %638 {offsets = [0, 128], sizes = [8, 128], strides = [1, 1]} : vector<8x384xf32> to vector<8x128xf32>
    %641 = vector.extract_strided_slice %638 {offsets = [0, 256], sizes = [8, 128], strides = [1, 1]} : vector<8x384xf32> to vector<8x128xf32>
    %642 = vector.extract_strided_slice %628 {offsets = [0, 384], sizes = [8, 128], strides = [1, 1]} : vector<8x512xf32> to vector<8x128xf32>
    %643 = math.tanh %642 : vector<8x128xf32>
    %644 = arith.mulf %640, %592 : vector<8x128xf32>
    %645 = arith.mulf %639, %643 : vector<8x128xf32>
    %646 = arith.addf %644, %645 : vector<8x128xf32>
    %647 = math.tanh %646 : vector<8x128xf32>
    %648 = arith.mulf %641, %647 : vector<8x128xf32>
    %649 = vector.extract_strided_slice %632 {offsets = [0, 0], sizes = [8, 384], strides = [1, 1]} : vector<8x512xf32> to vector<8x384xf32>
    %650 = arith.negf %649 : vector<8x384xf32>
    %651 = math.exp %650 : vector<8x384xf32>
    %cst_146 = arith.constant 1.000000e+00 : f32
    %652 = vector.broadcast %cst_146 : f32 to vector<8x384xf32>
    %653 = arith.addf %652, %651 : vector<8x384xf32>
    %654 = arith.divf %652, %653 : vector<8x384xf32>
    %655 = vector.extract_strided_slice %654 {offsets = [0, 0], sizes = [8, 128], strides = [1, 1]} : vector<8x384xf32> to vector<8x128xf32>
    %656 = vector.extract_strided_slice %654 {offsets = [0, 128], sizes = [8, 128], strides = [1, 1]} : vector<8x384xf32> to vector<8x128xf32>
    %657 = vector.extract_strided_slice %654 {offsets = [0, 256], sizes = [8, 128], strides = [1, 1]} : vector<8x384xf32> to vector<8x128xf32>
    %658 = vector.extract_strided_slice %632 {offsets = [0, 384], sizes = [8, 128], strides = [1, 1]} : vector<8x512xf32> to vector<8x128xf32>
    %659 = math.tanh %658 : vector<8x128xf32>
    %660 = arith.mulf %656, %608 : vector<8x128xf32>
    %661 = arith.mulf %655, %659 : vector<8x128xf32>
    %662 = arith.addf %660, %661 : vector<8x128xf32>
    %663 = math.tanh %662 : vector<8x128xf32>
    %664 = arith.mulf %657, %663 : vector<8x128xf32>
    %665 = vector.extract_strided_slice %648 {offsets = [0, 0], sizes = [8, 32], strides = [1, 1]} : vector<8x128xf32> to vector<8x32xf32>
    %666 = vector.extract_strided_slice %664 {offsets = [0, 0], sizes = [8, 32], strides = [1, 1]} : vector<8x128xf32> to vector<8x32xf32>
    %667 = arith.index_cast %618 : i32 to index
    %c0_147 = arith.constant 0 : index
    %668 = vector.load %arg11[%667, %c0_147] : memref<64x32xf32, #tpu.memory_space<vmem>>, vector<8x32xf32>
    tpu.vector_store %arg11[%667, %c0_147], %665 {strides = array<i32>} : memref<64x32xf32, #tpu.memory_space<vmem>>, vector<8x32xf32>,
    %669 = arith.index_cast %621 : i32 to index
    %c0_148 = arith.constant 0 : index
    %670 = vector.load %arg12[%669, %c0_148] : memref<64x32xf32, #tpu.memory_space<vmem>>, vector<8x32xf32>
    tpu.vector_store %arg12[%669, %c0_148], %666 {strides = array<i32>} : memref<64x32xf32, #tpu.memory_space<vmem>>, vector<8x32xf32>,
    %c4_i32_149 = arith.constant 4 : i32
    %c8_i32_150 = arith.constant 8 : i32
    %671 = arith.muli %c4_i32_149, %c8_i32_150 : i32
    %672 = tpu.assume_multiple %671, 8 : i32
    %c7_i32_151 = arith.constant 7 : i32
    %673 = arith.subi %c7_i32_151, %c4_i32_149 : i32
    %c8_i32_152 = arith.constant 8 : i32
    %674 = arith.muli %673, %c8_i32_152 : i32
    %675 = tpu.assume_multiple %674, 8 : i32
    %676 = tpu.concatenate %665, %666 in 1 : vector<8x32xf32>, vector<8x32xf32> -> vector<8x64xf32>
    %677 = arith.truncf %676 : vector<8x64xf32> to vector<8x64xbf16>
    %cst_153 = arith.constant dense<0.000000e+00> : vector<8x1024xf32>
    %678 = tpu.matmul %677, %443, %cst_153 {dimension_numbers = #tpu.dot_dimension_numbers<[1], [0], [0], [1], [0, 0, 1, 1], [], []>} : vector<8x64xbf16>, vector<64x1024xbf16>, vector<8x1024xf32> -> vector<8x1024xf32>
    %679 = arith.index_cast %672 : i32 to index
    %c0_154 = arith.constant 0 : index
    %680 = vector.load %arg10[%679, %c0_154] : memref<64x1024xf32, #tpu.memory_space<vmem>>, vector<8x512xf32>
    %681 = vector.extract_strided_slice %678 {offsets = [0, 0], sizes = [8, 512], strides = [1, 1]} : vector<8x1024xf32> to vector<8x512xf32>
    %682 = arith.addf %680, %681 : vector<8x512xf32>
    %683 = arith.index_cast %675 : i32 to index
    %c512_155 = arith.constant 512 : index
    %684 = vector.load %arg10[%683, %c512_155] : memref<64x1024xf32, #tpu.memory_space<vmem>>, vector<8x512xf32>
    %685 = vector.extract_strided_slice %678 {offsets = [0, 512], sizes = [8, 512], strides = [1, 1]} : vector<8x1024xf32> to vector<8x512xf32>
    %686 = arith.addf %684, %685 : vector<8x512xf32>
    %687 = vector.extract_strided_slice %682 {offsets = [0, 0], sizes = [8, 384], strides = [1, 1]} : vector<8x512xf32> to vector<8x384xf32>
    %688 = arith.negf %687 : vector<8x384xf32>
    %689 = math.exp %688 : vector<8x384xf32>
    %cst_156 = arith.constant 1.000000e+00 : f32
    %690 = vector.broadcast %cst_156 : f32 to vector<8x384xf32>
    %691 = arith.addf %690, %689 : vector<8x384xf32>
    %692 = arith.divf %690, %691 : vector<8x384xf32>
    %693 = vector.extract_strided_slice %692 {offsets = [0, 0], sizes = [8, 128], strides = [1, 1]} : vector<8x384xf32> to vector<8x128xf32>
    %694 = vector.extract_strided_slice %692 {offsets = [0, 128], sizes = [8, 128], strides = [1, 1]} : vector<8x384xf32> to vector<8x128xf32>
    %695 = vector.extract_strided_slice %692 {offsets = [0, 256], sizes = [8, 128], strides = [1, 1]} : vector<8x384xf32> to vector<8x128xf32>
    %696 = vector.extract_strided_slice %682 {offsets = [0, 384], sizes = [8, 128], strides = [1, 1]} : vector<8x512xf32> to vector<8x128xf32>
    %697 = math.tanh %696 : vector<8x128xf32>
    %698 = arith.mulf %694, %646 : vector<8x128xf32>
    %699 = arith.mulf %693, %697 : vector<8x128xf32>
    %700 = arith.addf %698, %699 : vector<8x128xf32>
    %701 = math.tanh %700 : vector<8x128xf32>
    %702 = arith.mulf %695, %701 : vector<8x128xf32>
    %703 = vector.extract_strided_slice %686 {offsets = [0, 0], sizes = [8, 384], strides = [1, 1]} : vector<8x512xf32> to vector<8x384xf32>
    %704 = arith.negf %703 : vector<8x384xf32>
    %705 = math.exp %704 : vector<8x384xf32>
    %cst_157 = arith.constant 1.000000e+00 : f32
    %706 = vector.broadcast %cst_157 : f32 to vector<8x384xf32>
    %707 = arith.addf %706, %705 : vector<8x384xf32>
    %708 = arith.divf %706, %707 : vector<8x384xf32>
    %709 = vector.extract_strided_slice %708 {offsets = [0, 0], sizes = [8, 128], strides = [1, 1]} : vector<8x384xf32> to vector<8x128xf32>
    %710 = vector.extract_strided_slice %708 {offsets = [0, 128], sizes = [8, 128], strides = [1, 1]} : vector<8x384xf32> to vector<8x128xf32>
    %711 = vector.extract_strided_slice %708 {offsets = [0, 256], sizes = [8, 128], strides = [1, 1]} : vector<8x384xf32> to vector<8x128xf32>
    %712 = vector.extract_strided_slice %686 {offsets = [0, 384], sizes = [8, 128], strides = [1, 1]} : vector<8x512xf32> to vector<8x128xf32>
    %713 = math.tanh %712 : vector<8x128xf32>
    %714 = arith.mulf %710, %662 : vector<8x128xf32>
    %715 = arith.mulf %709, %713 : vector<8x128xf32>
    %716 = arith.addf %714, %715 : vector<8x128xf32>
    %717 = math.tanh %716 : vector<8x128xf32>
    %718 = arith.mulf %711, %717 : vector<8x128xf32>
    %719 = vector.extract_strided_slice %702 {offsets = [0, 0], sizes = [8, 32], strides = [1, 1]} : vector<8x128xf32> to vector<8x32xf32>
    %720 = vector.extract_strided_slice %718 {offsets = [0, 0], sizes = [8, 32], strides = [1, 1]} : vector<8x128xf32> to vector<8x32xf32>
    %721 = arith.index_cast %672 : i32 to index
    %c0_158 = arith.constant 0 : index
    %722 = vector.load %arg11[%721, %c0_158] : memref<64x32xf32, #tpu.memory_space<vmem>>, vector<8x32xf32>
    tpu.vector_store %arg11[%721, %c0_158], %719 {strides = array<i32>} : memref<64x32xf32, #tpu.memory_space<vmem>>, vector<8x32xf32>,
    %723 = arith.index_cast %675 : i32 to index
    %c0_159 = arith.constant 0 : index
    %724 = vector.load %arg12[%723, %c0_159] : memref<64x32xf32, #tpu.memory_space<vmem>>, vector<8x32xf32>
    tpu.vector_store %arg12[%723, %c0_159], %720 {strides = array<i32>} : memref<64x32xf32, #tpu.memory_space<vmem>>, vector<8x32xf32>,
    %c5_i32_160 = arith.constant 5 : i32
    %c8_i32_161 = arith.constant 8 : i32
    %725 = arith.muli %c5_i32_160, %c8_i32_161 : i32
    %726 = tpu.assume_multiple %725, 8 : i32
    %c7_i32_162 = arith.constant 7 : i32
    %727 = arith.subi %c7_i32_162, %c5_i32_160 : i32
    %c8_i32_163 = arith.constant 8 : i32
    %728 = arith.muli %727, %c8_i32_163 : i32
    %729 = tpu.assume_multiple %728, 8 : i32
    %730 = tpu.concatenate %719, %720 in 1 : vector<8x32xf32>, vector<8x32xf32> -> vector<8x64xf32>
    %731 = arith.truncf %730 : vector<8x64xf32> to vector<8x64xbf16>
    %cst_164 = arith.constant dense<0.000000e+00> : vector<8x1024xf32>
    %732 = tpu.matmul %731, %443, %cst_164 {dimension_numbers = #tpu.dot_dimension_numbers<[1], [0], [0], [1], [0, 0, 1, 1], [], []>} : vector<8x64xbf16>, vector<64x1024xbf16>, vector<8x1024xf32> -> vector<8x1024xf32>
    %733 = arith.index_cast %726 : i32 to index
    %c0_165 = arith.constant 0 : index
    %734 = vector.load %arg10[%733, %c0_165] : memref<64x1024xf32, #tpu.memory_space<vmem>>, vector<8x512xf32>
    %735 = vector.extract_strided_slice %732 {offsets = [0, 0], sizes = [8, 512], strides = [1, 1]} : vector<8x1024xf32> to vector<8x512xf32>
    %736 = arith.addf %734, %735 : vector<8x512xf32>
    %737 = arith.index_cast %729 : i32 to index
    %c512_166 = arith.constant 512 : index
    %738 = vector.load %arg10[%737, %c512_166] : memref<64x1024xf32, #tpu.memory_space<vmem>>, vector<8x512xf32>
    %739 = vector.extract_strided_slice %732 {offsets = [0, 512], sizes = [8, 512], strides = [1, 1]} : vector<8x1024xf32> to vector<8x512xf32>
    %740 = arith.addf %738, %739 : vector<8x512xf32>
    %741 = vector.extract_strided_slice %736 {offsets = [0, 0], sizes = [8, 384], strides = [1, 1]} : vector<8x512xf32> to vector<8x384xf32>
    %742 = arith.negf %741 : vector<8x384xf32>
    %743 = math.exp %742 : vector<8x384xf32>
    %cst_167 = arith.constant 1.000000e+00 : f32
    %744 = vector.broadcast %cst_167 : f32 to vector<8x384xf32>
    %745 = arith.addf %744, %743 : vector<8x384xf32>
    %746 = arith.divf %744, %745 : vector<8x384xf32>
    %747 = vector.extract_strided_slice %746 {offsets = [0, 0], sizes = [8, 128], strides = [1, 1]} : vector<8x384xf32> to vector<8x128xf32>
    %748 = vector.extract_strided_slice %746 {offsets = [0, 128], sizes = [8, 128], strides = [1, 1]} : vector<8x384xf32> to vector<8x128xf32>
    %749 = vector.extract_strided_slice %746 {offsets = [0, 256], sizes = [8, 128], strides = [1, 1]} : vector<8x384xf32> to vector<8x128xf32>
    %750 = vector.extract_strided_slice %736 {offsets = [0, 384], sizes = [8, 128], strides = [1, 1]} : vector<8x512xf32> to vector<8x128xf32>
    %751 = math.tanh %750 : vector<8x128xf32>
    %752 = arith.mulf %748, %700 : vector<8x128xf32>
    %753 = arith.mulf %747, %751 : vector<8x128xf32>
    %754 = arith.addf %752, %753 : vector<8x128xf32>
    %755 = math.tanh %754 : vector<8x128xf32>
    %756 = arith.mulf %749, %755 : vector<8x128xf32>
    %757 = vector.extract_strided_slice %740 {offsets = [0, 0], sizes = [8, 384], strides = [1, 1]} : vector<8x512xf32> to vector<8x384xf32>
    %758 = arith.negf %757 : vector<8x384xf32>
    %759 = math.exp %758 : vector<8x384xf32>
    %cst_168 = arith.constant 1.000000e+00 : f32
    %760 = vector.broadcast %cst_168 : f32 to vector<8x384xf32>
    %761 = arith.addf %760, %759 : vector<8x384xf32>
    %762 = arith.divf %760, %761 : vector<8x384xf32>
    %763 = vector.extract_strided_slice %762 {offsets = [0, 0], sizes = [8, 128], strides = [1, 1]} : vector<8x384xf32> to vector<8x128xf32>
    %764 = vector.extract_strided_slice %762 {offsets = [0, 128], sizes = [8, 128], strides = [1, 1]} : vector<8x384xf32> to vector<8x128xf32>
    %765 = vector.extract_strided_slice %762 {offsets = [0, 256], sizes = [8, 128], strides = [1, 1]} : vector<8x384xf32> to vector<8x128xf32>
    %766 = vector.extract_strided_slice %740 {offsets = [0, 384], sizes = [8, 128], strides = [1, 1]} : vector<8x512xf32> to vector<8x128xf32>
    %767 = math.tanh %766 : vector<8x128xf32>
    %768 = arith.mulf %764, %716 : vector<8x128xf32>
    %769 = arith.mulf %763, %767 : vector<8x128xf32>
    %770 = arith.addf %768, %769 : vector<8x128xf32>
    %771 = math.tanh %770 : vector<8x128xf32>
    %772 = arith.mulf %765, %771 : vector<8x128xf32>
    %773 = vector.extract_strided_slice %756 {offsets = [0, 0], sizes = [8, 32], strides = [1, 1]} : vector<8x128xf32> to vector<8x32xf32>
    %774 = vector.extract_strided_slice %772 {offsets = [0, 0], sizes = [8, 32], strides = [1, 1]} : vector<8x128xf32> to vector<8x32xf32>
    %775 = arith.index_cast %726 : i32 to index
    %c0_169 = arith.constant 0 : index
    %776 = vector.load %arg11[%775, %c0_169] : memref<64x32xf32, #tpu.memory_space<vmem>>, vector<8x32xf32>
    tpu.vector_store %arg11[%775, %c0_169], %773 {strides = array<i32>} : memref<64x32xf32, #tpu.memory_space<vmem>>, vector<8x32xf32>,
    %777 = arith.index_cast %729 : i32 to index
    %c0_170 = arith.constant 0 : index
    %778 = vector.load %arg12[%777, %c0_170] : memref<64x32xf32, #tpu.memory_space<vmem>>, vector<8x32xf32>
    tpu.vector_store %arg12[%777, %c0_170], %774 {strides = array<i32>} : memref<64x32xf32, #tpu.memory_space<vmem>>, vector<8x32xf32>,
    %c6_i32_171 = arith.constant 6 : i32
    %c8_i32_172 = arith.constant 8 : i32
    %779 = arith.muli %c6_i32_171, %c8_i32_172 : i32
    %780 = tpu.assume_multiple %779, 8 : i32
    %c7_i32_173 = arith.constant 7 : i32
    %781 = arith.subi %c7_i32_173, %c6_i32_171 : i32
    %c8_i32_174 = arith.constant 8 : i32
    %782 = arith.muli %781, %c8_i32_174 : i32
    %783 = tpu.assume_multiple %782, 8 : i32
    %784 = tpu.concatenate %773, %774 in 1 : vector<8x32xf32>, vector<8x32xf32> -> vector<8x64xf32>
    %785 = arith.truncf %784 : vector<8x64xf32> to vector<8x64xbf16>
    %cst_175 = arith.constant dense<0.000000e+00> : vector<8x1024xf32>
    %786 = tpu.matmul %785, %443, %cst_175 {dimension_numbers = #tpu.dot_dimension_numbers<[1], [0], [0], [1], [0, 0, 1, 1], [], []>} : vector<8x64xbf16>, vector<64x1024xbf16>, vector<8x1024xf32> -> vector<8x1024xf32>
    %787 = arith.index_cast %780 : i32 to index
    %c0_176 = arith.constant 0 : index
    %788 = vector.load %arg10[%787, %c0_176] : memref<64x1024xf32, #tpu.memory_space<vmem>>, vector<8x512xf32>
    %789 = vector.extract_strided_slice %786 {offsets = [0, 0], sizes = [8, 512], strides = [1, 1]} : vector<8x1024xf32> to vector<8x512xf32>
    %790 = arith.addf %788, %789 : vector<8x512xf32>
    %791 = arith.index_cast %783 : i32 to index
    %c512_177 = arith.constant 512 : index
    %792 = vector.load %arg10[%791, %c512_177] : memref<64x1024xf32, #tpu.memory_space<vmem>>, vector<8x512xf32>
    %793 = vector.extract_strided_slice %786 {offsets = [0, 512], sizes = [8, 512], strides = [1, 1]} : vector<8x1024xf32> to vector<8x512xf32>
    %794 = arith.addf %792, %793 : vector<8x512xf32>
    %795 = vector.extract_strided_slice %790 {offsets = [0, 0], sizes = [8, 384], strides = [1, 1]} : vector<8x512xf32> to vector<8x384xf32>
    %796 = arith.negf %795 : vector<8x384xf32>
    %797 = math.exp %796 : vector<8x384xf32>
    %cst_178 = arith.constant 1.000000e+00 : f32
    %798 = vector.broadcast %cst_178 : f32 to vector<8x384xf32>
    %799 = arith.addf %798, %797 : vector<8x384xf32>
    %800 = arith.divf %798, %799 : vector<8x384xf32>
    %801 = vector.extract_strided_slice %800 {offsets = [0, 0], sizes = [8, 128], strides = [1, 1]} : vector<8x384xf32> to vector<8x128xf32>
    %802 = vector.extract_strided_slice %800 {offsets = [0, 128], sizes = [8, 128], strides = [1, 1]} : vector<8x384xf32> to vector<8x128xf32>
    %803 = vector.extract_strided_slice %800 {offsets = [0, 256], sizes = [8, 128], strides = [1, 1]} : vector<8x384xf32> to vector<8x128xf32>
    %804 = vector.extract_strided_slice %790 {offsets = [0, 384], sizes = [8, 128], strides = [1, 1]} : vector<8x512xf32> to vector<8x128xf32>
    %805 = math.tanh %804 : vector<8x128xf32>
    %806 = arith.mulf %802, %754 : vector<8x128xf32>
    %807 = arith.mulf %801, %805 : vector<8x128xf32>
    %808 = arith.addf %806, %807 : vector<8x128xf32>
    %809 = math.tanh %808 : vector<8x128xf32>
    %810 = arith.mulf %803, %809 : vector<8x128xf32>
    %811 = vector.extract_strided_slice %794 {offsets = [0, 0], sizes = [8, 384], strides = [1, 1]} : vector<8x512xf32> to vector<8x384xf32>
    %812 = arith.negf %811 : vector<8x384xf32>
    %813 = math.exp %812 : vector<8x384xf32>
    %cst_179 = arith.constant 1.000000e+00 : f32
    %814 = vector.broadcast %cst_179 : f32 to vector<8x384xf32>
    %815 = arith.addf %814, %813 : vector<8x384xf32>
    %816 = arith.divf %814, %815 : vector<8x384xf32>
    %817 = vector.extract_strided_slice %816 {offsets = [0, 0], sizes = [8, 128], strides = [1, 1]} : vector<8x384xf32> to vector<8x128xf32>
    %818 = vector.extract_strided_slice %816 {offsets = [0, 128], sizes = [8, 128], strides = [1, 1]} : vector<8x384xf32> to vector<8x128xf32>
    %819 = vector.extract_strided_slice %816 {offsets = [0, 256], sizes = [8, 128], strides = [1, 1]} : vector<8x384xf32> to vector<8x128xf32>
    %820 = vector.extract_strided_slice %794 {offsets = [0, 384], sizes = [8, 128], strides = [1, 1]} : vector<8x512xf32> to vector<8x128xf32>
    %821 = math.tanh %820 : vector<8x128xf32>
    %822 = arith.mulf %818, %770 : vector<8x128xf32>
    %823 = arith.mulf %817, %821 : vector<8x128xf32>
    %824 = arith.addf %822, %823 : vector<8x128xf32>
    %825 = math.tanh %824 : vector<8x128xf32>
    %826 = arith.mulf %819, %825 : vector<8x128xf32>
    %827 = vector.extract_strided_slice %810 {offsets = [0, 0], sizes = [8, 32], strides = [1, 1]} : vector<8x128xf32> to vector<8x32xf32>
    %828 = vector.extract_strided_slice %826 {offsets = [0, 0], sizes = [8, 32], strides = [1, 1]} : vector<8x128xf32> to vector<8x32xf32>
    %829 = arith.index_cast %780 : i32 to index
    %c0_180 = arith.constant 0 : index
    %830 = vector.load %arg11[%829, %c0_180] : memref<64x32xf32, #tpu.memory_space<vmem>>, vector<8x32xf32>
    tpu.vector_store %arg11[%829, %c0_180], %827 {strides = array<i32>} : memref<64x32xf32, #tpu.memory_space<vmem>>, vector<8x32xf32>,
    %831 = arith.index_cast %783 : i32 to index
    %c0_181 = arith.constant 0 : index
    %832 = vector.load %arg12[%831, %c0_181] : memref<64x32xf32, #tpu.memory_space<vmem>>, vector<8x32xf32>
    tpu.vector_store %arg12[%831, %c0_181], %828 {strides = array<i32>} : memref<64x32xf32, #tpu.memory_space<vmem>>, vector<8x32xf32>,
    %c7_i32_182 = arith.constant 7 : i32
    %c8_i32_183 = arith.constant 8 : i32
    %833 = arith.muli %c7_i32_182, %c8_i32_183 : i32
    %834 = tpu.assume_multiple %833, 8 : i32
    %c7_i32_184 = arith.constant 7 : i32
    %835 = arith.subi %c7_i32_184, %c7_i32_182 : i32
    %c8_i32_185 = arith.constant 8 : i32
    %836 = arith.muli %835, %c8_i32_185 : i32
    %837 = tpu.assume_multiple %836, 8 : i32
    %838 = tpu.concatenate %827, %828 in 1 : vector<8x32xf32>, vector<8x32xf32> -> vector<8x64xf32>
    %839 = arith.truncf %838 : vector<8x64xf32> to vector<8x64xbf16>
    %cst_186 = arith.constant dense<0.000000e+00> : vector<8x1024xf32>
    %840 = tpu.matmul %839, %443, %cst_186 {dimension_numbers = #tpu.dot_dimension_numbers<[1], [0], [0], [1], [0, 0, 1, 1], [], []>} : vector<8x64xbf16>, vector<64x1024xbf16>, vector<8x1024xf32> -> vector<8x1024xf32>
    %841 = arith.index_cast %834 : i32 to index
    %c0_187 = arith.constant 0 : index
    %842 = vector.load %arg10[%841, %c0_187] : memref<64x1024xf32, #tpu.memory_space<vmem>>, vector<8x512xf32>
    %843 = vector.extract_strided_slice %840 {offsets = [0, 0], sizes = [8, 512], strides = [1, 1]} : vector<8x1024xf32> to vector<8x512xf32>
    %844 = arith.addf %842, %843 : vector<8x512xf32>
    %845 = arith.index_cast %837 : i32 to index
    %c512_188 = arith.constant 512 : index
    %846 = vector.load %arg10[%845, %c512_188] : memref<64x1024xf32, #tpu.memory_space<vmem>>, vector<8x512xf32>
    %847 = vector.extract_strided_slice %840 {offsets = [0, 512], sizes = [8, 512], strides = [1, 1]} : vector<8x1024xf32> to vector<8x512xf32>
    %848 = arith.addf %846, %847 : vector<8x512xf32>
    %849 = vector.extract_strided_slice %844 {offsets = [0, 0], sizes = [8, 384], strides = [1, 1]} : vector<8x512xf32> to vector<8x384xf32>
    %850 = arith.negf %849 : vector<8x384xf32>
    %851 = math.exp %850 : vector<8x384xf32>
    %cst_189 = arith.constant 1.000000e+00 : f32
    %852 = vector.broadcast %cst_189 : f32 to vector<8x384xf32>
    %853 = arith.addf %852, %851 : vector<8x384xf32>
    %854 = arith.divf %852, %853 : vector<8x384xf32>
    %855 = vector.extract_strided_slice %854 {offsets = [0, 0], sizes = [8, 128], strides = [1, 1]} : vector<8x384xf32> to vector<8x128xf32>
    %856 = vector.extract_strided_slice %854 {offsets = [0, 128], sizes = [8, 128], strides = [1, 1]} : vector<8x384xf32> to vector<8x128xf32>
    %857 = vector.extract_strided_slice %854 {offsets = [0, 256], sizes = [8, 128], strides = [1, 1]} : vector<8x384xf32> to vector<8x128xf32>
    %858 = vector.extract_strided_slice %844 {offsets = [0, 384], sizes = [8, 128], strides = [1, 1]} : vector<8x512xf32> to vector<8x128xf32>
    %859 = math.tanh %858 : vector<8x128xf32>
    %860 = arith.mulf %856, %808 : vector<8x128xf32>
    %861 = arith.mulf %855, %859 : vector<8x128xf32>
    %862 = arith.addf %860, %861 : vector<8x128xf32>
    %863 = math.tanh %862 : vector<8x128xf32>
    %864 = arith.mulf %857, %863 : vector<8x128xf32>
    %865 = vector.extract_strided_slice %848 {offsets = [0, 0], sizes = [8, 384], strides = [1, 1]} : vector<8x512xf32> to vector<8x384xf32>
    %866 = arith.negf %865 : vector<8x384xf32>
    %867 = math.exp %866 : vector<8x384xf32>
    %cst_190 = arith.constant 1.000000e+00 : f32
    %868 = vector.broadcast %cst_190 : f32 to vector<8x384xf32>
    %869 = arith.addf %868, %867 : vector<8x384xf32>
    %870 = arith.divf %868, %869 : vector<8x384xf32>
    %871 = vector.extract_strided_slice %870 {offsets = [0, 0], sizes = [8, 128], strides = [1, 1]} : vector<8x384xf32> to vector<8x128xf32>
    %872 = vector.extract_strided_slice %870 {offsets = [0, 128], sizes = [8, 128], strides = [1, 1]} : vector<8x384xf32> to vector<8x128xf32>
    %873 = vector.extract_strided_slice %870 {offsets = [0, 256], sizes = [8, 128], strides = [1, 1]} : vector<8x384xf32> to vector<8x128xf32>
    %874 = vector.extract_strided_slice %848 {offsets = [0, 384], sizes = [8, 128], strides = [1, 1]} : vector<8x512xf32> to vector<8x128xf32>
    %875 = math.tanh %874 : vector<8x128xf32>
    %876 = arith.mulf %872, %824 : vector<8x128xf32>
    %877 = arith.mulf %871, %875 : vector<8x128xf32>
    %878 = arith.addf %876, %877 : vector<8x128xf32>
    %879 = math.tanh %878 : vector<8x128xf32>
    %880 = arith.mulf %873, %879 : vector<8x128xf32>
    %881 = vector.extract_strided_slice %864 {offsets = [0, 0], sizes = [8, 32], strides = [1, 1]} : vector<8x128xf32> to vector<8x32xf32>
    %882 = vector.extract_strided_slice %880 {offsets = [0, 0], sizes = [8, 32], strides = [1, 1]} : vector<8x128xf32> to vector<8x32xf32>
    %883 = arith.index_cast %834 : i32 to index
    %c0_191 = arith.constant 0 : index
    %884 = vector.load %arg11[%883, %c0_191] : memref<64x32xf32, #tpu.memory_space<vmem>>, vector<8x32xf32>
    tpu.vector_store %arg11[%883, %c0_191], %881 {strides = array<i32>} : memref<64x32xf32, #tpu.memory_space<vmem>>, vector<8x32xf32>,
    %885 = arith.index_cast %837 : i32 to index
    %c0_192 = arith.constant 0 : index
    %886 = vector.load %arg12[%885, %c0_192] : memref<64x32xf32, #tpu.memory_space<vmem>>, vector<8x32xf32>
    tpu.vector_store %arg12[%885, %c0_192], %882 {strides = array<i32>} : memref<64x32xf32, #tpu.memory_space<vmem>>, vector<8x32xf32>,
    %c8_i32_193 = arith.constant 8 : i32
    %c56 = arith.constant 56 : index
    %c0_194 = arith.constant 0 : index
    %887 = vector.load %arg11[%c56, %c0_194] : memref<64x32xf32, #tpu.memory_space<vmem>>, vector<8x32xf32>
    %c56_195 = arith.constant 56 : index
    %c0_196 = arith.constant 0 : index
    %888 = vector.load %arg12[%c56_195, %c0_196] : memref<64x32xf32, #tpu.memory_space<vmem>>, vector<8x32xf32>
    %889 = tpu.concatenate %887, %888 in 1 : vector<8x32xf32>, vector<8x32xf32> -> vector<8x64xf32>
    %c0_197 = arith.constant 0 : index
    %c0_198 = arith.constant 0 : index
    %890 = vector.load %arg7[%c0_197, %c0_198] : memref<64x5xf32, #tpu.memory_space<vmem>>, vector<64x5xf32>
    %cst_199 = arith.constant dense<0.000000e+00> : vector<8x5xf32>
    %891 = tpu.matmul %889, %890, %cst_199 {dimension_numbers = #tpu.dot_dimension_numbers<[1], [0], [0], [1], [0, 0, 1, 1], [], []>} : vector<8x64xf32>, vector<64x5xf32>, vector<8x5xf32> -> vector<8x5xf32>
    %c0_200 = arith.constant 0 : index
    %c0_201 = arith.constant 0 : index
    %892 = vector.load %arg8[%c0_200, %c0_201] : memref<1x5xf32, #tpu.memory_space<vmem>>, vector<1x5xf32>
    %893 = vector.broadcast %892 : vector<1x5xf32> to vector<8x5xf32>
    %894 = arith.addf %891, %893 : vector<8x5xf32>
    %c0_202 = arith.constant 0 : index
    %c0_203 = arith.constant 0 : index
    %895 = vector.load %arg9[%c0_202, %c0_203] : memref<8x5xf32, #tpu.memory_space<vmem>>, vector<8x5xf32>
    tpu.vector_store %arg9[%c0_202, %c0_203], %894 {strides = array<i32>} : memref<8x5xf32, #tpu.memory_space<vmem>>, vector<8x5xf32>,
    return
  }
}

</mosaic_0001>

<llo_original>
// kernel: bilstm_forward.1
$region0: #{bilstm_forward.1}
  #allocation0 [shape = 'u32[]', space=smem, size = 0x4, offset = 0x4, fixed_abs, tag = 'smem constant byte address 0x4 - core index']
  #allocation1 [shape = 'u32[144,128]{1,0:T(1,128)}', space=vmem, size = 0x12000, scoped, tag = 'internal scratch']
  #allocation2 [shape = 'f32[64,1024]{1,0:T(8,128)}', space=vmem, size = 0x40000, scoped, tag = 'scratch operand']
  #allocation3 [shape = 'f32[64,32]{1,0:T(8,128)}', space=vmem, size = 0x8000, scoped, tag = 'scratch operand']
  #allocation4 [shape = 'f32[64,32]{1,0:T(8,128)}', space=vmem, size = 0x8000, scoped, tag = 'scratch operand']
  %s0 = inlined_call_operand.vmem [shape: bf16[64,16], index: 0, kind: input, shape index: {}]
  %s1 = inlined_call_operand.vmem [shape: bf16[16,1024], index: 1, kind: input, shape index: {}]
  %s2 = inlined_call_operand.hbm [shape: bf16[64,1024], index: 2, kind: input, shape index: {}]
  %s3 = inlined_call_operand.vmem [shape: f32[1,1024], index: 3, kind: input, shape index: {}]
  %s4 = inlined_call_operand.hbm [shape: bf16[64,1024], index: 4, kind: input, shape index: {}]
  %s5 = inlined_call_operand.hbm [shape: bf16[64,1024], index: 5, kind: input, shape index: {}]
  %s6 = inlined_call_operand.vmem [shape: f32[1,1024], index: 6, kind: input, shape index: {}]
  %s7 = inlined_call_operand.vmem [shape: f32[64,5], index: 7, kind: input, shape index: {}]
  %s8 = inlined_call_operand.vmem [shape: f32[1,5], index: 8, kind: input, shape index: {}]
  %s9 = inlined_call_operand.vmem [shape: f32[8,5], index: 9, kind: output, shape index: {}]
  %s10 = sld [smem:[#allocation0]]
  $region58: #{bilstm_forward.1} parent=0
    _
  %s12 = ssub.s32 1, %s10
  %s13 = scalar_select 0, %s12, %s10
  $region1: #{bilstm_forward.1} parent=0
    #allocation5 [shape = 'u8[131072]{0}', space=vmem, size = 0x20000, scoped, tag = 'input window, operand 2, single buffered']
    #allocation6 [shape = 's32[1]{0}', space=sflag, size = 0x4, scoped, tag = 'scoped memory for bilstm_forward.1']
    #allocation7 [shape = 'u8[131072]{0}', space=vmem, size = 0x20000, scoped, tag = 'input window, operand 4, single buffered']
    #allocation8 [shape = 's32[1]{0}', space=sflag, size = 0x4, scoped, tag = 'scoped memory for bilstm_forward.1']
    #allocation9 [shape = 'u8[131072]{0}', space=vmem, size = 0x20000, scoped, tag = 'input window, operand 5, single buffered']
    %14 = vsyncpa [#allocation6], 0
    %15 = vsyncpa [#allocation8], 0
    // Predicated region
    $region2: #{bilstm_forward.1} parent=1 // pred_check
      _
    $region3: #{bilstm_forward.1} parent=1 // pred_check_branch
      %17 = sbr.rel (0) target = $region5
    $region4: #{bilstm_forward.1} parent=1 // pred_region
      _
    $region5: #{bilstm_forward.1} parent=1 // pred_fallthru
      _
    // Predicated region
    $region6: #{bilstm_forward.1} parent=1 // pred_check
      _
    $region7: #{bilstm_forward.1} parent=1 // pred_check_branch
      %19 = sbr.rel (0) target = $region9
    $region8: #{bilstm_forward.1} parent=1 // pred_region
      _
    $region9: #{bilstm_forward.1} parent=1 // pred_fallthru
      _
    // Predicated region
    $region10: #{bilstm_forward.1} parent=1 // pred_check
      _
    $region11: #{bilstm_forward.1} parent=1 // pred_check_branch
      %21 = sbr.rel (0) target = $region13
    $region12: #{bilstm_forward.1} parent=1 // pred_region
      %s23 = ssub.s32 4096, 4096
      %24 = vsyncadd [#allocation6], %s23
      %s25 = sshll.u32 [#allocation5], 4
      %s26 = int_to_ptr.vmem [resolvable:$true] %s25
      %31 = dma.hbm_to_vmem [thread:$0]  %s2, 4096, %s26, [#allocation6], 512, 512, 32
    $region13: #{bilstm_forward.1} parent=1 // pred_fallthru
      _
    // Predicated region
    $region14: #{bilstm_forward.1} parent=1 // pred_check
      _
    $region15: #{bilstm_forward.1} parent=1 // pred_check_branch
      %33 = sbr.rel (0) target = $region17
    $region16: #{bilstm_forward.1} parent=1 // pred_region
      _
    $region17: #{bilstm_forward.1} parent=1 // pred_fallthru
      _
    // Predicated region
    $region18: #{bilstm_forward.1} parent=1 // pred_check
      _
    $region19: #{bilstm_forward.1} parent=1 // pred_check_branch
      %35 = sbr.rel (0) target = $region21
    $region20: #{bilstm_forward.1} parent=1 // pred_region
      %s37 = ssub.s32 4096, 4096
      %38 = vsyncadd [#allocation8], %s37
      %s39 = sshll.u32 [#allocation7], 4
      %s40 = int_to_ptr.vmem [resolvable:$true] %s39
      %45 = dma.hbm_to_vmem [thread:$0]  %s4, 4096, %s40, [#allocation8], 512, 512, 32
    $region21: #{bilstm_forward.1} parent=1 // pred_fallthru
      _
    // Predicated region
    $region22: #{bilstm_forward.1} parent=1 // pred_check
      _
    $region23: #{bilstm_forward.1} parent=1 // pred_check_branch
      %47 = sbr.rel (0) target = $region25
    $region24: #{bilstm_forward.1} parent=1 // pred_region
      %s49 = ssub.s32 4096, 4096
      %50 = vsyncadd [#allocation8], %s49
      %s51 = sshll.u32 [#allocation9], 4
      %s52 = int_to_ptr.vmem [resolvable:$true] %s51
      %57 = dma.hbm_to_vmem [thread:$0]  %s5, 4096, %s52, [#allocation8], 512, 512, 32
    $region25: #{bilstm_forward.1} parent=1 // pred_fallthru
      _
    // Predicated region
    $region26: #{bilstm_forward.1} parent=1 // pred_check
      _
    $region27: #{bilstm_forward.1} parent=1 // pred_check_branch
      %59 = sbr.rel (0) target = $region29
    $region28: #{bilstm_forward.1} parent=1 // pred_region
      _
    $region29: #{bilstm_forward.1} parent=1 // pred_fallthru
      _
    // Predicated region
    $region30: #{bilstm_forward.1} parent=1 // pred_check
      _
    $region31: #{bilstm_forward.1} parent=1 // pred_check_branch
      %61 = sbr.rel (0) target = $region33
    $region32: #{bilstm_forward.1} parent=1 // pred_region
      _
    $region33: #{bilstm_forward.1} parent=1 // pred_fallthru
      _
    // Predicated region
    $region34: #{bilstm_forward.1} parent=1 // pred_check
      _
    $region35: #{bilstm_forward.1} parent=1 // pred_check_branch
      %63 = sbr.rel (0) target = $region37
    $region36: #{bilstm_forward.1} parent=1 // pred_region
      _
    $region37: #{bilstm_forward.1} parent=1 // pred_fallthru
      _
    // Predicated region
    $region38: #{bilstm_forward.1} parent=1 // pred_check
      _
    $region39: #{bilstm_forward.1} parent=1 // pred_check_branch
      %65 = sbr.rel (0) target = $region41
    $region40: #{bilstm_forward.1} parent=1 // pred_region
      %66 = dma.done [#allocation6], 4096
    $region41: #{bilstm_forward.1} parent=1 // pred_fallthru
      _
    // Predicated region
    $region42: #{bilstm_forward.1} parent=1 // pred_check
      _
    $region43: #{bilstm_forward.1} parent=1 // pred_check_branch
      %68 = sbr.rel (0) target = $region45
    $region44: #{bilstm_forward.1} parent=1 // pred_region
      %69 = dma.done [#allocation8], 4096
    $region45: #{bilstm_forward.1} parent=1 // pred_fallthru
      _
    // Predicated region
    $region46: #{bilstm_forward.1} parent=1 // pred_check
      _
    $region47: #{bilstm_forward.1} parent=1 // pred_check_branch
      %71 = sbr.rel (0) target = $region49
    $region48: #{bilstm_forward.1} parent=1 // pred_region
      %72 = dma.done [#allocation8], 4096
    $region49: #{bilstm_forward.1} parent=1 // pred_fallthru
      _
    %v74 = vld [vmem:[%s1] sm:$0xff]
    %v75 = vld [vmem:[%s1 + $0x8] sm:$0xff]
    %v76 = vld [vmem:[%s1 + $0x10] sm:$0xff]
    %v77 = vld [vmem:[%s1 + $0x18] sm:$0xff]
    %v78 = vld [vmem:[%s1 + $0x20] sm:$0xff]
    %v79 = vld [vmem:[%s1 + $0x28] sm:$0xff]
    %v80 = vld [vmem:[%s1 + $0x30] sm:$0xff]
    %v81 = vld [vmem:[%s1 + $0x38] sm:$0xff]
    %v82 = vld [vmem:[#allocation5] sm:$0xff]
    %v83 = vld [vmem:[#allocation5 + $0x8] sm:$0xff]
    %v84 = vld [vmem:[#allocation5 + $0x10] sm:$0xff]
    %v85 = vld [vmem:[#allocation5 + $0x18] sm:$0xff]
    %v86 = vld [vmem:[#allocation5 + $0x20] sm:$0xff]
    %v87 = vld [vmem:[#allocation5 + $0x28] sm:$0xff]
    %v88 = vld [vmem:[#allocation5 + $0x30] sm:$0xff]
    %v89 = vld [vmem:[#allocation5 + $0x38] sm:$0xff]
    %v90 = vld [vmem:[#allocation5 + $0x40] sm:$0xff]
    %v91 = vld [vmem:[#allocation5 + $0x48] sm:$0xff]
    %v92 = vld [vmem:[#allocation5 + $0x50] sm:$0xff]
    %v93 = vld [vmem:[#allocation5 + $0x58] sm:$0xff]
    %v94 = vld [vmem:[#allocation5 + $0x60] sm:$0xff]
    %v95 = vld [vmem:[#allocation5 + $0x68] sm:$0xff]
    %v96 = vld [vmem:[#allocation5 + $0x70] sm:$0xff]
    %v97 = vld [vmem:[#allocation5 + $0x78] sm:$0xff]
    %v98 = vld [vmem:[#allocation5 + $0x80] sm:$0xff]
    %v99 = vld [vmem:[#allocation5 + $0x88] sm:$0xff]
    %v100 = vld [vmem:[#allocation5 + $0x90] sm:$0xff]
    %v101 = vld [vmem:[#allocation5 + $0x98] sm:$0xff]
    %v102 = vld [vmem:[#allocation5 + $0xa0] sm:$0xff]
    %v103 = vld [vmem:[#allocation5 + $0xa8] sm:$0xff]
    %v104 = vld [vmem:[#allocation5 + $0xb0] sm:$0xff]
    %v105 = vld [vmem:[#allocation5 + $0xb8] sm:$0xff]
    %v106 = vld [vmem:[#allocation5 + $0xc0] sm:$0xff]
    %v107 = vld [vmem:[#allocation5 + $0xc8] sm:$0xff]
    %v108 = vld [vmem:[#allocation5 + $0xd0] sm:$0xff]
    %v109 = vld [vmem:[#allocation5 + $0xd8] sm:$0xff]
    %v110 = vld [vmem:[#allocation5 + $0xe0] sm:$0xff]
    %v111 = vld [vmem:[#allocation5 + $0xe8] sm:$0xff]
    %v112 = vld [vmem:[#allocation5 + $0xf0] sm:$0xff]
    %v113 = vld [vmem:[#allocation5 + $0xf8] sm:$0xff]
    %v114 = vld [vmem:[%s3] sm:$0xff]
    %v115 = vld [vmem:[%s0] sm:$0xf]
    %v116 = vld [vmem:[%s0 + $0x4] sm:$0xf]
    %v117 = vld [vmem:[%s0 + $0x8] sm:$0xf]
    %v118 = vld [vmem:[%s0 + $0xc] sm:$0xf]
    %v119 = vld [vmem:[%s0 + $0x10] sm:$0xf]
    %v120 = vld [vmem:[%s0 + $0x14] sm:$0xf]
    %v121 = vld [vmem:[%s0 + $0x18] sm:$0xf]
    %v122 = vld [vmem:[%s0 + $0x1c] sm:$0xf]
    %v124 = vlaneseq
    %v125 = vshrl.u32 %v124, 7
    %v126 = vsub.s32 0, %v125
    %v127 = vrot.slane %v114, %v126
    %v128 = vlaneseq
    %v129 = vshrl.u32 %v128, 7
    %v130 = vsub.s32 1, %v129
    %v131 = vrot.slane %v114, %v130
    %v132 = vlaneseq
    %v133 = vshrl.u32 %v132, 7
    %v134 = vsub.s32 2, %v133
    %v135 = vrot.slane %v114, %v134
    %v136 = vlaneseq
    %v137 = vshrl.u32 %v136, 7
    %v138 = vsub.s32 3, %v137
    %v139 = vrot.slane %v114, %v138
    %v140 = vlaneseq
    %v141 = vshrl.u32 %v140, 7
    %v142 = vsub.s32 4, %v141
    %v143 = vrot.slane %v114, %v142
    %v144 = vlaneseq
    %v145 = vshrl.u32 %v144, 7
    %v146 = vsub.s32 5, %v145
    %v147 = vrot.slane %v114, %v146
    %v148 = vlaneseq
    %v149 = vshrl.u32 %v148, 7
    %v150 = vsub.s32 6, %v149
    %v151 = vrot.slane %v114, %v150
    %v152 = vlaneseq
    %v153 = vshrl.u32 %v152, 7
    %v154 = vsub.s32 7, %v153
    %v155 = vrot.slane %v114, %v154
    %v172 = vunpack.c.l.b16 %v115
    %v173 = vunpack.c.l.b16 %v116
    %v174 = vunpack.c.l.b16 %v117
    %v175 = vunpack.c.l.b16 %v118
    %v176 = vunpack.c.l.b16 %v119
    %v177 = vunpack.c.l.b16 %v120
    %v178 = vunpack.c.l.b16 %v121
    %v179 = vunpack.c.l.b16 %v122
    %v180 = vpack.c.b16 %v173, %v172
    %v181 = vpack.c.b16 %v175, %v174
    %v182 = vpack.c.b16 %v177, %v176
    %v183 = vpack.c.b16 %v179, %v178
    %v192 = vunpack.c.l.b16 %v74
    %v193 = vunpack.c.h.b16 %v74
    %v194 = vunpack.c.l.b16 %v75
    %v195 = vunpack.c.h.b16 %v75
    %v196 = vunpack.c.l.b16 %v76
    %v197 = vunpack.c.h.b16 %v76
    %v198 = vunpack.c.l.b16 %v77
    %v199 = vunpack.c.h.b16 %v77
    %v200 = vunpack.c.l.b16 %v78
    %v201 = vunpack.c.h.b16 %v78
    %v202 = vunpack.c.l.b16 %v79
    %v203 = vunpack.c.h.b16 %v79
    %v204 = vunpack.c.l.b16 %v80
    %v205 = vunpack.c.h.b16 %v80
    %v206 = vunpack.c.l.b16 %v81
    %v207 = vunpack.c.h.b16 %v81
    %v208 = vpack.c.b16 %v200, %v192
    %v209 = vpack.c.b16 %v201, %v193
    %v210 = vpack.c.b16 %v202, %v194
    %v211 = vpack.c.b16 %v203, %v195
    %v212 = vpack.c.b16 %v204, %v196
    %v213 = vpack.c.b16 %v205, %v197
    %v214 = vpack.c.b16 %v206, %v198
    %v215 = vpack.c.b16 %v207, %v199
    %vm224 = vcmask 130048
    %v226 = vsel %vm224, %v180, 0
    %v229 = vsel %vm224, %v181, 0
    %v232 = vsel %vm224, %v182, 0
    %v235 = vsel %vm224, %v183, 0
    %237 = vmatprep.subr.bf16.mxu0 0
    %238 = vmatpush1.bf16.msra.mxu0 0
    %239 = vmatprep.subr.bf16.mxu0 0
    %240 = vmatpush1.bf16.msra.mxu0 0
    %241 = vmatprep.subr.bf16.mxu0 0
    %242 = vmatpush1.bf16.msra.mxu0 0
    %243 = vmatprep.subr.bf16.mxu0 0
    %244 = vmatpush1.bf16.msra.mxu0 0
    %245 = vmatprep.subr.bf16.mxu0 0
    %246 = vmatpush1.bf16.msra.mxu0 0
    %247 = vmatprep.subr.bf16.mxu0 0
    %248 = vmatpush1.bf16.msra.mxu0 0
    %249 = vmatprep.subr.bf16.mxu0 0
    %250 = vmatpush1.bf16.msra.mxu0 0
    %251 = vmatprep.subr.bf16.mxu0 %v209
    %252 = vmatpush1.bf16.msra.mxu0 %v208
    %253 = vmatprep.subr.bf16.mxu0 0
    %254 = vmatpush2.bf16.msra.mxu0 0
    %255 = vmatprep.subr.bf16.mxu0 0
    %256 = vmatpush2.bf16.msra.mxu0 0
    %257 = vmatprep.subr.bf16.mxu0 0
    %258 = vmatpush2.bf16.msra.mxu0 0
    %259 = vmatprep.subr.bf16.mxu0 0
    %260 = vmatpush2.bf16.msra.mxu0 0
    %261 = vmatprep.subr.bf16.mxu0 0
    %262 = vmatpush2.bf16.msra.mxu0 0
    %263 = vmatprep.subr.bf16.mxu0 0
    %264 = vmatpush2.bf16.msra.mxu0 0
    %265 = vmatprep.subr.bf16.mxu0 0
    %266 = vmatpush2.bf16.msra.mxu0 0
    %267 = vmatprep.subr.bf16.mxu0 0
    %268 = vmatpush2.bf16.msra.mxu0 0
    %269 = vmatprep.mubr.bf16.mxu0 0
    %270 = vmatmul.mubr.bf16.gmra.mxu0 %v226
    %v271 = vpop.f32.mrf.mxu0
    %v272 = vadd.f32 %v127, %v271
    %v273 = vpop.f32.mrf.mxu0
    %v274 = vadd.f32 %v131, %v273
    %v275 = vpop.f32.mrf.mxu0
    %v276 = vadd.f32 %v127, %v275
    %v277 = vpop.f32.mrf.mxu0
    %v278 = vadd.f32 %v131, %v277
    %279 = vmatprep.mubr.bf16.mxu0 0
    %280 = vmatmul.mubr.bf16.gmra.mxu0 %v229
    %v281 = vpop.f32.mrf.mxu0
    %v282 = vadd.f32 %v127, %v281
    %v283 = vpop.f32.mrf.mxu0
    %v284 = vadd.f32 %v131, %v283
    %v285 = vpop.f32.mrf.mxu0
    %v286 = vadd.f32 %v127, %v285
    %v287 = vpop.f32.mrf.mxu0
    %v288 = vadd.f32 %v131, %v287
    %289 = vmatprep.mubr.bf16.mxu0 0
    %290 = vmatmul.mubr.bf16.gmra.mxu0 %v232
    %v291 = vpop.f32.mrf.mxu0
    %v292 = vadd.f32 %v127, %v291
    %v293 = vpop.f32.mrf.mxu0
    %v294 = vadd.f32 %v131, %v293
    %v295 = vpop.f32.mrf.mxu0
    %v296 = vadd.f32 %v127, %v295
    %v297 = vpop.f32.mrf.mxu0
    %v298 = vadd.f32 %v131, %v297
    %299 = vmatprep.mubr.bf16.mxu0 0
    %300 = vmatmul.mubr.bf16.gmra.mxu0 %v235
    %v301 = vpop.f32.mrf.mxu0
    %v302 = vadd.f32 %v127, %v301
    %v303 = vpop.f32.mrf.mxu0
    %v304 = vadd.f32 %v131, %v303
    %v305 = vpop.f32.mrf.mxu0
    %v306 = vadd.f32 %v127, %v305
    %v307 = vpop.f32.mrf.mxu0
    %v308 = vadd.f32 %v131, %v307
    %309 = vdwg.mxu0
    %310 = vmatprep.subr.bf16.mxu0 0
    %311 = vmatpush1.bf16.msra.mxu0 0
    %312 = vmatprep.subr.bf16.mxu0 0
    %313 = vmatpush1.bf16.msra.mxu0 0
    %314 = vmatprep.subr.bf16.mxu0 0
    %315 = vmatpush1.bf16.msra.mxu0 0
    %316 = vmatprep.subr.bf16.mxu0 0
    %317 = vmatpush1.bf16.msra.mxu0 0
    %318 = vmatprep.subr.bf16.mxu0 0
    %319 = vmatpush1.bf16.msra.mxu0 0
    %320 = vmatprep.subr.bf16.mxu0 0
    %321 = vmatpush1.bf16.msra.mxu0 0
    %322 = vmatprep.subr.bf16.mxu0 0
    %323 = vmatpush1.bf16.msra.mxu0 0
    %324 = vmatprep.subr.bf16.mxu0 %v211
    %325 = vmatpush1.bf16.msra.mxu0 %v210
    %326 = vmatprep.subr.bf16.mxu0 0
    %327 = vmatpush2.bf16.msra.mxu0 0
    %328 = vmatprep.subr.bf16.mxu0 0
    %329 = vmatpush2.bf16.msra.mxu0 0
    %330 = vmatprep.subr.bf16.mxu0 0
    %331 = vmatpush2.bf16.msra.mxu0 0
    %332 = vmatprep.subr.bf16.mxu0 0
    %333 = vmatpush2.bf16.msra.mxu0 0
    %334 = vmatprep.subr.bf16.mxu0 0
    %335 = vmatpush2.bf16.msra.mxu0 0
    %336 = vmatprep.subr.bf16.mxu0 0
    %337 = vmatpush2.bf16.msra.mxu0 0
    %338 = vmatprep.subr.bf16.mxu0 0
    %339 = vmatpush2.bf16.msra.mxu0 0
    %340 = vmatprep.subr.bf16.mxu0 0
    %341 = vmatpush2.bf16.msra.mxu0 0
    %342 = vmatprep.mubr.bf16.mxu0 0
    %343 = vmatmul.mubr.bf16.gmra.mxu0 %v226
    %v344 = vpop.f32.mrf.mxu0
    %v345 = vadd.f32 %v135, %v344
    %v346 = vpop.f32.mrf.mxu0
    %v347 = vadd.f32 %v139, %v346
    %v348 = vpop.f32.mrf.mxu0
    %v349 = vadd.f32 %v135, %v348
    %v350 = vpop.f32.mrf.mxu0
    %v351 = vadd.f32 %v139, %v350
    %352 = vmatprep.mubr.bf16.mxu0 0
    %353 = vmatmul.mubr.bf16.gmra.mxu0 %v229
    %v354 = vpop.f32.mrf.mxu0
    %v355 = vadd.f32 %v135, %v354
    %v356 = vpop.f32.mrf.mxu0
    %v357 = vadd.f32 %v139, %v356
    %v358 = vpop.f32.mrf.mxu0
    %v359 = vadd.f32 %v135, %v358
    %v360 = vpop.f32.mrf.mxu0
    %v361 = vadd.f32 %v139, %v360
    %362 = vmatprep.mubr.bf16.mxu0 0
    %363 = vmatmul.mubr.bf16.gmra.mxu0 %v232
    %v364 = vpop.f32.mrf.mxu0
    %v365 = vadd.f32 %v135, %v364
    %v366 = vpop.f32.mrf.mxu0
    %v367 = vadd.f32 %v139, %v366
    %v368 = vpop.f32.mrf.mxu0
    %v369 = vadd.f32 %v135, %v368
    %v370 = vpop.f32.mrf.mxu0
    %v371 = vadd.f32 %v139, %v370
    %372 = vmatprep.mubr.bf16.mxu0 0
    %373 = vmatmul.mubr.bf16.gmra.mxu0 %v235
    %v374 = vpop.f32.mrf.mxu0
    %v375 = vadd.f32 %v135, %v374
    %v376 = vpop.f32.mrf.mxu0
    %v377 = vadd.f32 %v139, %v376
    %v378 = vpop.f32.mrf.mxu0
    %v379 = vadd.f32 %v135, %v378
    %v380 = vpop.f32.mrf.mxu0
    %v381 = vadd.f32 %v139, %v380
    %382 = vdwg.mxu0
    %383 = vmatprep.subr.bf16.mxu0 0
    %384 = vmatpush1.bf16.msra.mxu0 0
    %385 = vmatprep.subr.bf16.mxu0 0
    %386 = vmatpush1.bf16.msra.mxu0 0
    %387 = vmatprep.subr.bf16.mxu0 0
    %388 = vmatpush1.bf16.msra.mxu0 0
    %389 = vmatprep.subr.bf16.mxu0 0
    %390 = vmatpush1.bf16.msra.mxu0 0
    %391 = vmatprep.subr.bf16.mxu0 0
    %392 = vmatpush1.bf16.msra.mxu0 0
    %393 = vmatprep.subr.bf16.mxu0 0
    %394 = vmatpush1.bf16.msra.mxu0 0
    %395 = vmatprep.subr.bf16.mxu0 0
    %396 = vmatpush1.bf16.msra.mxu0 0
    %397 = vmatprep.subr.bf16.mxu0 %v213
    %398 = vmatpush1.bf16.msra.mxu0 %v212
    %399 = vmatprep.subr.bf16.mxu0 0
    %400 = vmatpush2.bf16.msra.mxu0 0
    %401 = vmatprep.subr.bf16.mxu0 0
    %402 = vmatpush2.bf16.msra.mxu0 0
    %403 = vmatprep.subr.bf16.mxu0 0
    %404 = vmatpush2.bf16.msra.mxu0 0
    %405 = vmatprep.subr.bf16.mxu0 0
    %406 = vmatpush2.bf16.msra.mxu0 0
    %407 = vmatprep.subr.bf16.mxu0 0
    %408 = vmatpush2.bf16.msra.mxu0 0
    %409 = vmatprep.subr.bf16.mxu0 0
    %410 = vmatpush2.bf16.msra.mxu0 0
    %411 = vmatprep.subr.bf16.mxu0 0
    %412 = vmatpush2.bf16.msra.mxu0 0
    %413 = vmatprep.subr.bf16.mxu0 0
    %414 = vmatpush2.bf16.msra.mxu0 0
    %415 = vmatprep.mubr.bf16.mxu0 0
    %416 = vmatmul.mubr.bf16.gmra.mxu0 %v226
    %v417 = vpop.f32.mrf.mxu0
    %v418 = vadd.f32 %v143, %v417
    %v419 = vpop.f32.mrf.mxu0
    %v420 = vadd.f32 %v147, %v419
    %v421 = vpop.f32.mrf.mxu0
    %v422 = vadd.f32 %v143, %v421
    %v423 = vpop.f32.mrf.mxu0
    %v424 = vadd.f32 %v147, %v423
    %425 = vmatprep.mubr.bf16.mxu0 0
    %426 = vmatmul.mubr.bf16.gmra.mxu0 %v229
    %v427 = vpop.f32.mrf.mxu0
    %v428 = vadd.f32 %v143, %v427
    %v429 = vpop.f32.mrf.mxu0
    %v430 = vadd.f32 %v147, %v429
    %v431 = vpop.f32.mrf.mxu0
    %v432 = vadd.f32 %v143, %v431
    %v433 = vpop.f32.mrf.mxu0
    %v434 = vadd.f32 %v147, %v433
    %435 = vmatprep.mubr.bf16.mxu0 0
    %436 = vmatmul.mubr.bf16.gmra.mxu0 %v232
    %v437 = vpop.f32.mrf.mxu0
    %v438 = vadd.f32 %v143, %v437
    %v439 = vpop.f32.mrf.mxu0
    %v440 = vadd.f32 %v147, %v439
    %v441 = vpop.f32.mrf.mxu0
    %v442 = vadd.f32 %v143, %v441
    %v443 = vpop.f32.mrf.mxu0
    %v444 = vadd.f32 %v147, %v443
    %445 = vmatprep.mubr.bf16.mxu0 0
    %446 = vmatmul.mubr.bf16.gmra.mxu0 %v235
    %v447 = vpop.f32.mrf.mxu0
    %v448 = vadd.f32 %v143, %v447
    %v449 = vpop.f32.mrf.mxu0
    %v450 = vadd.f32 %v147, %v449
    %v451 = vpop.f32.mrf.mxu0
    %v452 = vadd.f32 %v143, %v451
    %v453 = vpop.f32.mrf.mxu0
    %v454 = vadd.f32 %v147, %v453
    %455 = vdwg.mxu0
    %456 = vmatprep.subr.bf16.mxu0 0
    %457 = vmatpush1.bf16.msra.mxu0 0
    %458 = vmatprep.subr.bf16.mxu0 0
    %459 = vmatpush1.bf16.msra.mxu0 0
    %460 = vmatprep.subr.bf16.mxu0 0
    %461 = vmatpush1.bf16.msra.mxu0 0
    %462 = vmatprep.subr.bf16.mxu0 0
    %463 = vmatpush1.bf16.msra.mxu0 0
    %464 = vmatprep.subr.bf16.mxu0 0
    %465 = vmatpush1.bf16.msra.mxu0 0
    %466 = vmatprep.subr.bf16.mxu0 0
    %467 = vmatpush1.bf16.msra.mxu0 0
    %468 = vmatprep.subr.bf16.mxu0 0
    %469 = vmatpush1.bf16.msra.mxu0 0
    %470 = vmatprep.subr.bf16.mxu0 %v215
    %471 = vmatpush1.bf16.msra.mxu0 %v214
    %472 = vmatprep.subr.bf16.mxu0 0
    %473 = vmatpush2.bf16.msra.mxu0 0
    %474 = vmatprep.subr.bf16.mxu0 0
    %475 = vmatpush2.bf16.msra.mxu0 0
    %476 = vmatprep.subr.bf16.mxu0 0
    %477 = vmatpush2.bf16.msra.mxu0 0
    %478 = vmatprep.subr.bf16.mxu0 0
    %479 = vmatpush2.bf16.msra.mxu0 0
    %480 = vmatprep.subr.bf16.mxu0 0
    %481 = vmatpush2.bf16.msra.mxu0 0
    %482 = vmatprep.subr.bf16.mxu0 0
    %483 = vmatpush2.bf16.msra.mxu0 0
    %484 = vmatprep.subr.bf16.mxu0 0
    %485 = vmatpush2.bf16.msra.mxu0 0
    %486 = vmatprep.subr.bf16.mxu0 0
    %487 = vmatpush2.bf16.msra.mxu0 0
    %488 = vmatprep.mubr.bf16.mxu0 0
    %489 = vmatmul.mubr.bf16.gmra.mxu0 %v226
    %v490 = vpop.f32.mrf.mxu0
    %v491 = vadd.f32 %v151, %v490
    %v492 = vpop.f32.mrf.mxu0
    %v493 = vadd.f32 %v155, %v492
    %v494 = vpop.f32.mrf.mxu0
    %v495 = vadd.f32 %v151, %v494
    %v496 = vpop.f32.mrf.mxu0
    %v497 = vadd.f32 %v155, %v496
    %498 = vmatprep.mubr.bf16.mxu0 0
    %499 = vmatmul.mubr.bf16.gmra.mxu0 %v229
    %v500 = vpop.f32.mrf.mxu0
    %v501 = vadd.f32 %v151, %v500
    %v502 = vpop.f32.mrf.mxu0
    %v503 = vadd.f32 %v155, %v502
    %v504 = vpop.f32.mrf.mxu0
    %v505 = vadd.f32 %v151, %v504
    %v506 = vpop.f32.mrf.mxu0
    %v507 = vadd.f32 %v155, %v506
    %508 = vmatprep.mubr.bf16.mxu0 0
    %509 = vmatmul.mubr.bf16.gmra.mxu0 %v232
    %v510 = vpop.f32.mrf.mxu0
    %v511 = vadd.f32 %v151, %v510
    %v512 = vpop.f32.mrf.mxu0
    %v513 = vadd.f32 %v155, %v512
    %v514 = vpop.f32.mrf.mxu0
    %v515 = vadd.f32 %v151, %v514
    %v516 = vpop.f32.mrf.mxu0
    %v517 = vadd.f32 %v155, %v516
    %518 = vmatprep.mubr.bf16.mxu0 0
    %519 = vmatmul.mubr.bf16.gmra.mxu0 %v235
    %v520 = vpop.f32.mrf.mxu0
    %v521 = vadd.f32 %v151, %v520
    %v522 = vpop.f32.mrf.mxu0
    %v523 = vadd.f32 %v155, %v522
    %v524 = vpop.f32.mrf.mxu0
    %v525 = vadd.f32 %v151, %v524
    %v526 = vpop.f32.mrf.mxu0
    %v527 = vadd.f32 %v155, %v526
    %528 = vdwg.mxu0
    %529 = vst [vmem:[#allocation2] sm:$0xff] %v272
    %530 = vst [vmem:[#allocation2 + $0x8] sm:$0xff] %v274
    %531 = vst [vmem:[#allocation2 + $0x10] sm:$0xff] %v345
    %532 = vst [vmem:[#allocation2 + $0x18] sm:$0xff] %v347
    %533 = vst [vmem:[#allocation2 + $0x20] sm:$0xff] %v418
    %534 = vst [vmem:[#allocation2 + $0x28] sm:$0xff] %v420
    %535 = vst [vmem:[#allocation2 + $0x30] sm:$0xff] %v491
    %536 = vst [vmem:[#allocation2 + $0x38] sm:$0xff] %v493
    %537 = vst [vmem:[#allocation2 + $0x40] sm:$0xff] %v276
    %538 = vst [vmem:[#allocation2 + $0x48] sm:$0xff] %v278
    %539 = vst [vmem:[#allocation2 + $0x50] sm:$0xff] %v349
    %540 = vst [vmem:[#allocation2 + $0x58] sm:$0xff] %v351
    %541 = vst [vmem:[#allocation2 + $0x60] sm:$0xff] %v422
    %542 = vst [vmem:[#allocation2 + $0x68] sm:$0xff] %v424
    %543 = vst [vmem:[#allocation2 + $0x70] sm:$0xff] %v495
    %544 = vst [vmem:[#allocation2 + $0x78] sm:$0xff] %v497
    %545 = vst [vmem:[#allocation2 + $0x80] sm:$0xff] %v282
    %546 = vst [vmem:[#allocation2 + $0x88] sm:$0xff] %v284
    %547 = vst [vmem:[#allocation2 + $0x90] sm:$0xff] %v355
    %548 = vst [vmem:[#allocation2 + $0x98] sm:$0xff] %v357
    %549 = vst [vmem:[#allocation2 + $0xa0] sm:$0xff] %v428
    %550 = vst [vmem:[#allocation2 + $0xa8] sm:$0xff] %v430
    %551 = vst [vmem:[#allocation2 + $0xb0] sm:$0xff] %v501
    %552 = vst [vmem:[#allocation2 + $0xb8] sm:$0xff] %v503
    %553 = vst [vmem:[#allocation2 + $0xc0] sm:$0xff] %v286
    %554 = vst [vmem:[#allocation2 + $0xc8] sm:$0xff] %v288
    %555 = vst [vmem:[#allocation2 + $0xd0] sm:$0xff] %v359
    %556 = vst [vmem:[#allocation2 + $0xd8] sm:$0xff] %v361
    %557 = vst [vmem:[#allocation2 + $0xe0] sm:$0xff] %v432
    %558 = vst [vmem:[#allocation2 + $0xe8] sm:$0xff] %v434
    %559 = vst [vmem:[#allocation2 + $0xf0] sm:$0xff] %v505
    %560 = vst [vmem:[#allocation2 + $0xf8] sm:$0xff] %v507
    %561 = vst [vmem:[#allocation2 + $0x100] sm:$0xff] %v292
    %562 = vst [vmem:[#allocation2 + $0x108] sm:$0xff] %v294
    %563 = vst [vmem:[#allocation2 + $0x110] sm:$0xff] %v365
    %564 = vst [vmem:[#allocation2 + $0x118] sm:$0xff] %v367
    %565 = vst [vmem:[#allocation2 + $0x120] sm:$0xff] %v438
    %566 = vst [vmem:[#allocation2 + $0x128] sm:$0xff] %v440
    %567 = vst [vmem:[#allocation2 + $0x130] sm:$0xff] %v511
    %568 = vst [vmem:[#allocation2 + $0x138] sm:$0xff] %v513
    %569 = vst [vmem:[#allocation2 + $0x140] sm:$0xff] %v296
    %570 = vst [vmem:[#allocation2 + $0x148] sm:$0xff] %v298
    %571 = vst [vmem:[#allocation2 + $0x150] sm:$0xff] %v369
    %572 = vst [vmem:[#allocation2 + $0x158] sm:$0xff] %v371
    %573 = vst [vmem:[#allocation2 + $0x160] sm:$0xff] %v442
    %574 = vst [vmem:[#allocation2 + $0x168] sm:$0xff] %v444
    %575 = vst [vmem:[#allocation2 + $0x170] sm:$0xff] %v515
    %576 = vst [vmem:[#allocation2 + $0x178] sm:$0xff] %v517
    %577 = vst [vmem:[#allocation2 + $0x180] sm:$0xff] %v302
    %578 = vst [vmem:[#allocation2 + $0x188] sm:$0xff] %v304
    %579 = vst [vmem:[#allocation2 + $0x190] sm:$0xff] %v375
    %580 = vst [vmem:[#allocation2 + $0x198] sm:$0xff] %v377
    %581 = vst [vmem:[#allocation2 + $0x1a0] sm:$0xff] %v448
    %582 = vst [vmem:[#allocation2 + $0x1a8] sm:$0xff] %v450
    %583 = vst [vmem:[#allocation2 + $0x1b0] sm:$0xff] %v521
    %584 = vst [vmem:[#allocation2 + $0x1b8] sm:$0xff] %v523
    %585 = vst [vmem:[#allocation2 + $0x1c0] sm:$0xff] %v306
    %586 = vst [vmem:[#allocation2 + $0x1c8] sm:$0xff] %v308
    %587 = vst [vmem:[#allocation2 + $0x1d0] sm:$0xff] %v379
    %588 = vst [vmem:[#allocation2 + $0x1d8] sm:$0xff] %v381
    %589 = vst [vmem:[#allocation2 + $0x1e0] sm:$0xff] %v452
    %590 = vst [vmem:[#allocation2 + $0x1e8] sm:$0xff] %v454
    %591 = vst [vmem:[#allocation2 + $0x1f0] sm:$0xff] %v525
    %592 = vst [vmem:[#allocation2 + $0x1f8] sm:$0xff] %v527
    %v593 = vpack.c.bf16 0.0, 0.0
    %v626 = vunpack.c.l.b16 %v82
    %v627 = vunpack.c.h.b16 %v82
    %v628 = vunpack.c.l.b16 %v83
    %v629 = vunpack.c.h.b16 %v83
    %v630 = vunpack.c.l.b16 %v84
    %v631 = vunpack.c.h.b16 %v84
    %v632 = vunpack.c.l.b16 %v85
    %v633 = vunpack.c.h.b16 %v85
    %v634 = vunpack.c.l.b16 %v86
    %v635 = vunpack.c.h.b16 %v86
    %v636 = vunpack.c.l.b16 %v87
    %v637 = vunpack.c.h.b16 %v87
    %v638 = vunpack.c.l.b16 %v88
    %v639 = vunpack.c.h.b16 %v88
    %v640 = vunpack.c.l.b16 %v89
    %v641 = vunpack.c.h.b16 %v89
    %v642 = vunpack.c.l.b16 %v90
    %v643 = vunpack.c.h.b16 %v90
    %v644 = vunpack.c.l.b16 %v91
    %v645 = vunpack.c.h.b16 %v91
    %v646 = vunpack.c.l.b16 %v92
    %v647 = vunpack.c.h.b16 %v92
    %v648 = vunpack.c.l.b16 %v93
    %v649 = vunpack.c.h.b16 %v93
    %v650 = vunpack.c.l.b16 %v94
    %v651 = vunpack.c.h.b16 %v94
    %v652 = vunpack.c.l.b16 %v95
    %v653 = vunpack.c.h.b16 %v95
    %v654 = vunpack.c.l.b16 %v96
    %v655 = vunpack.c.h.b16 %v96
    %v656 = vunpack.c.l.b16 %v97
    %v657 = vunpack.c.h.b16 %v97
    %v658 = vunpack.c.l.b16 %v98
    %v659 = vunpack.c.h.b16 %v98
    %v660 = vunpack.c.l.b16 %v99
    %v661 = vunpack.c.h.b16 %v99
    %v662 = vunpack.c.l.b16 %v100
    %v663 = vunpack.c.h.b16 %v100
    %v664 = vunpack.c.l.b16 %v101
    %v665 = vunpack.c.h.b16 %v101
    %v666 = vunpack.c.l.b16 %v102
    %v667 = vunpack.c.h.b16 %v102
    %v668 = vunpack.c.l.b16 %v103
    %v669 = vunpack.c.h.b16 %v103
    %v670 = vunpack.c.l.b16 %v104
    %v671 = vunpack.c.h.b16 %v104
    %v672 = vunpack.c.l.b16 %v105
    %v673 = vunpack.c.h.b16 %v105
    %v674 = vunpack.c.l.b16 %v106
    %v675 = vunpack.c.h.b16 %v106
    %v676 = vunpack.c.l.b16 %v107
    %v677 = vunpack.c.h.b16 %v107
    %v678 = vunpack.c.l.b16 %v108
    %v679 = vunpack.c.h.b16 %v108
    %v680 = vunpack.c.l.b16 %v109
    %v681 = vunpack.c.h.b16 %v109
    %v682 = vunpack.c.l.b16 %v110
    %v683 = vunpack.c.h.b16 %v110
    %v684 = vunpack.c.l.b16 %v111
    %v685 = vunpack.c.h.b16 %v111
    %v686 = vunpack.c.l.b16 %v112
    %v687 = vunpack.c.h.b16 %v112
    %v688 = vunpack.c.l.b16 %v113
    %v689 = vunpack.c.h.b16 %v113
    %v690 = vpack.c.b16 %v634, %v626
    %v691 = vpack.c.b16 %v635, %v627
    %v692 = vpack.c.b16 %v636, %v628
    %v693 = vpack.c.b16 %v637, %v629
    %v694 = vpack.c.b16 %v638, %v630
    %v695 = vpack.c.b16 %v639, %v631
    %v696 = vpack.c.b16 %v640, %v632
    %v697 = vpack.c.b16 %v641, %v633
    %v698 = vpack.c.b16 %v650, %v642
    %v699 = vpack.c.b16 %v651, %v643
    %v700 = vpack.c.b16 %v652, %v644
    %v701 = vpack.c.b16 %v653, %v645
    %v702 = vpack.c.b16 %v654, %v646
    %v703 = vpack.c.b16 %v655, %v647
    %v704 = vpack.c.b16 %v656, %v648
    %v705 = vpack.c.b16 %v657, %v649
    %v706 = vpack.c.b16 %v666, %v658
    %v707 = vpack.c.b16 %v667, %v659
    %v708 = vpack.c.b16 %v668, %v660
    %v709 = vpack.c.b16 %v669, %v661
    %v710 = vpack.c.b16 %v670, %v662
    %v711 = vpack.c.b16 %v671, %v663
    %v712 = vpack.c.b16 %v672, %v664
    %v713 = vpack.c.b16 %v673, %v665
    %v714 = vpack.c.b16 %v682, %v674
    %v715 = vpack.c.b16 %v683, %v675
    %v716 = vpack.c.b16 %v684, %v676
    %v717 = vpack.c.b16 %v685, %v677
    %v718 = vpack.c.b16 %v686, %v678
    %v719 = vpack.c.b16 %v687, %v679
    %v720 = vpack.c.b16 %v688, %v680
    %v721 = vpack.c.b16 %v689, %v681
    %vm754 = vcmask 523264
    %v756 = vsel %vm754, %v593, 0
    %758 = vmatprep.subr.bf16.mxu0 0
    %759 = vmatpush1.bf16.msra.mxu0 0
    %760 = vmatprep.subr.bf16.mxu0 0
    %761 = vmatpush1.bf16.msra.mxu0 0
    %762 = vmatprep.subr.bf16.mxu0 0
    %763 = vmatpush1.bf16.msra.mxu0 0
    %764 = vmatprep.subr.bf16.mxu0 0
    %765 = vmatpush1.bf16.msra.mxu0 0
    %766 = vmatprep.subr.bf16.mxu0 %v715
    %767 = vmatpush1.bf16.msra.mxu0 %v714
    %768 = vmatprep.subr.bf16.mxu0 %v707
    %769 = vmatpush1.bf16.msra.mxu0 %v706
    %770 = vmatprep.subr.bf16.mxu0 %v699
    %771 = vmatpush1.bf16.msra.mxu0 %v698
    %772 = vmatprep.subr.bf16.mxu0 %v691
    %773 = vmatpush1.bf16.msra.mxu0 %v690
    %774 = vmatprep.subr.bf16.mxu0 0
    %775 = vmatpush2.bf16.msra.mxu0 0
    %776 = vmatprep.subr.bf16.mxu0 0
    %777 = vmatpush2.bf16.msra.mxu0 0
    %778 = vmatprep.subr.bf16.mxu0 0
    %779 = vmatpush2.bf16.msra.mxu0 0
    %780 = vmatprep.subr.bf16.mxu0 0
    %781 = vmatpush2.bf16.msra.mxu0 0
    %782 = vmatprep.subr.bf16.mxu0 0
    %783 = vmatpush2.bf16.msra.mxu0 0
    %784 = vmatprep.subr.bf16.mxu0 0
    %785 = vmatpush2.bf16.msra.mxu0 0
    %786 = vmatprep.subr.bf16.mxu0 0
    %787 = vmatpush2.bf16.msra.mxu0 0
    %788 = vmatprep.subr.bf16.mxu0 0
    %789 = vmatpush2.bf16.msra.mxu0 0
    %790 = vmatprep.mubr.bf16.mxu0 0
    %791 = vmatmul.mubr.bf16.gmra.mxu0 %v756
    %v792 = vpop.f32.mrf.mxu0
    %v793 = vadd.f32 0.0, %v792
    %v794 = vpop.f32.mrf.mxu0
    %v795 = vadd.f32 0.0, %v794
    %v796 = vpop.f32.mrf.mxu0
    %v797 = vpop.f32.mrf.mxu0
    %798 = vdwg.mxu0
    %799 = vmatprep.subr.bf16.mxu0 0
    %800 = vmatpush1.bf16.msra.mxu0 0
    %801 = vmatprep.subr.bf16.mxu0 0
    %802 = vmatpush1.bf16.msra.mxu0 0
    %803 = vmatprep.subr.bf16.mxu0 0
    %804 = vmatpush1.bf16.msra.mxu0 0
    %805 = vmatprep.subr.bf16.mxu0 0
    %806 = vmatpush1.bf16.msra.mxu0 0
    %807 = vmatprep.subr.bf16.mxu0 %v717
    %808 = vmatpush1.bf16.msra.mxu0 %v716
    %809 = vmatprep.subr.bf16.mxu0 %v709
    %810 = vmatpush1.bf16.msra.mxu0 %v708
    %811 = vmatprep.subr.bf16.mxu0 %v701
    %812 = vmatpush1.bf16.msra.mxu0 %v700
    %813 = vmatprep.subr.bf16.mxu0 %v693
    %814 = vmatpush1.bf16.msra.mxu0 %v692
    %815 = vmatprep.subr.bf16.mxu0 0
    %816 = vmatpush2.bf16.msra.mxu0 0
    %817 = vmatprep.subr.bf16.mxu0 0
    %818 = vmatpush2.bf16.msra.mxu0 0
    %819 = vmatprep.subr.bf16.mxu0 0
    %820 = vmatpush2.bf16.msra.mxu0 0
    %821 = vmatprep.subr.bf16.mxu0 0
    %822 = vmatpush2.bf16.msra.mxu0 0
    %823 = vmatprep.subr.bf16.mxu0 0
    %824 = vmatpush2.bf16.msra.mxu0 0
    %825 = vmatprep.subr.bf16.mxu0 0
    %826 = vmatpush2.bf16.msra.mxu0 0
    %827 = vmatprep.subr.bf16.mxu0 0
    %828 = vmatpush2.bf16.msra.mxu0 0
    %829 = vmatprep.subr.bf16.mxu0 0
    %830 = vmatpush2.bf16.msra.mxu0 0
    %831 = vmatprep.mubr.bf16.mxu0 0
    %832 = vmatmul.mubr.bf16.gmra.mxu0 %v756
    %v833 = vpop.f32.mrf.mxu0
    %v834 = vadd.f32 0.0, %v833
    %v835 = vpop.f32.mrf.mxu0
    %v836 = vadd.f32 0.0, %v835
    %v837 = vpop.f32.mrf.mxu0
    %v838 = vpop.f32.mrf.mxu0
    %839 = vdwg.mxu0
    %840 = vmatprep.subr.bf16.mxu0 0
    %841 = vmatpush1.bf16.msra.mxu0 0
    %842 = vmatprep.subr.bf16.mxu0 0
    %843 = vmatpush1.bf16.msra.mxu0 0
    %844 = vmatprep.subr.bf16.mxu0 0
    %845 = vmatpush1.bf16.msra.mxu0 0
    %846 = vmatprep.subr.bf16.mxu0 0
    %847 = vmatpush1.bf16.msra.mxu0 0
    %848 = vmatprep.subr.bf16.mxu0 %v719
    %849 = vmatpush1.bf16.msra.mxu0 %v718
    %850 = vmatprep.subr.bf16.mxu0 %v711
    %851 = vmatpush1.bf16.msra.mxu0 %v710
    %852 = vmatprep.subr.bf16.mxu0 %v703
    %853 = vmatpush1.bf16.msra.mxu0 %v702
    %854 = vmatprep.subr.bf16.mxu0 %v695
    %855 = vmatpush1.bf16.msra.mxu0 %v694
    %856 = vmatprep.subr.bf16.mxu0 0
    %857 = vmatpush2.bf16.msra.mxu0 0
    %858 = vmatprep.subr.bf16.mxu0 0
    %859 = vmatpush2.bf16.msra.mxu0 0
    %860 = vmatprep.subr.bf16.mxu0 0
    %861 = vmatpush2.bf16.msra.mxu0 0
    %862 = vmatprep.subr.bf16.mxu0 0
    %863 = vmatpush2.bf16.msra.mxu0 0
    %864 = vmatprep.subr.bf16.mxu0 0
    %865 = vmatpush2.bf16.msra.mxu0 0
    %866 = vmatprep.subr.bf16.mxu0 0
    %867 = vmatpush2.bf16.msra.mxu0 0
    %868 = vmatprep.subr.bf16.mxu0 0
    %869 = vmatpush2.bf16.msra.mxu0 0
    %870 = vmatprep.subr.bf16.mxu0 0
    %871 = vmatpush2.bf16.msra.mxu0 0
    %872 = vmatprep.mubr.bf16.mxu0 0
    %873 = vmatmul.mubr.bf16.gmra.mxu0 %v756
    %v874 = vpop.f32.mrf.mxu0
    %v875 = vadd.f32 0.0, %v874
    %v876 = vpop.f32.mrf.mxu0
    %v877 = vadd.f32 0.0, %v876
    %v878 = vpop.f32.mrf.mxu0
    %v879 = vpop.f32.mrf.mxu0
    %880 = vdwg.mxu0
    %881 = vmatprep.subr.bf16.mxu0 0
    %882 = vmatpush1.bf16.msra.mxu0 0
    %883 = vmatprep.subr.bf16.mxu0 0
    %884 = vmatpush1.bf16.msra.mxu0 0
    %885 = vmatprep.subr.bf16.mxu0 0
    %886 = vmatpush1.bf16.msra.mxu0 0
    %887 = vmatprep.subr.bf16.mxu0 0
    %888 = vmatpush1.bf16.msra.mxu0 0
    %889 = vmatprep.subr.bf16.mxu0 %v721
    %890 = vmatpush1.bf16.msra.mxu0 %v720
    %891 = vmatprep.subr.bf16.mxu0 %v713
    %892 = vmatpush1.bf16.msra.mxu0 %v712
    %893 = vmatprep.subr.bf16.mxu0 %v705
    %894 = vmatpush1.bf16.msra.mxu0 %v704
    %895 = vmatprep.subr.bf16.mxu0 %v697
    %896 = vmatpush1.bf16.msra.mxu0 %v696
    %897 = vmatprep.subr.bf16.mxu0 0
    %898 = vmatpush2.bf16.msra.mxu0 0
    %899 = vmatprep.subr.bf16.mxu0 0
    %900 = vmatpush2.bf16.msra.mxu0 0
    %901 = vmatprep.subr.bf16.mxu0 0
    %902 = vmatpush2.bf16.msra.mxu0 0
    %903 = vmatprep.subr.bf16.mxu0 0
    %904 = vmatpush2.bf16.msra.mxu0 0
    %905 = vmatprep.subr.bf16.mxu0 0
    %906 = vmatpush2.bf16.msra.mxu0 0
    %907 = vmatprep.subr.bf16.mxu0 0
    %908 = vmatpush2.bf16.msra.mxu0 0
    %909 = vmatprep.subr.bf16.mxu0 0
    %910 = vmatpush2.bf16.msra.mxu0 0
    %911 = vmatprep.subr.bf16.mxu0 0
    %912 = vmatpush2.bf16.msra.mxu0 0
    %913 = vmatprep.mubr.bf16.mxu0 0
    %914 = vmatmul.mubr.bf16.gmra.mxu0 %v756
    %v915 = vpop.f32.mrf.mxu0
    %v916 = vadd.f32 0.0, %v915
    %v917 = vpop.f32.mrf.mxu0
    %v918 = vadd.f32 0.0, %v917
    %v919 = vpop.f32.mrf.mxu0
    %v920 = vpop.f32.mrf.mxu0
    %921 = vdwg.mxu0
    %s922 = smul.u32 0, 8
    %s923 = smul.addr %s922, 8
    %s924 = scalar_lea.vmem [#allocation2], %s923
    %v925 = vld [vmem:[%s924] sm:$0xff]
    %v926 = vld [vmem:[%s924 + $0x8] sm:$0xff]
    %v927 = vld [vmem:[%s924 + $0x10] sm:$0xff]
    %v928 = vld [vmem:[%s924 + $0x18] sm:$0xff]
    %v929 = vadd.f32 %v925, %v793
    %v930 = vadd.f32 %v926, %v795
    %v931 = vadd.f32 %v927, %v834
    %v932 = vadd.f32 %v928, %v836
    %s933 = smul.u32 7, 8
    %s934 = smul.addr %s933, 8
    %s935 = scalar_lea.vmem [#allocation2], %s934
    %v936 = vld [vmem:[%s935 + $0x20] sm:$0xff]
    %v937 = vld [vmem:[%s935 + $0x28] sm:$0xff]
    %v938 = vld [vmem:[%s935 + $0x30] sm:$0xff]
    %v939 = vld [vmem:[%s935 + $0x38] sm:$0xff]
    %v940 = vadd.f32 %v936, %v875
    %v941 = vadd.f32 %v937, %v877
    %v942 = vadd.f32 %v938, %v916
    %v943 = vadd.f32 %v939, %v918
    %v944 = vxor.u32 %v929, 2147483648
    %v945 = vxor.u32 %v930, 2147483648
    %v946 = vxor.u32 %v931, 2147483648
    %v947 = vmul.f32 %v944, 1.442695
    %v948 = vpow.pop %v947
    %v949 = vmul.f32 %v945, 1.442695
    %v950 = vpow.pop %v949
    %v951 = vmul.f32 %v946, 1.442695
    %v952 = vpow.pop %v951
    %v953 = vadd.f32 %v948, 1.0
    %v954 = vadd.f32 %v950, 1.0
    %v955 = vadd.f32 %v952, 1.0
    %v956 = vrcp.pop %v953
    %v957 = vmul.f32 1.0, %v956
    %v958 = vrcp.pop %v954
    %v959 = vmul.f32 1.0, %v958
    %v960 = vrcp.pop %v955
    %v961 = vmul.f32 1.0, %v960
    %v962 = vtanh.pop %v932
    %v963 = vmul.f32 %v959, 0.0
    %v964 = vmul.f32 %v957, %v962
    %v965 = vadd.f32 %v963, %v964
    %v966 = vtanh.pop %v965
    %v967 = vmul.f32 %v961, %v966
    %v968 = vxor.u32 %v940, 2147483648
    %v969 = vxor.u32 %v941, 2147483648
    %v970 = vxor.u32 %v942, 2147483648
    %v971 = vmul.f32 %v968, 1.442695
    %v972 = vpow.pop %v971
    %v973 = vmul.f32 %v969, 1.442695
    %v974 = vpow.pop %v973
    %v975 = vmul.f32 %v970, 1.442695
    %v976 = vpow.pop %v975
    %v977 = vadd.f32 %v972, 1.0
    %v978 = vadd.f32 %v974, 1.0
    %v979 = vadd.f32 %v976, 1.0
    %v980 = vrcp.pop %v977
    %v981 = vmul.f32 1.0, %v980
    %v982 = vrcp.pop %v978
    %v983 = vmul.f32 1.0, %v982
    %v984 = vrcp.pop %v979
    %v985 = vmul.f32 1.0, %v984
    %v986 = vtanh.pop %v943
    %v987 = vmul.f32 %v983, 0.0
    %v988 = vmul.f32 %v981, %v986
    %v989 = vadd.f32 %v987, %v988
    %v990 = vtanh.pop %v989
    %v991 = vmul.f32 %v985, %v990
    %vm992 = vcmask 261120
    %993 = vst.msk [vmem:[#allocation3] sm:$0xff] %vm992, %v967
    %s994 = scalar_lea.vmem [#allocation4], 56
    %995 = vst.msk [vmem:[%s994] sm:$0xff] %vm992, %v991
    %997 = vrot.lane.b32.xlu0 %v991, 32
    %v998 = vpop.permute.xlu0 %997
    %v1000 = vsel %vm992, %v967, %v998
    %v1001 = vpack.c.bf16 %v1000, %v1000
    %v1003 = vsel %vm754, %v1001, 0
    %1005 = vmatprep.subr.bf16.mxu0 0
    %1006 = vmatpush1.bf16.msra.mxu0 0
    %1007 = vmatprep.subr.bf16.mxu0 0
    %1008 = vmatpush1.bf16.msra.mxu0 0
    %1009 = vmatprep.subr.bf16.mxu0 0
    %1010 = vmatpush1.bf16.msra.mxu0 0
    %1011 = vmatprep.subr.bf16.mxu0 0
    %1012 = vmatpush1.bf16.msra.mxu0 0
    %1013 = vmatprep.subr.bf16.mxu0 %v715
    %1014 = vmatpush1.bf16.msra.mxu0 %v714
    %1015 = vmatprep.subr.bf16.mxu0 %v707
    %1016 = vmatpush1.bf16.msra.mxu0 %v706
    %1017 = vmatprep.subr.bf16.mxu0 %v699
    %1018 = vmatpush1.bf16.msra.mxu0 %v698
    %1019 = vmatprep.subr.bf16.mxu0 %v691
    %1020 = vmatpush1.bf16.msra.mxu0 %v690
    %1021 = vmatprep.subr.bf16.mxu0 0
    %1022 = vmatpush2.bf16.msra.mxu0 0
    %1023 = vmatprep.subr.bf16.mxu0 0
    %1024 = vmatpush2.bf16.msra.mxu0 0
    %1025 = vmatprep.subr.bf16.mxu0 0
    %1026 = vmatpush2.bf16.msra.mxu0 0
    %1027 = vmatprep.subr.bf16.mxu0 0
    %1028 = vmatpush2.bf16.msra.mxu0 0
    %1029 = vmatprep.subr.bf16.mxu0 0
    %1030 = vmatpush2.bf16.msra.mxu0 0
    %1031 = vmatprep.subr.bf16.mxu0 0
    %1032 = vmatpush2.bf16.msra.mxu0 0
    %1033 = vmatprep.subr.bf16.mxu0 0
    %1034 = vmatpush2.bf16.msra.mxu0 0
    %1035 = vmatprep.subr.bf16.mxu0 0
    %1036 = vmatpush2.bf16.msra.mxu0 0
    %1037 = vmatprep.mubr.bf16.mxu0 0
    %1038 = vmatmul.mubr.bf16.gmra.mxu0 %v1003
    %v1039 = vpop.f32.mrf.mxu0
    %v1040 = vadd.f32 0.0, %v1039
    %v1041 = vpop.f32.mrf.mxu0
    %v1042 = vadd.f32 0.0, %v1041
    %v1043 = vpop.f32.mrf.mxu0
    %v1044 = vpop.f32.mrf.mxu0
    %1045 = vdwg.mxu0
    %1046 = vmatprep.subr.bf16.mxu0 0
    %1047 = vmatpush1.bf16.msra.mxu0 0
    %1048 = vmatprep.subr.bf16.mxu0 0
    %1049 = vmatpush1.bf16.msra.mxu0 0
    %1050 = vmatprep.subr.bf16.mxu0 0
    %1051 = vmatpush1.bf16.msra.mxu0 0
    %1052 = vmatprep.subr.bf16.mxu0 0
    %1053 = vmatpush1.bf16.msra.mxu0 0
    %1054 = vmatprep.subr.bf16.mxu0 %v717
    %1055 = vmatpush1.bf16.msra.mxu0 %v716
    %1056 = vmatprep.subr.bf16.mxu0 %v709
    %1057 = vmatpush1.bf16.msra.mxu0 %v708
    %1058 = vmatprep.subr.bf16.mxu0 %v701
    %1059 = vmatpush1.bf16.msra.mxu0 %v700
    %1060 = vmatprep.subr.bf16.mxu0 %v693
    %1061 = vmatpush1.bf16.msra.mxu0 %v692
    %1062 = vmatprep.subr.bf16.mxu0 0
    %1063 = vmatpush2.bf16.msra.mxu0 0
    %1064 = vmatprep.subr.bf16.mxu0 0
    %1065 = vmatpush2.bf16.msra.mxu0 0
    %1066 = vmatprep.subr.bf16.mxu0 0
    %1067 = vmatpush2.bf16.msra.mxu0 0
    %1068 = vmatprep.subr.bf16.mxu0 0
    %1069 = vmatpush2.bf16.msra.mxu0 0
    %1070 = vmatprep.subr.bf16.mxu0 0
    %1071 = vmatpush2.bf16.msra.mxu0 0
    %1072 = vmatprep.subr.bf16.mxu0 0
    %1073 = vmatpush2.bf16.msra.mxu0 0
    %1074 = vmatprep.subr.bf16.mxu0 0
    %1075 = vmatpush2.bf16.msra.mxu0 0
    %1076 = vmatprep.subr.bf16.mxu0 0
    %1077 = vmatpush2.bf16.msra.mxu0 0
    %1078 = vmatprep.mubr.bf16.mxu0 0
    %1079 = vmatmul.mubr.bf16.gmra.mxu0 %v1003
    %v1080 = vpop.f32.mrf.mxu0
    %v1081 = vadd.f32 0.0, %v1080
    %v1082 = vpop.f32.mrf.mxu0
    %v1083 = vadd.f32 0.0, %v1082
    %v1084 = vpop.f32.mrf.mxu0
    %v1085 = vpop.f32.mrf.mxu0
    %1086 = vdwg.mxu0
    %1087 = vmatprep.subr.bf16.mxu0 0
    %1088 = vmatpush1.bf16.msra.mxu0 0
    %1089 = vmatprep.subr.bf16.mxu0 0
    %1090 = vmatpush1.bf16.msra.mxu0 0
    %1091 = vmatprep.subr.bf16.mxu0 0
    %1092 = vmatpush1.bf16.msra.mxu0 0
    %1093 = vmatprep.subr.bf16.mxu0 0
    %1094 = vmatpush1.bf16.msra.mxu0 0
    %1095 = vmatprep.subr.bf16.mxu0 %v719
    %1096 = vmatpush1.bf16.msra.mxu0 %v718
    %1097 = vmatprep.subr.bf16.mxu0 %v711
    %1098 = vmatpush1.bf16.msra.mxu0 %v710
    %1099 = vmatprep.subr.bf16.mxu0 %v703
    %1100 = vmatpush1.bf16.msra.mxu0 %v702
    %1101 = vmatprep.subr.bf16.mxu0 %v695
    %1102 = vmatpush1.bf16.msra.mxu0 %v694
    %1103 = vmatprep.subr.bf16.mxu0 0
    %1104 = vmatpush2.bf16.msra.mxu0 0
    %1105 = vmatprep.subr.bf16.mxu0 0
    %1106 = vmatpush2.bf16.msra.mxu0 0
    %1107 = vmatprep.subr.bf16.mxu0 0
    %1108 = vmatpush2.bf16.msra.mxu0 0
    %1109 = vmatprep.subr.bf16.mxu0 0
    %1110 = vmatpush2.bf16.msra.mxu0 0
    %1111 = vmatprep.subr.bf16.mxu0 0
    %1112 = vmatpush2.bf16.msra.mxu0 0
    %1113 = vmatprep.subr.bf16.mxu0 0
    %1114 = vmatpush2.bf16.msra.mxu0 0
    %1115 = vmatprep.subr.bf16.mxu0 0
    %1116 = vmatpush2.bf16.msra.mxu0 0
    %1117 = vmatprep.subr.bf16.mxu0 0
    %1118 = vmatpush2.bf16.msra.mxu0 0
    %1119 = vmatprep.mubr.bf16.mxu0 0
    %1120 = vmatmul.mubr.bf16.gmra.mxu0 %v1003
    %v1121 = vpop.f32.mrf.mxu0
    %v1122 = vadd.f32 0.0, %v1121
    %v1123 = vpop.f32.mrf.mxu0
    %v1124 = vadd.f32 0.0, %v1123
    %v1125 = vpop.f32.mrf.mxu0
    %v1126 = vpop.f32.mrf.mxu0
    %1127 = vdwg.mxu0
    %1128 = vmatprep.subr.bf16.mxu0 0
    %1129 = vmatpush1.bf16.msra.mxu0 0
    %1130 = vmatprep.subr.bf16.mxu0 0
    %1131 = vmatpush1.bf16.msra.mxu0 0
    %1132 = vmatprep.subr.bf16.mxu0 0
    %1133 = vmatpush1.bf16.msra.mxu0 0
    %1134 = vmatprep.subr.bf16.mxu0 0
    %1135 = vmatpush1.bf16.msra.mxu0 0
    %1136 = vmatprep.subr.bf16.mxu0 %v721
    %1137 = vmatpush1.bf16.msra.mxu0 %v720
    %1138 = vmatprep.subr.bf16.mxu0 %v713
    %1139 = vmatpush1.bf16.msra.mxu0 %v712
    %1140 = vmatprep.subr.bf16.mxu0 %v705
    %1141 = vmatpush1.bf16.msra.mxu0 %v704
    %1142 = vmatprep.subr.bf16.mxu0 %v697
    %1143 = vmatpush1.bf16.msra.mxu0 %v696
    %1144 = vmatprep.subr.bf16.mxu0 0
    %1145 = vmatpush2.bf16.msra.mxu0 0
    %1146 = vmatprep.subr.bf16.mxu0 0
    %1147 = vmatpush2.bf16.msra.mxu0 0
    %1148 = vmatprep.subr.bf16.mxu0 0
    %1149 = vmatpush2.bf16.msra.mxu0 0
    %1150 = vmatprep.subr.bf16.mxu0 0
    %1151 = vmatpush2.bf16.msra.mxu0 0
    %1152 = vmatprep.subr.bf16.mxu0 0
    %1153 = vmatpush2.bf16.msra.mxu0 0
    %1154 = vmatprep.subr.bf16.mxu0 0
    %1155 = vmatpush2.bf16.msra.mxu0 0
    %1156 = vmatprep.subr.bf16.mxu0 0
    %1157 = vmatpush2.bf16.msra.mxu0 0
    %1158 = vmatprep.subr.bf16.mxu0 0
    %1159 = vmatpush2.bf16.msra.mxu0 0
    %1160 = vmatprep.mubr.bf16.mxu0 0
    %1161 = vmatmul.mubr.bf16.gmra.mxu0 %v1003
    %v1162 = vpop.f32.mrf.mxu0
    %v1163 = vadd.f32 0.0, %v1162
    %v1164 = vpop.f32.mrf.mxu0
    %v1165 = vadd.f32 0.0, %v1164
    %v1166 = vpop.f32.mrf.mxu0
    %v1167 = vpop.f32.mrf.mxu0
    %1168 = vdwg.mxu0
    %s1169 = smul.u32 1, 8
    %s1170 = smul.addr %s1169, 8
    %s1171 = scalar_lea.vmem [#allocation2], %s1170
    %v1172 = vld [vmem:[%s1171] sm:$0xff]
    %v1173 = vld [vmem:[%s1171 + $0x8] sm:$0xff]
    %v1174 = vld [vmem:[%s1171 + $0x10] sm:$0xff]
    %v1175 = vld [vmem:[%s1171 + $0x18] sm:$0xff]
    %v1176 = vadd.f32 %v1172, %v1040
    %v1177 = vadd.f32 %v1173, %v1042
    %v1178 = vadd.f32 %v1174, %v1081
    %v1179 = vadd.f32 %v1175, %v1083
    %s1180 = smul.u32 6, 8
    %s1181 = smul.addr %s1180, 8
    %s1182 = scalar_lea.vmem [#allocation2], %s1181
    %v1183 = vld [vmem:[%s1182 + $0x20] sm:$0xff]
    %v1184 = vld [vmem:[%s1182 + $0x28] sm:$0xff]
    %v1185 = vld [vmem:[%s1182 + $0x30] sm:$0xff]
    %v1186 = vld [vmem:[%s1182 + $0x38] sm:$0xff]
    %v1187 = vadd.f32 %v1183, %v1122
    %v1188 = vadd.f32 %v1184, %v1124
    %v1189 = vadd.f32 %v1185, %v1163
    %v1190 = vadd.f32 %v1186, %v1165
    %v1191 = vxor.u32 %v1176, 2147483648
    %v1192 = vxor.u32 %v1177, 2147483648
    %v1193 = vxor.u32 %v1178, 2147483648
    %v1194 = vmul.f32 %v1191, 1.442695
    %v1195 = vpow.pop %v1194
    %v1196 = vmul.f32 %v1192, 1.442695
    %v1197 = vpow.pop %v1196
    %v1198 = vmul.f32 %v1193, 1.442695
    %v1199 = vpow.pop %v1198
    %v1200 = vadd.f32 %v1195, 1.0
    %v1201 = vadd.f32 %v1197, 1.0
    %v1202 = vadd.f32 %v1199, 1.0
    %v1203 = vrcp.pop %v1200
    %v1204 = vmul.f32 1.0, %v1203
    %v1205 = vrcp.pop %v1201
    %v1206 = vmul.f32 1.0, %v1205
    %v1207 = vrcp.pop %v1202
    %v1208 = vmul.f32 1.0, %v1207
    %v1209 = vtanh.pop %v1179
    %v1210 = vmul.f32 %v1206, %v965
    %v1211 = vmul.f32 %v1204, %v1209
    %v1212 = vadd.f32 %v1210, %v1211
    %v1213 = vtanh.pop %v1212
    %v1214 = vmul.f32 %v1208, %v1213
    %v1215 = vxor.u32 %v1187, 2147483648
    %v1216 = vxor.u32 %v1188, 2147483648
    %v1217 = vxor.u32 %v1189, 2147483648
    %v1218 = vmul.f32 %v1215, 1.442695
    %v1219 = vpow.pop %v1218
    %v1220 = vmul.f32 %v1216, 1.442695
    %v1221 = vpow.pop %v1220
    %v1222 = vmul.f32 %v1217, 1.442695
    %v1223 = vpow.pop %v1222
    %v1224 = vadd.f32 %v1219, 1.0
    %v1225 = vadd.f32 %v1221, 1.0
    %v1226 = vadd.f32 %v1223, 1.0
    %v1227 = vrcp.pop %v1224
    %v1228 = vmul.f32 1.0, %v1227
    %v1229 = vrcp.pop %v1225
    %v1230 = vmul.f32 1.0, %v1229
    %v1231 = vrcp.pop %v1226
    %v1232 = vmul.f32 1.0, %v1231
    %v1233 = vtanh.pop %v1190
    %v1234 = vmul.f32 %v1230, %v989
    %v1235 = vmul.f32 %v1228, %v1233
    %v1236 = vadd.f32 %v1234, %v1235
    %v1237 = vtanh.pop %v1236
    %v1238 = vmul.f32 %v1232, %v1237
    %s1239 = scalar_lea.vmem [#allocation3], 8
    %1240 = vst.msk [vmem:[%s1239] sm:$0xff] %vm992, %v1214
    %s1241 = scalar_lea.vmem [#allocation4], 48
    %1242 = vst.msk [vmem:[%s1241] sm:$0xff] %vm992, %v1238
    %1244 = vrot.lane.b32.xlu0 %v1238, 32
    %v1245 = vpop.permute.xlu0 %1244
    %v1247 = vsel %vm992, %v1214, %v1245
    %v1248 = vpack.c.bf16 %v1247, %v1247
    %v1250 = vsel %vm754, %v1248, 0
    %1252 = vmatprep.subr.bf16.mxu0 0
    %1253 = vmatpush1.bf16.msra.mxu0 0
    %1254 = vmatprep.subr.bf16.mxu0 0
    %1255 = vmatpush1.bf16.msra.mxu0 0
    %1256 = vmatprep.subr.bf16.mxu0 0
    %1257 = vmatpush1.bf16.msra.mxu0 0
    %1258 = vmatprep.subr.bf16.mxu0 0
    %1259 = vmatpush1.bf16.msra.mxu0 0
    %1260 = vmatprep.subr.bf16.mxu0 %v715
    %1261 = vmatpush1.bf16.msra.mxu0 %v714
    %1262 = vmatprep.subr.bf16.mxu0 %v707
    %1263 = vmatpush1.bf16.msra.mxu0 %v706
    %1264 = vmatprep.subr.bf16.mxu0 %v699
    %1265 = vmatpush1.bf16.msra.mxu0 %v698
    %1266 = vmatprep.subr.bf16.mxu0 %v691
    %1267 = vmatpush1.bf16.msra.mxu0 %v690
    %1268 = vmatprep.subr.bf16.mxu0 0
    %1269 = vmatpush2.bf16.msra.mxu0 0
    %1270 = vmatprep.subr.bf16.mxu0 0
    %1271 = vmatpush2.bf16.msra.mxu0 0
    %1272 = vmatprep.subr.bf16.mxu0 0
    %1273 = vmatpush2.bf16.msra.mxu0 0
    %1274 = vmatprep.subr.bf16.mxu0 0
    %1275 = vmatpush2.bf16.msra.mxu0 0
    %1276 = vmatprep.subr.bf16.mxu0 0
    %1277 = vmatpush2.bf16.msra.mxu0 0
    %1278 = vmatprep.subr.bf16.mxu0 0
    %1279 = vmatpush2.bf16.msra.mxu0 0
    %1280 = vmatprep.subr.bf16.mxu0 0
    %1281 = vmatpush2.bf16.msra.mxu0 0
    %1282 = vmatprep.subr.bf16.mxu0 0
    %1283 = vmatpush2.bf16.msra.mxu0 0
    %1284 = vmatprep.mubr.bf16.mxu0 0
    %1285 = vmatmul.mubr.bf16.gmra.mxu0 %v1250
    %v1286 = vpop.f32.mrf.mxu0
    %v1287 = vadd.f32 0.0, %v1286
    %v1288 = vpop.f32.mrf.mxu0
    %v1289 = vadd.f32 0.0, %v1288
    %v1290 = vpop.f32.mrf.mxu0
    %v1291 = vpop.f32.mrf.mxu0
    %1292 = vdwg.mxu0
    %1293 = vmatprep.subr.bf16.mxu0 0
    %1294 = vmatpush1.bf16.msra.mxu0 0
    %1295 = vmatprep.subr.bf16.mxu0 0
    %1296 = vmatpush1.bf16.msra.mxu0 0
    %1297 = vmatprep.subr.bf16.mxu0 0
    %1298 = vmatpush1.bf16.msra.mxu0 0
    %1299 = vmatprep.subr.bf16.mxu0 0
    %1300 = vmatpush1.bf16.msra.mxu0 0
    %1301 = vmatprep.subr.bf16.mxu0 %v717
    %1302 = vmatpush1.bf16.msra.mxu0 %v716
    %1303 = vmatprep.subr.bf16.mxu0 %v709
    %1304 = vmatpush1.bf16.msra.mxu0 %v708
    %1305 = vmatprep.subr.bf16.mxu0 %v701
    %1306 = vmatpush1.bf16.msra.mxu0 %v700
    %1307 = vmatprep.subr.bf16.mxu0 %v693
    %1308 = vmatpush1.bf16.msra.mxu0 %v692
    %1309 = vmatprep.subr.bf16.mxu0 0
    %1310 = vmatpush2.bf16.msra.mxu0 0
    %1311 = vmatprep.subr.bf16.mxu0 0
    %1312 = vmatpush2.bf16.msra.mxu0 0
    %1313 = vmatprep.subr.bf16.mxu0 0
    %1314 = vmatpush2.bf16.msra.mxu0 0
    %1315 = vmatprep.subr.bf16.mxu0 0
    %1316 = vmatpush2.bf16.msra.mxu0 0
    %1317 = vmatprep.subr.bf16.mxu0 0
    %1318 = vmatpush2.bf16.msra.mxu0 0
    %1319 = vmatprep.subr.bf16.mxu0 0
    %1320 = vmatpush2.bf16.msra.mxu0 0
    %1321 = vmatprep.subr.bf16.mxu0 0
    %1322 = vmatpush2.bf16.msra.mxu0 0
    %1323 = vmatprep.subr.bf16.mxu0 0
    %1324 = vmatpush2.bf16.msra.mxu0 0
    %1325 = vmatprep.mubr.bf16.mxu0 0
    %1326 = vmatmul.mubr.bf16.gmra.mxu0 %v1250
    %v1327 = vpop.f32.mrf.mxu0
    %v1328 = vadd.f32 0.0, %v1327
    %v1329 = vpop.f32.mrf.mxu0
    %v1330 = vadd.f32 0.0, %v1329
    %v1331 = vpop.f32.mrf.mxu0
    %v1332 = vpop.f32.mrf.mxu0
    %1333 = vdwg.mxu0
    %1334 = vmatprep.subr.bf16.mxu0 0
    %1335 = vmatpush1.bf16.msra.mxu0 0
    %1336 = vmatprep.subr.bf16.mxu0 0
    %1337 = vmatpush1.bf16.msra.mxu0 0
    %1338 = vmatprep.subr.bf16.mxu0 0
    %1339 = vmatpush1.bf16.msra.mxu0 0
    %1340 = vmatprep.subr.bf16.mxu0 0
    %1341 = vmatpush1.bf16.msra.mxu0 0
    %1342 = vmatprep.subr.bf16.mxu0 %v719
    %1343 = vmatpush1.bf16.msra.mxu0 %v718
    %1344 = vmatprep.subr.bf16.mxu0 %v711
    %1345 = vmatpush1.bf16.msra.mxu0 %v710
    %1346 = vmatprep.subr.bf16.mxu0 %v703
    %1347 = vmatpush1.bf16.msra.mxu0 %v702
    %1348 = vmatprep.subr.bf16.mxu0 %v695
    %1349 = vmatpush1.bf16.msra.mxu0 %v694
    %1350 = vmatprep.subr.bf16.mxu0 0
    %1351 = vmatpush2.bf16.msra.mxu0 0
    %1352 = vmatprep.subr.bf16.mxu0 0
    %1353 = vmatpush2.bf16.msra.mxu0 0
    %1354 = vmatprep.subr.bf16.mxu0 0
    %1355 = vmatpush2.bf16.msra.mxu0 0
    %1356 = vmatprep.subr.bf16.mxu0 0
    %1357 = vmatpush2.bf16.msra.mxu0 0
    %1358 = vmatprep.subr.bf16.mxu0 0
    %1359 = vmatpush2.bf16.msra.mxu0 0
    %1360 = vmatprep.subr.bf16.mxu0 0
    %1361 = vmatpush2.bf16.msra.mxu0 0
    %1362 = vmatprep.subr.bf16.mxu0 0
    %1363 = vmatpush2.bf16.msra.mxu0 0
    %1364 = vmatprep.subr.bf16.mxu0 0
    %1365 = vmatpush2.bf16.msra.mxu0 0
    %1366 = vmatprep.mubr.bf16.mxu0 0
    %1367 = vmatmul.mubr.bf16.gmra.mxu0 %v1250
    %v1368 = vpop.f32.mrf.mxu0
    %v1369 = vadd.f32 0.0, %v1368
    %v1370 = vpop.f32.mrf.mxu0
    %v1371 = vadd.f32 0.0, %v1370
    %v1372 = vpop.f32.mrf.mxu0
    %v1373 = vpop.f32.mrf.mxu0
    %1374 = vdwg.mxu0
    %1375 = vmatprep.subr.bf16.mxu0 0
    %1376 = vmatpush1.bf16.msra.mxu0 0
    %1377 = vmatprep.subr.bf16.mxu0 0
    %1378 = vmatpush1.bf16.msra.mxu0 0
    %1379 = vmatprep.subr.bf16.mxu0 0
    %1380 = vmatpush1.bf16.msra.mxu0 0
    %1381 = vmatprep.subr.bf16.mxu0 0
    %1382 = vmatpush1.bf16.msra.mxu0 0
    %1383 = vmatprep.subr.bf16.mxu0 %v721
    %1384 = vmatpush1.bf16.msra.mxu0 %v720
    %1385 = vmatprep.subr.bf16.mxu0 %v713
    %1386 = vmatpush1.bf16.msra.mxu0 %v712
    %1387 = vmatprep.subr.bf16.mxu0 %v705
    %1388 = vmatpush1.bf16.msra.mxu0 %v704
    %1389 = vmatprep.subr.bf16.mxu0 %v697
    %1390 = vmatpush1.bf16.msra.mxu0 %v696
    %1391 = vmatprep.subr.bf16.mxu0 0
    %1392 = vmatpush2.bf16.msra.mxu0 0
    %1393 = vmatprep.subr.bf16.mxu0 0
    %1394 = vmatpush2.bf16.msra.mxu0 0
    %1395 = vmatprep.subr.bf16.mxu0 0
    %1396 = vmatpush2.bf16.msra.mxu0 0
    %1397 = vmatprep.subr.bf16.mxu0 0
    %1398 = vmatpush2.bf16.msra.mxu0 0
    %1399 = vmatprep.subr.bf16.mxu0 0
    %1400 = vmatpush2.bf16.msra.mxu0 0
    %1401 = vmatprep.subr.bf16.mxu0 0
    %1402 = vmatpush2.bf16.msra.mxu0 0
    %1403 = vmatprep.subr.bf16.mxu0 0
    %1404 = vmatpush2.bf16.msra.mxu0 0
    %1405 = vmatprep.subr.bf16.mxu0 0
    %1406 = vmatpush2.bf16.msra.mxu0 0
    %1407 = vmatprep.mubr.bf16.mxu0 0
    %1408 = vmatmul.mubr.bf16.gmra.mxu0 %v1250
    %v1409 = vpop.f32.mrf.mxu0
    %v1410 = vadd.f32 0.0, %v1409
    %v1411 = vpop.f32.mrf.mxu0
    %v1412 = vadd.f32 0.0, %v1411
    %v1413 = vpop.f32.mrf.mxu0
    %v1414 = vpop.f32.mrf.mxu0
    %1415 = vdwg.mxu0
    %s1416 = smul.u32 2, 8
    %s1417 = smul.addr %s1416, 8
    %s1418 = scalar_lea.vmem [#allocation2], %s1417
    %v1419 = vld [vmem:[%s1418] sm:$0xff]
    %v1420 = vld [vmem:[%s1418 + $0x8] sm:$0xff]
    %v1421 = vld [vmem:[%s1418 + $0x10] sm:$0xff]
    %v1422 = vld [vmem:[%s1418 + $0x18] sm:$0xff]
    %v1423 = vadd.f32 %v1419, %v1287
    %v1424 = vadd.f32 %v1420, %v1289
    %v1425 = vadd.f32 %v1421, %v1328
    %v1426 = vadd.f32 %v1422, %v1330
    %s1427 = smul.u32 5, 8
    %s1428 = smul.addr %s1427, 8
    %s1429 = scalar_lea.vmem [#allocation2], %s1428
    %v1430 = vld [vmem:[%s1429 + $0x20] sm:$0xff]
    %v1431 = vld [vmem:[%s1429 + $0x28] sm:$0xff]
    %v1432 = vld [vmem:[%s1429 + $0x30] sm:$0xff]
    %v1433 = vld [vmem:[%s1429 + $0x38] sm:$0xff]
    %v1434 = vadd.f32 %v1430, %v1369
    %v1435 = vadd.f32 %v1431, %v1371
    %v1436 = vadd.f32 %v1432, %v1410
    %v1437 = vadd.f32 %v1433, %v1412
    %v1438 = vxor.u32 %v1423, 2147483648
    %v1439 = vxor.u32 %v1424, 2147483648
    %v1440 = vxor.u32 %v1425, 2147483648
    %v1441 = vmul.f32 %v1438, 1.442695
    %v1442 = vpow.pop %v1441
    %v1443 = vmul.f32 %v1439, 1.442695
    %v1444 = vpow.pop %v1443
    %v1445 = vmul.f32 %v1440, 1.442695
    %v1446 = vpow.pop %v1445
    %v1447 = vadd.f32 %v1442, 1.0
    %v1448 = vadd.f32 %v1444, 1.0
    %v1449 = vadd.f32 %v1446, 1.0
    %v1450 = vrcp.pop %v1447
    %v1451 = vmul.f32 1.0, %v1450
    %v1452 = vrcp.pop %v1448
    %v1453 = vmul.f32 1.0, %v1452
    %v1454 = vrcp.pop %v1449
    %v1455 = vmul.f32 1.0, %v1454
    %v1456 = vtanh.pop %v1426
    %v1457 = vmul.f32 %v1453, %v1212
    %v1458 = vmul.f32 %v1451, %v1456
    %v1459 = vadd.f32 %v1457, %v1458
    %v1460 = vtanh.pop %v1459
    %v1461 = vmul.f32 %v1455, %v1460
    %v1462 = vxor.u32 %v1434, 2147483648
    %v1463 = vxor.u32 %v1435, 2147483648
    %v1464 = vxor.u32 %v1436, 2147483648
    %v1465 = vmul.f32 %v1462, 1.442695
    %v1466 = vpow.pop %v1465
    %v1467 = vmul.f32 %v1463, 1.442695
    %v1468 = vpow.pop %v1467
    %v1469 = vmul.f32 %v1464, 1.442695
    %v1470 = vpow.pop %v1469
    %v1471 = vadd.f32 %v1466, 1.0
    %v1472 = vadd.f32 %v1468, 1.0
    %v1473 = vadd.f32 %v1470, 1.0
    %v1474 = vrcp.pop %v1471
    %v1475 = vmul.f32 1.0, %v1474
    %v1476 = vrcp.pop %v1472
    %v1477 = vmul.f32 1.0, %v1476
    %v1478 = vrcp.pop %v1473
    %v1479 = vmul.f32 1.0, %v1478
    %v1480 = vtanh.pop %v1437
    %v1481 = vmul.f32 %v1477, %v1236
    %v1482 = vmul.f32 %v1475, %v1480
    %v1483 = vadd.f32 %v1481, %v1482
    %v1484 = vtanh.pop %v1483
    %v1485 = vmul.f32 %v1479, %v1484
    %s1486 = scalar_lea.vmem [#allocation3], 16
    %1487 = vst.msk [vmem:[%s1486] sm:$0xff] %vm992, %v1461
    %s1488 = scalar_lea.vmem [#allocation4], 40
    %1489 = vst.msk [vmem:[%s1488] sm:$0xff] %vm992, %v1485
    %1491 = vrot.lane.b32.xlu0 %v1485, 32
    %v1492 = vpop.permute.xlu0 %1491
    %v1494 = vsel %vm992, %v1461, %v1492
    %v1495 = vpack.c.bf16 %v1494, %v1494
    %v1497 = vsel %vm754, %v1495, 0
    %1499 = vmatprep.subr.bf16.mxu0 0
    %1500 = vmatpush1.bf16.msra.mxu0 0
    %1501 = vmatprep.subr.bf16.mxu0 0
    %1502 = vmatpush1.bf16.msra.mxu0 0
    %1503 = vmatprep.subr.bf16.mxu0 0
    %1504 = vmatpush1.bf16.msra.mxu0 0
    %1505 = vmatprep.subr.bf16.mxu0 0
    %1506 = vmatpush1.bf16.msra.mxu0 0
    %1507 = vmatprep.subr.bf16.mxu0 %v715
    %1508 = vmatpush1.bf16.msra.mxu0 %v714
    %1509 = vmatprep.subr.bf16.mxu0 %v707
    %1510 = vmatpush1.bf16.msra.mxu0 %v706
    %1511 = vmatprep.subr.bf16.mxu0 %v699
    %1512 = vmatpush1.bf16.msra.mxu0 %v698
    %1513 = vmatprep.subr.bf16.mxu0 %v691
    %1514 = vmatpush1.bf16.msra.mxu0 %v690
    %1515 = vmatprep.subr.bf16.mxu0 0
    %1516 = vmatpush2.bf16.msra.mxu0 0
    %1517 = vmatprep.subr.bf16.mxu0 0
    %1518 = vmatpush2.bf16.msra.mxu0 0
    %1519 = vmatprep.subr.bf16.mxu0 0
    %1520 = vmatpush2.bf16.msra.mxu0 0
    %1521 = vmatprep.subr.bf16.mxu0 0
    %1522 = vmatpush2.bf16.msra.mxu0 0
    %1523 = vmatprep.subr.bf16.mxu0 0
    %1524 = vmatpush2.bf16.msra.mxu0 0
    %1525 = vmatprep.subr.bf16.mxu0 0
    %1526 = vmatpush2.bf16.msra.mxu0 0
    %1527 = vmatprep.subr.bf16.mxu0 0
    %1528 = vmatpush2.bf16.msra.mxu0 0
    %1529 = vmatprep.subr.bf16.mxu0 0
    %1530 = vmatpush2.bf16.msra.mxu0 0
    %1531 = vmatprep.mubr.bf16.mxu0 0
    %1532 = vmatmul.mubr.bf16.gmra.mxu0 %v1497
    %v1533 = vpop.f32.mrf.mxu0
    %v1534 = vadd.f32 0.0, %v1533
    %v1535 = vpop.f32.mrf.mxu0
    %v1536 = vadd.f32 0.0, %v1535
    %v1537 = vpop.f32.mrf.mxu0
    %v1538 = vpop.f32.mrf.mxu0
    %1539 = vdwg.mxu0
    %1540 = vmatprep.subr.bf16.mxu0 0
    %1541 = vmatpush1.bf16.msra.mxu0 0
    %1542 = vmatprep.subr.bf16.mxu0 0
    %1543 = vmatpush1.bf16.msra.mxu0 0
    %1544 = vmatprep.subr.bf16.mxu0 0
    %1545 = vmatpush1.bf16.msra.mxu0 0
    %1546 = vmatprep.subr.bf16.mxu0 0
    %1547 = vmatpush1.bf16.msra.mxu0 0
    %1548 = vmatprep.subr.bf16.mxu0 %v717
    %1549 = vmatpush1.bf16.msra.mxu0 %v716
    %1550 = vmatprep.subr.bf16.mxu0 %v709
    %1551 = vmatpush1.bf16.msra.mxu0 %v708
    %1552 = vmatprep.subr.bf16.mxu0 %v701
    %1553 = vmatpush1.bf16.msra.mxu0 %v700
    %1554 = vmatprep.subr.bf16.mxu0 %v693
    %1555 = vmatpush1.bf16.msra.mxu0 %v692
    %1556 = vmatprep.subr.bf16.mxu0 0
    %1557 = vmatpush2.bf16.msra.mxu0 0
    %1558 = vmatprep.subr.bf16.mxu0 0
    %1559 = vmatpush2.bf16.msra.mxu0 0
    %1560 = vmatprep.subr.bf16.mxu0 0
    %1561 = vmatpush2.bf16.msra.mxu0 0
    %1562 = vmatprep.subr.bf16.mxu0 0
    %1563 = vmatpush2.bf16.msra.mxu0 0
    %1564 = vmatprep.subr.bf16.mxu0 0
    %1565 = vmatpush2.bf16.msra.mxu0 0
    %1566 = vmatprep.subr.bf16.mxu0 0
    %1567 = vmatpush2.bf16.msra.mxu0 0
    %1568 = vmatprep.subr.bf16.mxu0 0
    %1569 = vmatpush2.bf16.msra.mxu0 0
    %1570 = vmatprep.subr.bf16.mxu0 0
    %1571 = vmatpush2.bf16.msra.mxu0 0
    %1572 = vmatprep.mubr.bf16.mxu0 0
    %1573 = vmatmul.mubr.bf16.gmra.mxu0 %v1497
    %v1574 = vpop.f32.mrf.mxu0
    %v1575 = vadd.f32 0.0, %v1574
    %v1576 = vpop.f32.mrf.mxu0
    %v1577 = vadd.f32 0.0, %v1576
    %v1578 = vpop.f32.mrf.mxu0
    %v1579 = vpop.f32.mrf.mxu0
    %1580 = vdwg.mxu0
    %1581 = vmatprep.subr.bf16.mxu0 0
    %1582 = vmatpush1.bf16.msra.mxu0 0
    %1583 = vmatprep.subr.bf16.mxu0 0
    %1584 = vmatpush1.bf16.msra.mxu0 0
    %1585 = vmatprep.subr.bf16.mxu0 0
    %1586 = vmatpush1.bf16.msra.mxu0 0
    %1587 = vmatprep.subr.bf16.mxu0 0
    %1588 = vmatpush1.bf16.msra.mxu0 0
    %1589 = vmatprep.subr.bf16.mxu0 %v719
    %1590 = vmatpush1.bf16.msra.mxu0 %v718
    %1591 = vmatprep.subr.bf16.mxu0 %v711
    %1592 = vmatpush1.bf16.msra.mxu0 %v710
    %1593 = vmatprep.subr.bf16.mxu0 %v703
    %1594 = vmatpush1.bf16.msra.mxu0 %v702
    %1595 = vmatprep.subr.bf16.mxu0 %v695
    %1596 = vmatpush1.bf16.msra.mxu0 %v694
    %1597 = vmatprep.subr.bf16.mxu0 0
    %1598 = vmatpush2.bf16.msra.mxu0 0
    %1599 = vmatprep.subr.bf16.mxu0 0
    %1600 = vmatpush2.bf16.msra.mxu0 0
    %1601 = vmatprep.subr.bf16.mxu0 0
    %1602 = vmatpush2.bf16.msra.mxu0 0
    %1603 = vmatprep.subr.bf16.mxu0 0
    %1604 = vmatpush2.bf16.msra.mxu0 0
    %1605 = vmatprep.subr.bf16.mxu0 0
    %1606 = vmatpush2.bf16.msra.mxu0 0
    %1607 = vmatprep.subr.bf16.mxu0 0
    %1608 = vmatpush2.bf16.msra.mxu0 0
    %1609 = vmatprep.subr.bf16.mxu0 0
    %1610 = vmatpush2.bf16.msra.mxu0 0
    %1611 = vmatprep.subr.bf16.mxu0 0
    %1612 = vmatpush2.bf16.msra.mxu0 0
    %1613 = vmatprep.mubr.bf16.mxu0 0
    %1614 = vmatmul.mubr.bf16.gmra.mxu0 %v1497
    %v1615 = vpop.f32.mrf.mxu0
    %v1616 = vadd.f32 0.0, %v1615
    %v1617 = vpop.f32.mrf.mxu0
    %v1618 = vadd.f32 0.0, %v1617
    %v1619 = vpop.f32.mrf.mxu0
    %v1620 = vpop.f32.mrf.mxu0
    %1621 = vdwg.mxu0
    %1622 = vmatprep.subr.bf16.mxu0 0
    %1623 = vmatpush1.bf16.msra.mxu0 0
    %1624 = vmatprep.subr.bf16.mxu0 0
    %1625 = vmatpush1.bf16.msra.mxu0 0
    %1626 = vmatprep.subr.bf16.mxu0 0
    %1627 = vmatpush1.bf16.msra.mxu0 0
    %1628 = vmatprep.subr.bf16.mxu0 0
    %1629 = vmatpush1.bf16.msra.mxu0 0
    %1630 = vmatprep.subr.bf16.mxu0 %v721
    %1631 = vmatpush1.bf16.msra.mxu0 %v720
    %1632 = vmatprep.subr.bf16.mxu0 %v713
    %1633 = vmatpush1.bf16.msra.mxu0 %v712
    %1634 = vmatprep.subr.bf16.mxu0 %v705
    %1635 = vmatpush1.bf16.msra.mxu0 %v704
    %1636 = vmatprep.subr.bf16.mxu0 %v697
    %1637 = vmatpush1.bf16.msra.mxu0 %v696
    %1638 = vmatprep.subr.bf16.mxu0 0
    %1639 = vmatpush2.bf16.msra.mxu0 0
    %1640 = vmatprep.subr.bf16.mxu0 0
    %1641 = vmatpush2.bf16.msra.mxu0 0
    %1642 = vmatprep.subr.bf16.mxu0 0
    %1643 = vmatpush2.bf16.msra.mxu0 0
    %1644 = vmatprep.subr.bf16.mxu0 0
    %1645 = vmatpush2.bf16.msra.mxu0 0
    %1646 = vmatprep.subr.bf16.mxu0 0
    %1647 = vmatpush2.bf16.msra.mxu0 0
    %1648 = vmatprep.subr.bf16.mxu0 0
    %1649 = vmatpush2.bf16.msra.mxu0 0
    %1650 = vmatprep.subr.bf16.mxu0 0
    %1651 = vmatpush2.bf16.msra.mxu0 0
    %1652 = vmatprep.subr.bf16.mxu0 0
    %1653 = vmatpush2.bf16.msra.mxu0 0
    %1654 = vmatprep.mubr.bf16.mxu0 0
    %1655 = vmatmul.mubr.bf16.gmra.mxu0 %v1497
    %v1656 = vpop.f32.mrf.mxu0
    %v1657 = vadd.f32 0.0, %v1656
    %v1658 = vpop.f32.mrf.mxu0
    %v1659 = vadd.f32 0.0, %v1658
    %v1660 = vpop.f32.mrf.mxu0
    %v1661 = vpop.f32.mrf.mxu0
    %1662 = vdwg.mxu0
    %s1663 = smul.u32 3, 8
    %s1664 = smul.addr %s1663, 8
    %s1665 = scalar_lea.vmem [#allocation2], %s1664
    %v1666 = vld [vmem:[%s1665] sm:$0xff]
    %v1667 = vld [vmem:[%s1665 + $0x8] sm:$0xff]
    %v1668 = vld [vmem:[%s1665 + $0x10] sm:$0xff]
    %v1669 = vld [vmem:[%s1665 + $0x18] sm:$0xff]
    %v1670 = vadd.f32 %v1666, %v1534
    %v1671 = vadd.f32 %v1667, %v1536
    %v1672 = vadd.f32 %v1668, %v1575
    %v1673 = vadd.f32 %v1669, %v1577
    %s1674 = smul.u32 4, 8
    %s1675 = smul.addr %s1674, 8
    %s1676 = scalar_lea.vmem [#allocation2], %s1675
    %v1677 = vld [vmem:[%s1676 + $0x20] sm:$0xff]
    %v1678 = vld [vmem:[%s1676 + $0x28] sm:$0xff]
    %v1679 = vld [vmem:[%s1676 + $0x30] sm:$0xff]
    %v1680 = vld [vmem:[%s1676 + $0x38] sm:$0xff]
    %v1681 = vadd.f32 %v1677, %v1616
    %v1682 = vadd.f32 %v1678, %v1618
    %v1683 = vadd.f32 %v1679, %v1657
    %v1684 = vadd.f32 %v1680, %v1659
    %v1685 = vxor.u32 %v1670, 2147483648
    %v1686 = vxor.u32 %v1671, 2147483648
    %v1687 = vxor.u32 %v1672, 2147483648
    %v1688 = vmul.f32 %v1685, 1.442695
    %v1689 = vpow.pop %v1688
    %v1690 = vmul.f32 %v1686, 1.442695
    %v1691 = vpow.pop %v1690
    %v1692 = vmul.f32 %v1687, 1.442695
    %v1693 = vpow.pop %v1692
    %v1694 = vadd.f32 %v1689, 1.0
    %v1695 = vadd.f32 %v1691, 1.0
    %v1696 = vadd.f32 %v1693, 1.0
    %v1697 = vrcp.pop %v1694
    %v1698 = vmul.f32 1.0, %v1697
    %v1699 = vrcp.pop %v1695
    %v1700 = vmul.f32 1.0, %v1699
    %v1701 = vrcp.pop %v1696
    %v1702 = vmul.f32 1.0, %v1701
    %v1703 = vtanh.pop %v1673
    %v1704 = vmul.f32 %v1700, %v1459
    %v1705 = vmul.f32 %v1698, %v1703
    %v1706 = vadd.f32 %v1704, %v1705
    %v1707 = vtanh.pop %v1706
    %v1708 = vmul.f32 %v1702, %v1707
    %v1709 = vxor.u32 %v1681, 2147483648
    %v1710 = vxor.u32 %v1682, 2147483648
    %v1711 = vxor.u32 %v1683, 2147483648
    %v1712 = vmul.f32 %v1709, 1.442695
    %v1713 = vpow.pop %v1712
    %v1714 = vmul.f32 %v1710, 1.442695
    %v1715 = vpow.pop %v1714
    %v1716 = vmul.f32 %v1711, 1.442695
    %v1717 = vpow.pop %v1716
    %v1718 = vadd.f32 %v1713, 1.0
    %v1719 = vadd.f32 %v1715, 1.0
    %v1720 = vadd.f32 %v1717, 1.0
    %v1721 = vrcp.pop %v1718
    %v1722 = vmul.f32 1.0, %v1721
    %v1723 = vrcp.pop %v1719
    %v1724 = vmul.f32 1.0, %v1723
    %v1725 = vrcp.pop %v1720
    %v1726 = vmul.f32 1.0, %v1725
    %v1727 = vtanh.pop %v1684
    %v1728 = vmul.f32 %v1724, %v1483
    %v1729 = vmul.f32 %v1722, %v1727
    %v1730 = vadd.f32 %v1728, %v1729
    %v1731 = vtanh.pop %v1730
    %v1732 = vmul.f32 %v1726, %v1731
    %s1733 = scalar_lea.vmem [#allocation3], 24
    %1734 = vst.msk [vmem:[%s1733] sm:$0xff] %vm992, %v1708
    %s1735 = scalar_lea.vmem [#allocation4], 32
    %1736 = vst.msk [vmem:[%s1735] sm:$0xff] %vm992, %v1732
    %1738 = vrot.lane.b32.xlu0 %v1732, 32
    %v1739 = vpop.permute.xlu0 %1738
    %v1741 = vsel %vm992, %v1708, %v1739
    %v1742 = vpack.c.bf16 %v1741, %v1741
    %v1744 = vsel %vm754, %v1742, 0
    %1746 = vmatprep.subr.bf16.mxu0 0
    %1747 = vmatpush1.bf16.msra.mxu0 0
    %1748 = vmatprep.subr.bf16.mxu0 0
    %1749 = vmatpush1.bf16.msra.mxu0 0
    %1750 = vmatprep.subr.bf16.mxu0 0
    %1751 = vmatpush1.bf16.msra.mxu0 0
    %1752 = vmatprep.subr.bf16.mxu0 0
    %1753 = vmatpush1.bf16.msra.mxu0 0
    %1754 = vmatprep.subr.bf16.mxu0 %v715
    %1755 = vmatpush1.bf16.msra.mxu0 %v714
    %1756 = vmatprep.subr.bf16.mxu0 %v707
    %1757 = vmatpush1.bf16.msra.mxu0 %v706
    %1758 = vmatprep.subr.bf16.mxu0 %v699
    %1759 = vmatpush1.bf16.msra.mxu0 %v698
    %1760 = vmatprep.subr.bf16.mxu0 %v691
    %1761 = vmatpush1.bf16.msra.mxu0 %v690
    %1762 = vmatprep.subr.bf16.mxu0 0
    %1763 = vmatpush2.bf16.msra.mxu0 0
    %1764 = vmatprep.subr.bf16.mxu0 0
    %1765 = vmatpush2.bf16.msra.mxu0 0
    %1766 = vmatprep.subr.bf16.mxu0 0
    %1767 = vmatpush2.bf16.msra.mxu0 0
    %1768 = vmatprep.subr.bf16.mxu0 0
    %1769 = vmatpush2.bf16.msra.mxu0 0
    %1770 = vmatprep.subr.bf16.mxu0 0
    %1771 = vmatpush2.bf16.msra.mxu0 0
    %1772 = vmatprep.subr.bf16.mxu0 0
    %1773 = vmatpush2.bf16.msra.mxu0 0
    %1774 = vmatprep.subr.bf16.mxu0 0
    %1775 = vmatpush2.bf16.msra.mxu0 0
    %1776 = vmatprep.subr.bf16.mxu0 0
    %1777 = vmatpush2.bf16.msra.mxu0 0
    %1778 = vmatprep.mubr.bf16.mxu0 0
    %1779 = vmatmul.mubr.bf16.gmra.mxu0 %v1744
    %v1780 = vpop.f32.mrf.mxu0
    %v1781 = vadd.f32 0.0, %v1780
    %v1782 = vpop.f32.mrf.mxu0
    %v1783 = vadd.f32 0.0, %v1782
    %v1784 = vpop.f32.mrf.mxu0
    %v1785 = vpop.f32.mrf.mxu0
    %1786 = vdwg.mxu0
    %1787 = vmatprep.subr.bf16.mxu0 0
    %1788 = vmatpush1.bf16.msra.mxu0 0
    %1789 = vmatprep.subr.bf16.mxu0 0
    %1790 = vmatpush1.bf16.msra.mxu0 0
    %1791 = vmatprep.subr.bf16.mxu0 0
    %1792 = vmatpush1.bf16.msra.mxu0 0
    %1793 = vmatprep.subr.bf16.mxu0 0
    %1794 = vmatpush1.bf16.msra.mxu0 0
    %1795 = vmatprep.subr.bf16.mxu0 %v717
    %1796 = vmatpush1.bf16.msra.mxu0 %v716
    %1797 = vmatprep.subr.bf16.mxu0 %v709
    %1798 = vmatpush1.bf16.msra.mxu0 %v708
    %1799 = vmatprep.subr.bf16.mxu0 %v701
    %1800 = vmatpush1.bf16.msra.mxu0 %v700
    %1801 = vmatprep.subr.bf16.mxu0 %v693
    %1802 = vmatpush1.bf16.msra.mxu0 %v692
    %1803 = vmatprep.subr.bf16.mxu0 0
    %1804 = vmatpush2.bf16.msra.mxu0 0
    %1805 = vmatprep.subr.bf16.mxu0 0
    %1806 = vmatpush2.bf16.msra.mxu0 0
    %1807 = vmatprep.subr.bf16.mxu0 0
    %1808 = vmatpush2.bf16.msra.mxu0 0
    %1809 = vmatprep.subr.bf16.mxu0 0
    %1810 = vmatpush2.bf16.msra.mxu0 0
    %1811 = vmatprep.subr.bf16.mxu0 0
    %1812 = vmatpush2.bf16.msra.mxu0 0
    %1813 = vmatprep.subr.bf16.mxu0 0
    %1814 = vmatpush2.bf16.msra.mxu0 0
    %1815 = vmatprep.subr.bf16.mxu0 0
    %1816 = vmatpush2.bf16.msra.mxu0 0
    %1817 = vmatprep.subr.bf16.mxu0 0
    %1818 = vmatpush2.bf16.msra.mxu0 0
    %1819 = vmatprep.mubr.bf16.mxu0 0
    %1820 = vmatmul.mubr.bf16.gmra.mxu0 %v1744
    %v1821 = vpop.f32.mrf.mxu0
    %v1822 = vadd.f32 0.0, %v1821
    %v1823 = vpop.f32.mrf.mxu0
    %v1824 = vadd.f32 0.0, %v1823
    %v1825 = vpop.f32.mrf.mxu0
    %v1826 = vpop.f32.mrf.mxu0
    %1827 = vdwg.mxu0
    %1828 = vmatprep.subr.bf16.mxu0 0
    %1829 = vmatpush1.bf16.msra.mxu0 0
    %1830 = vmatprep.subr.bf16.mxu0 0
    %1831 = vmatpush1.bf16.msra.mxu0 0
    %1832 = vmatprep.subr.bf16.mxu0 0
    %1833 = vmatpush1.bf16.msra.mxu0 0
    %1834 = vmatprep.subr.bf16.mxu0 0
    %1835 = vmatpush1.bf16.msra.mxu0 0
    %1836 = vmatprep.subr.bf16.mxu0 %v719
    %1837 = vmatpush1.bf16.msra.mxu0 %v718
    %1838 = vmatprep.subr.bf16.mxu0 %v711
    %1839 = vmatpush1.bf16.msra.mxu0 %v710
    %1840 = vmatprep.subr.bf16.mxu0 %v703
    %1841 = vmatpush1.bf16.msra.mxu0 %v702
    %1842 = vmatprep.subr.bf16.mxu0 %v695
    %1843 = vmatpush1.bf16.msra.mxu0 %v694
    %1844 = vmatprep.subr.bf16.mxu0 0
    %1845 = vmatpush2.bf16.msra.mxu0 0
    %1846 = vmatprep.subr.bf16.mxu0 0
    %1847 = vmatpush2.bf16.msra.mxu0 0
    %1848 = vmatprep.subr.bf16.mxu0 0
    %1849 = vmatpush2.bf16.msra.mxu0 0
    %1850 = vmatprep.subr.bf16.mxu0 0
    %1851 = vmatpush2.bf16.msra.mxu0 0
    %1852 = vmatprep.subr.bf16.mxu0 0
    %1853 = vmatpush2.bf16.msra.mxu0 0
    %1854 = vmatprep.subr.bf16.mxu0 0
    %1855 = vmatpush2.bf16.msra.mxu0 0
    %1856 = vmatprep.subr.bf16.mxu0 0
    %1857 = vmatpush2.bf16.msra.mxu0 0
    %1858 = vmatprep.subr.bf16.mxu0 0
    %1859 = vmatpush2.bf16.msra.mxu0 0
    %1860 = vmatprep.mubr.bf16.mxu0 0
    %1861 = vmatmul.mubr.bf16.gmra.mxu0 %v1744
    %v1862 = vpop.f32.mrf.mxu0
    %v1863 = vadd.f32 0.0, %v1862
    %v1864 = vpop.f32.mrf.mxu0
    %v1865 = vadd.f32 0.0, %v1864
    %v1866 = vpop.f32.mrf.mxu0
    %v1867 = vpop.f32.mrf.mxu0
    %1868 = vdwg.mxu0
    %1869 = vmatprep.subr.bf16.mxu0 0
    %1870 = vmatpush1.bf16.msra.mxu0 0
    %1871 = vmatprep.subr.bf16.mxu0 0
    %1872 = vmatpush1.bf16.msra.mxu0 0
    %1873 = vmatprep.subr.bf16.mxu0 0
    %1874 = vmatpush1.bf16.msra.mxu0 0
    %1875 = vmatprep.subr.bf16.mxu0 0
    %1876 = vmatpush1.bf16.msra.mxu0 0
    %1877 = vmatprep.subr.bf16.mxu0 %v721
    %1878 = vmatpush1.bf16.msra.mxu0 %v720
    %1879 = vmatprep.subr.bf16.mxu0 %v713
    %1880 = vmatpush1.bf16.msra.mxu0 %v712
    %1881 = vmatprep.subr.bf16.mxu0 %v705
    %1882 = vmatpush1.bf16.msra.mxu0 %v704
    %1883 = vmatprep.subr.bf16.mxu0 %v697
    %1884 = vmatpush1.bf16.msra.mxu0 %v696
    %1885 = vmatprep.subr.bf16.mxu0 0
    %1886 = vmatpush2.bf16.msra.mxu0 0
    %1887 = vmatprep.subr.bf16.mxu0 0
    %1888 = vmatpush2.bf16.msra.mxu0 0
    %1889 = vmatprep.subr.bf16.mxu0 0
    %1890 = vmatpush2.bf16.msra.mxu0 0
    %1891 = vmatprep.subr.bf16.mxu0 0
    %1892 = vmatpush2.bf16.msra.mxu0 0
    %1893 = vmatprep.subr.bf16.mxu0 0
    %1894 = vmatpush2.bf16.msra.mxu0 0
    %1895 = vmatprep.subr.bf16.mxu0 0
    %1896 = vmatpush2.bf16.msra.mxu0 0
    %1897 = vmatprep.subr.bf16.mxu0 0
    %1898 = vmatpush2.bf16.msra.mxu0 0
    %1899 = vmatprep.subr.bf16.mxu0 0
    %1900 = vmatpush2.bf16.msra.mxu0 0
    %1901 = vmatprep.mubr.bf16.mxu0 0
    %1902 = vmatmul.mubr.bf16.gmra.mxu0 %v1744
    %v1903 = vpop.f32.mrf.mxu0
    %v1904 = vadd.f32 0.0, %v1903
    %v1905 = vpop.f32.mrf.mxu0
    %v1906 = vadd.f32 0.0, %v1905
    %v1907 = vpop.f32.mrf.mxu0
    %v1908 = vpop.f32.mrf.mxu0
    %1909 = vdwg.mxu0
    %v1910 = vld [vmem:[%s1676] sm:$0xff]
    %v1911 = vld [vmem:[%s1676 + $0x8] sm:$0xff]
    %v1912 = vld [vmem:[%s1676 + $0x10] sm:$0xff]
    %v1913 = vld [vmem:[%s1676 + $0x18] sm:$0xff]
    %v1914 = vadd.f32 %v1910, %v1781
    %v1915 = vadd.f32 %v1911, %v1783
    %v1916 = vadd.f32 %v1912, %v1822
    %v1917 = vadd.f32 %v1913, %v1824
    %v1918 = vld [vmem:[%s1665 + $0x20] sm:$0xff]
    %v1919 = vld [vmem:[%s1665 + $0x28] sm:$0xff]
    %v1920 = vld [vmem:[%s1665 + $0x30] sm:$0xff]
    %v1921 = vld [vmem:[%s1665 + $0x38] sm:$0xff]
    %v1922 = vadd.f32 %v1918, %v1863
    %v1923 = vadd.f32 %v1919, %v1865
    %v1924 = vadd.f32 %v1920, %v1904
    %v1925 = vadd.f32 %v1921, %v1906
    %v1926 = vxor.u32 %v1914, 2147483648
    %v1927 = vxor.u32 %v1915, 2147483648
    %v1928 = vxor.u32 %v1916, 2147483648
    %v1929 = vmul.f32 %v1926, 1.442695
    %v1930 = vpow.pop %v1929
    %v1931 = vmul.f32 %v1927, 1.442695
    %v1932 = vpow.pop %v1931
    %v1933 = vmul.f32 %v1928, 1.442695
    %v1934 = vpow.pop %v1933
    %v1935 = vadd.f32 %v1930, 1.0
    %v1936 = vadd.f32 %v1932, 1.0
    %v1937 = vadd.f32 %v1934, 1.0
    %v1938 = vrcp.pop %v1935
    %v1939 = vmul.f32 1.0, %v1938
    %v1940 = vrcp.pop %v1936
    %v1941 = vmul.f32 1.0, %v1940
    %v1942 = vrcp.pop %v1937
    %v1943 = vmul.f32 1.0, %v1942
    %v1944 = vtanh.pop %v1917
    %v1945 = vmul.f32 %v1941, %v1706
    %v1946 = vmul.f32 %v1939, %v1944
    %v1947 = vadd.f32 %v1945, %v1946
    %v1948 = vtanh.pop %v1947
    %v1949 = vmul.f32 %v1943, %v1948
    %v1950 = vxor.u32 %v1922, 2147483648
    %v1951 = vxor.u32 %v1923, 2147483648
    %v1952 = vxor.u32 %v1924, 2147483648
    %v1953 = vmul.f32 %v1950, 1.442695
    %v1954 = vpow.pop %v1953
    %v1955 = vmul.f32 %v1951, 1.442695
    %v1956 = vpow.pop %v1955
    %v1957 = vmul.f32 %v1952, 1.442695
    %v1958 = vpow.pop %v1957
    %v1959 = vadd.f32 %v1954, 1.0
    %v1960 = vadd.f32 %v1956, 1.0
    %v1961 = vadd.f32 %v1958, 1.0
    %v1962 = vrcp.pop %v1959
    %v1963 = vmul.f32 1.0, %v1962
    %v1964 = vrcp.pop %v1960
    %v1965 = vmul.f32 1.0, %v1964
    %v1966 = vrcp.pop %v1961
    %v1967 = vmul.f32 1.0, %v1966
    %v1968 = vtanh.pop %v1925
    %v1969 = vmul.f32 %v1965, %v1730
    %v1970 = vmul.f32 %v1963, %v1968
    %v1971 = vadd.f32 %v1969, %v1970
    %v1972 = vtanh.pop %v1971
    %v1973 = vmul.f32 %v1967, %v1972
    %s1974 = scalar_lea.vmem [#allocation3], 32
    %1975 = vst.msk [vmem:[%s1974] sm:$0xff] %vm992, %v1949
    %s1976 = scalar_lea.vmem [#allocation4], 24
    %1977 = vst.msk [vmem:[%s1976] sm:$0xff] %vm992, %v1973
    %1979 = vrot.lane.b32.xlu0 %v1973, 32
    %v1980 = vpop.permute.xlu0 %1979
    %v1982 = vsel %vm992, %v1949, %v1980
    %v1983 = vpack.c.bf16 %v1982, %v1982
    %v1985 = vsel %vm754, %v1983, 0
    %1987 = vmatprep.subr.bf16.mxu0 0
    %1988 = vmatpush1.bf16.msra.mxu0 0
    %1989 = vmatprep.subr.bf16.mxu0 0
    %1990 = vmatpush1.bf16.msra.mxu0 0
    %1991 = vmatprep.subr.bf16.mxu0 0
    %1992 = vmatpush1.bf16.msra.mxu0 0
    %1993 = vmatprep.subr.bf16.mxu0 0
    %1994 = vmatpush1.bf16.msra.mxu0 0
    %1995 = vmatprep.subr.bf16.mxu0 %v715
    %1996 = vmatpush1.bf16.msra.mxu0 %v714
    %1997 = vmatprep.subr.bf16.mxu0 %v707
    %1998 = vmatpush1.bf16.msra.mxu0 %v706
    %1999 = vmatprep.subr.bf16.mxu0 %v699
    %2000 = vmatpush1.bf16.msra.mxu0 %v698
    %2001 = vmatprep.subr.bf16.mxu0 %v691
    %2002 = vmatpush1.bf16.msra.mxu0 %v690
    %2003 = vmatprep.subr.bf16.mxu0 0
    %2004 = vmatpush2.bf16.msra.mxu0 0
    %2005 = vmatprep.subr.bf16.mxu0 0
    %2006 = vmatpush2.bf16.msra.mxu0 0
    %2007 = vmatprep.subr.bf16.mxu0 0
    %2008 = vmatpush2.bf16.msra.mxu0 0
    %2009 = vmatprep.subr.bf16.mxu0 0
    %2010 = vmatpush2.bf16.msra.mxu0 0
    %2011 = vmatprep.subr.bf16.mxu0 0
    %2012 = vmatpush2.bf16.msra.mxu0 0
    %2013 = vmatprep.subr.bf16.mxu0 0
    %2014 = vmatpush2.bf16.msra.mxu0 0
    %2015 = vmatprep.subr.bf16.mxu0 0
    %2016 = vmatpush2.bf16.msra.mxu0 0
    %2017 = vmatprep.subr.bf16.mxu0 0
    %2018 = vmatpush2.bf16.msra.mxu0 0
    %2019 = vmatprep.mubr.bf16.mxu0 0
    %2020 = vmatmul.mubr.bf16.gmra.mxu0 %v1985
    %v2021 = vpop.f32.mrf.mxu0
    %v2022 = vadd.f32 0.0, %v2021
    %v2023 = vpop.f32.mrf.mxu0
    %v2024 = vadd.f32 0.0, %v2023
    %v2025 = vpop.f32.mrf.mxu0
    %v2026 = vpop.f32.mrf.mxu0
    %2027 = vdwg.mxu0
    %2028 = vmatprep.subr.bf16.mxu0 0
    %2029 = vmatpush1.bf16.msra.mxu0 0
    %2030 = vmatprep.subr.bf16.mxu0 0
    %2031 = vmatpush1.bf16.msra.mxu0 0
    %2032 = vmatprep.subr.bf16.mxu0 0
    %2033 = vmatpush1.bf16.msra.mxu0 0
    %2034 = vmatprep.subr.bf16.mxu0 0
    %2035 = vmatpush1.bf16.msra.mxu0 0
    %2036 = vmatprep.subr.bf16.mxu0 %v717
    %2037 = vmatpush1.bf16.msra.mxu0 %v716
    %2038 = vmatprep.subr.bf16.mxu0 %v709
    %2039 = vmatpush1.bf16.msra.mxu0 %v708
    %2040 = vmatprep.subr.bf16.mxu0 %v701
    %2041 = vmatpush1.bf16.msra.mxu0 %v700
    %2042 = vmatprep.subr.bf16.mxu0 %v693
    %2043 = vmatpush1.bf16.msra.mxu0 %v692
    %2044 = vmatprep.subr.bf16.mxu0 0
    %2045 = vmatpush2.bf16.msra.mxu0 0
    %2046 = vmatprep.subr.bf16.mxu0 0
    %2047 = vmatpush2.bf16.msra.mxu0 0
    %2048 = vmatprep.subr.bf16.mxu0 0
    %2049 = vmatpush2.bf16.msra.mxu0 0
    %2050 = vmatprep.subr.bf16.mxu0 0
    %2051 = vmatpush2.bf16.msra.mxu0 0
    %2052 = vmatprep.subr.bf16.mxu0 0
    %2053 = vmatpush2.bf16.msra.mxu0 0
    %2054 = vmatprep.subr.bf16.mxu0 0
    %2055 = vmatpush2.bf16.msra.mxu0 0
    %2056 = vmatprep.subr.bf16.mxu0 0
    %2057 = vmatpush2.bf16.msra.mxu0 0
    %2058 = vmatprep.subr.bf16.mxu0 0
    %2059 = vmatpush2.bf16.msra.mxu0 0
    %2060 = vmatprep.mubr.bf16.mxu0 0
    %2061 = vmatmul.mubr.bf16.gmra.mxu0 %v1985
    %v2062 = vpop.f32.mrf.mxu0
    %v2063 = vadd.f32 0.0, %v2062
    %v2064 = vpop.f32.mrf.mxu0
    %v2065 = vadd.f32 0.0, %v2064
    %v2066 = vpop.f32.mrf.mxu0
    %v2067 = vpop.f32.mrf.mxu0
    %2068 = vdwg.mxu0
    %2069 = vmatprep.subr.bf16.mxu0 0
    %2070 = vmatpush1.bf16.msra.mxu0 0
    %2071 = vmatprep.subr.bf16.mxu0 0
    %2072 = vmatpush1.bf16.msra.mxu0 0
    %2073 = vmatprep.subr.bf16.mxu0 0
    %2074 = vmatpush1.bf16.msra.mxu0 0
    %2075 = vmatprep.subr.bf16.mxu0 0
    %2076 = vmatpush1.bf16.msra.mxu0 0
    %2077 = vmatprep.subr.bf16.mxu0 %v719
    %2078 = vmatpush1.bf16.msra.mxu0 %v718
    %2079 = vmatprep.subr.bf16.mxu0 %v711
    %2080 = vmatpush1.bf16.msra.mxu0 %v710
    %2081 = vmatprep.subr.bf16.mxu0 %v703
    %2082 = vmatpush1.bf16.msra.mxu0 %v702
    %2083 = vmatprep.subr.bf16.mxu0 %v695
    %2084 = vmatpush1.bf16.msra.mxu0 %v694
    %2085 = vmatprep.subr.bf16.mxu0 0
    %2086 = vmatpush2.bf16.msra.mxu0 0
    %2087 = vmatprep.subr.bf16.mxu0 0
    %2088 = vmatpush2.bf16.msra.mxu0 0
    %2089 = vmatprep.subr.bf16.mxu0 0
    %2090 = vmatpush2.bf16.msra.mxu0 0
    %2091 = vmatprep.subr.bf16.mxu0 0
    %2092 = vmatpush2.bf16.msra.mxu0 0
    %2093 = vmatprep.subr.bf16.mxu0 0
    %2094 = vmatpush2.bf16.msra.mxu0 0
    %2095 = vmatprep.subr.bf16.mxu0 0
    %2096 = vmatpush2.bf16.msra.mxu0 0
    %2097 = vmatprep.subr.bf16.mxu0 0
    %2098 = vmatpush2.bf16.msra.mxu0 0
    %2099 = vmatprep.subr.bf16.mxu0 0
    %2100 = vmatpush2.bf16.msra.mxu0 0
    %2101 = vmatprep.mubr.bf16.mxu0 0
    %2102 = vmatmul.mubr.bf16.gmra.mxu0 %v1985
    %v2103 = vpop.f32.mrf.mxu0
    %v2104 = vadd.f32 0.0, %v2103
    %v2105 = vpop.f32.mrf.mxu0
    %v2106 = vadd.f32 0.0, %v2105
    %v2107 = vpop.f32.mrf.mxu0
    %v2108 = vpop.f32.mrf.mxu0
    %2109 = vdwg.mxu0
    %2110 = vmatprep.subr.bf16.mxu0 0
    %2111 = vmatpush1.bf16.msra.mxu0 0
    %2112 = vmatprep.subr.bf16.mxu0 0
    %2113 = vmatpush1.bf16.msra.mxu0 0
    %2114 = vmatprep.subr.bf16.mxu0 0
    %2115 = vmatpush1.bf16.msra.mxu0 0
    %2116 = vmatprep.subr.bf16.mxu0 0
    %2117 = vmatpush1.bf16.msra.mxu0 0
    %2118 = vmatprep.subr.bf16.mxu0 %v721
    %2119 = vmatpush1.bf16.msra.mxu0 %v720
    %2120 = vmatprep.subr.bf16.mxu0 %v713
    %2121 = vmatpush1.bf16.msra.mxu0 %v712
    %2122 = vmatprep.subr.bf16.mxu0 %v705
    %2123 = vmatpush1.bf16.msra.mxu0 %v704
    %2124 = vmatprep.subr.bf16.mxu0 %v697
    %2125 = vmatpush1.bf16.msra.mxu0 %v696
    %2126 = vmatprep.subr.bf16.mxu0 0
    %2127 = vmatpush2.bf16.msra.mxu0 0
    %2128 = vmatprep.subr.bf16.mxu0 0
    %2129 = vmatpush2.bf16.msra.mxu0 0
    %2130 = vmatprep.subr.bf16.mxu0 0
    %2131 = vmatpush2.bf16.msra.mxu0 0
    %2132 = vmatprep.subr.bf16.mxu0 0
    %2133 = vmatpush2.bf16.msra.mxu0 0
    %2134 = vmatprep.subr.bf16.mxu0 0
    %2135 = vmatpush2.bf16.msra.mxu0 0
    %2136 = vmatprep.subr.bf16.mxu0 0
    %2137 = vmatpush2.bf16.msra.mxu0 0
    %2138 = vmatprep.subr.bf16.mxu0 0
    %2139 = vmatpush2.bf16.msra.mxu0 0
    %2140 = vmatprep.subr.bf16.mxu0 0
    %2141 = vmatpush2.bf16.msra.mxu0 0
    %2142 = vmatprep.mubr.bf16.mxu0 0
    %2143 = vmatmul.mubr.bf16.gmra.mxu0 %v1985
    %v2144 = vpop.f32.mrf.mxu0
    %v2145 = vadd.f32 0.0, %v2144
    %v2146 = vpop.f32.mrf.mxu0
    %v2147 = vadd.f32 0.0, %v2146
    %v2148 = vpop.f32.mrf.mxu0
    %v2149 = vpop.f32.mrf.mxu0
    %2150 = vdwg.mxu0
    %v2151 = vld [vmem:[%s1429] sm:$0xff]
    %v2152 = vld [vmem:[%s1429 + $0x8] sm:$0xff]
    %v2153 = vld [vmem:[%s1429 + $0x10] sm:$0xff]
    %v2154 = vld [vmem:[%s1429 + $0x18] sm:$0xff]
    %v2155 = vadd.f32 %v2151, %v2022
    %v2156 = vadd.f32 %v2152, %v2024
    %v2157 = vadd.f32 %v2153, %v2063
    %v2158 = vadd.f32 %v2154, %v2065
    %v2159 = vld [vmem:[%s1418 + $0x20] sm:$0xff]
    %v2160 = vld [vmem:[%s1418 + $0x28] sm:$0xff]
    %v2161 = vld [vmem:[%s1418 + $0x30] sm:$0xff]
    %v2162 = vld [vmem:[%s1418 + $0x38] sm:$0xff]
    %v2163 = vadd.f32 %v2159, %v2104
    %v2164 = vadd.f32 %v2160, %v2106
    %v2165 = vadd.f32 %v2161, %v2145
    %v2166 = vadd.f32 %v2162, %v2147
    %v2167 = vxor.u32 %v2155, 2147483648
    %v2168 = vxor.u32 %v2156, 2147483648
    %v2169 = vxor.u32 %v2157, 2147483648
    %v2170 = vmul.f32 %v2167, 1.442695
    %v2171 = vpow.pop %v2170
    %v2172 = vmul.f32 %v2168, 1.442695
    %v2173 = vpow.pop %v2172
    %v2174 = vmul.f32 %v2169, 1.442695
    %v2175 = vpow.pop %v2174
    %v2176 = vadd.f32 %v2171, 1.0
    %v2177 = vadd.f32 %v2173, 1.0
    %v2178 = vadd.f32 %v2175, 1.0
    %v2179 = vrcp.pop %v2176
    %v2180 = vmul.f32 1.0, %v2179
    %v2181 = vrcp.pop %v2177
    %v2182 = vmul.f32 1.0, %v2181
    %v2183 = vrcp.pop %v2178
    %v2184 = vmul.f32 1.0, %v2183
    %v2185 = vtanh.pop %v2158
    %v2186 = vmul.f32 %v2182, %v1947
    %v2187 = vmul.f32 %v2180, %v2185
    %v2188 = vadd.f32 %v2186, %v2187
    %v2189 = vtanh.pop %v2188
    %v2190 = vmul.f32 %v2184, %v2189
    %v2191 = vxor.u32 %v2163, 2147483648
    %v2192 = vxor.u32 %v2164, 2147483648
    %v2193 = vxor.u32 %v2165, 2147483648
    %v2194 = vmul.f32 %v2191, 1.442695
    %v2195 = vpow.pop %v2194
    %v2196 = vmul.f32 %v2192, 1.442695
    %v2197 = vpow.pop %v2196
    %v2198 = vmul.f32 %v2193, 1.442695
    %v2199 = vpow.pop %v2198
    %v2200 = vadd.f32 %v2195, 1.0
    %v2201 = vadd.f32 %v2197, 1.0
    %v2202 = vadd.f32 %v2199, 1.0
    %v2203 = vrcp.pop %v2200
    %v2204 = vmul.f32 1.0, %v2203
    %v2205 = vrcp.pop %v2201
    %v2206 = vmul.f32 1.0, %v2205
    %v2207 = vrcp.pop %v2202
    %v2208 = vmul.f32 1.0, %v2207
    %v2209 = vtanh.pop %v2166
    %v2210 = vmul.f32 %v2206, %v1971
    %v2211 = vmul.f32 %v2204, %v2209
    %v2212 = vadd.f32 %v2210, %v2211
    %v2213 = vtanh.pop %v2212
    %v2214 = vmul.f32 %v2208, %v2213
    %s2215 = scalar_lea.vmem [#allocation3], 40
    %2216 = vst.msk [vmem:[%s2215] sm:$0xff] %vm992, %v2190
    %s2217 = scalar_lea.vmem [#allocation4], 16
    %2218 = vst.msk [vmem:[%s2217] sm:$0xff] %vm992, %v2214
    %2220 = vrot.lane.b32.xlu0 %v2214, 32
    %v2221 = vpop.permute.xlu0 %2220
    %v2223 = vsel %vm992, %v2190, %v2221
    %v2224 = vpack.c.bf16 %v2223, %v2223
    %v2226 = vsel %vm754, %v2224, 0
    %2228 = vmatprep.subr.bf16.mxu0 0
    %2229 = vmatpush1.bf16.msra.mxu0 0
    %2230 = vmatprep.subr.bf16.mxu0 0
    %2231 = vmatpush1.bf16.msra.mxu0 0
    %2232 = vmatprep.subr.bf16.mxu0 0
    %2233 = vmatpush1.bf16.msra.mxu0 0
    %2234 = vmatprep.subr.bf16.mxu0 0
    %2235 = vmatpush1.bf16.msra.mxu0 0
    %2236 = vmatprep.subr.bf16.mxu0 %v715
    %2237 = vmatpush1.bf16.msra.mxu0 %v714
    %2238 = vmatprep.subr.bf16.mxu0 %v707
    %2239 = vmatpush1.bf16.msra.mxu0 %v706
    %2240 = vmatprep.subr.bf16.mxu0 %v699
    %2241 = vmatpush1.bf16.msra.mxu0 %v698
    %2242 = vmatprep.subr.bf16.mxu0 %v691
    %2243 = vmatpush1.bf16.msra.mxu0 %v690
    %2244 = vmatprep.subr.bf16.mxu0 0
    %2245 = vmatpush2.bf16.msra.mxu0 0
    %2246 = vmatprep.subr.bf16.mxu0 0
    %2247 = vmatpush2.bf16.msra.mxu0 0
    %2248 = vmatprep.subr.bf16.mxu0 0
    %2249 = vmatpush2.bf16.msra.mxu0 0
    %2250 = vmatprep.subr.bf16.mxu0 0
    %2251 = vmatpush2.bf16.msra.mxu0 0
    %2252 = vmatprep.subr.bf16.mxu0 0
    %2253 = vmatpush2.bf16.msra.mxu0 0
    %2254 = vmatprep.subr.bf16.mxu0 0
    %2255 = vmatpush2.bf16.msra.mxu0 0
    %2256 = vmatprep.subr.bf16.mxu0 0
    %2257 = vmatpush2.bf16.msra.mxu0 0
    %2258 = vmatprep.subr.bf16.mxu0 0
    %2259 = vmatpush2.bf16.msra.mxu0 0
    %2260 = vmatprep.mubr.bf16.mxu0 0
    %2261 = vmatmul.mubr.bf16.gmra.mxu0 %v2226
    %v2262 = vpop.f32.mrf.mxu0
    %v2263 = vadd.f32 0.0, %v2262
    %v2264 = vpop.f32.mrf.mxu0
    %v2265 = vadd.f32 0.0, %v2264
    %v2266 = vpop.f32.mrf.mxu0
    %v2267 = vpop.f32.mrf.mxu0
    %2268 = vdwg.mxu0
    %2269 = vmatprep.subr.bf16.mxu0 0
    %2270 = vmatpush1.bf16.msra.mxu0 0
    %2271 = vmatprep.subr.bf16.mxu0 0
    %2272 = vmatpush1.bf16.msra.mxu0 0
    %2273 = vmatprep.subr.bf16.mxu0 0
    %2274 = vmatpush1.bf16.msra.mxu0 0
    %2275 = vmatprep.subr.bf16.mxu0 0
    %2276 = vmatpush1.bf16.msra.mxu0 0
    %2277 = vmatprep.subr.bf16.mxu0 %v717
    %2278 = vmatpush1.bf16.msra.mxu0 %v716
    %2279 = vmatprep.subr.bf16.mxu0 %v709
    %2280 = vmatpush1.bf16.msra.mxu0 %v708
    %2281 = vmatprep.subr.bf16.mxu0 %v701
    %2282 = vmatpush1.bf16.msra.mxu0 %v700
    %2283 = vmatprep.subr.bf16.mxu0 %v693
    %2284 = vmatpush1.bf16.msra.mxu0 %v692
    %2285 = vmatprep.subr.bf16.mxu0 0
    %2286 = vmatpush2.bf16.msra.mxu0 0
    %2287 = vmatprep.subr.bf16.mxu0 0
    %2288 = vmatpush2.bf16.msra.mxu0 0
    %2289 = vmatprep.subr.bf16.mxu0 0
    %2290 = vmatpush2.bf16.msra.mxu0 0
    %2291 = vmatprep.subr.bf16.mxu0 0
    %2292 = vmatpush2.bf16.msra.mxu0 0
    %2293 = vmatprep.subr.bf16.mxu0 0
    %2294 = vmatpush2.bf16.msra.mxu0 0
    %2295 = vmatprep.subr.bf16.mxu0 0
    %2296 = vmatpush2.bf16.msra.mxu0 0
    %2297 = vmatprep.subr.bf16.mxu0 0
    %2298 = vmatpush2.bf16.msra.mxu0 0
    %2299 = vmatprep.subr.bf16.mxu0 0
    %2300 = vmatpush2.bf16.msra.mxu0 0
    %2301 = vmatprep.mubr.bf16.mxu0 0
    %2302 = vmatmul.mubr.bf16.gmra.mxu0 %v2226
    %v2303 = vpop.f32.mrf.mxu0
    %v2304 = vadd.f32 0.0, %v2303
    %v2305 = vpop.f32.mrf.mxu0
    %v2306 = vadd.f32 0.0, %v2305
    %v2307 = vpop.f32.mrf.mxu0
    %v2308 = vpop.f32.mrf.mxu0
    %2309 = vdwg.mxu0
    %2310 = vmatprep.subr.bf16.mxu0 0
    %2311 = vmatpush1.bf16.msra.mxu0 0
    %2312 = vmatprep.subr.bf16.mxu0 0
    %2313 = vmatpush1.bf16.msra.mxu0 0
    %2314 = vmatprep.subr.bf16.mxu0 0
    %2315 = vmatpush1.bf16.msra.mxu0 0
    %2316 = vmatprep.subr.bf16.mxu0 0
    %2317 = vmatpush1.bf16.msra.mxu0 0
    %2318 = vmatprep.subr.bf16.mxu0 %v719
    %2319 = vmatpush1.bf16.msra.mxu0 %v718
    %2320 = vmatprep.subr.bf16.mxu0 %v711
    %2321 = vmatpush1.bf16.msra.mxu0 %v710
    %2322 = vmatprep.subr.bf16.mxu0 %v703
    %2323 = vmatpush1.bf16.msra.mxu0 %v702
    %2324 = vmatprep.subr.bf16.mxu0 %v695
    %2325 = vmatpush1.bf16.msra.mxu0 %v694
    %2326 = vmatprep.subr.bf16.mxu0 0
    %2327 = vmatpush2.bf16.msra.mxu0 0
    %2328 = vmatprep.subr.bf16.mxu0 0
    %2329 = vmatpush2.bf16.msra.mxu0 0
    %2330 = vmatprep.subr.bf16.mxu0 0
    %2331 = vmatpush2.bf16.msra.mxu0 0
    %2332 = vmatprep.subr.bf16.mxu0 0
    %2333 = vmatpush2.bf16.msra.mxu0 0
    %2334 = vmatprep.subr.bf16.mxu0 0
    %2335 = vmatpush2.bf16.msra.mxu0 0
    %2336 = vmatprep.subr.bf16.mxu0 0
    %2337 = vmatpush2.bf16.msra.mxu0 0
    %2338 = vmatprep.subr.bf16.mxu0 0
    %2339 = vmatpush2.bf16.msra.mxu0 0
    %2340 = vmatprep.subr.bf16.mxu0 0
    %2341 = vmatpush2.bf16.msra.mxu0 0
    %2342 = vmatprep.mubr.bf16.mxu0 0
    %2343 = vmatmul.mubr.bf16.gmra.mxu0 %v2226
    %v2344 = vpop.f32.mrf.mxu0
    %v2345 = vadd.f32 0.0, %v2344
    %v2346 = vpop.f32.mrf.mxu0
    %v2347 = vadd.f32 0.0, %v2346
    %v2348 = vpop.f32.mrf.mxu0
    %v2349 = vpop.f32.mrf.mxu0
    %2350 = vdwg.mxu0
    %2351 = vmatprep.subr.bf16.mxu0 0
    %2352 = vmatpush1.bf16.msra.mxu0 0
    %2353 = vmatprep.subr.bf16.mxu0 0
    %2354 = vmatpush1.bf16.msra.mxu0 0
    %2355 = vmatprep.subr.bf16.mxu0 0
    %2356 = vmatpush1.bf16.msra.mxu0 0
    %2357 = vmatprep.subr.bf16.mxu0 0
    %2358 = vmatpush1.bf16.msra.mxu0 0
    %2359 = vmatprep.subr.bf16.mxu0 %v721
    %2360 = vmatpush1.bf16.msra.mxu0 %v720
    %2361 = vmatprep.subr.bf16.mxu0 %v713
    %2362 = vmatpush1.bf16.msra.mxu0 %v712
    %2363 = vmatprep.subr.bf16.mxu0 %v705
    %2364 = vmatpush1.bf16.msra.mxu0 %v704
    %2365 = vmatprep.subr.bf16.mxu0 %v697
    %2366 = vmatpush1.bf16.msra.mxu0 %v696
    %2367 = vmatprep.subr.bf16.mxu0 0
    %2368 = vmatpush2.bf16.msra.mxu0 0
    %2369 = vmatprep.subr.bf16.mxu0 0
    %2370 = vmatpush2.bf16.msra.mxu0 0
    %2371 = vmatprep.subr.bf16.mxu0 0
    %2372 = vmatpush2.bf16.msra.mxu0 0
    %2373 = vmatprep.subr.bf16.mxu0 0
    %2374 = vmatpush2.bf16.msra.mxu0 0
    %2375 = vmatprep.subr.bf16.mxu0 0
    %2376 = vmatpush2.bf16.msra.mxu0 0
    %2377 = vmatprep.subr.bf16.mxu0 0
    %2378 = vmatpush2.bf16.msra.mxu0 0
    %2379 = vmatprep.subr.bf16.mxu0 0
    %2380 = vmatpush2.bf16.msra.mxu0 0
    %2381 = vmatprep.subr.bf16.mxu0 0
    %2382 = vmatpush2.bf16.msra.mxu0 0
    %2383 = vmatprep.mubr.bf16.mxu0 0
    %2384 = vmatmul.mubr.bf16.gmra.mxu0 %v2226
    %v2385 = vpop.f32.mrf.mxu0
    %v2386 = vadd.f32 0.0, %v2385
    %v2387 = vpop.f32.mrf.mxu0
    %v2388 = vadd.f32 0.0, %v2387
    %v2389 = vpop.f32.mrf.mxu0
    %v2390 = vpop.f32.mrf.mxu0
    %2391 = vdwg.mxu0
    %v2392 = vld [vmem:[%s1182] sm:$0xff]
    %v2393 = vld [vmem:[%s1182 + $0x8] sm:$0xff]
    %v2394 = vld [vmem:[%s1182 + $0x10] sm:$0xff]
    %v2395 = vld [vmem:[%s1182 + $0x18] sm:$0xff]
    %v2396 = vadd.f32 %v2392, %v2263
    %v2397 = vadd.f32 %v2393, %v2265
    %v2398 = vadd.f32 %v2394, %v2304
    %v2399 = vadd.f32 %v2395, %v2306
    %v2400 = vld [vmem:[%s1171 + $0x20] sm:$0xff]
    %v2401 = vld [vmem:[%s1171 + $0x28] sm:$0xff]
    %v2402 = vld [vmem:[%s1171 + $0x30] sm:$0xff]
    %v2403 = vld [vmem:[%s1171 + $0x38] sm:$0xff]
    %v2404 = vadd.f32 %v2400, %v2345
    %v2405 = vadd.f32 %v2401, %v2347
    %v2406 = vadd.f32 %v2402, %v2386
    %v2407 = vadd.f32 %v2403, %v2388
    %v2408 = vxor.u32 %v2396, 2147483648
    %v2409 = vxor.u32 %v2397, 2147483648
    %v2410 = vxor.u32 %v2398, 2147483648
    %v2411 = vmul.f32 %v2408, 1.442695
    %v2412 = vpow.pop %v2411
    %v2413 = vmul.f32 %v2409, 1.442695
    %v2414 = vpow.pop %v2413
    %v2415 = vmul.f32 %v2410, 1.442695
    %v2416 = vpow.pop %v2415
    %v2417 = vadd.f32 %v2412, 1.0
    %v2418 = vadd.f32 %v2414, 1.0
    %v2419 = vadd.f32 %v2416, 1.0
    %v2420 = vrcp.pop %v2417
    %v2421 = vmul.f32 1.0, %v2420
    %v2422 = vrcp.pop %v2418
    %v2423 = vmul.f32 1.0, %v2422
    %v2424 = vrcp.pop %v2419
    %v2425 = vmul.f32 1.0, %v2424
    %v2426 = vtanh.pop %v2399
    %v2427 = vmul.f32 %v2423, %v2188
    %v2428 = vmul.f32 %v2421, %v2426
    %v2429 = vadd.f32 %v2427, %v2428
    %v2430 = vtanh.pop %v2429
    %v2431 = vmul.f32 %v2425, %v2430
    %v2432 = vxor.u32 %v2404, 2147483648
    %v2433 = vxor.u32 %v2405, 2147483648
    %v2434 = vxor.u32 %v2406, 2147483648
    %v2435 = vmul.f32 %v2432, 1.442695
    %v2436 = vpow.pop %v2435
    %v2437 = vmul.f32 %v2433, 1.442695
    %v2438 = vpow.pop %v2437
    %v2439 = vmul.f32 %v2434, 1.442695
    %v2440 = vpow.pop %v2439
    %v2441 = vadd.f32 %v2436, 1.0
    %v2442 = vadd.f32 %v2438, 1.0
    %v2443 = vadd.f32 %v2440, 1.0
    %v2444 = vrcp.pop %v2441
    %v2445 = vmul.f32 1.0, %v2444
    %v2446 = vrcp.pop %v2442
    %v2447 = vmul.f32 1.0, %v2446
    %v2448 = vrcp.pop %v2443
    %v2449 = vmul.f32 1.0, %v2448
    %v2450 = vtanh.pop %v2407
    %v2451 = vmul.f32 %v2447, %v2212
    %v2452 = vmul.f32 %v2445, %v2450
    %v2453 = vadd.f32 %v2451, %v2452
    %v2454 = vtanh.pop %v2453
    %v2455 = vmul.f32 %v2449, %v2454
    %s2456 = scalar_lea.vmem [#allocation3], 48
    %2457 = vst.msk [vmem:[%s2456] sm:$0xff] %vm992, %v2431
    %s2458 = scalar_lea.vmem [#allocation4], 8
    %2459 = vst.msk [vmem:[%s2458] sm:$0xff] %vm992, %v2455
    %2461 = vrot.lane.b32.xlu0 %v2455, 32
    %v2462 = vpop.permute.xlu0 %2461
    %v2464 = vsel %vm992, %v2431, %v2462
    %v2465 = vpack.c.bf16 %v2464, %v2464
    %v2467 = vsel %vm754, %v2465, 0
    %2469 = vmatprep.subr.bf16.mxu0 0
    %2470 = vmatpush1.bf16.msra.mxu0 0
    %2471 = vmatprep.subr.bf16.mxu0 0
    %2472 = vmatpush1.bf16.msra.mxu0 0
    %2473 = vmatprep.subr.bf16.mxu0 0
    %2474 = vmatpush1.bf16.msra.mxu0 0
    %2475 = vmatprep.subr.bf16.mxu0 0
    %2476 = vmatpush1.bf16.msra.mxu0 0
    %2477 = vmatprep.subr.bf16.mxu0 %v715
    %2478 = vmatpush1.bf16.msra.mxu0 %v714
    %2479 = vmatprep.subr.bf16.mxu0 %v707
    %2480 = vmatpush1.bf16.msra.mxu0 %v706
    %2481 = vmatprep.subr.bf16.mxu0 %v699
    %2482 = vmatpush1.bf16.msra.mxu0 %v698
    %2483 = vmatprep.subr.bf16.mxu0 %v691
    %2484 = vmatpush1.bf16.msra.mxu0 %v690
    %2485 = vmatprep.subr.bf16.mxu0 0
    %2486 = vmatpush2.bf16.msra.mxu0 0
    %2487 = vmatprep.subr.bf16.mxu0 0
    %2488 = vmatpush2.bf16.msra.mxu0 0
    %2489 = vmatprep.subr.bf16.mxu0 0
    %2490 = vmatpush2.bf16.msra.mxu0 0
    %2491 = vmatprep.subr.bf16.mxu0 0
    %2492 = vmatpush2.bf16.msra.mxu0 0
    %2493 = vmatprep.subr.bf16.mxu0 0
    %2494 = vmatpush2.bf16.msra.mxu0 0
    %2495 = vmatprep.subr.bf16.mxu0 0
    %2496 = vmatpush2.bf16.msra.mxu0 0
    %2497 = vmatprep.subr.bf16.mxu0 0
    %2498 = vmatpush2.bf16.msra.mxu0 0
    %2499 = vmatprep.subr.bf16.mxu0 0
    %2500 = vmatpush2.bf16.msra.mxu0 0
    %2501 = vmatprep.mubr.bf16.mxu0 0
    %2502 = vmatmul.mubr.bf16.gmra.mxu0 %v2467
    %v2503 = vpop.f32.mrf.mxu0
    %v2504 = vadd.f32 0.0, %v2503
    %v2505 = vpop.f32.mrf.mxu0
    %v2506 = vadd.f32 0.0, %v2505
    %v2507 = vpop.f32.mrf.mxu0
    %v2508 = vpop.f32.mrf.mxu0
    %2509 = vdwg.mxu0
    %2510 = vmatprep.subr.bf16.mxu0 0
    %2511 = vmatpush1.bf16.msra.mxu0 0
    %2512 = vmatprep.subr.bf16.mxu0 0
    %2513 = vmatpush1.bf16.msra.mxu0 0
    %2514 = vmatprep.subr.bf16.mxu0 0
    %2515 = vmatpush1.bf16.msra.mxu0 0
    %2516 = vmatprep.subr.bf16.mxu0 0
    %2517 = vmatpush1.bf16.msra.mxu0 0
    %2518 = vmatprep.subr.bf16.mxu0 %v717
    %2519 = vmatpush1.bf16.msra.mxu0 %v716
    %2520 = vmatprep.subr.bf16.mxu0 %v709
    %2521 = vmatpush1.bf16.msra.mxu0 %v708
    %2522 = vmatprep.subr.bf16.mxu0 %v701
    %2523 = vmatpush1.bf16.msra.mxu0 %v700
    %2524 = vmatprep.subr.bf16.mxu0 %v693
    %2525 = vmatpush1.bf16.msra.mxu0 %v692
    %2526 = vmatprep.subr.bf16.mxu0 0
    %2527 = vmatpush2.bf16.msra.mxu0 0
    %2528 = vmatprep.subr.bf16.mxu0 0
    %2529 = vmatpush2.bf16.msra.mxu0 0
    %2530 = vmatprep.subr.bf16.mxu0 0
    %2531 = vmatpush2.bf16.msra.mxu0 0
    %2532 = vmatprep.subr.bf16.mxu0 0
    %2533 = vmatpush2.bf16.msra.mxu0 0
    %2534 = vmatprep.subr.bf16.mxu0 0
    %2535 = vmatpush2.bf16.msra.mxu0 0
    %2536 = vmatprep.subr.bf16.mxu0 0
    %2537 = vmatpush2.bf16.msra.mxu0 0
    %2538 = vmatprep.subr.bf16.mxu0 0
    %2539 = vmatpush2.bf16.msra.mxu0 0
    %2540 = vmatprep.subr.bf16.mxu0 0
    %2541 = vmatpush2.bf16.msra.mxu0 0
    %2542 = vmatprep.mubr.bf16.mxu0 0
    %2543 = vmatmul.mubr.bf16.gmra.mxu0 %v2467
    %v2544 = vpop.f32.mrf.mxu0
    %v2545 = vadd.f32 0.0, %v2544
    %v2546 = vpop.f32.mrf.mxu0
    %v2547 = vadd.f32 0.0, %v2546
    %v2548 = vpop.f32.mrf.mxu0
    %v2549 = vpop.f32.mrf.mxu0
    %2550 = vdwg.mxu0
    %2551 = vmatprep.subr.bf16.mxu0 0
    %2552 = vmatpush1.bf16.msra.mxu0 0
    %2553 = vmatprep.subr.bf16.mxu0 0
    %2554 = vmatpush1.bf16.msra.mxu0 0
    %2555 = vmatprep.subr.bf16.mxu0 0
    %2556 = vmatpush1.bf16.msra.mxu0 0
    %2557 = vmatprep.subr.bf16.mxu0 0
    %2558 = vmatpush1.bf16.msra.mxu0 0
    %2559 = vmatprep.subr.bf16.mxu0 %v719
    %2560 = vmatpush1.bf16.msra.mxu0 %v718
    %2561 = vmatprep.subr.bf16.mxu0 %v711
    %2562 = vmatpush1.bf16.msra.mxu0 %v710
    %2563 = vmatprep.subr.bf16.mxu0 %v703
    %2564 = vmatpush1.bf16.msra.mxu0 %v702
    %2565 = vmatprep.subr.bf16.mxu0 %v695
    %2566 = vmatpush1.bf16.msra.mxu0 %v694
    %2567 = vmatprep.subr.bf16.mxu0 0
    %2568 = vmatpush2.bf16.msra.mxu0 0
    %2569 = vmatprep.subr.bf16.mxu0 0
    %2570 = vmatpush2.bf16.msra.mxu0 0
    %2571 = vmatprep.subr.bf16.mxu0 0
    %2572 = vmatpush2.bf16.msra.mxu0 0
    %2573 = vmatprep.subr.bf16.mxu0 0
    %2574 = vmatpush2.bf16.msra.mxu0 0
    %2575 = vmatprep.subr.bf16.mxu0 0
    %2576 = vmatpush2.bf16.msra.mxu0 0
    %2577 = vmatprep.subr.bf16.mxu0 0
    %2578 = vmatpush2.bf16.msra.mxu0 0
    %2579 = vmatprep.subr.bf16.mxu0 0
    %2580 = vmatpush2.bf16.msra.mxu0 0
    %2581 = vmatprep.subr.bf16.mxu0 0
    %2582 = vmatpush2.bf16.msra.mxu0 0
    %2583 = vmatprep.mubr.bf16.mxu0 0
    %2584 = vmatmul.mubr.bf16.gmra.mxu0 %v2467
    %v2585 = vpop.f32.mrf.mxu0
    %v2586 = vadd.f32 0.0, %v2585
    %v2587 = vpop.f32.mrf.mxu0
    %v2588 = vadd.f32 0.0, %v2587
    %v2589 = vpop.f32.mrf.mxu0
    %v2590 = vpop.f32.mrf.mxu0
    %2591 = vdwg.mxu0
    %2592 = vmatprep.subr.bf16.mxu0 0
    %2593 = vmatpush1.bf16.msra.mxu0 0
    %2594 = vmatprep.subr.bf16.mxu0 0
    %2595 = vmatpush1.bf16.msra.mxu0 0
    %2596 = vmatprep.subr.bf16.mxu0 0
    %2597 = vmatpush1.bf16.msra.mxu0 0
    %2598 = vmatprep.subr.bf16.mxu0 0
    %2599 = vmatpush1.bf16.msra.mxu0 0
    %2600 = vmatprep.subr.bf16.mxu0 %v721
    %2601 = vmatpush1.bf16.msra.mxu0 %v720
    %2602 = vmatprep.subr.bf16.mxu0 %v713
    %2603 = vmatpush1.bf16.msra.mxu0 %v712
    %2604 = vmatprep.subr.bf16.mxu0 %v705
    %2605 = vmatpush1.bf16.msra.mxu0 %v704
    %2606 = vmatprep.subr.bf16.mxu0 %v697
    %2607 = vmatpush1.bf16.msra.mxu0 %v696
    %2608 = vmatprep.subr.bf16.mxu0 0
    %2609 = vmatpush2.bf16.msra.mxu0 0
    %2610 = vmatprep.subr.bf16.mxu0 0
    %2611 = vmatpush2.bf16.msra.mxu0 0
    %2612 = vmatprep.subr.bf16.mxu0 0
    %2613 = vmatpush2.bf16.msra.mxu0 0
    %2614 = vmatprep.subr.bf16.mxu0 0
    %2615 = vmatpush2.bf16.msra.mxu0 0
    %2616 = vmatprep.subr.bf16.mxu0 0
    %2617 = vmatpush2.bf16.msra.mxu0 0
    %2618 = vmatprep.subr.bf16.mxu0 0
    %2619 = vmatpush2.bf16.msra.mxu0 0
    %2620 = vmatprep.subr.bf16.mxu0 0
    %2621 = vmatpush2.bf16.msra.mxu0 0
    %2622 = vmatprep.subr.bf16.mxu0 0
    %2623 = vmatpush2.bf16.msra.mxu0 0
    %2624 = vmatprep.mubr.bf16.mxu0 0
    %2625 = vmatmul.mubr.bf16.gmra.mxu0 %v2467
    %v2626 = vpop.f32.mrf.mxu0
    %v2627 = vadd.f32 0.0, %v2626
    %v2628 = vpop.f32.mrf.mxu0
    %v2629 = vadd.f32 0.0, %v2628
    %v2630 = vpop.f32.mrf.mxu0
    %v2631 = vpop.f32.mrf.mxu0
    %2632 = vdwg.mxu0
    %v2633 = vld [vmem:[%s935] sm:$0xff]
    %v2634 = vld [vmem:[%s935 + $0x8] sm:$0xff]
    %v2635 = vld [vmem:[%s935 + $0x10] sm:$0xff]
    %v2636 = vld [vmem:[%s935 + $0x18] sm:$0xff]
    %v2637 = vadd.f32 %v2633, %v2504
    %v2638 = vadd.f32 %v2634, %v2506
    %v2639 = vadd.f32 %v2635, %v2545
    %v2640 = vadd.f32 %v2636, %v2547
    %v2641 = vld [vmem:[%s924 + $0x20] sm:$0xff]
    %v2642 = vld [vmem:[%s924 + $0x28] sm:$0xff]
    %v2643 = vld [vmem:[%s924 + $0x30] sm:$0xff]
    %v2644 = vld [vmem:[%s924 + $0x38] sm:$0xff]
    %v2645 = vadd.f32 %v2641, %v2586
    %v2646 = vadd.f32 %v2642, %v2588
    %v2647 = vadd.f32 %v2643, %v2627
    %v2648 = vadd.f32 %v2644, %v2629
    %v2649 = vxor.u32 %v2637, 2147483648
    %v2650 = vxor.u32 %v2638, 2147483648
    %v2651 = vxor.u32 %v2639, 2147483648
    %v2652 = vmul.f32 %v2649, 1.442695
    %v2653 = vpow.pop %v2652
    %v2654 = vmul.f32 %v2650, 1.442695
    %v2655 = vpow.pop %v2654
    %v2656 = vmul.f32 %v2651, 1.442695
    %v2657 = vpow.pop %v2656
    %v2658 = vadd.f32 %v2653, 1.0
    %v2659 = vadd.f32 %v2655, 1.0
    %v2660 = vadd.f32 %v2657, 1.0
    %v2661 = vrcp.pop %v2658
    %v2662 = vmul.f32 1.0, %v2661
    %v2663 = vrcp.pop %v2659
    %v2664 = vmul.f32 1.0, %v2663
    %v2665 = vrcp.pop %v2660
    %v2666 = vmul.f32 1.0, %v2665
    %v2667 = vtanh.pop %v2640
    %v2668 = vmul.f32 %v2664, %v2429
    %v2669 = vmul.f32 %v2662, %v2667
    %v2670 = vadd.f32 %v2668, %v2669
    %v2671 = vtanh.pop %v2670
    %v2672 = vmul.f32 %v2666, %v2671
    %v2673 = vxor.u32 %v2645, 2147483648
    %v2674 = vxor.u32 %v2646, 2147483648
    %v2675 = vxor.u32 %v2647, 2147483648
    %v2676 = vmul.f32 %v2673, 1.442695
    %v2677 = vpow.pop %v2676
    %v2678 = vmul.f32 %v2674, 1.442695
    %v2679 = vpow.pop %v2678
    %v2680 = vmul.f32 %v2675, 1.442695
    %v2681 = vpow.pop %v2680
    %v2682 = vadd.f32 %v2677, 1.0
    %v2683 = vadd.f32 %v2679, 1.0
    %v2684 = vadd.f32 %v2681, 1.0
    %v2685 = vrcp.pop %v2682
    %v2686 = vmul.f32 1.0, %v2685
    %v2687 = vrcp.pop %v2683
    %v2688 = vmul.f32 1.0, %v2687
    %v2689 = vrcp.pop %v2684
    %v2690 = vmul.f32 1.0, %v2689
    %v2691 = vtanh.pop %v2648
    %v2692 = vmul.f32 %v2688, %v2453
    %v2693 = vmul.f32 %v2686, %v2691
    %v2694 = vadd.f32 %v2692, %v2693
    %v2695 = vtanh.pop %v2694
    %v2696 = vmul.f32 %v2690, %v2695
    %s2697 = scalar_lea.vmem [#allocation3], 56
    %2698 = vst.msk [vmem:[%s2697] sm:$0xff] %vm992, %v2672
    %2699 = vst.msk [vmem:[#allocation4] sm:$0xff] %vm992, %v2696
    %v2700 = vld [vmem:[#allocation7] sm:$0xff]
    %v2701 = vld [vmem:[#allocation7 + $0x8] sm:$0xff]
    %v2702 = vld [vmem:[#allocation7 + $0x10] sm:$0xff]
    %v2703 = vld [vmem:[#allocation7 + $0x18] sm:$0xff]
    %v2704 = vld [vmem:[#allocation7 + $0x20] sm:$0xff]
    %v2705 = vld [vmem:[#allocation7 + $0x28] sm:$0xff]
    %v2706 = vld [vmem:[#allocation7 + $0x30] sm:$0xff]
    %v2707 = vld [vmem:[#allocation7 + $0x38] sm:$0xff]
    %v2708 = vld [vmem:[#allocation7 + $0x40] sm:$0xff]
    %v2709 = vld [vmem:[#allocation7 + $0x48] sm:$0xff]
    %v2710 = vld [vmem:[#allocation7 + $0x50] sm:$0xff]
    %v2711 = vld [vmem:[#allocation7 + $0x58] sm:$0xff]
    %v2712 = vld [vmem:[#allocation7 + $0x60] sm:$0xff]
    %v2713 = vld [vmem:[#allocation7 + $0x68] sm:$0xff]
    %v2714 = vld [vmem:[#allocation7 + $0x70] sm:$0xff]
    %v2715 = vld [vmem:[#allocation7 + $0x78] sm:$0xff]
    %v2716 = vld [vmem:[#allocation7 + $0x80] sm:$0xff]
    %v2717 = vld [vmem:[#allocation7 + $0x88] sm:$0xff]
    %v2718 = vld [vmem:[#allocation7 + $0x90] sm:$0xff]
    %v2719 = vld [vmem:[#allocation7 + $0x98] sm:$0xff]
    %v2720 = vld [vmem:[#allocation7 + $0xa0] sm:$0xff]
    %v2721 = vld [vmem:[#allocation7 + $0xa8] sm:$0xff]
    %v2722 = vld [vmem:[#allocation7 + $0xb0] sm:$0xff]
    %v2723 = vld [vmem:[#allocation7 + $0xb8] sm:$0xff]
    %v2724 = vld [vmem:[#allocation7 + $0xc0] sm:$0xff]
    %v2725 = vld [vmem:[#allocation7 + $0xc8] sm:$0xff]
    %v2726 = vld [vmem:[#allocation7 + $0xd0] sm:$0xff]
    %v2727 = vld [vmem:[#allocation7 + $0xd8] sm:$0xff]
    %v2728 = vld [vmem:[#allocation7 + $0xe0] sm:$0xff]
    %v2729 = vld [vmem:[#allocation7 + $0xe8] sm:$0xff]
    %v2730 = vld [vmem:[#allocation7 + $0xf0] sm:$0xff]
    %v2731 = vld [vmem:[#allocation7 + $0xf8] sm:$0xff]
    %v2732 = vld [vmem:[#allocation9] sm:$0xff]
    %v2733 = vld [vmem:[#allocation9 + $0x8] sm:$0xff]
    %v2734 = vld [vmem:[#allocation9 + $0x10] sm:$0xff]
    %v2735 = vld [vmem:[#allocation9 + $0x18] sm:$0xff]
    %v2736 = vld [vmem:[#allocation9 + $0x20] sm:$0xff]
    %v2737 = vld [vmem:[#allocation9 + $0x28] sm:$0xff]
    %v2738 = vld [vmem:[#allocation9 + $0x30] sm:$0xff]
    %v2739 = vld [vmem:[#allocation9 + $0x38] sm:$0xff]
    %v2740 = vld [vmem:[#allocation9 + $0x40] sm:$0xff]
    %v2741 = vld [vmem:[#allocation9 + $0x48] sm:$0xff]
    %v2742 = vld [vmem:[#allocation9 + $0x50] sm:$0xff]
    %v2743 = vld [vmem:[#allocation9 + $0x58] sm:$0xff]
    %v2744 = vld [vmem:[#allocation9 + $0x60] sm:$0xff]
    %v2745 = vld [vmem:[#allocation9 + $0x68] sm:$0xff]
    %v2746 = vld [vmem:[#allocation9 + $0x70] sm:$0xff]
    %v2747 = vld [vmem:[#allocation9 + $0x78] sm:$0xff]
    %v2748 = vld [vmem:[#allocation9 + $0x80] sm:$0xff]
    %v2749 = vld [vmem:[#allocation9 + $0x88] sm:$0xff]
    %v2750 = vld [vmem:[#allocation9 + $0x90] sm:$0xff]
    %v2751 = vld [vmem:[#allocation9 + $0x98] sm:$0xff]
    %v2752 = vld [vmem:[#allocation9 + $0xa0] sm:$0xff]
    %v2753 = vld [vmem:[#allocation9 + $0xa8] sm:$0xff]
    %v2754 = vld [vmem:[#allocation9 + $0xb0] sm:$0xff]
    %v2755 = vld [vmem:[#allocation9 + $0xb8] sm:$0xff]
    %v2756 = vld [vmem:[#allocation9 + $0xc0] sm:$0xff]
    %v2757 = vld [vmem:[#allocation9 + $0xc8] sm:$0xff]
    %v2758 = vld [vmem:[#allocation9 + $0xd0] sm:$0xff]
    %v2759 = vld [vmem:[#allocation9 + $0xd8] sm:$0xff]
    %v2760 = vld [vmem:[#allocation9 + $0xe0] sm:$0xff]
    %v2761 = vld [vmem:[#allocation9 + $0xe8] sm:$0xff]
    %v2762 = vld [vmem:[#allocation9 + $0xf0] sm:$0xff]
    %v2763 = vld [vmem:[#allocation9 + $0xf8] sm:$0xff]
    %v2764 = vld [vmem:[%s6] sm:$0xff]
    %v2765 = vld [vmem:[#allocation3] sm:$0xff]
    %v2766 = vld [vmem:[#allocation3 + $0x8] sm:$0xff]
    %v2767 = vld [vmem:[#allocation3 + $0x10] sm:$0xff]
    %v2768 = vld [vmem:[#allocation3 + $0x18] sm:$0xff]
    %v2769 = vld [vmem:[#allocation3 + $0x20] sm:$0xff]
    %v2770 = vld [vmem:[#allocation3 + $0x28] sm:$0xff]
    %v2771 = vld [vmem:[#allocation3 + $0x30] sm:$0xff]
    %v2772 = vld [vmem:[#allocation3 + $0x38] sm:$0xff]
    %v2773 = vld [vmem:[#allocation4] sm:$0xff]
    %v2774 = vld [vmem:[#allocation4 + $0x8] sm:$0xff]
    %v2775 = vld [vmem:[#allocation4 + $0x10] sm:$0xff]
    %v2776 = vld [vmem:[#allocation4 + $0x18] sm:$0xff]
    %v2777 = vld [vmem:[#allocation4 + $0x20] sm:$0xff]
    %v2778 = vld [vmem:[#allocation4 + $0x28] sm:$0xff]
    %v2779 = vld [vmem:[#allocation4 + $0x30] sm:$0xff]
    %v2780 = vld [vmem:[#allocation4 + $0x38] sm:$0xff]
    %2789 = vrot.lane.b32.xlu0 %v2773, 32
    %v2790 = vpop.permute.xlu0 %2789
    %2791 = vrot.lane.b32.xlu0 %v2774, 32
    %v2792 = vpop.permute.xlu0 %2791
    %2793 = vrot.lane.b32.xlu0 %v2775, 32
    %v2794 = vpop.permute.xlu0 %2793
    %2795 = vrot.lane.b32.xlu0 %v2776, 32
    %v2796 = vpop.permute.xlu0 %2795
    %2797 = vrot.lane.b32.xlu0 %v2777, 32
    %v2798 = vpop.permute.xlu0 %2797
    %2799 = vrot.lane.b32.xlu0 %v2778, 32
    %v2800 = vpop.permute.xlu0 %2799
    %2801 = vrot.lane.b32.xlu0 %v2779, 32
    %v2802 = vpop.permute.xlu0 %2801
    %2803 = vrot.lane.b32.xlu0 %v2780, 32
    %v2804 = vpop.permute.xlu0 %2803
    %v2813 = vsel %vm992, %v2765, %v2790
    %v2814 = vsel %vm992, %v2766, %v2792
    %v2815 = vsel %vm992, %v2767, %v2794
    %v2816 = vsel %vm992, %v2768, %v2796
    %v2817 = vsel %vm992, %v2769, %v2798
    %v2818 = vsel %vm992, %v2770, %v2800
    %v2819 = vsel %vm992, %v2771, %v2802
    %v2820 = vsel %vm992, %v2772, %v2804
    %v2821 = vpack.c.bf16 %v2814, %v2813
    %v2822 = vpack.c.bf16 %v2816, %v2815
    %v2823 = vpack.c.bf16 %v2818, %v2817
    %v2824 = vpack.c.bf16 %v2820, %v2819
    %v2826 = vlaneseq
    %v2827 = vshrl.u32 %v2826, 7
    %v2828 = vsub.s32 0, %v2827
    %v2829 = vrot.slane %v2764, %v2828
    %v2830 = vlaneseq
    %v2831 = vshrl.u32 %v2830, 7
    %v2832 = vsub.s32 1, %v2831
    %v2833 = vrot.slane %v2764, %v2832
    %v2834 = vlaneseq
    %v2835 = vshrl.u32 %v2834, 7
    %v2836 = vsub.s32 2, %v2835
    %v2837 = vrot.slane %v2764, %v2836
    %v2838 = vlaneseq
    %v2839 = vshrl.u32 %v2838, 7
    %v2840 = vsub.s32 3, %v2839
    %v2841 = vrot.slane %v2764, %v2840
    %v2842 = vlaneseq
    %v2843 = vshrl.u32 %v2842, 7
    %v2844 = vsub.s32 4, %v2843
    %v2845 = vrot.slane %v2764, %v2844
    %v2846 = vlaneseq
    %v2847 = vshrl.u32 %v2846, 7
    %v2848 = vsub.s32 5, %v2847
    %v2849 = vrot.slane %v2764, %v2848
    %v2850 = vlaneseq
    %v2851 = vshrl.u32 %v2850, 7
    %v2852 = vsub.s32 6, %v2851
    %v2853 = vrot.slane %v2764, %v2852
    %v2854 = vlaneseq
    %v2855 = vshrl.u32 %v2854, 7
    %v2856 = vsub.s32 7, %v2855
    %v2857 = vrot.slane %v2764, %v2856
    %v2898 = vunpack.c.l.b16 %v2700
    %v2899 = vunpack.c.h.b16 %v2700
    %v2900 = vunpack.c.l.b16 %v2701
    %v2901 = vunpack.c.h.b16 %v2701
    %v2902 = vunpack.c.l.b16 %v2702
    %v2903 = vunpack.c.h.b16 %v2702
    %v2904 = vunpack.c.l.b16 %v2703
    %v2905 = vunpack.c.h.b16 %v2703
    %v2906 = vunpack.c.l.b16 %v2704
    %v2907 = vunpack.c.h.b16 %v2704
    %v2908 = vunpack.c.l.b16 %v2705
    %v2909 = vunpack.c.h.b16 %v2705
    %v2910 = vunpack.c.l.b16 %v2706
    %v2911 = vunpack.c.h.b16 %v2706
    %v2912 = vunpack.c.l.b16 %v2707
    %v2913 = vunpack.c.h.b16 %v2707
    %v2914 = vunpack.c.l.b16 %v2708
    %v2915 = vunpack.c.h.b16 %v2708
    %v2916 = vunpack.c.l.b16 %v2709
    %v2917 = vunpack.c.h.b16 %v2709
    %v2918 = vunpack.c.l.b16 %v2710
    %v2919 = vunpack.c.h.b16 %v2710
    %v2920 = vunpack.c.l.b16 %v2711
    %v2921 = vunpack.c.h.b16 %v2711
    %v2922 = vunpack.c.l.b16 %v2712
    %v2923 = vunpack.c.h.b16 %v2712
    %v2924 = vunpack.c.l.b16 %v2713
    %v2925 = vunpack.c.h.b16 %v2713
    %v2926 = vunpack.c.l.b16 %v2714
    %v2927 = vunpack.c.h.b16 %v2714
    %v2928 = vunpack.c.l.b16 %v2715
    %v2929 = vunpack.c.h.b16 %v2715
    %v2930 = vunpack.c.l.b16 %v2716
    %v2931 = vunpack.c.h.b16 %v2716
    %v2932 = vunpack.c.l.b16 %v2717
    %v2933 = vunpack.c.h.b16 %v2717
    %v2934 = vunpack.c.l.b16 %v2718
    %v2935 = vunpack.c.h.b16 %v2718
    %v2936 = vunpack.c.l.b16 %v2719
    %v2937 = vunpack.c.h.b16 %v2719
    %v2938 = vunpack.c.l.b16 %v2720
    %v2939 = vunpack.c.h.b16 %v2720
    %v2940 = vunpack.c.l.b16 %v2721
    %v2941 = vunpack.c.h.b16 %v2721
    %v2942 = vunpack.c.l.b16 %v2722
    %v2943 = vunpack.c.h.b16 %v2722
    %v2944 = vunpack.c.l.b16 %v2723
    %v2945 = vunpack.c.h.b16 %v2723
    %v2946 = vunpack.c.l.b16 %v2724
    %v2947 = vunpack.c.h.b16 %v2724
    %v2948 = vunpack.c.l.b16 %v2725
    %v2949 = vunpack.c.h.b16 %v2725
    %v2950 = vunpack.c.l.b16 %v2726
    %v2951 = vunpack.c.h.b16 %v2726
    %v2952 = vunpack.c.l.b16 %v2727
    %v2953 = vunpack.c.h.b16 %v2727
    %v2954 = vunpack.c.l.b16 %v2728
    %v2955 = vunpack.c.h.b16 %v2728
    %v2956 = vunpack.c.l.b16 %v2729
    %v2957 = vunpack.c.h.b16 %v2729
    %v2958 = vunpack.c.l.b16 %v2730
    %v2959 = vunpack.c.h.b16 %v2730
    %v2960 = vunpack.c.l.b16 %v2731
    %v2961 = vunpack.c.h.b16 %v2731
    %v2962 = vpack.c.b16 %v2906, %v2898
    %v2963 = vpack.c.b16 %v2907, %v2899
    %v2964 = vpack.c.b16 %v2908, %v2900
    %v2965 = vpack.c.b16 %v2909, %v2901
    %v2966 = vpack.c.b16 %v2910, %v2902
    %v2967 = vpack.c.b16 %v2911, %v2903
    %v2968 = vpack.c.b16 %v2912, %v2904
    %v2969 = vpack.c.b16 %v2913, %v2905
    %v2970 = vpack.c.b16 %v2922, %v2914
    %v2971 = vpack.c.b16 %v2923, %v2915
    %v2972 = vpack.c.b16 %v2924, %v2916
    %v2973 = vpack.c.b16 %v2925, %v2917
    %v2974 = vpack.c.b16 %v2926, %v2918
    %v2975 = vpack.c.b16 %v2927, %v2919
    %v2976 = vpack.c.b16 %v2928, %v2920
    %v2977 = vpack.c.b16 %v2929, %v2921
    %v2978 = vpack.c.b16 %v2938, %v2930
    %v2979 = vpack.c.b16 %v2939, %v2931
    %v2980 = vpack.c.b16 %v2940, %v2932
    %v2981 = vpack.c.b16 %v2941, %v2933
    %v2982 = vpack.c.b16 %v2942, %v2934
    %v2983 = vpack.c.b16 %v2943, %v2935
    %v2984 = vpack.c.b16 %v2944, %v2936
    %v2985 = vpack.c.b16 %v2945, %v2937
    %v2986 = vpack.c.b16 %v2954, %v2946
    %v2987 = vpack.c.b16 %v2955, %v2947
    %v2988 = vpack.c.b16 %v2956, %v2948
    %v2989 = vpack.c.b16 %v2957, %v2949
    %v2990 = vpack.c.b16 %v2958, %v2950
    %v2991 = vpack.c.b16 %v2959, %v2951
    %v2992 = vpack.c.b16 %v2960, %v2952
    %v2993 = vpack.c.b16 %v2961, %v2953
    %v3027 = vsel %vm754, %v2821, 0
    %v3030 = vsel %vm754, %v2822, 0
    %v3033 = vsel %vm754, %v2823, 0
    %v3036 = vsel %vm754, %v2824, 0
    %3038 = vmatprep.subr.bf16.mxu0 0
    %3039 = vmatpush1.bf16.msra.mxu0 0
    %3040 = vmatprep.subr.bf16.mxu0 0
    %3041 = vmatpush1.bf16.msra.mxu0 0
    %3042 = vmatprep.subr.bf16.mxu0 0
    %3043 = vmatpush1.bf16.msra.mxu0 0
    %3044 = vmatprep.subr.bf16.mxu0 0
    %3045 = vmatpush1.bf16.msra.mxu0 0
    %3046 = vmatprep.subr.bf16.mxu0 %v2987
    %3047 = vmatpush1.bf16.msra.mxu0 %v2986
    %3048 = vmatprep.subr.bf16.mxu0 %v2979
    %3049 = vmatpush1.bf16.msra.mxu0 %v2978
    %3050 = vmatprep.subr.bf16.mxu0 %v2971
    %3051 = vmatpush1.bf16.msra.mxu0 %v2970
    %3052 = vmatprep.subr.bf16.mxu0 %v2963
    %3053 = vmatpush1.bf16.msra.mxu0 %v2962
    %3054 = vmatprep.subr.bf16.mxu0 0
    %3055 = vmatpush2.bf16.msra.mxu0 0
    %3056 = vmatprep.subr.bf16.mxu0 0
    %3057 = vmatpush2.bf16.msra.mxu0 0
    %3058 = vmatprep.subr.bf16.mxu0 0
    %3059 = vmatpush2.bf16.msra.mxu0 0
    %3060 = vmatprep.subr.bf16.mxu0 0
    %3061 = vmatpush2.bf16.msra.mxu0 0
    %3062 = vmatprep.subr.bf16.mxu0 0
    %3063 = vmatpush2.bf16.msra.mxu0 0
    %3064 = vmatprep.subr.bf16.mxu0 0
    %3065 = vmatpush2.bf16.msra.mxu0 0
    %3066 = vmatprep.subr.bf16.mxu0 0
    %3067 = vmatpush2.bf16.msra.mxu0 0
    %3068 = vmatprep.subr.bf16.mxu0 0
    %3069 = vmatpush2.bf16.msra.mxu0 0
    %3070 = vmatprep.mubr.bf16.mxu0 0
    %3071 = vmatmul.mubr.bf16.gmra.mxu0 %v3027
    %v3072 = vpop.f32.mrf.mxu0
    %v3073 = vadd.f32 %v2829, %v3072
    %v3074 = vpop.f32.mrf.mxu0
    %v3075 = vadd.f32 %v2833, %v3074
    %v3076 = vpop.f32.mrf.mxu0
    %v3077 = vadd.f32 %v2829, %v3076
    %v3078 = vpop.f32.mrf.mxu0
    %v3079 = vadd.f32 %v2833, %v3078
    %3080 = vmatprep.mubr.bf16.mxu0 0
    %3081 = vmatmul.mubr.bf16.gmra.mxu0 %v3030
    %v3082 = vpop.f32.mrf.mxu0
    %v3083 = vadd.f32 %v2829, %v3082
    %v3084 = vpop.f32.mrf.mxu0
    %v3085 = vadd.f32 %v2833, %v3084
    %v3086 = vpop.f32.mrf.mxu0
    %v3087 = vadd.f32 %v2829, %v3086
    %v3088 = vpop.f32.mrf.mxu0
    %v3089 = vadd.f32 %v2833, %v3088
    %3090 = vmatprep.mubr.bf16.mxu0 0
    %3091 = vmatmul.mubr.bf16.gmra.mxu0 %v3033
    %v3092 = vpop.f32.mrf.mxu0
    %v3093 = vadd.f32 %v2829, %v3092
    %v3094 = vpop.f32.mrf.mxu0
    %v3095 = vadd.f32 %v2833, %v3094
    %v3096 = vpop.f32.mrf.mxu0
    %v3097 = vadd.f32 %v2829, %v3096
    %v3098 = vpop.f32.mrf.mxu0
    %v3099 = vadd.f32 %v2833, %v3098
    %3100 = vmatprep.mubr.bf16.mxu0 0
    %3101 = vmatmul.mubr.bf16.gmra.mxu0 %v3036
    %v3102 = vpop.f32.mrf.mxu0
    %v3103 = vadd.f32 %v2829, %v3102
    %v3104 = vpop.f32.mrf.mxu0
    %v3105 = vadd.f32 %v2833, %v3104
    %v3106 = vpop.f32.mrf.mxu0
    %v3107 = vadd.f32 %v2829, %v3106
    %v3108 = vpop.f32.mrf.mxu0
    %v3109 = vadd.f32 %v2833, %v3108
    %3110 = vdwg.mxu0
    %3111 = vmatprep.subr.bf16.mxu0 0
    %3112 = vmatpush1.bf16.msra.mxu0 0
    %3113 = vmatprep.subr.bf16.mxu0 0
    %3114 = vmatpush1.bf16.msra.mxu0 0
    %3115 = vmatprep.subr.bf16.mxu0 0
    %3116 = vmatpush1.bf16.msra.mxu0 0
    %3117 = vmatprep.subr.bf16.mxu0 0
    %3118 = vmatpush1.bf16.msra.mxu0 0
    %3119 = vmatprep.subr.bf16.mxu0 %v2989
    %3120 = vmatpush1.bf16.msra.mxu0 %v2988
    %3121 = vmatprep.subr.bf16.mxu0 %v2981
    %3122 = vmatpush1.bf16.msra.mxu0 %v2980
    %3123 = vmatprep.subr.bf16.mxu0 %v2973
    %3124 = vmatpush1.bf16.msra.mxu0 %v2972
    %3125 = vmatprep.subr.bf16.mxu0 %v2965
    %3126 = vmatpush1.bf16.msra.mxu0 %v2964
    %3127 = vmatprep.subr.bf16.mxu0 0
    %3128 = vmatpush2.bf16.msra.mxu0 0
    %3129 = vmatprep.subr.bf16.mxu0 0
    %3130 = vmatpush2.bf16.msra.mxu0 0
    %3131 = vmatprep.subr.bf16.mxu0 0
    %3132 = vmatpush2.bf16.msra.mxu0 0
    %3133 = vmatprep.subr.bf16.mxu0 0
    %3134 = vmatpush2.bf16.msra.mxu0 0
    %3135 = vmatprep.subr.bf16.mxu0 0
    %3136 = vmatpush2.bf16.msra.mxu0 0
    %3137 = vmatprep.subr.bf16.mxu0 0
    %3138 = vmatpush2.bf16.msra.mxu0 0
    %3139 = vmatprep.subr.bf16.mxu0 0
    %3140 = vmatpush2.bf16.msra.mxu0 0
    %3141 = vmatprep.subr.bf16.mxu0 0
    %3142 = vmatpush2.bf16.msra.mxu0 0
    %3143 = vmatprep.mubr.bf16.mxu0 0
    %3144 = vmatmul.mubr.bf16.gmra.mxu0 %v3027
    %v3145 = vpop.f32.mrf.mxu0
    %v3146 = vadd.f32 %v2837, %v3145
    %v3147 = vpop.f32.mrf.mxu0
    %v3148 = vadd.f32 %v2841, %v3147
    %v3149 = vpop.f32.mrf.mxu0
    %v3150 = vadd.f32 %v2837, %v3149
    %v3151 = vpop.f32.mrf.mxu0
    %v3152 = vadd.f32 %v2841, %v3151
    %3153 = vmatprep.mubr.bf16.mxu0 0
    %3154 = vmatmul.mubr.bf16.gmra.mxu0 %v3030
    %v3155 = vpop.f32.mrf.mxu0
    %v3156 = vadd.f32 %v2837, %v3155
    %v3157 = vpop.f32.mrf.mxu0
    %v3158 = vadd.f32 %v2841, %v3157
    %v3159 = vpop.f32.mrf.mxu0
    %v3160 = vadd.f32 %v2837, %v3159
    %v3161 = vpop.f32.mrf.mxu0
    %v3162 = vadd.f32 %v2841, %v3161
    %3163 = vmatprep.mubr.bf16.mxu0 0
    %3164 = vmatmul.mubr.bf16.gmra.mxu0 %v3033
    %v3165 = vpop.f32.mrf.mxu0
    %v3166 = vadd.f32 %v2837, %v3165
    %v3167 = vpop.f32.mrf.mxu0
    %v3168 = vadd.f32 %v2841, %v3167
    %v3169 = vpop.f32.mrf.mxu0
    %v3170 = vadd.f32 %v2837, %v3169
    %v3171 = vpop.f32.mrf.mxu0
    %v3172 = vadd.f32 %v2841, %v3171
    %3173 = vmatprep.mubr.bf16.mxu0 0
    %3174 = vmatmul.mubr.bf16.gmra.mxu0 %v3036
    %v3175 = vpop.f32.mrf.mxu0
    %v3176 = vadd.f32 %v2837, %v3175
    %v3177 = vpop.f32.mrf.mxu0
    %v3178 = vadd.f32 %v2841, %v3177
    %v3179 = vpop.f32.mrf.mxu0
    %v3180 = vadd.f32 %v2837, %v3179
    %v3181 = vpop.f32.mrf.mxu0
    %v3182 = vadd.f32 %v2841, %v3181
    %3183 = vdwg.mxu0
    %3184 = vmatprep.subr.bf16.mxu0 0
    %3185 = vmatpush1.bf16.msra.mxu0 0
    %3186 = vmatprep.subr.bf16.mxu0 0
    %3187 = vmatpush1.bf16.msra.mxu0 0
    %3188 = vmatprep.subr.bf16.mxu0 0
    %3189 = vmatpush1.bf16.msra.mxu0 0
    %3190 = vmatprep.subr.bf16.mxu0 0
    %3191 = vmatpush1.bf16.msra.mxu0 0
    %3192 = vmatprep.subr.bf16.mxu0 %v2991
    %3193 = vmatpush1.bf16.msra.mxu0 %v2990
    %3194 = vmatprep.subr.bf16.mxu0 %v2983
    %3195 = vmatpush1.bf16.msra.mxu0 %v2982
    %3196 = vmatprep.subr.bf16.mxu0 %v2975
    %3197 = vmatpush1.bf16.msra.mxu0 %v2974
    %3198 = vmatprep.subr.bf16.mxu0 %v2967
    %3199 = vmatpush1.bf16.msra.mxu0 %v2966
    %3200 = vmatprep.subr.bf16.mxu0 0
    %3201 = vmatpush2.bf16.msra.mxu0 0
    %3202 = vmatprep.subr.bf16.mxu0 0
    %3203 = vmatpush2.bf16.msra.mxu0 0
    %3204 = vmatprep.subr.bf16.mxu0 0
    %3205 = vmatpush2.bf16.msra.mxu0 0
    %3206 = vmatprep.subr.bf16.mxu0 0
    %3207 = vmatpush2.bf16.msra.mxu0 0
    %3208 = vmatprep.subr.bf16.mxu0 0
    %3209 = vmatpush2.bf16.msra.mxu0 0
    %3210 = vmatprep.subr.bf16.mxu0 0
    %3211 = vmatpush2.bf16.msra.mxu0 0
    %3212 = vmatprep.subr.bf16.mxu0 0
    %3213 = vmatpush2.bf16.msra.mxu0 0
    %3214 = vmatprep.subr.bf16.mxu0 0
    %3215 = vmatpush2.bf16.msra.mxu0 0
    %3216 = vmatprep.mubr.bf16.mxu0 0
    %3217 = vmatmul.mubr.bf16.gmra.mxu0 %v3027
    %v3218 = vpop.f32.mrf.mxu0
    %v3219 = vadd.f32 %v2845, %v3218
    %v3220 = vpop.f32.mrf.mxu0
    %v3221 = vadd.f32 %v2849, %v3220
    %v3222 = vpop.f32.mrf.mxu0
    %v3223 = vadd.f32 %v2845, %v3222
    %v3224 = vpop.f32.mrf.mxu0
    %v3225 = vadd.f32 %v2849, %v3224
    %3226 = vmatprep.mubr.bf16.mxu0 0
    %3227 = vmatmul.mubr.bf16.gmra.mxu0 %v3030
    %v3228 = vpop.f32.mrf.mxu0
    %v3229 = vadd.f32 %v2845, %v3228
    %v3230 = vpop.f32.mrf.mxu0
    %v3231 = vadd.f32 %v2849, %v3230
    %v3232 = vpop.f32.mrf.mxu0
    %v3233 = vadd.f32 %v2845, %v3232
    %v3234 = vpop.f32.mrf.mxu0
    %v3235 = vadd.f32 %v2849, %v3234
    %3236 = vmatprep.mubr.bf16.mxu0 0
    %3237 = vmatmul.mubr.bf16.gmra.mxu0 %v3033
    %v3238 = vpop.f32.mrf.mxu0
    %v3239 = vadd.f32 %v2845, %v3238
    %v3240 = vpop.f32.mrf.mxu0
    %v3241 = vadd.f32 %v2849, %v3240
    %v3242 = vpop.f32.mrf.mxu0
    %v3243 = vadd.f32 %v2845, %v3242
    %v3244 = vpop.f32.mrf.mxu0
    %v3245 = vadd.f32 %v2849, %v3244
    %3246 = vmatprep.mubr.bf16.mxu0 0
    %3247 = vmatmul.mubr.bf16.gmra.mxu0 %v3036
    %v3248 = vpop.f32.mrf.mxu0
    %v3249 = vadd.f32 %v2845, %v3248
    %v3250 = vpop.f32.mrf.mxu0
    %v3251 = vadd.f32 %v2849, %v3250
    %v3252 = vpop.f32.mrf.mxu0
    %v3253 = vadd.f32 %v2845, %v3252
    %v3254 = vpop.f32.mrf.mxu0
    %v3255 = vadd.f32 %v2849, %v3254
    %3256 = vdwg.mxu0
    %3257 = vmatprep.subr.bf16.mxu0 0
    %3258 = vmatpush1.bf16.msra.mxu0 0
    %3259 = vmatprep.subr.bf16.mxu0 0
    %3260 = vmatpush1.bf16.msra.mxu0 0
    %3261 = vmatprep.subr.bf16.mxu0 0
    %3262 = vmatpush1.bf16.msra.mxu0 0
    %3263 = vmatprep.subr.bf16.mxu0 0
    %3264 = vmatpush1.bf16.msra.mxu0 0
    %3265 = vmatprep.subr.bf16.mxu0 %v2993
    %3266 = vmatpush1.bf16.msra.mxu0 %v2992
    %3267 = vmatprep.subr.bf16.mxu0 %v2985
    %3268 = vmatpush1.bf16.msra.mxu0 %v2984
    %3269 = vmatprep.subr.bf16.mxu0 %v2977
    %3270 = vmatpush1.bf16.msra.mxu0 %v2976
    %3271 = vmatprep.subr.bf16.mxu0 %v2969
    %3272 = vmatpush1.bf16.msra.mxu0 %v2968
    %3273 = vmatprep.subr.bf16.mxu0 0
    %3274 = vmatpush2.bf16.msra.mxu0 0
    %3275 = vmatprep.subr.bf16.mxu0 0
    %3276 = vmatpush2.bf16.msra.mxu0 0
    %3277 = vmatprep.subr.bf16.mxu0 0
    %3278 = vmatpush2.bf16.msra.mxu0 0
    %3279 = vmatprep.subr.bf16.mxu0 0
    %3280 = vmatpush2.bf16.msra.mxu0 0
    %3281 = vmatprep.subr.bf16.mxu0 0
    %3282 = vmatpush2.bf16.msra.mxu0 0
    %3283 = vmatprep.subr.bf16.mxu0 0
    %3284 = vmatpush2.bf16.msra.mxu0 0
    %3285 = vmatprep.subr.bf16.mxu0 0
    %3286 = vmatpush2.bf16.msra.mxu0 0
    %3287 = vmatprep.subr.bf16.mxu0 0
    %3288 = vmatpush2.bf16.msra.mxu0 0
    %3289 = vmatprep.mubr.bf16.mxu0 0
    %3290 = vmatmul.mubr.bf16.gmra.mxu0 %v3027
    %v3291 = vpop.f32.mrf.mxu0
    %v3292 = vadd.f32 %v2853, %v3291
    %v3293 = vpop.f32.mrf.mxu0
    %v3294 = vadd.f32 %v2857, %v3293
    %v3295 = vpop.f32.mrf.mxu0
    %v3296 = vadd.f32 %v2853, %v3295
    %v3297 = vpop.f32.mrf.mxu0
    %v3298 = vadd.f32 %v2857, %v3297
    %3299 = vmatprep.mubr.bf16.mxu0 0
    %3300 = vmatmul.mubr.bf16.gmra.mxu0 %v3030
    %v3301 = vpop.f32.mrf.mxu0
    %v3302 = vadd.f32 %v2853, %v3301
    %v3303 = vpop.f32.mrf.mxu0
    %v3304 = vadd.f32 %v2857, %v3303
    %v3305 = vpop.f32.mrf.mxu0
    %v3306 = vadd.f32 %v2853, %v3305
    %v3307 = vpop.f32.mrf.mxu0
    %v3308 = vadd.f32 %v2857, %v3307
    %3309 = vmatprep.mubr.bf16.mxu0 0
    %3310 = vmatmul.mubr.bf16.gmra.mxu0 %v3033
    %v3311 = vpop.f32.mrf.mxu0
    %v3312 = vadd.f32 %v2853, %v3311
    %v3313 = vpop.f32.mrf.mxu0
    %v3314 = vadd.f32 %v2857, %v3313
    %v3315 = vpop.f32.mrf.mxu0
    %v3316 = vadd.f32 %v2853, %v3315
    %v3317 = vpop.f32.mrf.mxu0
    %v3318 = vadd.f32 %v2857, %v3317
    %3319 = vmatprep.mubr.bf16.mxu0 0
    %3320 = vmatmul.mubr.bf16.gmra.mxu0 %v3036
    %v3321 = vpop.f32.mrf.mxu0
    %v3322 = vadd.f32 %v2853, %v3321
    %v3323 = vpop.f32.mrf.mxu0
    %v3324 = vadd.f32 %v2857, %v3323
    %v3325 = vpop.f32.mrf.mxu0
    %v3326 = vadd.f32 %v2853, %v3325
    %v3327 = vpop.f32.mrf.mxu0
    %v3328 = vadd.f32 %v2857, %v3327
    %3329 = vdwg.mxu0
    %3330 = vst [vmem:[#allocation2] sm:$0xff] %v3073
    %3331 = vst [vmem:[#allocation2 + $0x8] sm:$0xff] %v3075
    %3332 = vst [vmem:[#allocation2 + $0x10] sm:$0xff] %v3146
    %3333 = vst [vmem:[#allocation2 + $0x18] sm:$0xff] %v3148
    %3334 = vst [vmem:[#allocation2 + $0x20] sm:$0xff] %v3219
    %3335 = vst [vmem:[#allocation2 + $0x28] sm:$0xff] %v3221
    %3336 = vst [vmem:[#allocation2 + $0x30] sm:$0xff] %v3292
    %3337 = vst [vmem:[#allocation2 + $0x38] sm:$0xff] %v3294
    %3338 = vst [vmem:[#allocation2 + $0x40] sm:$0xff] %v3077
    %3339 = vst [vmem:[#allocation2 + $0x48] sm:$0xff] %v3079
    %3340 = vst [vmem:[#allocation2 + $0x50] sm:$0xff] %v3150
    %3341 = vst [vmem:[#allocation2 + $0x58] sm:$0xff] %v3152
    %3342 = vst [vmem:[#allocation2 + $0x60] sm:$0xff] %v3223
    %3343 = vst [vmem:[#allocation2 + $0x68] sm:$0xff] %v3225
    %3344 = vst [vmem:[#allocation2 + $0x70] sm:$0xff] %v3296
    %3345 = vst [vmem:[#allocation2 + $0x78] sm:$0xff] %v3298
    %3346 = vst [vmem:[#allocation2 + $0x80] sm:$0xff] %v3083
    %3347 = vst [vmem:[#allocation2 + $0x88] sm:$0xff] %v3085
    %3348 = vst [vmem:[#allocation2 + $0x90] sm:$0xff] %v3156
    %3349 = vst [vmem:[#allocation2 + $0x98] sm:$0xff] %v3158
    %3350 = vst [vmem:[#allocation2 + $0xa0] sm:$0xff] %v3229
    %3351 = vst [vmem:[#allocation2 + $0xa8] sm:$0xff] %v3231
    %3352 = vst [vmem:[#allocation2 + $0xb0] sm:$0xff] %v3302
    %3353 = vst [vmem:[#allocation2 + $0xb8] sm:$0xff] %v3304
    %3354 = vst [vmem:[#allocation2 + $0xc0] sm:$0xff] %v3087
    %3355 = vst [vmem:[#allocation2 + $0xc8] sm:$0xff] %v3089
    %3356 = vst [vmem:[#allocation2 + $0xd0] sm:$0xff] %v3160
    %3357 = vst [vmem:[#allocation2 + $0xd8] sm:$0xff] %v3162
    %3358 = vst [vmem:[#allocation2 + $0xe0] sm:$0xff] %v3233
    %3359 = vst [vmem:[#allocation2 + $0xe8] sm:$0xff] %v3235
    %3360 = vst [vmem:[#allocation2 + $0xf0] sm:$0xff] %v3306
    %3361 = vst [vmem:[#allocation2 + $0xf8] sm:$0xff] %v3308
    %3362 = vst [vmem:[#allocation2 + $0x100] sm:$0xff] %v3093
    %3363 = vst [vmem:[#allocation2 + $0x108] sm:$0xff] %v3095
    %3364 = vst [vmem:[#allocation2 + $0x110] sm:$0xff] %v3166
    %3365 = vst [vmem:[#allocation2 + $0x118] sm:$0xff] %v3168
    %3366 = vst [vmem:[#allocation2 + $0x120] sm:$0xff] %v3239
    %3367 = vst [vmem:[#allocation2 + $0x128] sm:$0xff] %v3241
    %3368 = vst [vmem:[#allocation2 + $0x130] sm:$0xff] %v3312
    %3369 = vst [vmem:[#allocation2 + $0x138] sm:$0xff] %v3314
    %3370 = vst [vmem:[#allocation2 + $0x140] sm:$0xff] %v3097
    %3371 = vst [vmem:[#allocation2 + $0x148] sm:$0xff] %v3099
    %3372 = vst [vmem:[#allocation2 + $0x150] sm:$0xff] %v3170
    %3373 = vst [vmem:[#allocation2 + $0x158] sm:$0xff] %v3172
    %3374 = vst [vmem:[#allocation2 + $0x160] sm:$0xff] %v3243
    %3375 = vst [vmem:[#allocation2 + $0x168] sm:$0xff] %v3245
    %3376 = vst [vmem:[#allocation2 + $0x170] sm:$0xff] %v3316
    %3377 = vst [vmem:[#allocation2 + $0x178] sm:$0xff] %v3318
    %3378 = vst [vmem:[#allocation2 + $0x180] sm:$0xff] %v3103
    %3379 = vst [vmem:[#allocation2 + $0x188] sm:$0xff] %v3105
    %3380 = vst [vmem:[#allocation2 + $0x190] sm:$0xff] %v3176
    %3381 = vst [vmem:[#allocation2 + $0x198] sm:$0xff] %v3178
    %3382 = vst [vmem:[#allocation2 + $0x1a0] sm:$0xff] %v3249
    %3383 = vst [vmem:[#allocation2 + $0x1a8] sm:$0xff] %v3251
    %3384 = vst [vmem:[#allocation2 + $0x1b0] sm:$0xff] %v3322
    %3385 = vst [vmem:[#allocation2 + $0x1b8] sm:$0xff] %v3324
    %3386 = vst [vmem:[#allocation2 + $0x1c0] sm:$0xff] %v3107
    %3387 = vst [vmem:[#allocation2 + $0x1c8] sm:$0xff] %v3109
    %3388 = vst [vmem:[#allocation2 + $0x1d0] sm:$0xff] %v3180
    %3389 = vst [vmem:[#allocation2 + $0x1d8] sm:$0xff] %v3182
    %3390 = vst [vmem:[#allocation2 + $0x1e0] sm:$0xff] %v3253
    %3391 = vst [vmem:[#allocation2 + $0x1e8] sm:$0xff] %v3255
    %3392 = vst [vmem:[#allocation2 + $0x1f0] sm:$0xff] %v3326
    %3393 = vst [vmem:[#allocation2 + $0x1f8] sm:$0xff] %v3328
    %v3426 = vunpack.c.l.b16 %v2732
    %v3427 = vunpack.c.h.b16 %v2732
    %v3428 = vunpack.c.l.b16 %v2733
    %v3429 = vunpack.c.h.b16 %v2733
    %v3430 = vunpack.c.l.b16 %v2734
    %v3431 = vunpack.c.h.b16 %v2734
    %v3432 = vunpack.c.l.b16 %v2735
    %v3433 = vunpack.c.h.b16 %v2735
    %v3434 = vunpack.c.l.b16 %v2736
    %v3435 = vunpack.c.h.b16 %v2736
    %v3436 = vunpack.c.l.b16 %v2737
    %v3437 = vunpack.c.h.b16 %v2737
    %v3438 = vunpack.c.l.b16 %v2738
    %v3439 = vunpack.c.h.b16 %v2738
    %v3440 = vunpack.c.l.b16 %v2739
    %v3441 = vunpack.c.h.b16 %v2739
    %v3442 = vunpack.c.l.b16 %v2740
    %v3443 = vunpack.c.h.b16 %v2740
    %v3444 = vunpack.c.l.b16 %v2741
    %v3445 = vunpack.c.h.b16 %v2741
    %v3446 = vunpack.c.l.b16 %v2742
    %v3447 = vunpack.c.h.b16 %v2742
    %v3448 = vunpack.c.l.b16 %v2743
    %v3449 = vunpack.c.h.b16 %v2743
    %v3450 = vunpack.c.l.b16 %v2744
    %v3451 = vunpack.c.h.b16 %v2744
    %v3452 = vunpack.c.l.b16 %v2745
    %v3453 = vunpack.c.h.b16 %v2745
    %v3454 = vunpack.c.l.b16 %v2746
    %v3455 = vunpack.c.h.b16 %v2746
    %v3456 = vunpack.c.l.b16 %v2747
    %v3457 = vunpack.c.h.b16 %v2747
    %v3458 = vunpack.c.l.b16 %v2748
    %v3459 = vunpack.c.h.b16 %v2748
    %v3460 = vunpack.c.l.b16 %v2749
    %v3461 = vunpack.c.h.b16 %v2749
    %v3462 = vunpack.c.l.b16 %v2750
    %v3463 = vunpack.c.h.b16 %v2750
    %v3464 = vunpack.c.l.b16 %v2751
    %v3465 = vunpack.c.h.b16 %v2751
    %v3466 = vunpack.c.l.b16 %v2752
    %v3467 = vunpack.c.h.b16 %v2752
    %v3468 = vunpack.c.l.b16 %v2753
    %v3469 = vunpack.c.h.b16 %v2753
    %v3470 = vunpack.c.l.b16 %v2754
    %v3471 = vunpack.c.h.b16 %v2754
    %v3472 = vunpack.c.l.b16 %v2755
    %v3473 = vunpack.c.h.b16 %v2755
    %v3474 = vunpack.c.l.b16 %v2756
    %v3475 = vunpack.c.h.b16 %v2756
    %v3476 = vunpack.c.l.b16 %v2757
    %v3477 = vunpack.c.h.b16 %v2757
    %v3478 = vunpack.c.l.b16 %v2758
    %v3479 = vunpack.c.h.b16 %v2758
    %v3480 = vunpack.c.l.b16 %v2759
    %v3481 = vunpack.c.h.b16 %v2759
    %v3482 = vunpack.c.l.b16 %v2760
    %v3483 = vunpack.c.h.b16 %v2760
    %v3484 = vunpack.c.l.b16 %v2761
    %v3485 = vunpack.c.h.b16 %v2761
    %v3486 = vunpack.c.l.b16 %v2762
    %v3487 = vunpack.c.h.b16 %v2762
    %v3488 = vunpack.c.l.b16 %v2763
    %v3489 = vunpack.c.h.b16 %v2763
    %v3490 = vpack.c.b16 %v3434, %v3426
    %v3491 = vpack.c.b16 %v3435, %v3427
    %v3492 = vpack.c.b16 %v3436, %v3428
    %v3493 = vpack.c.b16 %v3437, %v3429
    %v3494 = vpack.c.b16 %v3438, %v3430
    %v3495 = vpack.c.b16 %v3439, %v3431
    %v3496 = vpack.c.b16 %v3440, %v3432
    %v3497 = vpack.c.b16 %v3441, %v3433
    %v3498 = vpack.c.b16 %v3450, %v3442
    %v3499 = vpack.c.b16 %v3451, %v3443
    %v3500 = vpack.c.b16 %v3452, %v3444
    %v3501 = vpack.c.b16 %v3453, %v3445
    %v3502 = vpack.c.b16 %v3454, %v3446
    %v3503 = vpack.c.b16 %v3455, %v3447
    %v3504 = vpack.c.b16 %v3456, %v3448
    %v3505 = vpack.c.b16 %v3457, %v3449
    %v3506 = vpack.c.b16 %v3466, %v3458
    %v3507 = vpack.c.b16 %v3467, %v3459
    %v3508 = vpack.c.b16 %v3468, %v3460
    %v3509 = vpack.c.b16 %v3469, %v3461
    %v3510 = vpack.c.b16 %v3470, %v3462
    %v3511 = vpack.c.b16 %v3471, %v3463
    %v3512 = vpack.c.b16 %v3472, %v3464
    %v3513 = vpack.c.b16 %v3473, %v3465
    %v3514 = vpack.c.b16 %v3482, %v3474
    %v3515 = vpack.c.b16 %v3483, %v3475
    %v3516 = vpack.c.b16 %v3484, %v3476
    %v3517 = vpack.c.b16 %v3485, %v3477
    %v3518 = vpack.c.b16 %v3486, %v3478
    %v3519 = vpack.c.b16 %v3487, %v3479
    %v3520 = vpack.c.b16 %v3488, %v3480
    %v3521 = vpack.c.b16 %v3489, %v3481
    %3554 = vmatprep.subr.bf16.mxu0 0
    %3555 = vmatpush1.bf16.msra.mxu0 0
    %3556 = vmatprep.subr.bf16.mxu0 0
    %3557 = vmatpush1.bf16.msra.mxu0 0
    %3558 = vmatprep.subr.bf16.mxu0 0
    %3559 = vmatpush1.bf16.msra.mxu0 0
    %3560 = vmatprep.subr.bf16.mxu0 0
    %3561 = vmatpush1.bf16.msra.mxu0 0
    %3562 = vmatprep.subr.bf16.mxu0 %v3515
    %3563 = vmatpush1.bf16.msra.mxu0 %v3514
    %3564 = vmatprep.subr.bf16.mxu0 %v3507
    %3565 = vmatpush1.bf16.msra.mxu0 %v3506
    %3566 = vmatprep.subr.bf16.mxu0 %v3499
    %3567 = vmatpush1.bf16.msra.mxu0 %v3498
    %3568 = vmatprep.subr.bf16.mxu0 %v3491
    %3569 = vmatpush1.bf16.msra.mxu0 %v3490
    %3570 = vmatprep.subr.bf16.mxu0 0
    %3571 = vmatpush2.bf16.msra.mxu0 0
    %3572 = vmatprep.subr.bf16.mxu0 0
    %3573 = vmatpush2.bf16.msra.mxu0 0
    %3574 = vmatprep.subr.bf16.mxu0 0
    %3575 = vmatpush2.bf16.msra.mxu0 0
    %3576 = vmatprep.subr.bf16.mxu0 0
    %3577 = vmatpush2.bf16.msra.mxu0 0
    %3578 = vmatprep.subr.bf16.mxu0 0
    %3579 = vmatpush2.bf16.msra.mxu0 0
    %3580 = vmatprep.subr.bf16.mxu0 0
    %3581 = vmatpush2.bf16.msra.mxu0 0
    %3582 = vmatprep.subr.bf16.mxu0 0
    %3583 = vmatpush2.bf16.msra.mxu0 0
    %3584 = vmatprep.subr.bf16.mxu0 0
    %3585 = vmatpush2.bf16.msra.mxu0 0
    %3586 = vmatprep.mubr.bf16.mxu0 0
    %3587 = vmatmul.mubr.bf16.gmra.mxu0 %v756
    %v3588 = vpop.f32.mrf.mxu0
    %v3589 = vadd.f32 0.0, %v3588
    %v3590 = vpop.f32.mrf.mxu0
    %v3591 = vadd.f32 0.0, %v3590
    %v3592 = vpop.f32.mrf.mxu0
    %v3593 = vpop.f32.mrf.mxu0
    %3594 = vdwg.mxu0
    %3595 = vmatprep.subr.bf16.mxu0 0
    %3596 = vmatpush1.bf16.msra.mxu0 0
    %3597 = vmatprep.subr.bf16.mxu0 0
    %3598 = vmatpush1.bf16.msra.mxu0 0
    %3599 = vmatprep.subr.bf16.mxu0 0
    %3600 = vmatpush1.bf16.msra.mxu0 0
    %3601 = vmatprep.subr.bf16.mxu0 0
    %3602 = vmatpush1.bf16.msra.mxu0 0
    %3603 = vmatprep.subr.bf16.mxu0 %v3517
    %3604 = vmatpush1.bf16.msra.mxu0 %v3516
    %3605 = vmatprep.subr.bf16.mxu0 %v3509
    %3606 = vmatpush1.bf16.msra.mxu0 %v3508
    %3607 = vmatprep.subr.bf16.mxu0 %v3501
    %3608 = vmatpush1.bf16.msra.mxu0 %v3500
    %3609 = vmatprep.subr.bf16.mxu0 %v3493
    %3610 = vmatpush1.bf16.msra.mxu0 %v3492
    %3611 = vmatprep.subr.bf16.mxu0 0
    %3612 = vmatpush2.bf16.msra.mxu0 0
    %3613 = vmatprep.subr.bf16.mxu0 0
    %3614 = vmatpush2.bf16.msra.mxu0 0
    %3615 = vmatprep.subr.bf16.mxu0 0
    %3616 = vmatpush2.bf16.msra.mxu0 0
    %3617 = vmatprep.subr.bf16.mxu0 0
    %3618 = vmatpush2.bf16.msra.mxu0 0
    %3619 = vmatprep.subr.bf16.mxu0 0
    %3620 = vmatpush2.bf16.msra.mxu0 0
    %3621 = vmatprep.subr.bf16.mxu0 0
    %3622 = vmatpush2.bf16.msra.mxu0 0
    %3623 = vmatprep.subr.bf16.mxu0 0
    %3624 = vmatpush2.bf16.msra.mxu0 0
    %3625 = vmatprep.subr.bf16.mxu0 0
    %3626 = vmatpush2.bf16.msra.mxu0 0
    %3627 = vmatprep.mubr.bf16.mxu0 0
    %3628 = vmatmul.mubr.bf16.gmra.mxu0 %v756
    %v3629 = vpop.f32.mrf.mxu0
    %v3630 = vadd.f32 0.0, %v3629
    %v3631 = vpop.f32.mrf.mxu0
    %v3632 = vadd.f32 0.0, %v3631
    %v3633 = vpop.f32.mrf.mxu0
    %v3634 = vpop.f32.mrf.mxu0
    %3635 = vdwg.mxu0
    %3636 = vmatprep.subr.bf16.mxu0 0
    %3637 = vmatpush1.bf16.msra.mxu0 0
    %3638 = vmatprep.subr.bf16.mxu0 0
    %3639 = vmatpush1.bf16.msra.mxu0 0
    %3640 = vmatprep.subr.bf16.mxu0 0
    %3641 = vmatpush1.bf16.msra.mxu0 0
    %3642 = vmatprep.subr.bf16.mxu0 0
    %3643 = vmatpush1.bf16.msra.mxu0 0
    %3644 = vmatprep.subr.bf16.mxu0 %v3519
    %3645 = vmatpush1.bf16.msra.mxu0 %v3518
    %3646 = vmatprep.subr.bf16.mxu0 %v3511
    %3647 = vmatpush1.bf16.msra.mxu0 %v3510
    %3648 = vmatprep.subr.bf16.mxu0 %v3503
    %3649 = vmatpush1.bf16.msra.mxu0 %v3502
    %3650 = vmatprep.subr.bf16.mxu0 %v3495
    %3651 = vmatpush1.bf16.msra.mxu0 %v3494
    %3652 = vmatprep.subr.bf16.mxu0 0
    %3653 = vmatpush2.bf16.msra.mxu0 0
    %3654 = vmatprep.subr.bf16.mxu0 0
    %3655 = vmatpush2.bf16.msra.mxu0 0
    %3656 = vmatprep.subr.bf16.mxu0 0
    %3657 = vmatpush2.bf16.msra.mxu0 0
    %3658 = vmatprep.subr.bf16.mxu0 0
    %3659 = vmatpush2.bf16.msra.mxu0 0
    %3660 = vmatprep.subr.bf16.mxu0 0
    %3661 = vmatpush2.bf16.msra.mxu0 0
    %3662 = vmatprep.subr.bf16.mxu0 0
    %3663 = vmatpush2.bf16.msra.mxu0 0
    %3664 = vmatprep.subr.bf16.mxu0 0
    %3665 = vmatpush2.bf16.msra.mxu0 0
    %3666 = vmatprep.subr.bf16.mxu0 0
    %3667 = vmatpush2.bf16.msra.mxu0 0
    %3668 = vmatprep.mubr.bf16.mxu0 0
    %3669 = vmatmul.mubr.bf16.gmra.mxu0 %v756
    %v3670 = vpop.f32.mrf.mxu0
    %v3671 = vadd.f32 0.0, %v3670
    %v3672 = vpop.f32.mrf.mxu0
    %v3673 = vadd.f32 0.0, %v3672
    %v3674 = vpop.f32.mrf.mxu0
    %v3675 = vpop.f32.mrf.mxu0
    %3676 = vdwg.mxu0
    %3677 = vmatprep.subr.bf16.mxu0 0
    %3678 = vmatpush1.bf16.msra.mxu0 0
    %3679 = vmatprep.subr.bf16.mxu0 0
    %3680 = vmatpush1.bf16.msra.mxu0 0
    %3681 = vmatprep.subr.bf16.mxu0 0
    %3682 = vmatpush1.bf16.msra.mxu0 0
    %3683 = vmatprep.subr.bf16.mxu0 0
    %3684 = vmatpush1.bf16.msra.mxu0 0
    %3685 = vmatprep.subr.bf16.mxu0 %v3521
    %3686 = vmatpush1.bf16.msra.mxu0 %v3520
    %3687 = vmatprep.subr.bf16.mxu0 %v3513
    %3688 = vmatpush1.bf16.msra.mxu0 %v3512
    %3689 = vmatprep.subr.bf16.mxu0 %v3505
    %3690 = vmatpush1.bf16.msra.mxu0 %v3504
    %3691 = vmatprep.subr.bf16.mxu0 %v3497
    %3692 = vmatpush1.bf16.msra.mxu0 %v3496
    %3693 = vmatprep.subr.bf16.mxu0 0
    %3694 = vmatpush2.bf16.msra.mxu0 0
    %3695 = vmatprep.subr.bf16.mxu0 0
    %3696 = vmatpush2.bf16.msra.mxu0 0
    %3697 = vmatprep.subr.bf16.mxu0 0
    %3698 = vmatpush2.bf16.msra.mxu0 0
    %3699 = vmatprep.subr.bf16.mxu0 0
    %3700 = vmatpush2.bf16.msra.mxu0 0
    %3701 = vmatprep.subr.bf16.mxu0 0
    %3702 = vmatpush2.bf16.msra.mxu0 0
    %3703 = vmatprep.subr.bf16.mxu0 0
    %3704 = vmatpush2.bf16.msra.mxu0 0
    %3705 = vmatprep.subr.bf16.mxu0 0
    %3706 = vmatpush2.bf16.msra.mxu0 0
    %3707 = vmatprep.subr.bf16.mxu0 0
    %3708 = vmatpush2.bf16.msra.mxu0 0
    %3709 = vmatprep.mubr.bf16.mxu0 0
    %3710 = vmatmul.mubr.bf16.gmra.mxu0 %v756
    %v3711 = vpop.f32.mrf.mxu0
    %v3712 = vadd.f32 0.0, %v3711
    %v3713 = vpop.f32.mrf.mxu0
    %v3714 = vadd.f32 0.0, %v3713
    %v3715 = vpop.f32.mrf.mxu0
    %v3716 = vpop.f32.mrf.mxu0
    %3717 = vdwg.mxu0
    %v3718 = vld [vmem:[%s924] sm:$0xff]
    %v3719 = vld [vmem:[%s924 + $0x8] sm:$0xff]
    %v3720 = vld [vmem:[%s924 + $0x10] sm:$0xff]
    %v3721 = vld [vmem:[%s924 + $0x18] sm:$0xff]
    %v3722 = vadd.f32 %v3718, %v3589
    %v3723 = vadd.f32 %v3719, %v3591
    %v3724 = vadd.f32 %v3720, %v3630
    %v3725 = vadd.f32 %v3721, %v3632
    %v3726 = vld [vmem:[%s935 + $0x20] sm:$0xff]
    %v3727 = vld [vmem:[%s935 + $0x28] sm:$0xff]
    %v3728 = vld [vmem:[%s935 + $0x30] sm:$0xff]
    %v3729 = vld [vmem:[%s935 + $0x38] sm:$0xff]
    %v3730 = vadd.f32 %v3726, %v3671
    %v3731 = vadd.f32 %v3727, %v3673
    %v3732 = vadd.f32 %v3728, %v3712
    %v3733 = vadd.f32 %v3729, %v3714
    %v3734 = vxor.u32 %v3722, 2147483648
    %v3735 = vxor.u32 %v3723, 2147483648
    %v3736 = vxor.u32 %v3724, 2147483648
    %v3737 = vmul.f32 %v3734, 1.442695
    %v3738 = vpow.pop %v3737
    %v3739 = vmul.f32 %v3735, 1.442695
    %v3740 = vpow.pop %v3739
    %v3741 = vmul.f32 %v3736, 1.442695
    %v3742 = vpow.pop %v3741
    %v3743 = vadd.f32 %v3738, 1.0
    %v3744 = vadd.f32 %v3740, 1.0
    %v3745 = vadd.f32 %v3742, 1.0
    %v3746 = vrcp.pop %v3743
    %v3747 = vmul.f32 1.0, %v3746
    %v3748 = vrcp.pop %v3744
    %v3749 = vmul.f32 1.0, %v3748
    %v3750 = vrcp.pop %v3745
    %v3751 = vmul.f32 1.0, %v3750
    %v3752 = vtanh.pop %v3725
    %v3753 = vmul.f32 %v3749, 0.0
    %v3754 = vmul.f32 %v3747, %v3752
    %v3755 = vadd.f32 %v3753, %v3754
    %v3756 = vtanh.pop %v3755
    %v3757 = vmul.f32 %v3751, %v3756
    %v3758 = vxor.u32 %v3730, 2147483648
    %v3759 = vxor.u32 %v3731, 2147483648
    %v3760 = vxor.u32 %v3732, 2147483648
    %v3761 = vmul.f32 %v3758, 1.442695
    %v3762 = vpow.pop %v3761
    %v3763 = vmul.f32 %v3759, 1.442695
    %v3764 = vpow.pop %v3763
    %v3765 = vmul.f32 %v3760, 1.442695
    %v3766 = vpow.pop %v3765
    %v3767 = vadd.f32 %v3762, 1.0
    %v3768 = vadd.f32 %v3764, 1.0
    %v3769 = vadd.f32 %v3766, 1.0
    %v3770 = vrcp.pop %v3767
    %v3771 = vmul.f32 1.0, %v3770
    %v3772 = vrcp.pop %v3768
    %v3773 = vmul.f32 1.0, %v3772
    %v3774 = vrcp.pop %v3769
    %v3775 = vmul.f32 1.0, %v3774
    %v3776 = vtanh.pop %v3733
    %v3777 = vmul.f32 %v3773, 0.0
    %v3778 = vmul.f32 %v3771, %v3776
    %v3779 = vadd.f32 %v3777, %v3778
    %v3780 = vtanh.pop %v3779
    %v3781 = vmul.f32 %v3775, %v3780
    %3782 = vst.msk [vmem:[#allocation3] sm:$0xff] %vm992, %v3757
    %3783 = vst.msk [vmem:[%s994] sm:$0xff] %vm992, %v3781
    %3785 = vrot.lane.b32.xlu0 %v3781, 32
    %v3786 = vpop.permute.xlu0 %3785
    %v3788 = vsel %vm992, %v3757, %v3786
    %v3789 = vpack.c.bf16 %v3788, %v3788
    %v3791 = vsel %vm754, %v3789, 0
    %3793 = vmatprep.subr.bf16.mxu0 0
    %3794 = vmatpush1.bf16.msra.mxu0 0
    %3795 = vmatprep.subr.bf16.mxu0 0
    %3796 = vmatpush1.bf16.msra.mxu0 0
    %3797 = vmatprep.subr.bf16.mxu0 0
    %3798 = vmatpush1.bf16.msra.mxu0 0
    %3799 = vmatprep.subr.bf16.mxu0 0
    %3800 = vmatpush1.bf16.msra.mxu0 0
    %3801 = vmatprep.subr.bf16.mxu0 %v3515
    %3802 = vmatpush1.bf16.msra.mxu0 %v3514
    %3803 = vmatprep.subr.bf16.mxu0 %v3507
    %3804 = vmatpush1.bf16.msra.mxu0 %v3506
    %3805 = vmatprep.subr.bf16.mxu0 %v3499
    %3806 = vmatpush1.bf16.msra.mxu0 %v3498
    %3807 = vmatprep.subr.bf16.mxu0 %v3491
    %3808 = vmatpush1.bf16.msra.mxu0 %v3490
    %3809 = vmatprep.subr.bf16.mxu0 0
    %3810 = vmatpush2.bf16.msra.mxu0 0
    %3811 = vmatprep.subr.bf16.mxu0 0
    %3812 = vmatpush2.bf16.msra.mxu0 0
    %3813 = vmatprep.subr.bf16.mxu0 0
    %3814 = vmatpush2.bf16.msra.mxu0 0
    %3815 = vmatprep.subr.bf16.mxu0 0
    %3816 = vmatpush2.bf16.msra.mxu0 0
    %3817 = vmatprep.subr.bf16.mxu0 0
    %3818 = vmatpush2.bf16.msra.mxu0 0
    %3819 = vmatprep.subr.bf16.mxu0 0
    %3820 = vmatpush2.bf16.msra.mxu0 0
    %3821 = vmatprep.subr.bf16.mxu0 0
    %3822 = vmatpush2.bf16.msra.mxu0 0
    %3823 = vmatprep.subr.bf16.mxu0 0
    %3824 = vmatpush2.bf16.msra.mxu0 0
    %3825 = vmatprep.mubr.bf16.mxu0 0
    %3826 = vmatmul.mubr.bf16.gmra.mxu0 %v3791
    %v3827 = vpop.f32.mrf.mxu0
    %v3828 = vadd.f32 0.0, %v3827
    %v3829 = vpop.f32.mrf.mxu0
    %v3830 = vadd.f32 0.0, %v3829
    %v3831 = vpop.f32.mrf.mxu0
    %v3832 = vpop.f32.mrf.mxu0
    %3833 = vdwg.mxu0
    %3834 = vmatprep.subr.bf16.mxu0 0
    %3835 = vmatpush1.bf16.msra.mxu0 0
    %3836 = vmatprep.subr.bf16.mxu0 0
    %3837 = vmatpush1.bf16.msra.mxu0 0
    %3838 = vmatprep.subr.bf16.mxu0 0
    %3839 = vmatpush1.bf16.msra.mxu0 0
    %3840 = vmatprep.subr.bf16.mxu0 0
    %3841 = vmatpush1.bf16.msra.mxu0 0
    %3842 = vmatprep.subr.bf16.mxu0 %v3517
    %3843 = vmatpush1.bf16.msra.mxu0 %v3516
    %3844 = vmatprep.subr.bf16.mxu0 %v3509
    %3845 = vmatpush1.bf16.msra.mxu0 %v3508
    %3846 = vmatprep.subr.bf16.mxu0 %v3501
    %3847 = vmatpush1.bf16.msra.mxu0 %v3500
    %3848 = vmatprep.subr.bf16.mxu0 %v3493
    %3849 = vmatpush1.bf16.msra.mxu0 %v3492
    %3850 = vmatprep.subr.bf16.mxu0 0
    %3851 = vmatpush2.bf16.msra.mxu0 0
    %3852 = vmatprep.subr.bf16.mxu0 0
    %3853 = vmatpush2.bf16.msra.mxu0 0
    %3854 = vmatprep.subr.bf16.mxu0 0
    %3855 = vmatpush2.bf16.msra.mxu0 0
    %3856 = vmatprep.subr.bf16.mxu0 0
    %3857 = vmatpush2.bf16.msra.mxu0 0
    %3858 = vmatprep.subr.bf16.mxu0 0
    %3859 = vmatpush2.bf16.msra.mxu0 0
    %3860 = vmatprep.subr.bf16.mxu0 0
    %3861 = vmatpush2.bf16.msra.mxu0 0
    %3862 = vmatprep.subr.bf16.mxu0 0
    %3863 = vmatpush2.bf16.msra.mxu0 0
    %3864 = vmatprep.subr.bf16.mxu0 0
    %3865 = vmatpush2.bf16.msra.mxu0 0
    %3866 = vmatprep.mubr.bf16.mxu0 0
    %3867 = vmatmul.mubr.bf16.gmra.mxu0 %v3791
    %v3868 = vpop.f32.mrf.mxu0
    %v3869 = vadd.f32 0.0, %v3868
    %v3870 = vpop.f32.mrf.mxu0
    %v3871 = vadd.f32 0.0, %v3870
    %v3872 = vpop.f32.mrf.mxu0
    %v3873 = vpop.f32.mrf.mxu0
    %3874 = vdwg.mxu0
    %3875 = vmatprep.subr.bf16.mxu0 0
    %3876 = vmatpush1.bf16.msra.mxu0 0
    %3877 = vmatprep.subr.bf16.mxu0 0
    %3878 = vmatpush1.bf16.msra.mxu0 0
    %3879 = vmatprep.subr.bf16.mxu0 0
    %3880 = vmatpush1.bf16.msra.mxu0 0
    %3881 = vmatprep.subr.bf16.mxu0 0
    %3882 = vmatpush1.bf16.msra.mxu0 0
    %3883 = vmatprep.subr.bf16.mxu0 %v3519
    %3884 = vmatpush1.bf16.msra.mxu0 %v3518
    %3885 = vmatprep.subr.bf16.mxu0 %v3511
    %3886 = vmatpush1.bf16.msra.mxu0 %v3510
    %3887 = vmatprep.subr.bf16.mxu0 %v3503
    %3888 = vmatpush1.bf16.msra.mxu0 %v3502
    %3889 = vmatprep.subr.bf16.mxu0 %v3495
    %3890 = vmatpush1.bf16.msra.mxu0 %v3494
    %3891 = vmatprep.subr.bf16.mxu0 0
    %3892 = vmatpush2.bf16.msra.mxu0 0
    %3893 = vmatprep.subr.bf16.mxu0 0
    %3894 = vmatpush2.bf16.msra.mxu0 0
    %3895 = vmatprep.subr.bf16.mxu0 0
    %3896 = vmatpush2.bf16.msra.mxu0 0
    %3897 = vmatprep.subr.bf16.mxu0 0
    %3898 = vmatpush2.bf16.msra.mxu0 0
    %3899 = vmatprep.subr.bf16.mxu0 0
    %3900 = vmatpush2.bf16.msra.mxu0 0
    %3901 = vmatprep.subr.bf16.mxu0 0
    %3902 = vmatpush2.bf16.msra.mxu0 0
    %3903 = vmatprep.subr.bf16.mxu0 0
    %3904 = vmatpush2.bf16.msra.mxu0 0
    %3905 = vmatprep.subr.bf16.mxu0 0
    %3906 = vmatpush2.bf16.msra.mxu0 0
    %3907 = vmatprep.mubr.bf16.mxu0 0
    %3908 = vmatmul.mubr.bf16.gmra.mxu0 %v3791
    %v3909 = vpop.f32.mrf.mxu0
    %v3910 = vadd.f32 0.0, %v3909
    %v3911 = vpop.f32.mrf.mxu0
    %v3912 = vadd.f32 0.0, %v3911
    %v3913 = vpop.f32.mrf.mxu0
    %v3914 = vpop.f32.mrf.mxu0
    %3915 = vdwg.mxu0
    %3916 = vmatprep.subr.bf16.mxu0 0
    %3917 = vmatpush1.bf16.msra.mxu0 0
    %3918 = vmatprep.subr.bf16.mxu0 0
    %3919 = vmatpush1.bf16.msra.mxu0 0
    %3920 = vmatprep.subr.bf16.mxu0 0
    %3921 = vmatpush1.bf16.msra.mxu0 0
    %3922 = vmatprep.subr.bf16.mxu0 0
    %3923 = vmatpush1.bf16.msra.mxu0 0
    %3924 = vmatprep.subr.bf16.mxu0 %v3521
    %3925 = vmatpush1.bf16.msra.mxu0 %v3520
    %3926 = vmatprep.subr.bf16.mxu0 %v3513
    %3927 = vmatpush1.bf16.msra.mxu0 %v3512
    %3928 = vmatprep.subr.bf16.mxu0 %v3505
    %3929 = vmatpush1.bf16.msra.mxu0 %v3504
    %3930 = vmatprep.subr.bf16.mxu0 %v3497
    %3931 = vmatpush1.bf16.msra.mxu0 %v3496
    %3932 = vmatprep.subr.bf16.mxu0 0
    %3933 = vmatpush2.bf16.msra.mxu0 0
    %3934 = vmatprep.subr.bf16.mxu0 0
    %3935 = vmatpush2.bf16.msra.mxu0 0
    %3936 = vmatprep.subr.bf16.mxu0 0
    %3937 = vmatpush2.bf16.msra.mxu0 0
    %3938 = vmatprep.subr.bf16.mxu0 0
    %3939 = vmatpush2.bf16.msra.mxu0 0
    %3940 = vmatprep.subr.bf16.mxu0 0
    %3941 = vmatpush2.bf16.msra.mxu0 0
    %3942 = vmatprep.subr.bf16.mxu0 0
    %3943 = vmatpush2.bf16.msra.mxu0 0
    %3944 = vmatprep.subr.bf16.mxu0 0
    %3945 = vmatpush2.bf16.msra.mxu0 0
    %3946 = vmatprep.subr.bf16.mxu0 0
    %3947 = vmatpush2.bf16.msra.mxu0 0
    %3948 = vmatprep.mubr.bf16.mxu0 0
    %3949 = vmatmul.mubr.bf16.gmra.mxu0 %v3791
    %v3950 = vpop.f32.mrf.mxu0
    %v3951 = vadd.f32 0.0, %v3950
    %v3952 = vpop.f32.mrf.mxu0
    %v3953 = vadd.f32 0.0, %v3952
    %v3954 = vpop.f32.mrf.mxu0
    %v3955 = vpop.f32.mrf.mxu0
    %3956 = vdwg.mxu0
    %v3957 = vld [vmem:[%s1171] sm:$0xff]
    %v3958 = vld [vmem:[%s1171 + $0x8] sm:$0xff]
    %v3959 = vld [vmem:[%s1171 + $0x10] sm:$0xff]
    %v3960 = vld [vmem:[%s1171 + $0x18] sm:$0xff]
    %v3961 = vadd.f32 %v3957, %v3828
    %v3962 = vadd.f32 %v3958, %v3830
    %v3963 = vadd.f32 %v3959, %v3869
    %v3964 = vadd.f32 %v3960, %v3871
    %v3965 = vld [vmem:[%s1182 + $0x20] sm:$0xff]
    %v3966 = vld [vmem:[%s1182 + $0x28] sm:$0xff]
    %v3967 = vld [vmem:[%s1182 + $0x30] sm:$0xff]
    %v3968 = vld [vmem:[%s1182 + $0x38] sm:$0xff]
    %v3969 = vadd.f32 %v3965, %v3910
    %v3970 = vadd.f32 %v3966, %v3912
    %v3971 = vadd.f32 %v3967, %v3951
    %v3972 = vadd.f32 %v3968, %v3953
    %v3973 = vxor.u32 %v3961, 2147483648
    %v3974 = vxor.u32 %v3962, 2147483648
    %v3975 = vxor.u32 %v3963, 2147483648
    %v3976 = vmul.f32 %v3973, 1.442695
    %v3977 = vpow.pop %v3976
    %v3978 = vmul.f32 %v3974, 1.442695
    %v3979 = vpow.pop %v3978
    %v3980 = vmul.f32 %v3975, 1.442695
    %v3981 = vpow.pop %v3980
    %v3982 = vadd.f32 %v3977, 1.0
    %v3983 = vadd.f32 %v3979, 1.0
    %v3984 = vadd.f32 %v3981, 1.0
    %v3985 = vrcp.pop %v3982
    %v3986 = vmul.f32 1.0, %v3985
    %v3987 = vrcp.pop %v3983
    %v3988 = vmul.f32 1.0, %v3987
    %v3989 = vrcp.pop %v3984
    %v3990 = vmul.f32 1.0, %v3989
    %v3991 = vtanh.pop %v3964
    %v3992 = vmul.f32 %v3988, %v3755
    %v3993 = vmul.f32 %v3986, %v3991
    %v3994 = vadd.f32 %v3992, %v3993
    %v3995 = vtanh.pop %v3994
    %v3996 = vmul.f32 %v3990, %v3995
    %v3997 = vxor.u32 %v3969, 2147483648
    %v3998 = vxor.u32 %v3970, 2147483648
    %v3999 = vxor.u32 %v3971, 2147483648
    %v4000 = vmul.f32 %v3997, 1.442695
    %v4001 = vpow.pop %v4000
    %v4002 = vmul.f32 %v3998, 1.442695
    %v4003 = vpow.pop %v4002
    %v4004 = vmul.f32 %v3999, 1.442695
    %v4005 = vpow.pop %v4004
    %v4006 = vadd.f32 %v4001, 1.0
    %v4007 = vadd.f32 %v4003, 1.0
    %v4008 = vadd.f32 %v4005, 1.0
    %v4009 = vrcp.pop %v4006
    %v4010 = vmul.f32 1.0, %v4009
    %v4011 = vrcp.pop %v4007
    %v4012 = vmul.f32 1.0, %v4011
    %v4013 = vrcp.pop %v4008
    %v4014 = vmul.f32 1.0, %v4013
    %v4015 = vtanh.pop %v3972
    %v4016 = vmul.f32 %v4012, %v3779
    %v4017 = vmul.f32 %v4010, %v4015
    %v4018 = vadd.f32 %v4016, %v4017
    %v4019 = vtanh.pop %v4018
    %v4020 = vmul.f32 %v4014, %v4019
    %4021 = vst.msk [vmem:[%s1239] sm:$0xff] %vm992, %v3996
    %4022 = vst.msk [vmem:[%s1241] sm:$0xff] %vm992, %v4020
    %4024 = vrot.lane.b32.xlu0 %v4020, 32
    %v4025 = vpop.permute.xlu0 %4024
    %v4027 = vsel %vm992, %v3996, %v4025
    %v4028 = vpack.c.bf16 %v4027, %v4027
    %v4030 = vsel %vm754, %v4028, 0
    %4032 = vmatprep.subr.bf16.mxu0 0
    %4033 = vmatpush1.bf16.msra.mxu0 0
    %4034 = vmatprep.subr.bf16.mxu0 0
    %4035 = vmatpush1.bf16.msra.mxu0 0
    %4036 = vmatprep.subr.bf16.mxu0 0
    %4037 = vmatpush1.bf16.msra.mxu0 0
    %4038 = vmatprep.subr.bf16.mxu0 0
    %4039 = vmatpush1.bf16.msra.mxu0 0
    %4040 = vmatprep.subr.bf16.mxu0 %v3515
    %4041 = vmatpush1.bf16.msra.mxu0 %v3514
    %4042 = vmatprep.subr.bf16.mxu0 %v3507
    %4043 = vmatpush1.bf16.msra.mxu0 %v3506
    %4044 = vmatprep.subr.bf16.mxu0 %v3499
    %4045 = vmatpush1.bf16.msra.mxu0 %v3498
    %4046 = vmatprep.subr.bf16.mxu0 %v3491
    %4047 = vmatpush1.bf16.msra.mxu0 %v3490
    %4048 = vmatprep.subr.bf16.mxu0 0
    %4049 = vmatpush2.bf16.msra.mxu0 0
    %4050 = vmatprep.subr.bf16.mxu0 0
    %4051 = vmatpush2.bf16.msra.mxu0 0
    %4052 = vmatprep.subr.bf16.mxu0 0
    %4053 = vmatpush2.bf16.msra.mxu0 0
    %4054 = vmatprep.subr.bf16.mxu0 0
    %4055 = vmatpush2.bf16.msra.mxu0 0
    %4056 = vmatprep.subr.bf16.mxu0 0
    %4057 = vmatpush2.bf16.msra.mxu0 0
    %4058 = vmatprep.subr.bf16.mxu0 0
    %4059 = vmatpush2.bf16.msra.mxu0 0
    %4060 = vmatprep.subr.bf16.mxu0 0
    %4061 = vmatpush2.bf16.msra.mxu0 0
    %4062 = vmatprep.subr.bf16.mxu0 0
    %4063 = vmatpush2.bf16.msra.mxu0 0
    %4064 = vmatprep.mubr.bf16.mxu0 0
    %4065 = vmatmul.mubr.bf16.gmra.mxu0 %v4030
    %v4066 = vpop.f32.mrf.mxu0
    %v4067 = vadd.f32 0.0, %v4066
    %v4068 = vpop.f32.mrf.mxu0
    %v4069 = vadd.f32 0.0, %v4068
    %v4070 = vpop.f32.mrf.mxu0
    %v4071 = vpop.f32.mrf.mxu0
    %4072 = vdwg.mxu0
    %4073 = vmatprep.subr.bf16.mxu0 0
    %4074 = vmatpush1.bf16.msra.mxu0 0
    %4075 = vmatprep.subr.bf16.mxu0 0
    %4076 = vmatpush1.bf16.msra.mxu0 0
    %4077 = vmatprep.subr.bf16.mxu0 0
    %4078 = vmatpush1.bf16.msra.mxu0 0
    %4079 = vmatprep.subr.bf16.mxu0 0
    %4080 = vmatpush1.bf16.msra.mxu0 0
    %4081 = vmatprep.subr.bf16.mxu0 %v3517
    %4082 = vmatpush1.bf16.msra.mxu0 %v3516
    %4083 = vmatprep.subr.bf16.mxu0 %v3509
    %4084 = vmatpush1.bf16.msra.mxu0 %v3508
    %4085 = vmatprep.subr.bf16.mxu0 %v3501
    %4086 = vmatpush1.bf16.msra.mxu0 %v3500
    %4087 = vmatprep.subr.bf16.mxu0 %v3493
    %4088 = vmatpush1.bf16.msra.mxu0 %v3492
    %4089 = vmatprep.subr.bf16.mxu0 0
    %4090 = vmatpush2.bf16.msra.mxu0 0
    %4091 = vmatprep.subr.bf16.mxu0 0
    %4092 = vmatpush2.bf16.msra.mxu0 0
    %4093 = vmatprep.subr.bf16.mxu0 0
    %4094 = vmatpush2.bf16.msra.mxu0 0
    %4095 = vmatprep.subr.bf16.mxu0 0
    %4096 = vmatpush2.bf16.msra.mxu0 0
    %4097 = vmatprep.subr.bf16.mxu0 0
    %4098 = vmatpush2.bf16.msra.mxu0 0
    %4099 = vmatprep.subr.bf16.mxu0 0
    %4100 = vmatpush2.bf16.msra.mxu0 0
    %4101 = vmatprep.subr.bf16.mxu0 0
    %4102 = vmatpush2.bf16.msra.mxu0 0
    %4103 = vmatprep.subr.bf16.mxu0 0
    %4104 = vmatpush2.bf16.msra.mxu0 0
    %4105 = vmatprep.mubr.bf16.mxu0 0
    %4106 = vmatmul.mubr.bf16.gmra.mxu0 %v4030
    %v4107 = vpop.f32.mrf.mxu0
    %v4108 = vadd.f32 0.0, %v4107
    %v4109 = vpop.f32.mrf.mxu0
    %v4110 = vadd.f32 0.0, %v4109
    %v4111 = vpop.f32.mrf.mxu0
    %v4112 = vpop.f32.mrf.mxu0
    %4113 = vdwg.mxu0
    %4114 = vmatprep.subr.bf16.mxu0 0
    %4115 = vmatpush1.bf16.msra.mxu0 0
    %4116 = vmatprep.subr.bf16.mxu0 0
    %4117 = vmatpush1.bf16.msra.mxu0 0
    %4118 = vmatprep.subr.bf16.mxu0 0
    %4119 = vmatpush1.bf16.msra.mxu0 0
    %4120 = vmatprep.subr.bf16.mxu0 0
    %4121 = vmatpush1.bf16.msra.mxu0 0
    %4122 = vmatprep.subr.bf16.mxu0 %v3519
    %4123 = vmatpush1.bf16.msra.mxu0 %v3518
    %4124 = vmatprep.subr.bf16.mxu0 %v3511
    %4125 = vmatpush1.bf16.msra.mxu0 %v3510
    %4126 = vmatprep.subr.bf16.mxu0 %v3503
    %4127 = vmatpush1.bf16.msra.mxu0 %v3502
    %4128 = vmatprep.subr.bf16.mxu0 %v3495
    %4129 = vmatpush1.bf16.msra.mxu0 %v3494
    %4130 = vmatprep.subr.bf16.mxu0 0
    %4131 = vmatpush2.bf16.msra.mxu0 0
    %4132 = vmatprep.subr.bf16.mxu0 0
    %4133 = vmatpush2.bf16.msra.mxu0 0
    %4134 = vmatprep.subr.bf16.mxu0 0
    %4135 = vmatpush2.bf16.msra.mxu0 0
    %4136 = vmatprep.subr.bf16.mxu0 0
    %4137 = vmatpush2.bf16.msra.mxu0 0
    %4138 = vmatprep.subr.bf16.mxu0 0
    %4139 = vmatpush2.bf16.msra.mxu0 0
    %4140 = vmatprep.subr.bf16.mxu0 0
    %4141 = vmatpush2.bf16.msra.mxu0 0
    %4142 = vmatprep.subr.bf16.mxu0 0
    %4143 = vmatpush2.bf16.msra.mxu0 0
    %4144 = vmatprep.subr.bf16.mxu0 0
    %4145 = vmatpush2.bf16.msra.mxu0 0
    %4146 = vmatprep.mubr.bf16.mxu0 0
    %4147 = vmatmul.mubr.bf16.gmra.mxu0 %v4030
    %v4148 = vpop.f32.mrf.mxu0
    %v4149 = vadd.f32 0.0, %v4148
    %v4150 = vpop.f32.mrf.mxu0
    %v4151 = vadd.f32 0.0, %v4150
    %v4152 = vpop.f32.mrf.mxu0
    %v4153 = vpop.f32.mrf.mxu0
    %4154 = vdwg.mxu0
    %4155 = vmatprep.subr.bf16.mxu0 0
    %4156 = vmatpush1.bf16.msra.mxu0 0
    %4157 = vmatprep.subr.bf16.mxu0 0
    %4158 = vmatpush1.bf16.msra.mxu0 0
    %4159 = vmatprep.subr.bf16.mxu0 0
    %4160 = vmatpush1.bf16.msra.mxu0 0
    %4161 = vmatprep.subr.bf16.mxu0 0
    %4162 = vmatpush1.bf16.msra.mxu0 0
    %4163 = vmatprep.subr.bf16.mxu0 %v3521
    %4164 = vmatpush1.bf16.msra.mxu0 %v3520
    %4165 = vmatprep.subr.bf16.mxu0 %v3513
    %4166 = vmatpush1.bf16.msra.mxu0 %v3512
    %4167 = vmatprep.subr.bf16.mxu0 %v3505
    %4168 = vmatpush1.bf16.msra.mxu0 %v3504
    %4169 = vmatprep.subr.bf16.mxu0 %v3497
    %4170 = vmatpush1.bf16.msra.mxu0 %v3496
    %4171 = vmatprep.subr.bf16.mxu0 0
    %4172 = vmatpush2.bf16.msra.mxu0 0
    %4173 = vmatprep.subr.bf16.mxu0 0
    %4174 = vmatpush2.bf16.msra.mxu0 0
    %4175 = vmatprep.subr.bf16.mxu0 0
    %4176 = vmatpush2.bf16.msra.mxu0 0
    %4177 = vmatprep.subr.bf16.mxu0 0
    %4178 = vmatpush2.bf16.msra.mxu0 0
    %4179 = vmatprep.subr.bf16.mxu0 0
    %4180 = vmatpush2.bf16.msra.mxu0 0
    %4181 = vmatprep.subr.bf16.mxu0 0
    %4182 = vmatpush2.bf16.msra.mxu0 0
    %4183 = vmatprep.subr.bf16.mxu0 0
    %4184 = vmatpush2.bf16.msra.mxu0 0
    %4185 = vmatprep.subr.bf16.mxu0 0
    %4186 = vmatpush2.bf16.msra.mxu0 0
    %4187 = vmatprep.mubr.bf16.mxu0 0
    %4188 = vmatmul.mubr.bf16.gmra.mxu0 %v4030
    %v4189 = vpop.f32.mrf.mxu0
    %v4190 = vadd.f32 0.0, %v4189
    %v4191 = vpop.f32.mrf.mxu0
    %v4192 = vadd.f32 0.0, %v4191
    %v4193 = vpop.f32.mrf.mxu0
    %v4194 = vpop.f32.mrf.mxu0
    %4195 = vdwg.mxu0
    %v4196 = vld [vmem:[%s1418] sm:$0xff]
    %v4197 = vld [vmem:[%s1418 + $0x8] sm:$0xff]
    %v4198 = vld [vmem:[%s1418 + $0x10] sm:$0xff]
    %v4199 = vld [vmem:[%s1418 + $0x18] sm:$0xff]
    %v4200 = vadd.f32 %v4196, %v4067
    %v4201 = vadd.f32 %v4197, %v4069
    %v4202 = vadd.f32 %v4198, %v4108
    %v4203 = vadd.f32 %v4199, %v4110
    %v4204 = vld [vmem:[%s1429 + $0x20] sm:$0xff]
    %v4205 = vld [vmem:[%s1429 + $0x28] sm:$0xff]
    %v4206 = vld [vmem:[%s1429 + $0x30] sm:$0xff]
    %v4207 = vld [vmem:[%s1429 + $0x38] sm:$0xff]
    %v4208 = vadd.f32 %v4204, %v4149
    %v4209 = vadd.f32 %v4205, %v4151
    %v4210 = vadd.f32 %v4206, %v4190
    %v4211 = vadd.f32 %v4207, %v4192
    %v4212 = vxor.u32 %v4200, 2147483648
    %v4213 = vxor.u32 %v4201, 2147483648
    %v4214 = vxor.u32 %v4202, 2147483648
    %v4215 = vmul.f32 %v4212, 1.442695
    %v4216 = vpow.pop %v4215
    %v4217 = vmul.f32 %v4213, 1.442695
    %v4218 = vpow.pop %v4217
    %v4219 = vmul.f32 %v4214, 1.442695
    %v4220 = vpow.pop %v4219
    %v4221 = vadd.f32 %v4216, 1.0
    %v4222 = vadd.f32 %v4218, 1.0
    %v4223 = vadd.f32 %v4220, 1.0
    %v4224 = vrcp.pop %v4221
    %v4225 = vmul.f32 1.0, %v4224
    %v4226 = vrcp.pop %v4222
    %v4227 = vmul.f32 1.0, %v4226
    %v4228 = vrcp.pop %v4223
    %v4229 = vmul.f32 1.0, %v4228
    %v4230 = vtanh.pop %v4203
    %v4231 = vmul.f32 %v4227, %v3994
    %v4232 = vmul.f32 %v4225, %v4230
    %v4233 = vadd.f32 %v4231, %v4232
    %v4234 = vtanh.pop %v4233
    %v4235 = vmul.f32 %v4229, %v4234
    %v4236 = vxor.u32 %v4208, 2147483648
    %v4237 = vxor.u32 %v4209, 2147483648
    %v4238 = vxor.u32 %v4210, 2147483648
    %v4239 = vmul.f32 %v4236, 1.442695
    %v4240 = vpow.pop %v4239
    %v4241 = vmul.f32 %v4237, 1.442695
    %v4242 = vpow.pop %v4241
    %v4243 = vmul.f32 %v4238, 1.442695
    %v4244 = vpow.pop %v4243
    %v4245 = vadd.f32 %v4240, 1.0
    %v4246 = vadd.f32 %v4242, 1.0
    %v4247 = vadd.f32 %v4244, 1.0
    %v4248 = vrcp.pop %v4245
    %v4249 = vmul.f32 1.0, %v4248
    %v4250 = vrcp.pop %v4246
    %v4251 = vmul.f32 1.0, %v4250
    %v4252 = vrcp.pop %v4247
    %v4253 = vmul.f32 1.0, %v4252
    %v4254 = vtanh.pop %v4211
    %v4255 = vmul.f32 %v4251, %v4018
    %v4256 = vmul.f32 %v4249, %v4254
    %v4257 = vadd.f32 %v4255, %v4256
    %v4258 = vtanh.pop %v4257
    %v4259 = vmul.f32 %v4253, %v4258
    %4260 = vst.msk [vmem:[%s1486] sm:$0xff] %vm992, %v4235
    %4261 = vst.msk [vmem:[%s1488] sm:$0xff] %vm992, %v4259
    %4263 = vrot.lane.b32.xlu0 %v4259, 32
    %v4264 = vpop.permute.xlu0 %4263
    %v4266 = vsel %vm992, %v4235, %v4264
    %v4267 = vpack.c.bf16 %v4266, %v4266
    %v4269 = vsel %vm754, %v4267, 0
    %4271 = vmatprep.subr.bf16.mxu0 0
    %4272 = vmatpush1.bf16.msra.mxu0 0
    %4273 = vmatprep.subr.bf16.mxu0 0
    %4274 = vmatpush1.bf16.msra.mxu0 0
    %4275 = vmatprep.subr.bf16.mxu0 0
    %4276 = vmatpush1.bf16.msra.mxu0 0
    %4277 = vmatprep.subr.bf16.mxu0 0
    %4278 = vmatpush1.bf16.msra.mxu0 0
    %4279 = vmatprep.subr.bf16.mxu0 %v3515
    %4280 = vmatpush1.bf16.msra.mxu0 %v3514
    %4281 = vmatprep.subr.bf16.mxu0 %v3507
    %4282 = vmatpush1.bf16.msra.mxu0 %v3506
    %4283 = vmatprep.subr.bf16.mxu0 %v3499
    %4284 = vmatpush1.bf16.msra.mxu0 %v3498
    %4285 = vmatprep.subr.bf16.mxu0 %v3491
    %4286 = vmatpush1.bf16.msra.mxu0 %v3490
    %4287 = vmatprep.subr.bf16.mxu0 0
    %4288 = vmatpush2.bf16.msra.mxu0 0
    %4289 = vmatprep.subr.bf16.mxu0 0
    %4290 = vmatpush2.bf16.msra.mxu0 0
    %4291 = vmatprep.subr.bf16.mxu0 0
    %4292 = vmatpush2.bf16.msra.mxu0 0
    %4293 = vmatprep.subr.bf16.mxu0 0
    %4294 = vmatpush2.bf16.msra.mxu0 0
    %4295 = vmatprep.subr.bf16.mxu0 0
    %4296 = vmatpush2.bf16.msra.mxu0 0
    %4297 = vmatprep.subr.bf16.mxu0 0
    %4298 = vmatpush2.bf16.msra.mxu0 0
    %4299 = vmatprep.subr.bf16.mxu0 0
    %4300 = vmatpush2.bf16.msra.mxu0 0
    %4301 = vmatprep.subr.bf16.mxu0 0
    %4302 = vmatpush2.bf16.msra.mxu0 0
    %4303 = vmatprep.mubr.bf16.mxu0 0
    %4304 = vmatmul.mubr.bf16.gmra.mxu0 %v4269
    %v4305 = vpop.f32.mrf.mxu0
    %v4306 = vadd.f32 0.0, %v4305
    %v4307 = vpop.f32.mrf.mxu0
    %v4308 = vadd.f32 0.0, %v4307
    %v4309 = vpop.f32.mrf.mxu0
    %v4310 = vpop.f32.mrf.mxu0
    %4311 = vdwg.mxu0
    %4312 = vmatprep.subr.bf16.mxu0 0
    %4313 = vmatpush1.bf16.msra.mxu0 0
    %4314 = vmatprep.subr.bf16.mxu0 0
    %4315 = vmatpush1.bf16.msra.mxu0 0
    %4316 = vmatprep.subr.bf16.mxu0 0
    %4317 = vmatpush1.bf16.msra.mxu0 0
    %4318 = vmatprep.subr.bf16.mxu0 0
    %4319 = vmatpush1.bf16.msra.mxu0 0
    %4320 = vmatprep.subr.bf16.mxu0 %v3517
    %4321 = vmatpush1.bf16.msra.mxu0 %v3516
    %4322 = vmatprep.subr.bf16.mxu0 %v3509
    %4323 = vmatpush1.bf16.msra.mxu0 %v3508
    %4324 = vmatprep.subr.bf16.mxu0 %v3501
    %4325 = vmatpush1.bf16.msra.mxu0 %v3500
    %4326 = vmatprep.subr.bf16.mxu0 %v3493
    %4327 = vmatpush1.bf16.msra.mxu0 %v3492
    %4328 = vmatprep.subr.bf16.mxu0 0
    %4329 = vmatpush2.bf16.msra.mxu0 0
    %4330 = vmatprep.subr.bf16.mxu0 0
    %4331 = vmatpush2.bf16.msra.mxu0 0
    %4332 = vmatprep.subr.bf16.mxu0 0
    %4333 = vmatpush2.bf16.msra.mxu0 0
    %4334 = vmatprep.subr.bf16.mxu0 0
    %4335 = vmatpush2.bf16.msra.mxu0 0
    %4336 = vmatprep.subr.bf16.mxu0 0
    %4337 = vmatpush2.bf16.msra.mxu0 0
    %4338 = vmatprep.subr.bf16.mxu0 0
    %4339 = vmatpush2.bf16.msra.mxu0 0
    %4340 = vmatprep.subr.bf16.mxu0 0
    %4341 = vmatpush2.bf16.msra.mxu0 0
    %4342 = vmatprep.subr.bf16.mxu0 0
    %4343 = vmatpush2.bf16.msra.mxu0 0
    %4344 = vmatprep.mubr.bf16.mxu0 0
    %4345 = vmatmul.mubr.bf16.gmra.mxu0 %v4269
    %v4346 = vpop.f32.mrf.mxu0
    %v4347 = vadd.f32 0.0, %v4346
    %v4348 = vpop.f32.mrf.mxu0
    %v4349 = vadd.f32 0.0, %v4348
    %v4350 = vpop.f32.mrf.mxu0
    %v4351 = vpop.f32.mrf.mxu0
    %4352 = vdwg.mxu0
    %4353 = vmatprep.subr.bf16.mxu0 0
    %4354 = vmatpush1.bf16.msra.mxu0 0
    %4355 = vmatprep.subr.bf16.mxu0 0
    %4356 = vmatpush1.bf16.msra.mxu0 0
    %4357 = vmatprep.subr.bf16.mxu0 0
    %4358 = vmatpush1.bf16.msra.mxu0 0
    %4359 = vmatprep.subr.bf16.mxu0 0
    %4360 = vmatpush1.bf16.msra.mxu0 0
    %4361 = vmatprep.subr.bf16.mxu0 %v3519
    %4362 = vmatpush1.bf16.msra.mxu0 %v3518
    %4363 = vmatprep.subr.bf16.mxu0 %v3511
    %4364 = vmatpush1.bf16.msra.mxu0 %v3510
    %4365 = vmatprep.subr.bf16.mxu0 %v3503
    %4366 = vmatpush1.bf16.msra.mxu0 %v3502
    %4367 = vmatprep.subr.bf16.mxu0 %v3495
    %4368 = vmatpush1.bf16.msra.mxu0 %v3494
    %4369 = vmatprep.subr.bf16.mxu0 0
    %4370 = vmatpush2.bf16.msra.mxu0 0
    %4371 = vmatprep.subr.bf16.mxu0 0
    %4372 = vmatpush2.bf16.msra.mxu0 0
    %4373 = vmatprep.subr.bf16.mxu0 0
    %4374 = vmatpush2.bf16.msra.mxu0 0
    %4375 = vmatprep.subr.bf16.mxu0 0
    %4376 = vmatpush2.bf16.msra.mxu0 0
    %4377 = vmatprep.subr.bf16.mxu0 0
    %4378 = vmatpush2.bf16.msra.mxu0 0
    %4379 = vmatprep.subr.bf16.mxu0 0
    %4380 = vmatpush2.bf16.msra.mxu0 0
    %4381 = vmatprep.subr.bf16.mxu0 0
    %4382 = vmatpush2.bf16.msra.mxu0 0
    %4383 = vmatprep.subr.bf16.mxu0 0
    %4384 = vmatpush2.bf16.msra.mxu0 0
    %4385 = vmatprep.mubr.bf16.mxu0 0
    %4386 = vmatmul.mubr.bf16.gmra.mxu0 %v4269
    %v4387 = vpop.f32.mrf.mxu0
    %v4388 = vadd.f32 0.0, %v4387
    %v4389 = vpop.f32.mrf.mxu0
    %v4390 = vadd.f32 0.0, %v4389
    %v4391 = vpop.f32.mrf.mxu0
    %v4392 = vpop.f32.mrf.mxu0
    %4393 = vdwg.mxu0
    %4394 = vmatprep.subr.bf16.mxu0 0
    %4395 = vmatpush1.bf16.msra.mxu0 0
    %4396 = vmatprep.subr.bf16.mxu0 0
    %4397 = vmatpush1.bf16.msra.mxu0 0
    %4398 = vmatprep.subr.bf16.mxu0 0
    %4399 = vmatpush1.bf16.msra.mxu0 0
    %4400 = vmatprep.subr.bf16.mxu0 0
    %4401 = vmatpush1.bf16.msra.mxu0 0
    %4402 = vmatprep.subr.bf16.mxu0 %v3521
    %4403 = vmatpush1.bf16.msra.mxu0 %v3520
    %4404 = vmatprep.subr.bf16.mxu0 %v3513
    %4405 = vmatpush1.bf16.msra.mxu0 %v3512
    %4406 = vmatprep.subr.bf16.mxu0 %v3505
    %4407 = vmatpush1.bf16.msra.mxu0 %v3504
    %4408 = vmatprep.subr.bf16.mxu0 %v3497
    %4409 = vmatpush1.bf16.msra.mxu0 %v3496
    %4410 = vmatprep.subr.bf16.mxu0 0
    %4411 = vmatpush2.bf16.msra.mxu0 0
    %4412 = vmatprep.subr.bf16.mxu0 0
    %4413 = vmatpush2.bf16.msra.mxu0 0
    %4414 = vmatprep.subr.bf16.mxu0 0
    %4415 = vmatpush2.bf16.msra.mxu0 0
    %4416 = vmatprep.subr.bf16.mxu0 0
    %4417 = vmatpush2.bf16.msra.mxu0 0
    %4418 = vmatprep.subr.bf16.mxu0 0
    %4419 = vmatpush2.bf16.msra.mxu0 0
    %4420 = vmatprep.subr.bf16.mxu0 0
    %4421 = vmatpush2.bf16.msra.mxu0 0
    %4422 = vmatprep.subr.bf16.mxu0 0
    %4423 = vmatpush2.bf16.msra.mxu0 0
    %4424 = vmatprep.subr.bf16.mxu0 0
    %4425 = vmatpush2.bf16.msra.mxu0 0
    %4426 = vmatprep.mubr.bf16.mxu0 0
    %4427 = vmatmul.mubr.bf16.gmra.mxu0 %v4269
    %v4428 = vpop.f32.mrf.mxu0
    %v4429 = vadd.f32 0.0, %v4428
    %v4430 = vpop.f32.mrf.mxu0
    %v4431 = vadd.f32 0.0, %v4430
    %v4432 = vpop.f32.mrf.mxu0
    %v4433 = vpop.f32.mrf.mxu0
    %4434 = vdwg.mxu0
    %v4435 = vld [vmem:[%s1665] sm:$0xff]
    %v4436 = vld [vmem:[%s1665 + $0x8] sm:$0xff]
    %v4437 = vld [vmem:[%s1665 + $0x10] sm:$0xff]
    %v4438 = vld [vmem:[%s1665 + $0x18] sm:$0xff]
    %v4439 = vadd.f32 %v4435, %v4306
    %v4440 = vadd.f32 %v4436, %v4308
    %v4441 = vadd.f32 %v4437, %v4347
    %v4442 = vadd.f32 %v4438, %v4349
    %v4443 = vld [vmem:[%s1676 + $0x20] sm:$0xff]
    %v4444 = vld [vmem:[%s1676 + $0x28] sm:$0xff]
    %v4445 = vld [vmem:[%s1676 + $0x30] sm:$0xff]
    %v4446 = vld [vmem:[%s1676 + $0x38] sm:$0xff]
    %v4447 = vadd.f32 %v4443, %v4388
    %v4448 = vadd.f32 %v4444, %v4390
    %v4449 = vadd.f32 %v4445, %v4429
    %v4450 = vadd.f32 %v4446, %v4431
    %v4451 = vxor.u32 %v4439, 2147483648
    %v4452 = vxor.u32 %v4440, 2147483648
    %v4453 = vxor.u32 %v4441, 2147483648
    %v4454 = vmul.f32 %v4451, 1.442695
    %v4455 = vpow.pop %v4454
    %v4456 = vmul.f32 %v4452, 1.442695
    %v4457 = vpow.pop %v4456
    %v4458 = vmul.f32 %v4453, 1.442695
    %v4459 = vpow.pop %v4458
    %v4460 = vadd.f32 %v4455, 1.0
    %v4461 = vadd.f32 %v4457, 1.0
    %v4462 = vadd.f32 %v4459, 1.0
    %v4463 = vrcp.pop %v4460
    %v4464 = vmul.f32 1.0, %v4463
    %v4465 = vrcp.pop %v4461
    %v4466 = vmul.f32 1.0, %v4465
    %v4467 = vrcp.pop %v4462
    %v4468 = vmul.f32 1.0, %v4467
    %v4469 = vtanh.pop %v4442
    %v4470 = vmul.f32 %v4466, %v4233
    %v4471 = vmul.f32 %v4464, %v4469
    %v4472 = vadd.f32 %v4470, %v4471
    %v4473 = vtanh.pop %v4472
    %v4474 = vmul.f32 %v4468, %v4473
    %v4475 = vxor.u32 %v4447, 2147483648
    %v4476 = vxor.u32 %v4448, 2147483648
    %v4477 = vxor.u32 %v4449, 2147483648
    %v4478 = vmul.f32 %v4475, 1.442695
    %v4479 = vpow.pop %v4478
    %v4480 = vmul.f32 %v4476, 1.442695
    %v4481 = vpow.pop %v4480
    %v4482 = vmul.f32 %v4477, 1.442695
    %v4483 = vpow.pop %v4482
    %v4484 = vadd.f32 %v4479, 1.0
    %v4485 = vadd.f32 %v4481, 1.0
    %v4486 = vadd.f32 %v4483, 1.0
    %v4487 = vrcp.pop %v4484
    %v4488 = vmul.f32 1.0, %v4487
    %v4489 = vrcp.pop %v4485
    %v4490 = vmul.f32 1.0, %v4489
    %v4491 = vrcp.pop %v4486
    %v4492 = vmul.f32 1.0, %v4491
    %v4493 = vtanh.pop %v4450
    %v4494 = vmul.f32 %v4490, %v4257
    %v4495 = vmul.f32 %v4488, %v4493
    %v4496 = vadd.f32 %v4494, %v4495
    %v4497 = vtanh.pop %v4496
    %v4498 = vmul.f32 %v4492, %v4497
    %4499 = vst.msk [vmem:[%s1733] sm:$0xff] %vm992, %v4474
    %4500 = vst.msk [vmem:[%s1735] sm:$0xff] %vm992, %v4498
    %4502 = vrot.lane.b32.xlu0 %v4498, 32
    %v4503 = vpop.permute.xlu0 %4502
    %v4505 = vsel %vm992, %v4474, %v4503
    %v4506 = vpack.c.bf16 %v4505, %v4505
    %v4508 = vsel %vm754, %v4506, 0
    %4510 = vmatprep.subr.bf16.mxu0 0
    %4511 = vmatpush1.bf16.msra.mxu0 0
    %4512 = vmatprep.subr.bf16.mxu0 0
    %4513 = vmatpush1.bf16.msra.mxu0 0
    %4514 = vmatprep.subr.bf16.mxu0 0
    %4515 = vmatpush1.bf16.msra.mxu0 0
    %4516 = vmatprep.subr.bf16.mxu0 0
    %4517 = vmatpush1.bf16.msra.mxu0 0
    %4518 = vmatprep.subr.bf16.mxu0 %v3515
    %4519 = vmatpush1.bf16.msra.mxu0 %v3514
    %4520 = vmatprep.subr.bf16.mxu0 %v3507
    %4521 = vmatpush1.bf16.msra.mxu0 %v3506
    %4522 = vmatprep.subr.bf16.mxu0 %v3499
    %4523 = vmatpush1.bf16.msra.mxu0 %v3498
    %4524 = vmatprep.subr.bf16.mxu0 %v3491
    %4525 = vmatpush1.bf16.msra.mxu0 %v3490
    %4526 = vmatprep.subr.bf16.mxu0 0
    %4527 = vmatpush2.bf16.msra.mxu0 0
    %4528 = vmatprep.subr.bf16.mxu0 0
    %4529 = vmatpush2.bf16.msra.mxu0 0
    %4530 = vmatprep.subr.bf16.mxu0 0
    %4531 = vmatpush2.bf16.msra.mxu0 0
    %4532 = vmatprep.subr.bf16.mxu0 0
    %4533 = vmatpush2.bf16.msra.mxu0 0
    %4534 = vmatprep.subr.bf16.mxu0 0
    %4535 = vmatpush2.bf16.msra.mxu0 0
    %4536 = vmatprep.subr.bf16.mxu0 0
    %4537 = vmatpush2.bf16.msra.mxu0 0
    %4538 = vmatprep.subr.bf16.mxu0 0
    %4539 = vmatpush2.bf16.msra.mxu0 0
    %4540 = vmatprep.subr.bf16.mxu0 0
    %4541 = vmatpush2.bf16.msra.mxu0 0
    %4542 = vmatprep.mubr.bf16.mxu0 0
    %4543 = vmatmul.mubr.bf16.gmra.mxu0 %v4508
    %v4544 = vpop.f32.mrf.mxu0
    %v4545 = vadd.f32 0.0, %v4544
    %v4546 = vpop.f32.mrf.mxu0
    %v4547 = vadd.f32 0.0, %v4546
    %v4548 = vpop.f32.mrf.mxu0
    %v4549 = vpop.f32.mrf.mxu0
    %4550 = vdwg.mxu0
    %4551 = vmatprep.subr.bf16.mxu0 0
    %4552 = vmatpush1.bf16.msra.mxu0 0
    %4553 = vmatprep.subr.bf16.mxu0 0
    %4554 = vmatpush1.bf16.msra.mxu0 0
    %4555 = vmatprep.subr.bf16.mxu0 0
    %4556 = vmatpush1.bf16.msra.mxu0 0
    %4557 = vmatprep.subr.bf16.mxu0 0
    %4558 = vmatpush1.bf16.msra.mxu0 0
    %4559 = vmatprep.subr.bf16.mxu0 %v3517
    %4560 = vmatpush1.bf16.msra.mxu0 %v3516
    %4561 = vmatprep.subr.bf16.mxu0 %v3509
    %4562 = vmatpush1.bf16.msra.mxu0 %v3508
    %4563 = vmatprep.subr.bf16.mxu0 %v3501
    %4564 = vmatpush1.bf16.msra.mxu0 %v3500
    %4565 = vmatprep.subr.bf16.mxu0 %v3493
    %4566 = vmatpush1.bf16.msra.mxu0 %v3492
    %4567 = vmatprep.subr.bf16.mxu0 0
    %4568 = vmatpush2.bf16.msra.mxu0 0
    %4569 = vmatprep.subr.bf16.mxu0 0
    %4570 = vmatpush2.bf16.msra.mxu0 0
    %4571 = vmatprep.subr.bf16.mxu0 0
    %4572 = vmatpush2.bf16.msra.mxu0 0
    %4573 = vmatprep.subr.bf16.mxu0 0
    %4574 = vmatpush2.bf16.msra.mxu0 0
    %4575 = vmatprep.subr.bf16.mxu0 0
    %4576 = vmatpush2.bf16.msra.mxu0 0
    %4577 = vmatprep.subr.bf16.mxu0 0
    %4578 = vmatpush2.bf16.msra.mxu0 0
    %4579 = vmatprep.subr.bf16.mxu0 0
    %4580 = vmatpush2.bf16.msra.mxu0 0
    %4581 = vmatprep.subr.bf16.mxu0 0
    %4582 = vmatpush2.bf16.msra.mxu0 0
    %4583 = vmatprep.mubr.bf16.mxu0 0
    %4584 = vmatmul.mubr.bf16.gmra.mxu0 %v4508
    %v4585 = vpop.f32.mrf.mxu0
    %v4586 = vadd.f32 0.0, %v4585
    %v4587 = vpop.f32.mrf.mxu0
    %v4588 = vadd.f32 0.0, %v4587
    %v4589 = vpop.f32.mrf.mxu0
    %v4590 = vpop.f32.mrf.mxu0
    %4591 = vdwg.mxu0
    %4592 = vmatprep.subr.bf16.mxu0 0
    %4593 = vmatpush1.bf16.msra.mxu0 0
    %4594 = vmatprep.subr.bf16.mxu0 0
    %4595 = vmatpush1.bf16.msra.mxu0 0
    %4596 = vmatprep.subr.bf16.mxu0 0
    %4597 = vmatpush1.bf16.msra.mxu0 0
    %4598 = vmatprep.subr.bf16.mxu0 0
    %4599 = vmatpush1.bf16.msra.mxu0 0
    %4600 = vmatprep.subr.bf16.mxu0 %v3519
    %4601 = vmatpush1.bf16.msra.mxu0 %v3518
    %4602 = vmatprep.subr.bf16.mxu0 %v3511
    %4603 = vmatpush1.bf16.msra.mxu0 %v3510
    %4604 = vmatprep.subr.bf16.mxu0 %v3503
    %4605 = vmatpush1.bf16.msra.mxu0 %v3502
    %4606 = vmatprep.subr.bf16.mxu0 %v3495
    %4607 = vmatpush1.bf16.msra.mxu0 %v3494
    %4608 = vmatprep.subr.bf16.mxu0 0
    %4609 = vmatpush2.bf16.msra.mxu0 0
    %4610 = vmatprep.subr.bf16.mxu0 0
    %4611 = vmatpush2.bf16.msra.mxu0 0
    %4612 = vmatprep.subr.bf16.mxu0 0
    %4613 = vmatpush2.bf16.msra.mxu0 0
    %4614 = vmatprep.subr.bf16.mxu0 0
    %4615 = vmatpush2.bf16.msra.mxu0 0
    %4616 = vmatprep.subr.bf16.mxu0 0
    %4617 = vmatpush2.bf16.msra.mxu0 0
    %4618 = vmatprep.subr.bf16.mxu0 0
    %4619 = vmatpush2.bf16.msra.mxu0 0
    %4620 = vmatprep.subr.bf16.mxu0 0
    %4621 = vmatpush2.bf16.msra.mxu0 0
    %4622 = vmatprep.subr.bf16.mxu0 0
    %4623 = vmatpush2.bf16.msra.mxu0 0
    %4624 = vmatprep.mubr.bf16.mxu0 0
    %4625 = vmatmul.mubr.bf16.gmra.mxu0 %v4508
    %v4626 = vpop.f32.mrf.mxu0
    %v4627 = vadd.f32 0.0, %v4626
    %v4628 = vpop.f32.mrf.mxu0
    %v4629 = vadd.f32 0.0, %v4628
    %v4630 = vpop.f32.mrf.mxu0
    %v4631 = vpop.f32.mrf.mxu0
    %4632 = vdwg.mxu0
    %4633 = vmatprep.subr.bf16.mxu0 0
    %4634 = vmatpush1.bf16.msra.mxu0 0
    %4635 = vmatprep.subr.bf16.mxu0 0
    %4636 = vmatpush1.bf16.msra.mxu0 0
    %4637 = vmatprep.subr.bf16.mxu0 0
    %4638 = vmatpush1.bf16.msra.mxu0 0
    %4639 = vmatprep.subr.bf16.mxu0 0
    %4640 = vmatpush1.bf16.msra.mxu0 0
    %4641 = vmatprep.subr.bf16.mxu0 %v3521
    %4642 = vmatpush1.bf16.msra.mxu0 %v3520
    %4643 = vmatprep.subr.bf16.mxu0 %v3513
    %4644 = vmatpush1.bf16.msra.mxu0 %v3512
    %4645 = vmatprep.subr.bf16.mxu0 %v3505
    %4646 = vmatpush1.bf16.msra.mxu0 %v3504
    %4647 = vmatprep.subr.bf16.mxu0 %v3497
    %4648 = vmatpush1.bf16.msra.mxu0 %v3496
    %4649 = vmatprep.subr.bf16.mxu0 0
    %4650 = vmatpush2.bf16.msra.mxu0 0
    %4651 = vmatprep.subr.bf16.mxu0 0
    %4652 = vmatpush2.bf16.msra.mxu0 0
    %4653 = vmatprep.subr.bf16.mxu0 0
    %4654 = vmatpush2.bf16.msra.mxu0 0
    %4655 = vmatprep.subr.bf16.mxu0 0
    %4656 = vmatpush2.bf16.msra.mxu0 0
    %4657 = vmatprep.subr.bf16.mxu0 0
    %4658 = vmatpush2.bf16.msra.mxu0 0
    %4659 = vmatprep.subr.bf16.mxu0 0
    %4660 = vmatpush2.bf16.msra.mxu0 0
    %4661 = vmatprep.subr.bf16.mxu0 0
    %4662 = vmatpush2.bf16.msra.mxu0 0
    %4663 = vmatprep.subr.bf16.mxu0 0
    %4664 = vmatpush2.bf16.msra.mxu0 0
    %4665 = vmatprep.mubr.bf16.mxu0 0
    %4666 = vmatmul.mubr.bf16.gmra.mxu0 %v4508
    %v4667 = vpop.f32.mrf.mxu0
    %v4668 = vadd.f32 0.0, %v4667
    %v4669 = vpop.f32.mrf.mxu0
    %v4670 = vadd.f32 0.0, %v4669
    %v4671 = vpop.f32.mrf.mxu0
    %v4672 = vpop.f32.mrf.mxu0
    %4673 = vdwg.mxu0
    %v4674 = vld [vmem:[%s1676] sm:$0xff]
    %v4675 = vld [vmem:[%s1676 + $0x8] sm:$0xff]
    %v4676 = vld [vmem:[%s1676 + $0x10] sm:$0xff]
    %v4677 = vld [vmem:[%s1676 + $0x18] sm:$0xff]
    %v4678 = vadd.f32 %v4674, %v4545
    %v4679 = vadd.f32 %v4675, %v4547
    %v4680 = vadd.f32 %v4676, %v4586
    %v4681 = vadd.f32 %v4677, %v4588
    %v4682 = vld [vmem:[%s1665 + $0x20] sm:$0xff]
    %v4683 = vld [vmem:[%s1665 + $0x28] sm:$0xff]
    %v4684 = vld [vmem:[%s1665 + $0x30] sm:$0xff]
    %v4685 = vld [vmem:[%s1665 + $0x38] sm:$0xff]
    %v4686 = vadd.f32 %v4682, %v4627
    %v4687 = vadd.f32 %v4683, %v4629
    %v4688 = vadd.f32 %v4684, %v4668
    %v4689 = vadd.f32 %v4685, %v4670
    %v4690 = vxor.u32 %v4678, 2147483648
    %v4691 = vxor.u32 %v4679, 2147483648
    %v4692 = vxor.u32 %v4680, 2147483648
    %v4693 = vmul.f32 %v4690, 1.442695
    %v4694 = vpow.pop %v4693
    %v4695 = vmul.f32 %v4691, 1.442695
    %v4696 = vpow.pop %v4695
    %v4697 = vmul.f32 %v4692, 1.442695
    %v4698 = vpow.pop %v4697
    %v4699 = vadd.f32 %v4694, 1.0
    %v4700 = vadd.f32 %v4696, 1.0
    %v4701 = vadd.f32 %v4698, 1.0
    %v4702 = vrcp.pop %v4699
    %v4703 = vmul.f32 1.0, %v4702
    %v4704 = vrcp.pop %v4700
    %v4705 = vmul.f32 1.0, %v4704
    %v4706 = vrcp.pop %v4701
    %v4707 = vmul.f32 1.0, %v4706
    %v4708 = vtanh.pop %v4681
    %v4709 = vmul.f32 %v4705, %v4472
    %v4710 = vmul.f32 %v4703, %v4708
    %v4711 = vadd.f32 %v4709, %v4710
    %v4712 = vtanh.pop %v4711
    %v4713 = vmul.f32 %v4707, %v4712
    %v4714 = vxor.u32 %v4686, 2147483648
    %v4715 = vxor.u32 %v4687, 2147483648
    %v4716 = vxor.u32 %v4688, 2147483648
    %v4717 = vmul.f32 %v4714, 1.442695
    %v4718 = vpow.pop %v4717
    %v4719 = vmul.f32 %v4715, 1.442695
    %v4720 = vpow.pop %v4719
    %v4721 = vmul.f32 %v4716, 1.442695
    %v4722 = vpow.pop %v4721
    %v4723 = vadd.f32 %v4718, 1.0
    %v4724 = vadd.f32 %v4720, 1.0
    %v4725 = vadd.f32 %v4722, 1.0
    %v4726 = vrcp.pop %v4723
    %v4727 = vmul.f32 1.0, %v4726
    %v4728 = vrcp.pop %v4724
    %v4729 = vmul.f32 1.0, %v4728
    %v4730 = vrcp.pop %v4725
    %v4731 = vmul.f32 1.0, %v4730
    %v4732 = vtanh.pop %v4689
    %v4733 = vmul.f32 %v4729, %v4496
    %v4734 = vmul.f32 %v4727, %v4732
    %v4735 = vadd.f32 %v4733, %v4734
    %v4736 = vtanh.pop %v4735
    %v4737 = vmul.f32 %v4731, %v4736
    %4738 = vst.msk [vmem:[%s1974] sm:$0xff] %vm992, %v4713
    %4739 = vst.msk [vmem:[%s1976] sm:$0xff] %vm992, %v4737
    %4741 = vrot.lane.b32.xlu0 %v4737, 32
    %v4742 = vpop.permute.xlu0 %4741
    %v4744 = vsel %vm992, %v4713, %v4742
    %v4745 = vpack.c.bf16 %v4744, %v4744
    %v4747 = vsel %vm754, %v4745, 0
    %4749 = vmatprep.subr.bf16.mxu0 0
    %4750 = vmatpush1.bf16.msra.mxu0 0
    %4751 = vmatprep.subr.bf16.mxu0 0
    %4752 = vmatpush1.bf16.msra.mxu0 0
    %4753 = vmatprep.subr.bf16.mxu0 0
    %4754 = vmatpush1.bf16.msra.mxu0 0
    %4755 = vmatprep.subr.bf16.mxu0 0
    %4756 = vmatpush1.bf16.msra.mxu0 0
    %4757 = vmatprep.subr.bf16.mxu0 %v3515
    %4758 = vmatpush1.bf16.msra.mxu0 %v3514
    %4759 = vmatprep.subr.bf16.mxu0 %v3507
    %4760 = vmatpush1.bf16.msra.mxu0 %v3506
    %4761 = vmatprep.subr.bf16.mxu0 %v3499
    %4762 = vmatpush1.bf16.msra.mxu0 %v3498
    %4763 = vmatprep.subr.bf16.mxu0 %v3491
    %4764 = vmatpush1.bf16.msra.mxu0 %v3490
    %4765 = vmatprep.subr.bf16.mxu0 0
    %4766 = vmatpush2.bf16.msra.mxu0 0
    %4767 = vmatprep.subr.bf16.mxu0 0
    %4768 = vmatpush2.bf16.msra.mxu0 0
    %4769 = vmatprep.subr.bf16.mxu0 0
    %4770 = vmatpush2.bf16.msra.mxu0 0
    %4771 = vmatprep.subr.bf16.mxu0 0
    %4772 = vmatpush2.bf16.msra.mxu0 0
    %4773 = vmatprep.subr.bf16.mxu0 0
    %4774 = vmatpush2.bf16.msra.mxu0 0
    %4775 = vmatprep.subr.bf16.mxu0 0
    %4776 = vmatpush2.bf16.msra.mxu0 0
    %4777 = vmatprep.subr.bf16.mxu0 0
    %4778 = vmatpush2.bf16.msra.mxu0 0
    %4779 = vmatprep.subr.bf16.mxu0 0
    %4780 = vmatpush2.bf16.msra.mxu0 0
    %4781 = vmatprep.mubr.bf16.mxu0 0
    %4782 = vmatmul.mubr.bf16.gmra.mxu0 %v4747
    %v4783 = vpop.f32.mrf.mxu0
    %v4784 = vadd.f32 0.0, %v4783
    %v4785 = vpop.f32.mrf.mxu0
    %v4786 = vadd.f32 0.0, %v4785
    %v4787 = vpop.f32.mrf.mxu0
    %v4788 = vpop.f32.mrf.mxu0
    %4789 = vdwg.mxu0
    %4790 = vmatprep.subr.bf16.mxu0 0
    %4791 = vmatpush1.bf16.msra.mxu0 0
    %4792 = vmatprep.subr.bf16.mxu0 0
    %4793 = vmatpush1.bf16.msra.mxu0 0
    %4794 = vmatprep.subr.bf16.mxu0 0
    %4795 = vmatpush1.bf16.msra.mxu0 0
    %4796 = vmatprep.subr.bf16.mxu0 0
    %4797 = vmatpush1.bf16.msra.mxu0 0
    %4798 = vmatprep.subr.bf16.mxu0 %v3517
    %4799 = vmatpush1.bf16.msra.mxu0 %v3516
    %4800 = vmatprep.subr.bf16.mxu0 %v3509
    %4801 = vmatpush1.bf16.msra.mxu0 %v3508
    %4802 = vmatprep.subr.bf16.mxu0 %v3501
    %4803 = vmatpush1.bf16.msra.mxu0 %v3500
    %4804 = vmatprep.subr.bf16.mxu0 %v3493
    %4805 = vmatpush1.bf16.msra.mxu0 %v3492
    %4806 = vmatprep.subr.bf16.mxu0 0
    %4807 = vmatpush2.bf16.msra.mxu0 0
    %4808 = vmatprep.subr.bf16.mxu0 0
    %4809 = vmatpush2.bf16.msra.mxu0 0
    %4810 = vmatprep.subr.bf16.mxu0 0
    %4811 = vmatpush2.bf16.msra.mxu0 0
    %4812 = vmatprep.subr.bf16.mxu0 0
    %4813 = vmatpush2.bf16.msra.mxu0 0
    %4814 = vmatprep.subr.bf16.mxu0 0
    %4815 = vmatpush2.bf16.msra.mxu0 0
    %4816 = vmatprep.subr.bf16.mxu0 0
    %4817 = vmatpush2.bf16.msra.mxu0 0
    %4818 = vmatprep.subr.bf16.mxu0 0
    %4819 = vmatpush2.bf16.msra.mxu0 0
    %4820 = vmatprep.subr.bf16.mxu0 0
    %4821 = vmatpush2.bf16.msra.mxu0 0
    %4822 = vmatprep.mubr.bf16.mxu0 0
    %4823 = vmatmul.mubr.bf16.gmra.mxu0 %v4747
    %v4824 = vpop.f32.mrf.mxu0
    %v4825 = vadd.f32 0.0, %v4824
    %v4826 = vpop.f32.mrf.mxu0
    %v4827 = vadd.f32 0.0, %v4826
    %v4828 = vpop.f32.mrf.mxu0
    %v4829 = vpop.f32.mrf.mxu0
    %4830 = vdwg.mxu0
    %4831 = vmatprep.subr.bf16.mxu0 0
    %4832 = vmatpush1.bf16.msra.mxu0 0
    %4833 = vmatprep.subr.bf16.mxu0 0
    %4834 = vmatpush1.bf16.msra.mxu0 0
    %4835 = vmatprep.subr.bf16.mxu0 0
    %4836 = vmatpush1.bf16.msra.mxu0 0
    %4837 = vmatprep.subr.bf16.mxu0 0
    %4838 = vmatpush1.bf16.msra.mxu0 0
    %4839 = vmatprep.subr.bf16.mxu0 %v3519
    %4840 = vmatpush1.bf16.msra.mxu0 %v3518
    %4841 = vmatprep.subr.bf16.mxu0 %v3511
    %4842 = vmatpush1.bf16.msra.mxu0 %v3510
    %4843 = vmatprep.subr.bf16.mxu0 %v3503
    %4844 = vmatpush1.bf16.msra.mxu0 %v3502
    %4845 = vmatprep.subr.bf16.mxu0 %v3495
    %4846 = vmatpush1.bf16.msra.mxu0 %v3494
    %4847 = vmatprep.subr.bf16.mxu0 0
    %4848 = vmatpush2.bf16.msra.mxu0 0
    %4849 = vmatprep.subr.bf16.mxu0 0
    %4850 = vmatpush2.bf16.msra.mxu0 0
    %4851 = vmatprep.subr.bf16.mxu0 0
    %4852 = vmatpush2.bf16.msra.mxu0 0
    %4853 = vmatprep.subr.bf16.mxu0 0
    %4854 = vmatpush2.bf16.msra.mxu0 0
    %4855 = vmatprep.subr.bf16.mxu0 0
    %4856 = vmatpush2.bf16.msra.mxu0 0
    %4857 = vmatprep.subr.bf16.mxu0 0
    %4858 = vmatpush2.bf16.msra.mxu0 0
    %4859 = vmatprep.subr.bf16.mxu0 0
    %4860 = vmatpush2.bf16.msra.mxu0 0
    %4861 = vmatprep.subr.bf16.mxu0 0
    %4862 = vmatpush2.bf16.msra.mxu0 0
    %4863 = vmatprep.mubr.bf16.mxu0 0
    %4864 = vmatmul.mubr.bf16.gmra.mxu0 %v4747
    %v4865 = vpop.f32.mrf.mxu0
    %v4866 = vadd.f32 0.0, %v4865
    %v4867 = vpop.f32.mrf.mxu0
    %v4868 = vadd.f32 0.0, %v4867
    %v4869 = vpop.f32.mrf.mxu0
    %v4870 = vpop.f32.mrf.mxu0
    %4871 = vdwg.mxu0
    %4872 = vmatprep.subr.bf16.mxu0 0
    %4873 = vmatpush1.bf16.msra.mxu0 0
    %4874 = vmatprep.subr.bf16.mxu0 0
    %4875 = vmatpush1.bf16.msra.mxu0 0
    %4876 = vmatprep.subr.bf16.mxu0 0
    %4877 = vmatpush1.bf16.msra.mxu0 0
    %4878 = vmatprep.subr.bf16.mxu0 0
    %4879 = vmatpush1.bf16.msra.mxu0 0
    %4880 = vmatprep.subr.bf16.mxu0 %v3521
    %4881 = vmatpush1.bf16.msra.mxu0 %v3520
    %4882 = vmatprep.subr.bf16.mxu0 %v3513
    %4883 = vmatpush1.bf16.msra.mxu0 %v3512
    %4884 = vmatprep.subr.bf16.mxu0 %v3505
    %4885 = vmatpush1.bf16.msra.mxu0 %v3504
    %4886 = vmatprep.subr.bf16.mxu0 %v3497
    %4887 = vmatpush1.bf16.msra.mxu0 %v3496
    %4888 = vmatprep.subr.bf16.mxu0 0
    %4889 = vmatpush2.bf16.msra.mxu0 0
    %4890 = vmatprep.subr.bf16.mxu0 0
    %4891 = vmatpush2.bf16.msra.mxu0 0
    %4892 = vmatprep.subr.bf16.mxu0 0
    %4893 = vmatpush2.bf16.msra.mxu0 0
    %4894 = vmatprep.subr.bf16.mxu0 0
    %4895 = vmatpush2.bf16.msra.mxu0 0
    %4896 = vmatprep.subr.bf16.mxu0 0
    %4897 = vmatpush2.bf16.msra.mxu0 0
    %4898 = vmatprep.subr.bf16.mxu0 0
    %4899 = vmatpush2.bf16.msra.mxu0 0
    %4900 = vmatprep.subr.bf16.mxu0 0
    %4901 = vmatpush2.bf16.msra.mxu0 0
    %4902 = vmatprep.subr.bf16.mxu0 0
    %4903 = vmatpush2.bf16.msra.mxu0 0
    %4904 = vmatprep.mubr.bf16.mxu0 0
    %4905 = vmatmul.mubr.bf16.gmra.mxu0 %v4747
    %v4906 = vpop.f32.mrf.mxu0
    %v4907 = vadd.f32 0.0, %v4906
    %v4908 = vpop.f32.mrf.mxu0
    %v4909 = vadd.f32 0.0, %v4908
    %v4910 = vpop.f32.mrf.mxu0
    %v4911 = vpop.f32.mrf.mxu0
    %4912 = vdwg.mxu0
    %v4913 = vld [vmem:[%s1429] sm:$0xff]
    %v4914 = vld [vmem:[%s1429 + $0x8] sm:$0xff]
    %v4915 = vld [vmem:[%s1429 + $0x10] sm:$0xff]
    %v4916 = vld [vmem:[%s1429 + $0x18] sm:$0xff]
    %v4917 = vadd.f32 %v4913, %v4784
    %v4918 = vadd.f32 %v4914, %v4786
    %v4919 = vadd.f32 %v4915, %v4825
    %v4920 = vadd.f32 %v4916, %v4827
    %v4921 = vld [vmem:[%s1418 + $0x20] sm:$0xff]
    %v4922 = vld [vmem:[%s1418 + $0x28] sm:$0xff]
    %v4923 = vld [vmem:[%s1418 + $0x30] sm:$0xff]
    %v4924 = vld [vmem:[%s1418 + $0x38] sm:$0xff]
    %v4925 = vadd.f32 %v4921, %v4866
    %v4926 = vadd.f32 %v4922, %v4868
    %v4927 = vadd.f32 %v4923, %v4907
    %v4928 = vadd.f32 %v4924, %v4909
    %v4929 = vxor.u32 %v4917, 2147483648
    %v4930 = vxor.u32 %v4918, 2147483648
    %v4931 = vxor.u32 %v4919, 2147483648
    %v4932 = vmul.f32 %v4929, 1.442695
    %v4933 = vpow.pop %v4932
    %v4934 = vmul.f32 %v4930, 1.442695
    %v4935 = vpow.pop %v4934
    %v4936 = vmul.f32 %v4931, 1.442695
    %v4937 = vpow.pop %v4936
    %v4938 = vadd.f32 %v4933, 1.0
    %v4939 = vadd.f32 %v4935, 1.0
    %v4940 = vadd.f32 %v4937, 1.0
    %v4941 = vrcp.pop %v4938
    %v4942 = vmul.f32 1.0, %v4941
    %v4943 = vrcp.pop %v4939
    %v4944 = vmul.f32 1.0, %v4943
    %v4945 = vrcp.pop %v4940
    %v4946 = vmul.f32 1.0, %v4945
    %v4947 = vtanh.pop %v4920
    %v4948 = vmul.f32 %v4944, %v4711
    %v4949 = vmul.f32 %v4942, %v4947
    %v4950 = vadd.f32 %v4948, %v4949
    %v4951 = vtanh.pop %v4950
    %v4952 = vmul.f32 %v4946, %v4951
    %v4953 = vxor.u32 %v4925, 2147483648
    %v4954 = vxor.u32 %v4926, 2147483648
    %v4955 = vxor.u32 %v4927, 2147483648
    %v4956 = vmul.f32 %v4953, 1.442695
    %v4957 = vpow.pop %v4956
    %v4958 = vmul.f32 %v4954, 1.442695
    %v4959 = vpow.pop %v4958
    %v4960 = vmul.f32 %v4955, 1.442695
    %v4961 = vpow.pop %v4960
    %v4962 = vadd.f32 %v4957, 1.0
    %v4963 = vadd.f32 %v4959, 1.0
    %v4964 = vadd.f32 %v4961, 1.0
    %v4965 = vrcp.pop %v4962
    %v4966 = vmul.f32 1.0, %v4965
    %v4967 = vrcp.pop %v4963
    %v4968 = vmul.f32 1.0, %v4967
    %v4969 = vrcp.pop %v4964
    %v4970 = vmul.f32 1.0, %v4969
    %v4971 = vtanh.pop %v4928
    %v4972 = vmul.f32 %v4968, %v4735
    %v4973 = vmul.f32 %v4966, %v4971
    %v4974 = vadd.f32 %v4972, %v4973
    %v4975 = vtanh.pop %v4974
    %v4976 = vmul.f32 %v4970, %v4975
    %4977 = vst.msk [vmem:[%s2215] sm:$0xff] %vm992, %v4952
    %4978 = vst.msk [vmem:[%s2217] sm:$0xff] %vm992, %v4976
    %4980 = vrot.lane.b32.xlu0 %v4976, 32
    %v4981 = vpop.permute.xlu0 %4980
    %v4983 = vsel %vm992, %v4952, %v4981
    %v4984 = vpack.c.bf16 %v4983, %v4983
    %v4986 = vsel %vm754, %v4984, 0
    %4988 = vmatprep.subr.bf16.mxu0 0
    %4989 = vmatpush1.bf16.msra.mxu0 0
    %4990 = vmatprep.subr.bf16.mxu0 0
    %4991 = vmatpush1.bf16.msra.mxu0 0
    %4992 = vmatprep.subr.bf16.mxu0 0
    %4993 = vmatpush1.bf16.msra.mxu0 0
    %4994 = vmatprep.subr.bf16.mxu0 0
    %4995 = vmatpush1.bf16.msra.mxu0 0
    %4996 = vmatprep.subr.bf16.mxu0 %v3515
    %4997 = vmatpush1.bf16.msra.mxu0 %v3514
    %4998 = vmatprep.subr.bf16.mxu0 %v3507
    %4999 = vmatpush1.bf16.msra.mxu0 %v3506
    %5000 = vmatprep.subr.bf16.mxu0 %v3499
    %5001 = vmatpush1.bf16.msra.mxu0 %v3498
    %5002 = vmatprep.subr.bf16.mxu0 %v3491
    %5003 = vmatpush1.bf16.msra.mxu0 %v3490
    %5004 = vmatprep.subr.bf16.mxu0 0
    %5005 = vmatpush2.bf16.msra.mxu0 0
    %5006 = vmatprep.subr.bf16.mxu0 0
    %5007 = vmatpush2.bf16.msra.mxu0 0
    %5008 = vmatprep.subr.bf16.mxu0 0
    %5009 = vmatpush2.bf16.msra.mxu0 0
    %5010 = vmatprep.subr.bf16.mxu0 0
    %5011 = vmatpush2.bf16.msra.mxu0 0
    %5012 = vmatprep.subr.bf16.mxu0 0
    %5013 = vmatpush2.bf16.msra.mxu0 0
    %5014 = vmatprep.subr.bf16.mxu0 0
    %5015 = vmatpush2.bf16.msra.mxu0 0
    %5016 = vmatprep.subr.bf16.mxu0 0
    %5017 = vmatpush2.bf16.msra.mxu0 0
    %5018 = vmatprep.subr.bf16.mxu0 0
    %5019 = vmatpush2.bf16.msra.mxu0 0
    %5020 = vmatprep.mubr.bf16.mxu0 0
    %5021 = vmatmul.mubr.bf16.gmra.mxu0 %v4986
    %v5022 = vpop.f32.mrf.mxu0
    %v5023 = vadd.f32 0.0, %v5022
    %v5024 = vpop.f32.mrf.mxu0
    %v5025 = vadd.f32 0.0, %v5024
    %v5026 = vpop.f32.mrf.mxu0
    %v5027 = vpop.f32.mrf.mxu0
    %5028 = vdwg.mxu0
    %5029 = vmatprep.subr.bf16.mxu0 0
    %5030 = vmatpush1.bf16.msra.mxu0 0
    %5031 = vmatprep.subr.bf16.mxu0 0
    %5032 = vmatpush1.bf16.msra.mxu0 0
    %5033 = vmatprep.subr.bf16.mxu0 0
    %5034 = vmatpush1.bf16.msra.mxu0 0
    %5035 = vmatprep.subr.bf16.mxu0 0
    %5036 = vmatpush1.bf16.msra.mxu0 0
    %5037 = vmatprep.subr.bf16.mxu0 %v3517
    %5038 = vmatpush1.bf16.msra.mxu0 %v3516
    %5039 = vmatprep.subr.bf16.mxu0 %v3509
    %5040 = vmatpush1.bf16.msra.mxu0 %v3508
    %5041 = vmatprep.subr.bf16.mxu0 %v3501
    %5042 = vmatpush1.bf16.msra.mxu0 %v3500
    %5043 = vmatprep.subr.bf16.mxu0 %v3493
    %5044 = vmatpush1.bf16.msra.mxu0 %v3492
    %5045 = vmatprep.subr.bf16.mxu0 0
    %5046 = vmatpush2.bf16.msra.mxu0 0
    %5047 = vmatprep.subr.bf16.mxu0 0
    %5048 = vmatpush2.bf16.msra.mxu0 0
    %5049 = vmatprep.subr.bf16.mxu0 0
    %5050 = vmatpush2.bf16.msra.mxu0 0
    %5051 = vmatprep.subr.bf16.mxu0 0
    %5052 = vmatpush2.bf16.msra.mxu0 0
    %5053 = vmatprep.subr.bf16.mxu0 0
    %5054 = vmatpush2.bf16.msra.mxu0 0
    %5055 = vmatprep.subr.bf16.mxu0 0
    %5056 = vmatpush2.bf16.msra.mxu0 0
    %5057 = vmatprep.subr.bf16.mxu0 0
    %5058 = vmatpush2.bf16.msra.mxu0 0
    %5059 = vmatprep.subr.bf16.mxu0 0
    %5060 = vmatpush2.bf16.msra.mxu0 0
    %5061 = vmatprep.mubr.bf16.mxu0 0
    %5062 = vmatmul.mubr.bf16.gmra.mxu0 %v4986
    %v5063 = vpop.f32.mrf.mxu0
    %v5064 = vadd.f32 0.0, %v5063
    %v5065 = vpop.f32.mrf.mxu0
    %v5066 = vadd.f32 0.0, %v5065
    %v5067 = vpop.f32.mrf.mxu0
    %v5068 = vpop.f32.mrf.mxu0
    %5069 = vdwg.mxu0
    %5070 = vmatprep.subr.bf16.mxu0 0
    %5071 = vmatpush1.bf16.msra.mxu0 0
    %5072 = vmatprep.subr.bf16.mxu0 0
    %5073 = vmatpush1.bf16.msra.mxu0 0
    %5074 = vmatprep.subr.bf16.mxu0 0
    %5075 = vmatpush1.bf16.msra.mxu0 0
    %5076 = vmatprep.subr.bf16.mxu0 0
    %5077 = vmatpush1.bf16.msra.mxu0 0
    %5078 = vmatprep.subr.bf16.mxu0 %v3519
    %5079 = vmatpush1.bf16.msra.mxu0 %v3518
    %5080 = vmatprep.subr.bf16.mxu0 %v3511
    %5081 = vmatpush1.bf16.msra.mxu0 %v3510
    %5082 = vmatprep.subr.bf16.mxu0 %v3503
    %5083 = vmatpush1.bf16.msra.mxu0 %v3502
    %5084 = vmatprep.subr.bf16.mxu0 %v3495
    %5085 = vmatpush1.bf16.msra.mxu0 %v3494
    %5086 = vmatprep.subr.bf16.mxu0 0
    %5087 = vmatpush2.bf16.msra.mxu0 0
    %5088 = vmatprep.subr.bf16.mxu0 0
    %5089 = vmatpush2.bf16.msra.mxu0 0
    %5090 = vmatprep.subr.bf16.mxu0 0
    %5091 = vmatpush2.bf16.msra.mxu0 0
    %5092 = vmatprep.subr.bf16.mxu0 0
    %5093 = vmatpush2.bf16.msra.mxu0 0
    %5094 = vmatprep.subr.bf16.mxu0 0
    %5095 = vmatpush2.bf16.msra.mxu0 0
    %5096 = vmatprep.subr.bf16.mxu0 0
    %5097 = vmatpush2.bf16.msra.mxu0 0
    %5098 = vmatprep.subr.bf16.mxu0 0
    %5099 = vmatpush2.bf16.msra.mxu0 0
    %5100 = vmatprep.subr.bf16.mxu0 0
    %5101 = vmatpush2.bf16.msra.mxu0 0
    %5102 = vmatprep.mubr.bf16.mxu0 0
    %5103 = vmatmul.mubr.bf16.gmra.mxu0 %v4986
    %v5104 = vpop.f32.mrf.mxu0
    %v5105 = vadd.f32 0.0, %v5104
    %v5106 = vpop.f32.mrf.mxu0
    %v5107 = vadd.f32 0.0, %v5106
    %v5108 = vpop.f32.mrf.mxu0
    %v5109 = vpop.f32.mrf.mxu0
    %5110 = vdwg.mxu0
    %5111 = vmatprep.subr.bf16.mxu0 0
    %5112 = vmatpush1.bf16.msra.mxu0 0
    %5113 = vmatprep.subr.bf16.mxu0 0
    %5114 = vmatpush1.bf16.msra.mxu0 0
    %5115 = vmatprep.subr.bf16.mxu0 0
    %5116 = vmatpush1.bf16.msra.mxu0 0
    %5117 = vmatprep.subr.bf16.mxu0 0
    %5118 = vmatpush1.bf16.msra.mxu0 0
    %5119 = vmatprep.subr.bf16.mxu0 %v3521
    %5120 = vmatpush1.bf16.msra.mxu0 %v3520
    %5121 = vmatprep.subr.bf16.mxu0 %v3513
    %5122 = vmatpush1.bf16.msra.mxu0 %v3512
    %5123 = vmatprep.subr.bf16.mxu0 %v3505
    %5124 = vmatpush1.bf16.msra.mxu0 %v3504
    %5125 = vmatprep.subr.bf16.mxu0 %v3497
    %5126 = vmatpush1.bf16.msra.mxu0 %v3496
    %5127 = vmatprep.subr.bf16.mxu0 0
    %5128 = vmatpush2.bf16.msra.mxu0 0
    %5129 = vmatprep.subr.bf16.mxu0 0
    %5130 = vmatpush2.bf16.msra.mxu0 0
    %5131 = vmatprep.subr.bf16.mxu0 0
    %5132 = vmatpush2.bf16.msra.mxu0 0
    %5133 = vmatprep.subr.bf16.mxu0 0
    %5134 = vmatpush2.bf16.msra.mxu0 0
    %5135 = vmatprep.subr.bf16.mxu0 0
    %5136 = vmatpush2.bf16.msra.mxu0 0
    %5137 = vmatprep.subr.bf16.mxu0 0
    %5138 = vmatpush2.bf16.msra.mxu0 0
    %5139 = vmatprep.subr.bf16.mxu0 0
    %5140 = vmatpush2.bf16.msra.mxu0 0
    %5141 = vmatprep.subr.bf16.mxu0 0
    %5142 = vmatpush2.bf16.msra.mxu0 0
    %5143 = vmatprep.mubr.bf16.mxu0 0
    %5144 = vmatmul.mubr.bf16.gmra.mxu0 %v4986
    %v5145 = vpop.f32.mrf.mxu0
    %v5146 = vadd.f32 0.0, %v5145
    %v5147 = vpop.f32.mrf.mxu0
    %v5148 = vadd.f32 0.0, %v5147
    %v5149 = vpop.f32.mrf.mxu0
    %v5150 = vpop.f32.mrf.mxu0
    %5151 = vdwg.mxu0
    %v5152 = vld [vmem:[%s1182] sm:$0xff]
    %v5153 = vld [vmem:[%s1182 + $0x8] sm:$0xff]
    %v5154 = vld [vmem:[%s1182 + $0x10] sm:$0xff]
    %v5155 = vld [vmem:[%s1182 + $0x18] sm:$0xff]
    %v5156 = vadd.f32 %v5152, %v5023
    %v5157 = vadd.f32 %v5153, %v5025
    %v5158 = vadd.f32 %v5154, %v5064
    %v5159 = vadd.f32 %v5155, %v5066
    %v5160 = vld [vmem:[%s1171 + $0x20] sm:$0xff]
    %v5161 = vld [vmem:[%s1171 + $0x28] sm:$0xff]
    %v5162 = vld [vmem:[%s1171 + $0x30] sm:$0xff]
    %v5163 = vld [vmem:[%s1171 + $0x38] sm:$0xff]
    %v5164 = vadd.f32 %v5160, %v5105
    %v5165 = vadd.f32 %v5161, %v5107
    %v5166 = vadd.f32 %v5162, %v5146
    %v5167 = vadd.f32 %v5163, %v5148
    %v5168 = vxor.u32 %v5156, 2147483648
    %v5169 = vxor.u32 %v5157, 2147483648
    %v5170 = vxor.u32 %v5158, 2147483648
    %v5171 = vmul.f32 %v5168, 1.442695
    %v5172 = vpow.pop %v5171
    %v5173 = vmul.f32 %v5169, 1.442695
    %v5174 = vpow.pop %v5173
    %v5175 = vmul.f32 %v5170, 1.442695
    %v5176 = vpow.pop %v5175
    %v5177 = vadd.f32 %v5172, 1.0
    %v5178 = vadd.f32 %v5174, 1.0
    %v5179 = vadd.f32 %v5176, 1.0
    %v5180 = vrcp.pop %v5177
    %v5181 = vmul.f32 1.0, %v5180
    %v5182 = vrcp.pop %v5178
    %v5183 = vmul.f32 1.0, %v5182
    %v5184 = vrcp.pop %v5179
    %v5185 = vmul.f32 1.0, %v5184
    %v5186 = vtanh.pop %v5159
    %v5187 = vmul.f32 %v5183, %v4950
    %v5188 = vmul.f32 %v5181, %v5186
    %v5189 = vadd.f32 %v5187, %v5188
    %v5190 = vtanh.pop %v5189
    %v5191 = vmul.f32 %v5185, %v5190
    %v5192 = vxor.u32 %v5164, 2147483648
    %v5193 = vxor.u32 %v5165, 2147483648
    %v5194 = vxor.u32 %v5166, 2147483648
    %v5195 = vmul.f32 %v5192, 1.442695
    %v5196 = vpow.pop %v5195
    %v5197 = vmul.f32 %v5193, 1.442695
    %v5198 = vpow.pop %v5197
    %v5199 = vmul.f32 %v5194, 1.442695
    %v5200 = vpow.pop %v5199
    %v5201 = vadd.f32 %v5196, 1.0
    %v5202 = vadd.f32 %v5198, 1.0
    %v5203 = vadd.f32 %v5200, 1.0
    %v5204 = vrcp.pop %v5201
    %v5205 = vmul.f32 1.0, %v5204
    %v5206 = vrcp.pop %v5202
    %v5207 = vmul.f32 1.0, %v5206
    %v5208 = vrcp.pop %v5203
    %v5209 = vmul.f32 1.0, %v5208
    %v5210 = vtanh.pop %v5167
    %v5211 = vmul.f32 %v5207, %v4974
    %v5212 = vmul.f32 %v5205, %v5210
    %v5213 = vadd.f32 %v5211, %v5212
    %v5214 = vtanh.pop %v5213
    %v5215 = vmul.f32 %v5209, %v5214
    %5216 = vst.msk [vmem:[%s2456] sm:$0xff] %vm992, %v5191
    %5217 = vst.msk [vmem:[%s2458] sm:$0xff] %vm992, %v5215
    %5219 = vrot.lane.b32.xlu0 %v5215, 32
    %v5220 = vpop.permute.xlu0 %5219
    %v5222 = vsel %vm992, %v5191, %v5220
    %v5223 = vpack.c.bf16 %v5222, %v5222
    %v5225 = vsel %vm754, %v5223, 0
    %5227 = vmatprep.subr.bf16.mxu0 0
    %5228 = vmatpush1.bf16.msra.mxu0 0
    %5229 = vmatprep.subr.bf16.mxu0 0
    %5230 = vmatpush1.bf16.msra.mxu0 0
    %5231 = vmatprep.subr.bf16.mxu0 0
    %5232 = vmatpush1.bf16.msra.mxu0 0
    %5233 = vmatprep.subr.bf16.mxu0 0
    %5234 = vmatpush1.bf16.msra.mxu0 0
    %5235 = vmatprep.subr.bf16.mxu0 %v3515
    %5236 = vmatpush1.bf16.msra.mxu0 %v3514
    %5237 = vmatprep.subr.bf16.mxu0 %v3507
    %5238 = vmatpush1.bf16.msra.mxu0 %v3506
    %5239 = vmatprep.subr.bf16.mxu0 %v3499
    %5240 = vmatpush1.bf16.msra.mxu0 %v3498
    %5241 = vmatprep.subr.bf16.mxu0 %v3491
    %5242 = vmatpush1.bf16.msra.mxu0 %v3490
    %5243 = vmatprep.subr.bf16.mxu0 0
    %5244 = vmatpush2.bf16.msra.mxu0 0
    %5245 = vmatprep.subr.bf16.mxu0 0
    %5246 = vmatpush2.bf16.msra.mxu0 0
    %5247 = vmatprep.subr.bf16.mxu0 0
    %5248 = vmatpush2.bf16.msra.mxu0 0
    %5249 = vmatprep.subr.bf16.mxu0 0
    %5250 = vmatpush2.bf16.msra.mxu0 0
    %5251 = vmatprep.subr.bf16.mxu0 0
    %5252 = vmatpush2.bf16.msra.mxu0 0
    %5253 = vmatprep.subr.bf16.mxu0 0
    %5254 = vmatpush2.bf16.msra.mxu0 0
    %5255 = vmatprep.subr.bf16.mxu0 0
    %5256 = vmatpush2.bf16.msra.mxu0 0
    %5257 = vmatprep.subr.bf16.mxu0 0
    %5258 = vmatpush2.bf16.msra.mxu0 0
    %5259 = vmatprep.mubr.bf16.mxu0 0
    %5260 = vmatmul.mubr.bf16.gmra.mxu0 %v5225
    %v5261 = vpop.f32.mrf.mxu0
    %v5262 = vadd.f32 0.0, %v5261
    %v5263 = vpop.f32.mrf.mxu0
    %v5264 = vadd.f32 0.0, %v5263
    %v5265 = vpop.f32.mrf.mxu0
    %v5266 = vpop.f32.mrf.mxu0
    %5267 = vdwg.mxu0
    %5268 = vmatprep.subr.bf16.mxu0 0
    %5269 = vmatpush1.bf16.msra.mxu0 0
    %5270 = vmatprep.subr.bf16.mxu0 0
    %5271 = vmatpush1.bf16.msra.mxu0 0
    %5272 = vmatprep.subr.bf16.mxu0 0
    %5273 = vmatpush1.bf16.msra.mxu0 0
    %5274 = vmatprep.subr.bf16.mxu0 0
    %5275 = vmatpush1.bf16.msra.mxu0 0
    %5276 = vmatprep.subr.bf16.mxu0 %v3517
    %5277 = vmatpush1.bf16.msra.mxu0 %v3516
    %5278 = vmatprep.subr.bf16.mxu0 %v3509
    %5279 = vmatpush1.bf16.msra.mxu0 %v3508
    %5280 = vmatprep.subr.bf16.mxu0 %v3501
    %5281 = vmatpush1.bf16.msra.mxu0 %v3500
    %5282 = vmatprep.subr.bf16.mxu0 %v3493
    %5283 = vmatpush1.bf16.msra.mxu0 %v3492
    %5284 = vmatprep.subr.bf16.mxu0 0
    %5285 = vmatpush2.bf16.msra.mxu0 0
    %5286 = vmatprep.subr.bf16.mxu0 0
    %5287 = vmatpush2.bf16.msra.mxu0 0
    %5288 = vmatprep.subr.bf16.mxu0 0
    %5289 = vmatpush2.bf16.msra.mxu0 0
    %5290 = vmatprep.subr.bf16.mxu0 0
    %5291 = vmatpush2.bf16.msra.mxu0 0
    %5292 = vmatprep.subr.bf16.mxu0 0
    %5293 = vmatpush2.bf16.msra.mxu0 0
    %5294 = vmatprep.subr.bf16.mxu0 0
    %5295 = vmatpush2.bf16.msra.mxu0 0
    %5296 = vmatprep.subr.bf16.mxu0 0
    %5297 = vmatpush2.bf16.msra.mxu0 0
    %5298 = vmatprep.subr.bf16.mxu0 0
    %5299 = vmatpush2.bf16.msra.mxu0 0
    %5300 = vmatprep.mubr.bf16.mxu0 0
    %5301 = vmatmul.mubr.bf16.gmra.mxu0 %v5225
    %v5302 = vpop.f32.mrf.mxu0
    %v5303 = vadd.f32 0.0, %v5302
    %v5304 = vpop.f32.mrf.mxu0
    %v5305 = vadd.f32 0.0, %v5304
    %v5306 = vpop.f32.mrf.mxu0
    %v5307 = vpop.f32.mrf.mxu0
    %5308 = vdwg.mxu0
    %5309 = vmatprep.subr.bf16.mxu0 0
    %5310 = vmatpush1.bf16.msra.mxu0 0
    %5311 = vmatprep.subr.bf16.mxu0 0
    %5312 = vmatpush1.bf16.msra.mxu0 0
    %5313 = vmatprep.subr.bf16.mxu0 0
    %5314 = vmatpush1.bf16.msra.mxu0 0
    %5315 = vmatprep.subr.bf16.mxu0 0
    %5316 = vmatpush1.bf16.msra.mxu0 0
    %5317 = vmatprep.subr.bf16.mxu0 %v3519
    %5318 = vmatpush1.bf16.msra.mxu0 %v3518
    %5319 = vmatprep.subr.bf16.mxu0 %v3511
    %5320 = vmatpush1.bf16.msra.mxu0 %v3510
    %5321 = vmatprep.subr.bf16.mxu0 %v3503
    %5322 = vmatpush1.bf16.msra.mxu0 %v3502
    %5323 = vmatprep.subr.bf16.mxu0 %v3495
    %5324 = vmatpush1.bf16.msra.mxu0 %v3494
    %5325 = vmatprep.subr.bf16.mxu0 0
    %5326 = vmatpush2.bf16.msra.mxu0 0
    %5327 = vmatprep.subr.bf16.mxu0 0
    %5328 = vmatpush2.bf16.msra.mxu0 0
    %5329 = vmatprep.subr.bf16.mxu0 0
    %5330 = vmatpush2.bf16.msra.mxu0 0
    %5331 = vmatprep.subr.bf16.mxu0 0
    %5332 = vmatpush2.bf16.msra.mxu0 0
    %5333 = vmatprep.subr.bf16.mxu0 0
    %5334 = vmatpush2.bf16.msra.mxu0 0
    %5335 = vmatprep.subr.bf16.mxu0 0
    %5336 = vmatpush2.bf16.msra.mxu0 0
    %5337 = vmatprep.subr.bf16.mxu0 0
    %5338 = vmatpush2.bf16.msra.mxu0 0
    %5339 = vmatprep.subr.bf16.mxu0 0
    %5340 = vmatpush2.bf16.msra.mxu0 0
    %5341 = vmatprep.mubr.bf16.mxu0 0
    %5342 = vmatmul.mubr.bf16.gmra.mxu0 %v5225
    %v5343 = vpop.f32.mrf.mxu0
    %v5344 = vadd.f32 0.0, %v5343
    %v5345 = vpop.f32.mrf.mxu0
    %v5346 = vadd.f32 0.0, %v5345
    %v5347 = vpop.f32.mrf.mxu0
    %v5348 = vpop.f32.mrf.mxu0
    %5349 = vdwg.mxu0
    %5350 = vmatprep.subr.bf16.mxu0 0
    %5351 = vmatpush1.bf16.msra.mxu0 0
    %5352 = vmatprep.subr.bf16.mxu0 0
    %5353 = vmatpush1.bf16.msra.mxu0 0
    %5354 = vmatprep.subr.bf16.mxu0 0
    %5355 = vmatpush1.bf16.msra.mxu0 0
    %5356 = vmatprep.subr.bf16.mxu0 0
    %5357 = vmatpush1.bf16.msra.mxu0 0
    %5358 = vmatprep.subr.bf16.mxu0 %v3521
    %5359 = vmatpush1.bf16.msra.mxu0 %v3520
    %5360 = vmatprep.subr.bf16.mxu0 %v3513
    %5361 = vmatpush1.bf16.msra.mxu0 %v3512
    %5362 = vmatprep.subr.bf16.mxu0 %v3505
    %5363 = vmatpush1.bf16.msra.mxu0 %v3504
    %5364 = vmatprep.subr.bf16.mxu0 %v3497
    %5365 = vmatpush1.bf16.msra.mxu0 %v3496
    %5366 = vmatprep.subr.bf16.mxu0 0
    %5367 = vmatpush2.bf16.msra.mxu0 0
    %5368 = vmatprep.subr.bf16.mxu0 0
    %5369 = vmatpush2.bf16.msra.mxu0 0
    %5370 = vmatprep.subr.bf16.mxu0 0
    %5371 = vmatpush2.bf16.msra.mxu0 0
    %5372 = vmatprep.subr.bf16.mxu0 0
    %5373 = vmatpush2.bf16.msra.mxu0 0
    %5374 = vmatprep.subr.bf16.mxu0 0
    %5375 = vmatpush2.bf16.msra.mxu0 0
    %5376 = vmatprep.subr.bf16.mxu0 0
    %5377 = vmatpush2.bf16.msra.mxu0 0
    %5378 = vmatprep.subr.bf16.mxu0 0
    %5379 = vmatpush2.bf16.msra.mxu0 0
    %5380 = vmatprep.subr.bf16.mxu0 0
    %5381 = vmatpush2.bf16.msra.mxu0 0
    %5382 = vmatprep.mubr.bf16.mxu0 0
    %5383 = vmatmul.mubr.bf16.gmra.mxu0 %v5225
    %v5384 = vpop.f32.mrf.mxu0
    %v5385 = vadd.f32 0.0, %v5384
    %v5386 = vpop.f32.mrf.mxu0
    %v5387 = vadd.f32 0.0, %v5386
    %v5388 = vpop.f32.mrf.mxu0
    %v5389 = vpop.f32.mrf.mxu0
    %5390 = vdwg.mxu0
    %v5391 = vld [vmem:[%s935] sm:$0xff]
    %v5392 = vld [vmem:[%s935 + $0x8] sm:$0xff]
    %v5393 = vld [vmem:[%s935 + $0x10] sm:$0xff]
    %v5394 = vld [vmem:[%s935 + $0x18] sm:$0xff]
    %v5395 = vadd.f32 %v5391, %v5262
    %v5396 = vadd.f32 %v5392, %v5264
    %v5397 = vadd.f32 %v5393, %v5303
    %v5398 = vadd.f32 %v5394, %v5305
    %v5399 = vld [vmem:[%s924 + $0x20] sm:$0xff]
    %v5400 = vld [vmem:[%s924 + $0x28] sm:$0xff]
    %v5401 = vld [vmem:[%s924 + $0x30] sm:$0xff]
    %v5402 = vld [vmem:[%s924 + $0x38] sm:$0xff]
    %v5403 = vadd.f32 %v5399, %v5344
    %v5404 = vadd.f32 %v5400, %v5346
    %v5405 = vadd.f32 %v5401, %v5385
    %v5406 = vadd.f32 %v5402, %v5387
    %v5407 = vxor.u32 %v5395, 2147483648
    %v5408 = vxor.u32 %v5396, 2147483648
    %v5409 = vxor.u32 %v5397, 2147483648
    %v5410 = vmul.f32 %v5407, 1.442695
    %v5411 = vpow.pop %v5410
    %v5412 = vmul.f32 %v5408, 1.442695
    %v5413 = vpow.pop %v5412
    %v5414 = vmul.f32 %v5409, 1.442695
    %v5415 = vpow.pop %v5414
    %v5416 = vadd.f32 %v5411, 1.0
    %v5417 = vadd.f32 %v5413, 1.0
    %v5418 = vadd.f32 %v5415, 1.0
    %v5419 = vrcp.pop %v5416
    %v5420 = vmul.f32 1.0, %v5419
    %v5421 = vrcp.pop %v5417
    %v5422 = vmul.f32 1.0, %v5421
    %v5423 = vrcp.pop %v5418
    %v5424 = vmul.f32 1.0, %v5423
    %v5425 = vtanh.pop %v5398
    %v5426 = vmul.f32 %v5422, %v5189
    %v5427 = vmul.f32 %v5420, %v5425
    %v5428 = vadd.f32 %v5426, %v5427
    %v5429 = vtanh.pop %v5428
    %v5430 = vmul.f32 %v5424, %v5429
    %v5431 = vxor.u32 %v5403, 2147483648
    %v5432 = vxor.u32 %v5404, 2147483648
    %v5433 = vxor.u32 %v5405, 2147483648
    %v5434 = vmul.f32 %v5431, 1.442695
    %v5435 = vpow.pop %v5434
    %v5436 = vmul.f32 %v5432, 1.442695
    %v5437 = vpow.pop %v5436
    %v5438 = vmul.f32 %v5433, 1.442695
    %v5439 = vpow.pop %v5438
    %v5440 = vadd.f32 %v5435, 1.0
    %v5441 = vadd.f32 %v5437, 1.0
    %v5442 = vadd.f32 %v5439, 1.0
    %v5443 = vrcp.pop %v5440
    %v5444 = vmul.f32 1.0, %v5443
    %v5445 = vrcp.pop %v5441
    %v5446 = vmul.f32 1.0, %v5445
    %v5447 = vrcp.pop %v5442
    %v5448 = vmul.f32 1.0, %v5447
    %v5449 = vtanh.pop %v5406
    %v5450 = vmul.f32 %v5446, %v5213
    %v5451 = vmul.f32 %v5444, %v5449
    %v5452 = vadd.f32 %v5450, %v5451
    %v5453 = vtanh.pop %v5452
    %v5454 = vmul.f32 %v5448, %v5453
    %5455 = vst.msk [vmem:[%s2697] sm:$0xff] %vm992, %v5430
    %5456 = vst.msk [vmem:[#allocation4] sm:$0xff] %vm992, %v5454
    %v5457 = vld [vmem:[#allocation3 + $0x38] sm:$0xff]
    %v5458 = vld [vmem:[#allocation4 + $0x38] sm:$0xff]
    %5460 = vrot.lane.b32.xlu0 %v5458, 32
    %v5461 = vpop.permute.xlu0 %5460
    %v5463 = vsel %vm992, %v5457, %v5461
    %v5464 = vld [vmem:[%s7] sm:$0xff]
    %v5465 = vld [vmem:[%s7 + $0x8] sm:$0xff]
    %v5466 = vld [vmem:[%s7 + $0x10] sm:$0xff]
    %v5467 = vld [vmem:[%s7 + $0x18] sm:$0xff]
    %v5468 = vld [vmem:[%s7 + $0x20] sm:$0xff]
    %v5469 = vld [vmem:[%s7 + $0x28] sm:$0xff]
    %v5470 = vld [vmem:[%s7 + $0x30] sm:$0xff]
    %v5471 = vld [vmem:[%s7 + $0x38] sm:$0xff]
    %v5472 = vld [vmem:[%s8] sm:$0x1]
    %v5474 = vlaneseq
    %v5475 = vshrl.u32 %v5474, 7
    %v5476 = vsub.s32 0, %v5475
    %v5477 = vrot.slane %v5472, %v5476
    %v5480 = vsel %vm754, %v5463, 0
    %5482 = vmatprep.subr.mxu0 0.0
    %5483 = vmatpush1.msra.mxu0 0.0
    %5484 = vmatprep.subr.mxu0 0.0
    %5485 = vmatpush1.msra.mxu0 0.0
    %5486 = vmatprep.subr.mxu0 0.0
    %5487 = vmatpush1.msra.mxu0 0.0
    %5488 = vmatprep.subr.mxu0 0.0
    %5489 = vmatpush1.msra.mxu0 0.0
    %5490 = vmatprep.subr.mxu0 0.0
    %5491 = vmatpush1.msra.mxu0 0.0
    %5492 = vmatprep.subr.mxu0 0.0
    %5493 = vmatpush1.msra.mxu0 0.0
    %5494 = vmatprep.subr.mxu0 0.0
    %5495 = vmatpush1.msra.mxu0 0.0
    %5496 = vmatprep.subr.mxu0 0.0
    %5497 = vmatpush1.msra.mxu0 0.0
    %5498 = vmatprep.subr.mxu0 0.0
    %5499 = vmatpush1.msra.mxu0 %v5471
    %5500 = vmatprep.subr.mxu0 0.0
    %5501 = vmatpush1.msra.mxu0 %v5470
    %5502 = vmatprep.subr.mxu0 0.0
    %5503 = vmatpush1.msra.mxu0 %v5469
    %5504 = vmatprep.subr.mxu0 0.0
    %5505 = vmatpush1.msra.mxu0 %v5468
    %5506 = vmatprep.subr.mxu0 0.0
    %5507 = vmatpush1.msra.mxu0 %v5467
    %5508 = vmatprep.subr.mxu0 0.0
    %5509 = vmatpush1.msra.mxu0 %v5466
    %5510 = vmatprep.subr.mxu0 0.0
    %5511 = vmatpush1.msra.mxu0 %v5465
    %5512 = vmatprep.subr.mxu0 0.0
    %5513 = vmatpush1.msra.mxu0 %v5464
    %5514 = vmatprep.subr.mxu0 0.0
    %5515 = vmatpush2.msra.mxu0 0.0
    %5516 = vmatprep.subr.mxu0 0.0
    %5517 = vmatpush2.msra.mxu0 0.0
    %5518 = vmatprep.subr.mxu0 0.0
    %5519 = vmatpush2.msra.mxu0 0.0
    %5520 = vmatprep.subr.mxu0 0.0
    %5521 = vmatpush2.msra.mxu0 0.0
    %5522 = vmatprep.subr.mxu0 0.0
    %5523 = vmatpush2.msra.mxu0 0.0
    %5524 = vmatprep.subr.mxu0 0.0
    %5525 = vmatpush2.msra.mxu0 0.0
    %5526 = vmatprep.subr.mxu0 0.0
    %5527 = vmatpush2.msra.mxu0 0.0
    %5528 = vmatprep.subr.mxu0 0.0
    %5529 = vmatpush2.msra.mxu0 0.0
    %5530 = vmatprep.subr.mxu0 0.0
    %5531 = vmatpush2.msra.mxu0 0.0
    %5532 = vmatprep.subr.mxu0 0.0
    %5533 = vmatpush2.msra.mxu0 0.0
    %5534 = vmatprep.subr.mxu0 0.0
    %5535 = vmatpush2.msra.mxu0 0.0
    %5536 = vmatprep.subr.mxu0 0.0
    %5537 = vmatpush2.msra.mxu0 0.0
    %5538 = vmatprep.subr.mxu0 0.0
    %5539 = vmatpush2.msra.mxu0 0.0
    %5540 = vmatprep.subr.mxu0 0.0
    %5541 = vmatpush2.msra.mxu0 0.0
    %5542 = vmatprep.subr.mxu0 0.0
    %5543 = vmatpush2.msra.mxu0 0.0
    %5544 = vmatprep.subr.mxu0 0.0
    %5545 = vmatpush2.msra.mxu0 0.0
    %5546 = vmatprep.mubr.f32.mxu0 0.0
    %5547 = vmatmul.mubr.f32.gmra.mxu0 %v5480
    %v5548 = vpop.f32.mrf.mxu0
    %v5549 = vadd.f32 %v5477, %v5548
    %v5550 = vpop.f32.mrf.mxu0
    %5551 = vdwg.mxu0
    %vm5552 = vcmask 39936
    %5553 = vst.msk [vmem:[%s9] sm:$0xff] %vm5552, %v5549
    // Predicated region
    $region50: #{bilstm_forward.1} parent=1 // pred_check
      _
    $region51: #{bilstm_forward.1} parent=1 // pred_check_branch
      %5555 = sbr.rel (0) target = $region53
    $region52: #{bilstm_forward.1} parent=1 // pred_region
      _
    $region53: #{bilstm_forward.1} parent=1 // pred_fallthru
      _
    // Predicated region
    $region54: #{bilstm_forward.1} parent=1 // pred_check
      _
    $region55: #{bilstm_forward.1} parent=1 // pred_check_branch
      %5557 = sbr.rel (0) target = $region57
    $region56: #{bilstm_forward.1} parent=1 // pred_region
      _
    $region57: #{bilstm_forward.1} parent=1 // pred_fallthru
      _
    %5558 = vsyncpa [#allocation6], 1
    %5559 = vsyncpa [#allocation8], 1

</llo_original>
